<compile_context>
chip_gen: v5e
topology: v5e:2x2
jax: 0.10.0
libtpu: 0.0.40
codegen_flags: <defaults>
</compile_context>

<pallas_src>
import math

import jax
import jax.numpy as jnp
from jax import lax
from jax.experimental import pallas as pl
from jax.experimental.pallas import tpu as pltpu

_VMEM = pl.BlockSpec(memory_space=pltpu.MemorySpace.VMEM)
_SMEM = pl.BlockSpec(memory_space=pltpu.MemorySpace.SMEM)
_ANY = pl.BlockSpec(memory_space=pl.ANY)


# ----------------------------------------------------------------------------
# Fused forward kernel (single block; all intermediates stay in VMEM).
# ----------------------------------------------------------------------------
def _sdgcn_fused_kernel(
    # SMEM scalars: [a, b, eps1, eps2, bias_A, bias_B]
    scal_ref,
    # small VMEM inputs
    x_ref,          # (N, K)   bf16
    adj_ref,        # (N, N)   f32
    sel_ref,        # (2E, N)  bf16 one-hot [left ; right]
    wA_ref,         # (K, 1)   bf16 folded fc1 head
    wB_ref,         # (1, K)   bf16 folded fc2 head (row form)
    gc1_b_ref, gc2_b_ref, fea_b_ref, gnn_b_ref, fc_b_ref,   # (1, *) f32
    # big weights left in HBM (pl.ANY) -> manual async copies
    gc1_w_hbm, gc2_w_hbm, fea_wl_hbm, fea_wr_hbm, gnn_w_hbm, fc_w_hbm,
    # output
    o_ref,          # (E, 128) f32
    # scratch: VMEM staging buffers + DMA semaphores
    gc1_w_v, gc2_w_v, fea_wl_v, fea_wr_v, gnn_w_v, fc_w_v, sems,
):
    f32, bf16 = jnp.float32, jnp.bfloat16
    n = adj_ref.shape[0]
    e = o_ref.shape[0]

    # ---- kick off all big-weight DMAs; wait only just before first use -----
    cp_gc1 = pltpu.make_async_copy(gc1_w_hbm, gc1_w_v, sems.at[0])
    cp_gc2 = pltpu.make_async_copy(gc2_w_hbm, gc2_w_v, sems.at[1])
    cp_fel = pltpu.make_async_copy(fea_wl_hbm, fea_wl_v, sems.at[2])
    cp_fer = pltpu.make_async_copy(fea_wr_hbm, fea_wr_v, sems.at[3])
    cp_gnn = pltpu.make_async_copy(gnn_w_hbm, gnn_w_v, sems.at[4])
    cp_fc = pltpu.make_async_copy(fc_w_hbm, fc_w_v, sems.at[5])
    cp_gc1.start(); cp_gc2.start(); cp_fel.start()
    cp_fer.start(); cp_gnn.start(); cp_fc.start()

    a_mix, b_mix = scal_ref[0], scal_ref[1]
    eps1, eps2 = scal_ref[2], scal_ref[3]
    bias_a, bias_b = scal_ref[4], scal_ref[5]

    x_bf = x_ref[...]                      # (N, K) bf16
    sel = sel_ref[...]                     # (2E, N) bf16

    # ---- folded fc1 / fc2 heads -> attr matrix (overlaps the weight DMA) ----
    # A = fc1(x) as a column; B^T = fc2(x) as a row via a transposed-RHS (NT)
    # contraction so no in-kernel transpose is needed.
    a_col = jnp.dot(x_bf, wA_ref[...], preferred_element_type=f32) + bias_a    # (N,1)
    b_row = lax.dot_general(
        wB_ref[...], x_bf,
        dimension_numbers=(((1,), (1,)), ((), ())),
        preferred_element_type=f32) + bias_b                                    # (1,N)
    attr = jax.nn.sigmoid(a_col + b_row)                                        # (N,N) f32

    # ---- adjacency mixing + per-GCN-layer diagonal replacement --------------
    # reference: off-diag -> adj_mix, diag -> eps * diag(adj_mix)
    adj_mix = a_mix * adj_ref[...] + b_mix * attr
    row_i = lax.broadcasted_iota(jnp.int32, (n, n), 0)
    col_i = lax.broadcasted_iota(jnp.int32, (n, n), 1)
    is_diag = row_i == col_i
    adj1_bf = jnp.where(is_diag, eps1 * adj_mix, adj_mix).astype(bf16)
    adj2_bf = jnp.where(is_diag, eps2 * adj_mix, adj_mix).astype(bf16)

    # ---- edge-endpoint gather of x (one-hot matmul, bf16 operands) ----------
    xg = jnp.dot(sel, x_bf, preferred_element_type=f32)                         # (2E,K)
    x_l = xg[:e].astype(bf16)
    x_r = xg[e:].astype(bf16)

    # ---- GCN layer 1 ---------------------------------------------------------
    cp_gc1.wait()
    support1 = jnp.dot(x_bf, gc1_w_v[...], preferred_element_type=f32)          # (N,H)
    x1 = jnp.maximum(
        jnp.dot(adj1_bf, support1.astype(bf16), preferred_element_type=f32)
        + gc1_b_ref[...], 0.0)                                                   # (N,H)
    # TODO(synk): training-mode F.dropout(x1, p) not implemented (inference only).

    # ---- GCN layer 2 ---------------------------------------------------------
    cp_gc2.wait()
    support2 = jnp.dot(x1.astype(bf16), gc2_w_v[...], preferred_element_type=f32)
    x2 = (jnp.dot(adj2_bf, support2.astype(bf16), preferred_element_type=f32)
          + gc2_b_ref[...])                                                      # (N,O)

    # ---- fea_fc: cat([x[l], x[r]],1) @ W == x[l] @ W_top + x[r] @ W_bot ------
    cp_fel.wait()
    cp_fer.wait()
    emb_fea = jnp.maximum(
        jnp.dot(x_l, fea_wl_v[...], preferred_element_type=f32)
        + jnp.dot(x_r, fea_wr_v[...], preferred_element_type=f32)
        + fea_b_ref[...], 0.0)                                                   # (E,256)

    # ---- gnn_fc: gather cat([x1,x2],1), one unsplit (1536,256) matmul --------
    x12 = jnp.concatenate([x1.astype(bf16), x2.astype(bf16)], axis=1)            # (N,H+O)
    xg12 = jnp.dot(sel, x12, preferred_element_type=f32)                         # (2E,H+O)
    gnn_in = jnp.concatenate([xg12[:e], xg12[e:]], axis=1).astype(bf16)          # (E,2(H+O))
    cp_gnn.wait()
    emb_gnn = jnp.maximum(
        jnp.dot(gnn_in, gnn_w_v[...], preferred_element_type=f32)
        + gnn_b_ref[...], 0.0)                                                   # (E,256)

    # ---- final fc: unsplit (512,128) on the lane-concatenated embedding ------
    emb = jnp.concatenate([emb_fea, emb_gnn], axis=1).astype(bf16)               # (E,512)
    cp_fc.wait()
    o_ref[...] = jnp.maximum(
        jnp.dot(emb, fc_w_v[...], preferred_element_type=f32) + fc_b_ref[...], 0.0)


# ----------------------------------------------------------------------------
# Wrapper
# ----------------------------------------------------------------------------
def sdgcn_forward(prepped, left, right, adj, x):
    """Fused SDGCN forward (inference). `prepped` from prepare_inference_params."""
    n, k = x.shape
    e = left.shape[0]
    h = prepped["gc1_w"].shape[1]
    o = prepped["gc2_w"].shape[1]

    # Precompute the (2E, N) one-hot selection [left-rows ; right-rows] in bf16
    # so the in-kernel gathers are single bf16 MXU matmuls.
    idx = jnp.concatenate([left, right]).astype(jnp.int32)
    sel = (idx[:, None] == jnp.arange(n, dtype=jnp.int32)[None, :]).astype(jnp.bfloat16)
    x_bf = x.astype(jnp.bfloat16)
    adj_f32 = adj.astype(jnp.float32)

    args = (
        prepped["scal"],
        x_bf, adj_f32, sel,
        prepped["wA"], prepped["wB"],
        prepped["gc1_b"], prepped["gc2_b"], prepped["fea_b"],
        prepped["gnn_b"], prepped["fc_b"],
        prepped["gc1_w"], prepped["gc2_w"],
        prepped["fea_wl"], prepped["fea_wr"],
        prepped["gnn_w"], prepped["fc_w"],
    )
    in_specs = [_SMEM] + [_VMEM] * 10 + [_ANY] * 6

    bf16 = jnp.bfloat16
    scratch_shapes = [
        pltpu.VMEM(prepped["gc1_w"].shape, bf16),
        pltpu.VMEM(prepped["gc2_w"].shape, bf16),
        pltpu.VMEM(prepped["fea_wl"].shape, bf16),
        pltpu.VMEM(prepped["fea_wr"].shape, bf16),
        pltpu.VMEM(prepped["gnn_w"].shape, bf16),
        pltpu.VMEM(prepped["fc_w"].shape, bf16),
        pltpu.SemaphoreType.DMA((6,)),
    ]

    flops = 2 * (
        2 * n * k                                  # folded heads
        + n * k * h + n * n * h                    # gc1
        + n * h * o + n * n * o                    # gc2
        + 2 * e * n * k + 2 * e * n * (h + o)      # one-hot gathers
        + 2 * e * k * 256                          # fea_fc (split)
        + e * 2 * (h + o) * 256                    # gnn_fc
        + e * 512 * 128                            # final fc
    )
    bytes_accessed = int(sum(a.size * a.dtype.itemsize for a in args) + e * 128 * 4)

    # TODO(synk): on v7x (2 TensorCores/chip) split the weight stream ~evenly
    # across cores (or shard a batch grid axis) for ~1.7-1.9x; single-core
    # fused kernel kept here for portability across v5e / v6e / v7x.
    return pl.pallas_call(
        _sdgcn_fused_kernel,
        out_shape=jax.ShapeDtypeStruct((e, 128), jnp.float32),
        in_specs=in_specs,
        out_specs=_VMEM,
        scratch_shapes=scratch_shapes,
        compiler_params=pltpu.CompilerParams(vmem_limit_bytes=32 * 1024 * 1024),
        cost_estimate=pl.CostEstimate(
            flops=flops, transcendentals=n * n, bytes_accessed=bytes_accessed),
    )(*args)


# ----------------------------------------------------------------------------
# Parameter initialization (deterministic, mirrors the module's __init__)
# ----------------------------------------------------------------------------
def _xavier_normal(key, shape, gain=1.0):
    fan_in, fan_out = shape
    std = gain * math.sqrt(2.0 / (fan_in + fan_out))
    return std * jax.random.normal(key, shape, jnp.float32)


def _uniform(key, shape, bound):
    return jax.random.uniform(key, shape, jnp.float32, -bound, bound)


def init_params(key, in_feat, hidden_feat, out_feat):
    ks = jax.random.split(key, 16)
    relu_gain = math.sqrt(2.0)
    p = {}

    # GCN layers: weight/bias uniform(+-0.95/sqrt(out)), eps = 0.21
    s1 = 0.95 / math.sqrt(hidden_feat)
    p["gc1_w"] = _uniform(ks[0], (in_feat, hidden_feat), s1)
    p["gc1_b"] = _uniform(ks[1], (hidden_feat,), s1)
    p["gc1_eps"] = jnp.full((1,), 0.21, jnp.float32)
    s2 = 0.95 / math.sqrt(out_feat)
    p["gc2_w"] = _uniform(ks[2], (hidden_feat, out_feat), s2)
    p["gc2_b"] = _uniform(ks[3], (out_feat,), s2)
    p["gc2_eps"] = jnp.full((1,), 0.21, jnp.float32)

    # fc1 / fc2 heads: Linear(1134,128)->Linear(128,16)->Linear(16,1), xavier gain=1
    def head(kbase):
        kk = jax.random.split(kbase, 6)
        return (
            _xavier_normal(kk[0], (in_feat, 128)), _uniform(kk[1], (128,), 1.0 / math.sqrt(in_feat)),
            _xavier_normal(kk[2], (128, 16)),      _uniform(kk[3], (16,), 1.0 / math.sqrt(128)),
            _xavier_normal(kk[4], (16, 1)),        _uniform(kk[5], (1,), 1.0 / math.sqrt(16)),
        )

    p["fc1"] = head(ks[4])
    p["fc2"] = head(ks[5])

    # fea_fc: Linear(2*in_feat, 256) + ReLU
    p["fea_fc_w"] = _xavier_normal(ks[6], (2 * in_feat, 256), relu_gain)
    p["fea_fc_b"] = _uniform(ks[7], (256,), 1.0 / math.sqrt(2 * in_feat))

    # gnn_fc: Linear(2*(hidden+out), 256) + ReLU
    gin = 2 * (hidden_feat + out_feat)
    p["gnn_fc_w"] = _xavier_normal(ks[8], (gin, 256), relu_gain)
    p["gnn_fc_b"] = _uniform(ks[9], (256,), 1.0 / math.sqrt(gin))

    # fc: Linear(512, 128) + ReLU
    p["fc_w"] = _xavier_normal(ks[10], (512, 128), relu_gain)
    p["fc_b"] = _uniform(ks[11], (128,), 1.0 / math.sqrt(512))

    # a, b scalars ~ randn(1)
    p["a"] = jax.random.normal(ks[12], (1,), jnp.float32)
    p["b"] = jax.random.normal(ks[13], (1,), jnp.float32)
    return p


def prepare_inference_params(p):
    """Fold the activation-free heads, split fea_fc weight, cast to bf16."""
    f32, bf16 = jnp.float32, jnp.bfloat16

    def fold_head(head):
        # Linear -> (Dropout=id) -> Linear -> (Dropout=id) -> Linear: exact fold.
        w1, b1, w2, b2, w3, b3 = head
        w = w1 @ w2 @ w3                              # (in, 1)
        b = b1 @ w2 @ w3 + b2 @ w3 + b3               # (1,)
        return w, b

    wA, bA = fold_head(p["fc1"])
    wB, bB = fold_head(p["fc2"])
    in_feat = wA.shape[0]

    scal = jnp.concatenate(
        [p["a"], p["b"], p["gc1_eps"], p["gc2_eps"], bA, bB]).astype(f32)   # (6,)

    fea_w = p["fea_fc_w"]
    return {
        "scal": scal,
        "wA": wA.astype(bf16),                       # (in_feat, 1)
        "wB": wB.T.astype(bf16),                     # (1, in_feat)
        "gc1_w": p["gc1_w"].astype(bf16),
        "gc1_b": p["gc1_b"].reshape(1, -1).astype(f32),
        "gc2_w": p["gc2_w"].astype(bf16),
        "gc2_b": p["gc2_b"].reshape(1, -1).astype(f32),
        "fea_wl": fea_w[:in_feat].astype(bf16),
        "fea_wr": fea_w[in_feat:].astype(bf16),
        "fea_b": p["fea_fc_b"].reshape(1, -1).astype(f32),
        "gnn_w": p["gnn_fc_w"].astype(bf16),         # unsplit (1536, 256)
        "gnn_b": p["gnn_fc_b"].reshape(1, -1).astype(f32),
        "fc_w": p["fc_w"].astype(bf16),              # unsplit (512, 128)
        "fc_b": p["fc_b"].reshape(1, -1).astype(f32),
    }


if __name__ == "__main__":
    # Feature dims fixed by the module's hard-coded Linear sizes:
    #   fc1/fc2 take 1134 -> in_feat = 1134
    #   gnn_fc takes 1536 -> hidden_feat + out_feat = 768
    IN_FEAT, HIDDEN_FEAT, OUT_FEAT = 1134, 512, 256
    N_NODES, N_EDGES = 16, 8

    key = jax.random.PRNGKey(0)
    k_par, k_x, k_adj, k_l, k_r = jax.random.split(key, 5)

    params = init_params(k_par, IN_FEAT, HIDDEN_FEAT, OUT_FEAT)
    prepped = prepare_inference_params(params)

    x = jax.random.normal(k_x, (N_NODES, IN_FEAT), jnp.float32)
    adj = jax.random.uniform(k_adj, (N_NODES, N_NODES), jnp.float32)
    left = jax.random.randint(k_l, (N_EDGES,), 0, N_NODES)
    right = jax.random.randint(k_r, (N_EDGES,), 0, N_NODES)

    fwd = jax.jit(sdgcn_forward)
    out = fwd(prepped, left, right, adj, x)
    out = jax.block_until_ready(out)
    assert out.shape == (N_EDGES, 128)
    assert bool(jnp.all(jnp.isfinite(out)))
    print("KERNEL_OK")
</pallas_src>

<mosaic_0001>
module attributes {stable_mosaic.version = 11 : i64} {
  func.func @_sdgcn_fused_kernel(%arg0: memref<6xf32, #tpu.memory_space<smem>>, %arg1: memref<16x1134xbf16, #tpu.memory_space<vmem>>, %arg2: memref<16x16xf32, #tpu.memory_space<vmem>>, %arg3: memref<16x16xbf16, #tpu.memory_space<vmem>>, %arg4: memref<1134x1xbf16, #tpu.memory_space<vmem>>, %arg5: memref<1x1134xbf16, #tpu.memory_space<vmem>>, %arg6: memref<1x512xf32, #tpu.memory_space<vmem>>, %arg7: memref<1x256xf32, #tpu.memory_space<vmem>>, %arg8: memref<1x256xf32, #tpu.memory_space<vmem>>, %arg9: memref<1x256xf32, #tpu.memory_space<vmem>>, %arg10: memref<1x128xf32, #tpu.memory_space<vmem>>, %arg11: memref<1134x512xbf16, #tpu.memory_space<any>>, %arg12: memref<512x256xbf16, #tpu.memory_space<any>>, %arg13: memref<1134x256xbf16, #tpu.memory_space<any>>, %arg14: memref<1134x256xbf16, #tpu.memory_space<any>>, %arg15: memref<1536x256xbf16, #tpu.memory_space<any>>, %arg16: memref<512x128xbf16, #tpu.memory_space<any>>, %arg17: memref<8x128xf32, #tpu.memory_space<vmem>>, %arg18: memref<1134x512xbf16, #tpu.memory_space<vmem>>, %arg19: memref<512x256xbf16, #tpu.memory_space<vmem>>, %arg20: memref<1134x256xbf16, #tpu.memory_space<vmem>>, %arg21: memref<1134x256xbf16, #tpu.memory_space<vmem>>, %arg22: memref<1536x256xbf16, #tpu.memory_space<vmem>>, %arg23: memref<512x128xbf16, #tpu.memory_space<vmem>>, %arg24: memref<6x!tpu.dma_semaphore, #tpu.memory_space<semaphore_mem>>) attributes {dimension_semantics = [], scalar_prefetch = 0 : i64, scratch_operands = 7 : i64, tpu.core_type = #tpu.core_type<tc>} {
    %c0_i32 = arith.constant 0 : i32
    %0 = tpu.memref_slice %arg24[%c0_i32] : memref<6x!tpu.dma_semaphore, #tpu.memory_space<semaphore_mem>> -> memref<1x!tpu.dma_semaphore, #tpu.memory_space<semaphore_mem>>
    %1 = tpu.memref_squeeze %0 : memref<1x!tpu.dma_semaphore, #tpu.memory_space<semaphore_mem>> -> memref<!tpu.dma_semaphore, #tpu.memory_space<semaphore_mem>>
    tpu.enqueue_dma source(%arg11 : memref<1134x512xbf16, #tpu.memory_space<any>>) target(%arg18 : memref<1134x512xbf16, #tpu.memory_space<vmem>>) target_semaphore(%1 : memref<!tpu.dma_semaphore, #tpu.memory_space<semaphore_mem>>)
    %c1_i32 = arith.constant 1 : i32
    %2 = tpu.memref_slice %arg24[%c1_i32] : memref<6x!tpu.dma_semaphore, #tpu.memory_space<semaphore_mem>> -> memref<1x!tpu.dma_semaphore, #tpu.memory_space<semaphore_mem>>
    %3 = tpu.memref_squeeze %2 : memref<1x!tpu.dma_semaphore, #tpu.memory_space<semaphore_mem>> -> memref<!tpu.dma_semaphore, #tpu.memory_space<semaphore_mem>>
    tpu.enqueue_dma source(%arg12 : memref<512x256xbf16, #tpu.memory_space<any>>) target(%arg19 : memref<512x256xbf16, #tpu.memory_space<vmem>>) target_semaphore(%3 : memref<!tpu.dma_semaphore, #tpu.memory_space<semaphore_mem>>)
    %c2_i32 = arith.constant 2 : i32
    %4 = tpu.memref_slice %arg24[%c2_i32] : memref<6x!tpu.dma_semaphore, #tpu.memory_space<semaphore_mem>> -> memref<1x!tpu.dma_semaphore, #tpu.memory_space<semaphore_mem>>
    %5 = tpu.memref_squeeze %4 : memref<1x!tpu.dma_semaphore, #tpu.memory_space<semaphore_mem>> -> memref<!tpu.dma_semaphore, #tpu.memory_space<semaphore_mem>>
    tpu.enqueue_dma source(%arg13 : memref<1134x256xbf16, #tpu.memory_space<any>>) target(%arg20 : memref<1134x256xbf16, #tpu.memory_space<vmem>>) target_semaphore(%5 : memref<!tpu.dma_semaphore, #tpu.memory_space<semaphore_mem>>)
    %c3_i32 = arith.constant 3 : i32
    %6 = tpu.memref_slice %arg24[%c3_i32] : memref<6x!tpu.dma_semaphore, #tpu.memory_space<semaphore_mem>> -> memref<1x!tpu.dma_semaphore, #tpu.memory_space<semaphore_mem>>
    %7 = tpu.memref_squeeze %6 : memref<1x!tpu.dma_semaphore, #tpu.memory_space<semaphore_mem>> -> memref<!tpu.dma_semaphore, #tpu.memory_space<semaphore_mem>>
    tpu.enqueue_dma source(%arg14 : memref<1134x256xbf16, #tpu.memory_space<any>>) target(%arg21 : memref<1134x256xbf16, #tpu.memory_space<vmem>>) target_semaphore(%7 : memref<!tpu.dma_semaphore, #tpu.memory_space<semaphore_mem>>)
    %c4_i32 = arith.constant 4 : i32
    %8 = tpu.memref_slice %arg24[%c4_i32] : memref<6x!tpu.dma_semaphore, #tpu.memory_space<semaphore_mem>> -> memref<1x!tpu.dma_semaphore, #tpu.memory_space<semaphore_mem>>
    %9 = tpu.memref_squeeze %8 : memref<1x!tpu.dma_semaphore, #tpu.memory_space<semaphore_mem>> -> memref<!tpu.dma_semaphore, #tpu.memory_space<semaphore_mem>>
    tpu.enqueue_dma source(%arg15 : memref<1536x256xbf16, #tpu.memory_space<any>>) target(%arg22 : memref<1536x256xbf16, #tpu.memory_space<vmem>>) target_semaphore(%9 : memref<!tpu.dma_semaphore, #tpu.memory_space<semaphore_mem>>)
    %c5_i32 = arith.constant 5 : i32
    %10 = tpu.memref_slice %arg24[%c5_i32] : memref<6x!tpu.dma_semaphore, #tpu.memory_space<semaphore_mem>> -> memref<1x!tpu.dma_semaphore, #tpu.memory_space<semaphore_mem>>
    %11 = tpu.memref_squeeze %10 : memref<1x!tpu.dma_semaphore, #tpu.memory_space<semaphore_mem>> -> memref<!tpu.dma_semaphore, #tpu.memory_space<semaphore_mem>>
    tpu.enqueue_dma source(%arg16 : memref<512x128xbf16, #tpu.memory_space<any>>) target(%arg23 : memref<512x128xbf16, #tpu.memory_space<vmem>>) target_semaphore(%11 : memref<!tpu.dma_semaphore, #tpu.memory_space<semaphore_mem>>)
    %c0 = arith.constant 0 : index
    %12 = memref.load %arg0[%c0] : memref<6xf32, #tpu.memory_space<smem>>
    %c1 = arith.constant 1 : index
    %13 = memref.load %arg0[%c1] : memref<6xf32, #tpu.memory_space<smem>>
    %c2 = arith.constant 2 : index
    %14 = memref.load %arg0[%c2] : memref<6xf32, #tpu.memory_space<smem>>
    %c3 = arith.constant 3 : index
    %15 = memref.load %arg0[%c3] : memref<6xf32, #tpu.memory_space<smem>>
    %c4 = arith.constant 4 : index
    %16 = memref.load %arg0[%c4] : memref<6xf32, #tpu.memory_space<smem>>
    %c5 = arith.constant 5 : index
    %17 = memref.load %arg0[%c5] : memref<6xf32, #tpu.memory_space<smem>>
    %c0_0 = arith.constant 0 : index
    %c0_1 = arith.constant 0 : index
    %18 = vector.load %arg1[%c0_0, %c0_1] : memref<16x1134xbf16, #tpu.memory_space<vmem>>, vector<16x1134xbf16>
    %c0_2 = arith.constant 0 : index
    %c0_3 = arith.constant 0 : index
    %19 = vector.load %arg3[%c0_2, %c0_3] : memref<16x16xbf16, #tpu.memory_space<vmem>>, vector<16x16xbf16>
    %c0_4 = arith.constant 0 : index
    %c0_5 = arith.constant 0 : index
    %20 = vector.load %arg4[%c0_4, %c0_5] : memref<1134x1xbf16, #tpu.memory_space<vmem>>, vector<1134x1xbf16>
    %cst = arith.constant dense<0.000000e+00> : vector<16x1xf32>
    %21 = tpu.matmul %18, %20, %cst {dimension_numbers = #tpu.dot_dimension_numbers<[1], [0], [0], [1], [0, 0, 1, 1], [], []>} : vector<16x1134xbf16>, vector<1134x1xbf16>, vector<16x1xf32> -> vector<16x1xf32>
    %22 = vector.broadcast %16 : f32 to vector<16x1xf32>
    %23 = arith.addf %21, %22 : vector<16x1xf32>
    %c0_6 = arith.constant 0 : index
    %c0_7 = arith.constant 0 : index
    %24 = vector.load %arg5[%c0_6, %c0_7] : memref<1x1134xbf16, #tpu.memory_space<vmem>>, vector<1x1134xbf16>
    %cst_8 = arith.constant dense<0.000000e+00> : vector<1x16xf32>
    %25 = tpu.matmul %24, %18, %cst_8 {dimension_numbers = #tpu.dot_dimension_numbers<[1], [1], [0], [0], [0, 0, 1, 0], [], []>} : vector<1x1134xbf16>, vector<16x1134xbf16>, vector<1x16xf32> -> vector<1x16xf32>
    %26 = vector.broadcast %17 : f32 to vector<1x16xf32>
    %27 = arith.addf %25, %26 : vector<1x16xf32>
    %28 = vector.broadcast %23 : vector<16x1xf32> to vector<16x16xf32>
    %29 = vector.broadcast %27 : vector<1x16xf32> to vector<16x16xf32>
    %30 = arith.addf %28, %29 : vector<16x16xf32>
    %31 = arith.negf %30 : vector<16x16xf32>
    %32 = math.exp %31 : vector<16x16xf32>
    %cst_9 = arith.constant 1.000000e+00 : f32
    %33 = vector.broadcast %cst_9 : f32 to vector<16x16xf32>
    %34 = arith.addf %33, %32 : vector<16x16xf32>
    %35 = arith.divf %33, %34 : vector<16x16xf32>
    %c0_10 = arith.constant 0 : index
    %c0_11 = arith.constant 0 : index
    %36 = vector.load %arg2[%c0_10, %c0_11] : memref<16x16xf32, #tpu.memory_space<vmem>>, vector<16x16xf32>
    %37 = vector.broadcast %12 : f32 to vector<16x16xf32>
    %38 = arith.mulf %37, %36 : vector<16x16xf32>
    %39 = vector.broadcast %13 : f32 to vector<16x16xf32>
    %40 = arith.mulf %39, %35 : vector<16x16xf32>
    %41 = arith.addf %38, %40 : vector<16x16xf32>
    %42 = tpu.iota {dimensions = array<i32: 0>} : vector<16x16xi32>
    %43 = tpu.iota {dimensions = array<i32: 1>} : vector<16x16xi32>
    %44 = arith.cmpi eq, %42, %43 : vector<16x16xi32>
    %45 = vector.broadcast %14 : f32 to vector<16x16xf32>
    %46 = arith.mulf %45, %41 : vector<16x16xf32>
    %47 = arith.select %44, %46, %41 : vector<16x16xi1>, vector<16x16xf32>
    %48 = arith.truncf %47 : vector<16x16xf32> to vector<16x16xbf16>
    %49 = vector.broadcast %15 : f32 to vector<16x16xf32>
    %50 = arith.mulf %49, %41 : vector<16x16xf32>
    %51 = arith.select %44, %50, %41 : vector<16x16xi1>, vector<16x16xf32>
    %52 = arith.truncf %51 : vector<16x16xf32> to vector<16x16xbf16>
    %cst_12 = arith.constant dense<0.000000e+00> : vector<16x1134xf32>
    %53 = tpu.matmul %19, %18, %cst_12 {dimension_numbers = #tpu.dot_dimension_numbers<[1], [0], [0], [1], [0, 0, 1, 1], [], []>} : vector<16x16xbf16>, vector<16x1134xbf16>, vector<16x1134xf32> -> vector<16x1134xf32>
    %54 = vector.extract_strided_slice %53 {offsets = [0, 0], sizes = [8, 1134], strides = [1, 1]} : vector<16x1134xf32> to vector<8x1134xf32>
    %55 = arith.truncf %54 : vector<8x1134xf32> to vector<8x1134xbf16>
    %56 = vector.extract_strided_slice %53 {offsets = [8, 0], sizes = [8, 1134], strides = [1, 1]} : vector<16x1134xf32> to vector<8x1134xf32>
    %57 = arith.truncf %56 : vector<8x1134xf32> to vector<8x1134xbf16>
    %c0_i32_13 = arith.constant 0 : i32
    %58 = tpu.memref_slice %arg24[%c0_i32_13] : memref<6x!tpu.dma_semaphore, #tpu.memory_space<semaphore_mem>> -> memref<1x!tpu.dma_semaphore, #tpu.memory_space<semaphore_mem>>
    %59 = tpu.memref_squeeze %58 : memref<1x!tpu.dma_semaphore, #tpu.memory_space<semaphore_mem>> -> memref<!tpu.dma_semaphore, #tpu.memory_space<semaphore_mem>>
    tpu.wait_dma2 semaphore(%59 : memref<!tpu.dma_semaphore, #tpu.memory_space<semaphore_mem>>) src(%arg11 : memref<1134x512xbf16, #tpu.memory_space<any>>) dst(%arg18 : memref<1134x512xbf16, #tpu.memory_space<vmem>>)
    %c0_14 = arith.constant 0 : index
    %c0_15 = arith.constant 0 : index
    %60 = vector.load %arg18[%c0_14, %c0_15] : memref<1134x512xbf16, #tpu.memory_space<vmem>>, vector<1134x512xbf16>
    %cst_16 = arith.constant dense<0.000000e+00> : vector<16x512xf32>
    %61 = tpu.matmul %18, %60, %cst_16 {dimension_numbers = #tpu.dot_dimension_numbers<[1], [0], [0], [1], [0, 0, 1, 1], [], []>} : vector<16x1134xbf16>, vector<1134x512xbf16>, vector<16x512xf32> -> vector<16x512xf32>
    %62 = arith.truncf %61 : vector<16x512xf32> to vector<16x512xbf16>
    %cst_17 = arith.constant dense<0.000000e+00> : vector<16x512xf32>
    %63 = tpu.matmul %48, %62, %cst_17 {dimension_numbers = #tpu.dot_dimension_numbers<[1], [0], [0], [1], [0, 0, 1, 1], [], []>} : vector<16x16xbf16>, vector<16x512xbf16>, vector<16x512xf32> -> vector<16x512xf32>
    %c0_18 = arith.constant 0 : index
    %c0_19 = arith.constant 0 : index
    %64 = vector.load %arg6[%c0_18, %c0_19] : memref<1x512xf32, #tpu.memory_space<vmem>>, vector<1x512xf32>
    %65 = vector.broadcast %64 : vector<1x512xf32> to vector<16x512xf32>
    %66 = arith.addf %63, %65 : vector<16x512xf32>
    %cst_20 = arith.constant 0.000000e+00 : f32
    %67 = vector.broadcast %cst_20 : f32 to vector<16x512xf32>
    %68 = arith.maximumf %66, %67 : vector<16x512xf32>
    %c1_i32_21 = arith.constant 1 : i32
    %69 = tpu.memref_slice %arg24[%c1_i32_21] : memref<6x!tpu.dma_semaphore, #tpu.memory_space<semaphore_mem>> -> memref<1x!tpu.dma_semaphore, #tpu.memory_space<semaphore_mem>>
    %70 = tpu.memref_squeeze %69 : memref<1x!tpu.dma_semaphore, #tpu.memory_space<semaphore_mem>> -> memref<!tpu.dma_semaphore, #tpu.memory_space<semaphore_mem>>
    tpu.wait_dma2 semaphore(%70 : memref<!tpu.dma_semaphore, #tpu.memory_space<semaphore_mem>>) src(%arg12 : memref<512x256xbf16, #tpu.memory_space<any>>) dst(%arg19 : memref<512x256xbf16, #tpu.memory_space<vmem>>)
    %71 = arith.truncf %68 : vector<16x512xf32> to vector<16x512xbf16>
    %c0_22 = arith.constant 0 : index
    %c0_23 = arith.constant 0 : index
    %72 = vector.load %arg19[%c0_22, %c0_23] : memref<512x256xbf16, #tpu.memory_space<vmem>>, vector<512x256xbf16>
    %cst_24 = arith.constant dense<0.000000e+00> : vector<16x256xf32>
    %73 = tpu.matmul %71, %72, %cst_24 {dimension_numbers = #tpu.dot_dimension_numbers<[1], [0], [0], [1], [0, 0, 1, 1], [], []>} : vector<16x512xbf16>, vector<512x256xbf16>, vector<16x256xf32> -> vector<16x256xf32>
    %74 = arith.truncf %73 : vector<16x256xf32> to vector<16x256xbf16>
    %cst_25 = arith.constant dense<0.000000e+00> : vector<16x256xf32>
    %75 = tpu.matmul %52, %74, %cst_25 {dimension_numbers = #tpu.dot_dimension_numbers<[1], [0], [0], [1], [0, 0, 1, 1], [], []>} : vector<16x16xbf16>, vector<16x256xbf16>, vector<16x256xf32> -> vector<16x256xf32>
    %c0_26 = arith.constant 0 : index
    %c0_27 = arith.constant 0 : index
    %76 = vector.load %arg7[%c0_26, %c0_27] : memref<1x256xf32, #tpu.memory_space<vmem>>, vector<1x256xf32>
    %77 = vector.broadcast %76 : vector<1x256xf32> to vector<16x256xf32>
    %78 = arith.addf %75, %77 : vector<16x256xf32>
    %c2_i32_28 = arith.constant 2 : i32
    %79 = tpu.memref_slice %arg24[%c2_i32_28] : memref<6x!tpu.dma_semaphore, #tpu.memory_space<semaphore_mem>> -> memref<1x!tpu.dma_semaphore, #tpu.memory_space<semaphore_mem>>
    %80 = tpu.memref_squeeze %79 : memref<1x!tpu.dma_semaphore, #tpu.memory_space<semaphore_mem>> -> memref<!tpu.dma_semaphore, #tpu.memory_space<semaphore_mem>>
    tpu.wait_dma2 semaphore(%80 : memref<!tpu.dma_semaphore, #tpu.memory_space<semaphore_mem>>) src(%arg13 : memref<1134x256xbf16, #tpu.memory_space<any>>) dst(%arg20 : memref<1134x256xbf16, #tpu.memory_space<vmem>>)
    %c3_i32_29 = arith.constant 3 : i32
    %81 = tpu.memref_slice %arg24[%c3_i32_29] : memref<6x!tpu.dma_semaphore, #tpu.memory_space<semaphore_mem>> -> memref<1x!tpu.dma_semaphore, #tpu.memory_space<semaphore_mem>>
    %82 = tpu.memref_squeeze %81 : memref<1x!tpu.dma_semaphore, #tpu.memory_space<semaphore_mem>> -> memref<!tpu.dma_semaphore, #tpu.memory_space<semaphore_mem>>
    tpu.wait_dma2 semaphore(%82 : memref<!tpu.dma_semaphore, #tpu.memory_space<semaphore_mem>>) src(%arg14 : memref<1134x256xbf16, #tpu.memory_space<any>>) dst(%arg21 : memref<1134x256xbf16, #tpu.memory_space<vmem>>)
    %c0_30 = arith.constant 0 : index
    %c0_31 = arith.constant 0 : index
    %83 = vector.load %arg20[%c0_30, %c0_31] : memref<1134x256xbf16, #tpu.memory_space<vmem>>, vector<1134x256xbf16>
    %cst_32 = arith.constant dense<0.000000e+00> : vector<8x256xf32>
    %84 = tpu.matmul %55, %83, %cst_32 {dimension_numbers = #tpu.dot_dimension_numbers<[1], [0], [0], [1], [0, 0, 1, 1], [], []>} : vector<8x1134xbf16>, vector<1134x256xbf16>, vector<8x256xf32> -> vector<8x256xf32>
    %c0_33 = arith.constant 0 : index
    %c0_34 = arith.constant 0 : index
    %85 = vector.load %arg21[%c0_33, %c0_34] : memref<1134x256xbf16, #tpu.memory_space<vmem>>, vector<1134x256xbf16>
    %cst_35 = arith.constant dense<0.000000e+00> : vector<8x256xf32>
    %86 = tpu.matmul %57, %85, %cst_35 {dimension_numbers = #tpu.dot_dimension_numbers<[1], [0], [0], [1], [0, 0, 1, 1], [], []>} : vector<8x1134xbf16>, vector<1134x256xbf16>, vector<8x256xf32> -> vector<8x256xf32>
    %87 = arith.addf %84, %86 : vector<8x256xf32>
    %c0_36 = arith.constant 0 : index
    %c0_37 = arith.constant 0 : index
    %88 = vector.load %arg8[%c0_36, %c0_37] : memref<1x256xf32, #tpu.memory_space<vmem>>, vector<1x256xf32>
    %89 = vector.broadcast %88 : vector<1x256xf32> to vector<8x256xf32>
    %90 = arith.addf %87, %89 : vector<8x256xf32>
    %cst_38 = arith.constant 0.000000e+00 : f32
    %91 = vector.broadcast %cst_38 : f32 to vector<8x256xf32>
    %92 = arith.maximumf %90, %91 : vector<8x256xf32>
    %93 = arith.truncf %68 : vector<16x512xf32> to vector<16x512xbf16>
    %94 = arith.truncf %78 : vector<16x256xf32> to vector<16x256xbf16>
    %95 = tpu.concatenate %93, %94 in 1 : vector<16x512xbf16>, vector<16x256xbf16> -> vector<16x768xbf16>
    %cst_39 = arith.constant dense<0.000000e+00> : vector<16x768xf32>
    %96 = tpu.matmul %19, %95, %cst_39 {dimension_numbers = #tpu.dot_dimension_numbers<[1], [0], [0], [1], [0, 0, 1, 1], [], []>} : vector<16x16xbf16>, vector<16x768xbf16>, vector<16x768xf32> -> vector<16x768xf32>
    %97 = vector.extract_strided_slice %96 {offsets = [0, 0], sizes = [8, 768], strides = [1, 1]} : vector<16x768xf32> to vector<8x768xf32>
    %98 = vector.extract_strided_slice %96 {offsets = [8, 0], sizes = [8, 768], strides = [1, 1]} : vector<16x768xf32> to vector<8x768xf32>
    %99 = tpu.concatenate %97, %98 in 1 : vector<8x768xf32>, vector<8x768xf32> -> vector<8x1536xf32>
    %100 = arith.truncf %99 : vector<8x1536xf32> to vector<8x1536xbf16>
    %c4_i32_40 = arith.constant 4 : i32
    %101 = tpu.memref_slice %arg24[%c4_i32_40] : memref<6x!tpu.dma_semaphore, #tpu.memory_space<semaphore_mem>> -> memref<1x!tpu.dma_semaphore, #tpu.memory_space<semaphore_mem>>
    %102 = tpu.memref_squeeze %101 : memref<1x!tpu.dma_semaphore, #tpu.memory_space<semaphore_mem>> -> memref<!tpu.dma_semaphore, #tpu.memory_space<semaphore_mem>>
    tpu.wait_dma2 semaphore(%102 : memref<!tpu.dma_semaphore, #tpu.memory_space<semaphore_mem>>) src(%arg15 : memref<1536x256xbf16, #tpu.memory_space<any>>) dst(%arg22 : memref<1536x256xbf16, #tpu.memory_space<vmem>>)
    %c0_41 = arith.constant 0 : index
    %c0_42 = arith.constant 0 : index
    %103 = vector.load %arg22[%c0_41, %c0_42] : memref<1536x256xbf16, #tpu.memory_space<vmem>>, vector<1536x256xbf16>
    %cst_43 = arith.constant dense<0.000000e+00> : vector<8x256xf32>
    %104 = tpu.matmul %100, %103, %cst_43 {dimension_numbers = #tpu.dot_dimension_numbers<[1], [0], [0], [1], [0, 0, 1, 1], [], []>} : vector<8x1536xbf16>, vector<1536x256xbf16>, vector<8x256xf32> -> vector<8x256xf32>
    %c0_44 = arith.constant 0 : index
    %c0_45 = arith.constant 0 : index
    %105 = vector.load %arg9[%c0_44, %c0_45] : memref<1x256xf32, #tpu.memory_space<vmem>>, vector<1x256xf32>
    %106 = vector.broadcast %105 : vector<1x256xf32> to vector<8x256xf32>
    %107 = arith.addf %104, %106 : vector<8x256xf32>
    %cst_46 = arith.constant 0.000000e+00 : f32
    %108 = vector.broadcast %cst_46 : f32 to vector<8x256xf32>
    %109 = arith.maximumf %107, %108 : vector<8x256xf32>
    %110 = tpu.concatenate %92, %109 in 1 : vector<8x256xf32>, vector<8x256xf32> -> vector<8x512xf32>
    %111 = arith.truncf %110 : vector<8x512xf32> to vector<8x512xbf16>
    %c5_i32_47 = arith.constant 5 : i32
    %112 = tpu.memref_slice %arg24[%c5_i32_47] : memref<6x!tpu.dma_semaphore, #tpu.memory_space<semaphore_mem>> -> memref<1x!tpu.dma_semaphore, #tpu.memory_space<semaphore_mem>>
    %113 = tpu.memref_squeeze %112 : memref<1x!tpu.dma_semaphore, #tpu.memory_space<semaphore_mem>> -> memref<!tpu.dma_semaphore, #tpu.memory_space<semaphore_mem>>
    tpu.wait_dma2 semaphore(%113 : memref<!tpu.dma_semaphore, #tpu.memory_space<semaphore_mem>>) src(%arg16 : memref<512x128xbf16, #tpu.memory_space<any>>) dst(%arg23 : memref<512x128xbf16, #tpu.memory_space<vmem>>)
    %c0_48 = arith.constant 0 : index
    %c0_49 = arith.constant 0 : index
    %114 = vector.load %arg23[%c0_48, %c0_49] : memref<512x128xbf16, #tpu.memory_space<vmem>>, vector<512x128xbf16>
    %cst_50 = arith.constant dense<0.000000e+00> : vector<8x128xf32>
    %115 = tpu.matmul %111, %114, %cst_50 {dimension_numbers = #tpu.dot_dimension_numbers<[1], [0], [0], [1], [0, 0, 1, 1], [], []>} : vector<8x512xbf16>, vector<512x128xbf16>, vector<8x128xf32> -> vector<8x128xf32>
    %c0_51 = arith.constant 0 : index
    %c0_52 = arith.constant 0 : index
    %116 = vector.load %arg10[%c0_51, %c0_52] : memref<1x128xf32, #tpu.memory_space<vmem>>, vector<1x128xf32>
    %117 = vector.broadcast %116 : vector<1x128xf32> to vector<8x128xf32>
    %118 = arith.addf %115, %117 : vector<8x128xf32>
    %cst_53 = arith.constant 0.000000e+00 : f32
    %119 = vector.broadcast %cst_53 : f32 to vector<8x128xf32>
    %120 = arith.maximumf %118, %119 : vector<8x128xf32>
    %c0_54 = arith.constant 0 : index
    %c0_55 = arith.constant 0 : index
    %121 = vector.load %arg17[%c0_54, %c0_55] : memref<8x128xf32, #tpu.memory_space<vmem>>, vector<8x128xf32>
    tpu.vector_store %arg17[%c0_54, %c0_55], %120 {strides = array<i32>} : memref<8x128xf32, #tpu.memory_space<vmem>>, vector<8x128xf32>,
    return
  }
}

</mosaic_0001>

<llo_original>
// kernel: sdgcn_forward.1
$region0: #{sdgcn_forward.1}
  #allocation0 [shape = 'u32[]', space=smem, size = 0x4, offset = 0x4, fixed_abs, tag = 'smem constant byte address 0x4 - core index']
  #allocation1 [shape = 'u32[72,128]{1,0:T(1,128)}', space=vmem, size = 0x9000, scoped, tag = 'internal scratch']
  #allocation2 [shape = 'bf16[1134,512]{1,0:T(8,128)(2,1)}', space=vmem, size = 0x11c000, scoped, tag = 'scratch operand']
  #allocation3 [shape = 'bf16[512,256]{1,0:T(8,128)(2,1)}', space=vmem, size = 0x40000, scoped, tag = 'scratch operand']
  #allocation4 [shape = 'bf16[1134,256]{1,0:T(8,128)(2,1)}', space=vmem, size = 0x8e000, scoped, tag = 'scratch operand']
  #allocation5 [shape = 'bf16[1134,256]{1,0:T(8,128)(2,1)}', space=vmem, size = 0x8e000, scoped, tag = 'scratch operand']
  #allocation6 [shape = 'bf16[1536,256]{1,0:T(8,128)(2,1)}', space=vmem, size = 0xc0000, scoped, tag = 'scratch operand']
  #allocation7 [shape = 'bf16[512,128]{1,0:T(8,128)(2,1)}', space=vmem, size = 0x20000, scoped, tag = 'scratch operand']
  #allocation8 [shape = 's32[6]{0}', space=sflag, size = 0x18, scoped, tag = 'scratch operand']
  #allocation24 [shape = 's32[]', space=sflag, size = 0x4, offset = 0, fixed_abs, tag = 'sflag constant byte address 0x0 - dummy sync flag']
  #allocation25 [shape = 's32[]', space=sflag, size = 0x4, offset = 0, fixed_abs, tag = 'sflag constant byte address 0x0 - dummy sync flag']
  #allocation26 [shape = 'u32[]', space=smem, size = 0x4, offset = 0x44, fixed_abs, tag = 'smem constant byte address 0x44 - assertion arg 0']
  #allocation27 [shape = 'u32[]', space=smem, size = 0x4, offset = 0x48, fixed_abs, tag = 'smem constant byte address 0x48 - assertion arg 1']
  #allocation28 [shape = 's32[]', space=sflag, size = 0x4, offset = 0, fixed_abs, tag = 'sflag constant byte address 0x0 - dummy sync flag']
  #allocation29 [shape = 's32[]', space=sflag, size = 0x4, offset = 0, fixed_abs, tag = 'sflag constant byte address 0x0 - dummy sync flag']
  #allocation30 [shape = 's32[]', space=sflag, size = 0x4, offset = 0, fixed_abs, tag = 'sflag constant byte address 0x0 - dummy sync flag']
  #allocation31 [shape = 's32[]', space=sflag, size = 0x4, offset = 0, fixed_abs, tag = 'sflag constant byte address 0x0 - dummy sync flag']
  #allocation32 [shape = 's32[]', space=sflag, size = 0x4, offset = 0, fixed_abs, tag = 'sflag constant byte address 0x0 - dummy sync flag']
  #allocation33 [shape = 's32[]', space=sflag, size = 0x4, offset = 0, fixed_abs, tag = 'sflag constant byte address 0x0 - dummy sync flag']
  #allocation34 [shape = 's32[]', space=sflag, size = 0x4, offset = 0, fixed_abs, tag = 'sflag constant byte address 0x0 - dummy sync flag']
  #allocation35 [shape = 's32[]', space=sflag, size = 0x4, offset = 0, fixed_abs, tag = 'sflag constant byte address 0x0 - dummy sync flag']
  #allocation36 [shape = 's32[]', space=sflag, size = 0x4, offset = 0, fixed_abs, tag = 'sflag constant byte address 0x0 - dummy sync flag']
  #allocation37 [shape = 's32[]', space=sflag, size = 0x4, offset = 0, fixed_abs, tag = 'sflag constant byte address 0x0 - dummy sync flag']
  %s0 = inlined_call_operand.hbm [shape: f32[6], index: 0, kind: input, shape index: {}]
  %s1 = inlined_call_operand.vmem [shape: bf16[16,1134], index: 1, kind: input, shape index: {}]
  %s2 = inlined_call_operand.hbm [shape: f32[16,16], index: 2, kind: input, shape index: {}]
  %s3 = inlined_call_operand.vmem [shape: bf16[16,16], index: 3, kind: input, shape index: {}]
  %s4 = inlined_call_operand.vmem [shape: bf16[1134,1], index: 4, kind: input, shape index: {}]
  %s5 = inlined_call_operand.hbm [shape: bf16[1,1134], index: 5, kind: input, shape index: {}]
  %s6 = inlined_call_operand.hbm [shape: f32[1,512], index: 6, kind: input, shape index: {}]
  %s7 = inlined_call_operand.hbm [shape: f32[1,256], index: 7, kind: input, shape index: {}]
  %s8 = inlined_call_operand.hbm [shape: f32[1,256], index: 8, kind: input, shape index: {}]
  %s9 = inlined_call_operand.hbm [shape: f32[1,256], index: 9, kind: input, shape index: {}]
  %s10 = inlined_call_operand.hbm [shape: f32[1,128], index: 10, kind: input, shape index: {}]
  %s11 = inlined_call_operand.hbm [shape: bf16[1134,512], index: 11, kind: input, shape index: {}]
  %s12 = inlined_call_operand.hbm [shape: bf16[512,256], index: 12, kind: input, shape index: {}]
  %s13 = inlined_call_operand.hbm [shape: bf16[1134,256], index: 13, kind: input, shape index: {}]
  %s14 = inlined_call_operand.hbm [shape: bf16[1134,256], index: 14, kind: input, shape index: {}]
  %s15 = inlined_call_operand.hbm [shape: bf16[1536,256], index: 15, kind: input, shape index: {}]
  %s16 = inlined_call_operand.hbm [shape: bf16[512,128], index: 16, kind: input, shape index: {}]
  %s17 = inlined_call_operand.hbm [shape: f32[8,128], index: 17, kind: output, shape index: {}]
  %s18 = sld [smem:[#allocation0]]
  $region110: #{sdgcn_forward.1} parent=0
    _
  %s20 = ssub.s32 1, %s18
  %s21 = scalar_select 0, %s20, %s18
  $region1: #{sdgcn_forward.1} parent=0
    #allocation9 [shape = 'u8[512]{0}', space=smem, size = 0x200, scoped, tag = 'input window, operand 0, single buffered']
    #allocation10 [shape = 's32[1]{0}', space=sflag, size = 0x4, scoped, tag = 'scoped memory for sdgcn_forward.1']
    #allocation11 [shape = 's32[1]{0}', space=sflag, size = 0x4, scoped, tag = 'scoped memory for sdgcn_forward.1']
    #allocation12 [shape = 's32[1]{0}', space=sflag, size = 0x4, scoped, tag = 'scoped memory for sdgcn_forward.1']
    #allocation13 [shape = 'u8[8192]{0}', space=vmem, size = 0x2000, scoped, tag = 'input window, operand 2, single buffered']
    #allocation14 [shape = 'u8[4608]{0}', space=vmem, size = 0x1400, scoped, tag = 'input window, operand 5, single buffered']
    #allocation15 [shape = 's32[1]{0}', space=sflag, size = 0x4, scoped, tag = 'scoped memory for sdgcn_forward.1']
    #allocation16 [shape = 'u8[2048]{0}', space=vmem, size = 0x800, scoped, tag = 'input window, operand 6, single buffered']
    #allocation17 [shape = 'u8[1024]{0}', space=vmem, size = 0x400, scoped, tag = 'input window, operand 7, single buffered']
    #allocation18 [shape = 's32[1]{0}', space=sflag, size = 0x4, scoped, tag = 'scoped memory for sdgcn_forward.1']
    #allocation19 [shape = 'u8[1024]{0}', space=vmem, size = 0x400, scoped, tag = 'input window, operand 8, single buffered']
    #allocation20 [shape = 'u8[1024]{0}', space=vmem, size = 0x400, scoped, tag = 'input window, operand 9, single buffered']
    #allocation21 [shape = 's32[1]{0}', space=sflag, size = 0x4, scoped, tag = 'scoped memory for sdgcn_forward.1']
    #allocation22 [shape = 'u8[512]{0}', space=vmem, size = 0x400, scoped, tag = 'input window, operand 10, single buffered']
    #allocation23 [shape = 'u8[4096]{0}', space=vmem, size = 0x1000, scoped, tag = 'output window, operand 0, single buffered']
    %22 = vsyncpa [#allocation12], 0
    %23 = vsyncpa [#allocation10], 0
    %24 = vsyncpa [#allocation15], 0
    %25 = vsyncpa [#allocation18], 0
    %26 = vsyncpa [#allocation21], 0
    %27 = vsyncpa [#allocation11], 0
    // Predicated region
    $region2: #{sdgcn_forward.1} parent=1 // pred_check
      _
    $region3: #{sdgcn_forward.1} parent=1 // pred_check_branch
      %29 = sbr.rel (0) target = $region5
    $region4: #{sdgcn_forward.1} parent=1 // pred_region
      %31 = vsyncadd [#allocation12], 0
      %s33 = sshll.u32 %s0, 4
      %s34 = int_to_ptr.hbm [resolvable:$true] %s33
      %36 = dma.hbm_to_smem %s34, 16, [#allocation9], [#allocation12]
    $region5: #{sdgcn_forward.1} parent=1 // pred_fallthru
      _
    // Predicated region
    $region6: #{sdgcn_forward.1} parent=1 // pred_check
      _
    $region7: #{sdgcn_forward.1} parent=1 // pred_check_branch
      %38 = sbr.rel (0) target = $region9
    $region8: #{sdgcn_forward.1} parent=1 // pred_region
      _
    $region9: #{sdgcn_forward.1} parent=1 // pred_fallthru
      _
    // Predicated region
    $region10: #{sdgcn_forward.1} parent=1 // pred_check
      _
    $region11: #{sdgcn_forward.1} parent=1 // pred_check_branch
      %40 = sbr.rel (0) target = $region13
    $region12: #{sdgcn_forward.1} parent=1 // pred_region
      %42 = vsyncadd [#allocation10], 0
      %s43 = sshll.u32 %s2, 4
      %s44 = int_to_ptr.hbm [resolvable:$true] %s43
      %s45 = sshll.u32 [#allocation13], 4
      %s46 = int_to_ptr.vmem [resolvable:$true] %s45
      %51 = dma.hbm_to_vmem [thread:$0]  %s44, 256, %s46, [#allocation10], 128, 128, 8
    $region13: #{sdgcn_forward.1} parent=1 // pred_fallthru
      _
    // Predicated region
    $region14: #{sdgcn_forward.1} parent=1 // pred_check
      _
    $region15: #{sdgcn_forward.1} parent=1 // pred_check_branch
      %53 = sbr.rel (0) target = $region17
    $region16: #{sdgcn_forward.1} parent=1 // pred_region
      _
    $region17: #{sdgcn_forward.1} parent=1 // pred_fallthru
      _
    // Predicated region
    $region18: #{sdgcn_forward.1} parent=1 // pred_check
      _
    $region19: #{sdgcn_forward.1} parent=1 // pred_check_branch
      %55 = sbr.rel (0) target = $region21
    $region20: #{sdgcn_forward.1} parent=1 // pred_region
      _
    $region21: #{sdgcn_forward.1} parent=1 // pred_fallthru
      _
    // Predicated region
    $region22: #{sdgcn_forward.1} parent=1 // pred_check
      _
    $region23: #{sdgcn_forward.1} parent=1 // pred_check_branch
      %57 = sbr.rel (0) target = $region25
    $region24: #{sdgcn_forward.1} parent=1 // pred_region
      %59 = vsyncadd [#allocation15], 0
      %s61 = sshll.u32 %s5, 4
      %s62 = int_to_ptr.hbm [resolvable:$true] %s61
      %s63 = sshll.u32 [#allocation14], 4
      %s64 = int_to_ptr.vmem [resolvable:$true] %s63
      %66 = dma.hbm_to_vmem [thread:$0]  %s62, 144, %s64, [#allocation15]
    $region25: #{sdgcn_forward.1} parent=1 // pred_fallthru
      _
    // Predicated region
    $region26: #{sdgcn_forward.1} parent=1 // pred_check
      _
    $region27: #{sdgcn_forward.1} parent=1 // pred_check_branch
      %68 = sbr.rel (0) target = $region29
    $region28: #{sdgcn_forward.1} parent=1 // pred_region
      %70 = vsyncadd [#allocation15], 0
      %s72 = sshll.u32 %s6, 4
      %s73 = int_to_ptr.hbm [resolvable:$true] %s72
      %s74 = sshll.u32 [#allocation16], 4
      %s75 = int_to_ptr.vmem [resolvable:$true] %s74
      %77 = dma.hbm_to_vmem [thread:$0]  %s73, 64, %s75, [#allocation15]
    $region29: #{sdgcn_forward.1} parent=1 // pred_fallthru
      _
    // Predicated region
    $region30: #{sdgcn_forward.1} parent=1 // pred_check
      _
    $region31: #{sdgcn_forward.1} parent=1 // pred_check_branch
      %79 = sbr.rel (0) target = $region33
    $region32: #{sdgcn_forward.1} parent=1 // pred_region
      %81 = vsyncadd [#allocation18], 0
      %s83 = sshll.u32 %s7, 4
      %s84 = int_to_ptr.hbm [resolvable:$true] %s83
      %s85 = sshll.u32 [#allocation17], 4
      %s86 = int_to_ptr.vmem [resolvable:$true] %s85
      %88 = dma.hbm_to_vmem [thread:$0]  %s84, 32, %s86, [#allocation18]
    $region33: #{sdgcn_forward.1} parent=1 // pred_fallthru
      _
    // Predicated region
    $region34: #{sdgcn_forward.1} parent=1 // pred_check
      _
    $region35: #{sdgcn_forward.1} parent=1 // pred_check_branch
      %90 = sbr.rel (0) target = $region37
    $region36: #{sdgcn_forward.1} parent=1 // pred_region
      %92 = vsyncadd [#allocation18], 0
      %s94 = sshll.u32 %s8, 4
      %s95 = int_to_ptr.hbm [resolvable:$true] %s94
      %s96 = sshll.u32 [#allocation19], 4
      %s97 = int_to_ptr.vmem [resolvable:$true] %s96
      %99 = dma.hbm_to_vmem [thread:$0]  %s95, 32, %s97, [#allocation18]
    $region37: #{sdgcn_forward.1} parent=1 // pred_fallthru
      _
    // Predicated region
    $region38: #{sdgcn_forward.1} parent=1 // pred_check
      _
    $region39: #{sdgcn_forward.1} parent=1 // pred_check_branch
      %101 = sbr.rel (0) target = $region41
    $region40: #{sdgcn_forward.1} parent=1 // pred_region
      %103 = vsyncadd [#allocation21], 0
      %s105 = sshll.u32 %s9, 4
      %s106 = int_to_ptr.hbm [resolvable:$true] %s105
      %s107 = sshll.u32 [#allocation20], 4
      %s108 = int_to_ptr.vmem [resolvable:$true] %s107
      %110 = dma.hbm_to_vmem [thread:$0]  %s106, 32, %s108, [#allocation21]
    $region41: #{sdgcn_forward.1} parent=1 // pred_fallthru
      _
    // Predicated region
    $region42: #{sdgcn_forward.1} parent=1 // pred_check
      _
    $region43: #{sdgcn_forward.1} parent=1 // pred_check_branch
      %112 = sbr.rel (0) target = $region45
    $region44: #{sdgcn_forward.1} parent=1 // pred_region
      %114 = vsyncadd [#allocation21], 0
      %s116 = sshll.u32 %s10, 4
      %s117 = int_to_ptr.hbm [resolvable:$true] %s116
      %s118 = sshll.u32 [#allocation22], 4
      %s119 = int_to_ptr.vmem [resolvable:$true] %s118
      %121 = dma.hbm_to_vmem [thread:$0]  %s117, 16, %s119, [#allocation21]
    $region45: #{sdgcn_forward.1} parent=1 // pred_fallthru
      _
    // Predicated region
    $region46: #{sdgcn_forward.1} parent=1 // pred_check
      _
    $region47: #{sdgcn_forward.1} parent=1 // pred_check_branch
      %123 = sbr.rel (0) target = $region49
    $region48: #{sdgcn_forward.1} parent=1 // pred_region
      %125 = dma.done [#allocation12], 16
    $region49: #{sdgcn_forward.1} parent=1 // pred_fallthru
      _
    // Predicated region
    $region50: #{sdgcn_forward.1} parent=1 // pred_check
      _
    $region51: #{sdgcn_forward.1} parent=1 // pred_check_branch
      %127 = sbr.rel (0) target = $region53
    $region52: #{sdgcn_forward.1} parent=1 // pred_region
      %129 = dma.done [#allocation10], 256
    $region53: #{sdgcn_forward.1} parent=1 // pred_fallthru
      _
    // Predicated region
    $region54: #{sdgcn_forward.1} parent=1 // pred_check
      _
    $region55: #{sdgcn_forward.1} parent=1 // pred_check_branch
      %131 = sbr.rel (0) target = $region57
    $region56: #{sdgcn_forward.1} parent=1 // pred_region
      %133 = dma.done [#allocation15], 144
    $region57: #{sdgcn_forward.1} parent=1 // pred_fallthru
      _
    // Predicated region
    $region58: #{sdgcn_forward.1} parent=1 // pred_check
      _
    $region59: #{sdgcn_forward.1} parent=1 // pred_check_branch
      %135 = sbr.rel (0) target = $region61
    $region60: #{sdgcn_forward.1} parent=1 // pred_region
      %137 = dma.done [#allocation15], 64
    $region61: #{sdgcn_forward.1} parent=1 // pred_fallthru
      _
    // Predicated region
    $region62: #{sdgcn_forward.1} parent=1 // pred_check
      _
    $region63: #{sdgcn_forward.1} parent=1 // pred_check_branch
      %139 = sbr.rel (0) target = $region65
    $region64: #{sdgcn_forward.1} parent=1 // pred_region
      %141 = dma.done [#allocation18], 32
    $region65: #{sdgcn_forward.1} parent=1 // pred_fallthru
      _
    // Predicated region
    $region66: #{sdgcn_forward.1} parent=1 // pred_check
      _
    $region67: #{sdgcn_forward.1} parent=1 // pred_check_branch
      %143 = sbr.rel (0) target = $region69
    $region68: #{sdgcn_forward.1} parent=1 // pred_region
      %145 = dma.done [#allocation18], 32
    $region69: #{sdgcn_forward.1} parent=1 // pred_fallthru
      _
    // Predicated region
    $region70: #{sdgcn_forward.1} parent=1 // pred_check
      _
    $region71: #{sdgcn_forward.1} parent=1 // pred_check_branch
      %147 = sbr.rel (0) target = $region73
    $region72: #{sdgcn_forward.1} parent=1 // pred_region
      %149 = dma.done [#allocation21], 32
    $region73: #{sdgcn_forward.1} parent=1 // pred_fallthru
      _
    // Predicated region
    $region74: #{sdgcn_forward.1} parent=1 // pred_check
      _
    $region75: #{sdgcn_forward.1} parent=1 // pred_check_branch
      %151 = sbr.rel (0) target = $region77
    $region76: #{sdgcn_forward.1} parent=1 // pred_region
      %153 = dma.done [#allocation21], 16
    $region77: #{sdgcn_forward.1} parent=1 // pred_fallthru
      _
    %154 = sfence
    // Predicated region
    $region78: #{sdgcn_forward.1} parent=1 // pred_check
      _
    $region79: #{sdgcn_forward.1} parent=1 // pred_check_branch
      %157 = sbr.rel target = $region81
    $region80: #{sdgcn_forward.1} parent=1 // pred_region
      %158 = sst [smem:[#allocation26]] [#allocation25]
      %159 = sst [smem:[#allocation27]] [#allocation24]
    $region81: #{sdgcn_forward.1} parent=1 // pred_fallthru
      _
    %161 = shalt.err (0)
    %s163 = sshll.u32 %s11, 4
    %s164 = int_to_ptr.hbm [resolvable:$true] %s163
    %s165 = sshll.u32 [#allocation2], 4
    %s166 = int_to_ptr.vmem [resolvable:$true] %s165
    %168 = dma.hbm_to_vmem [thread:$0]  %s164, 36352, %s166, [#allocation8]
    %s169 = scalar_lea.sflag [#allocation8], 1
    // Predicated region
    $region82: #{sdgcn_forward.1} parent=1 // pred_check
      _
    $region83: #{sdgcn_forward.1} parent=1 // pred_check_branch
      %171 = sbr.rel target = $region85
    $region84: #{sdgcn_forward.1} parent=1 // pred_region
      %172 = sst [smem:[#allocation26]] [#allocation29]
      %173 = sst [smem:[#allocation27]] [#allocation28]
    $region85: #{sdgcn_forward.1} parent=1 // pred_fallthru
      _
    %175 = shalt.err (0)
    %s177 = sshll.u32 %s12, 4
    %s178 = int_to_ptr.hbm [resolvable:$true] %s177
    %s179 = sshll.u32 [#allocation3], 4
    %s180 = int_to_ptr.vmem [resolvable:$true] %s179
    %182 = dma.hbm_to_vmem [thread:$0]  %s178, 8192, %s180, %s169
    %s183 = scalar_lea.sflag [#allocation8], 2
    // Predicated region
    $region86: #{sdgcn_forward.1} parent=1 // pred_check
      _
    $region87: #{sdgcn_forward.1} parent=1 // pred_check_branch
      %185 = sbr.rel target = $region89
    $region88: #{sdgcn_forward.1} parent=1 // pred_region
      %186 = sst [smem:[#allocation26]] [#allocation31]
      %187 = sst [smem:[#allocation27]] [#allocation30]
    $region89: #{sdgcn_forward.1} parent=1 // pred_fallthru
      _
    %189 = shalt.err (0)
    %s191 = sshll.u32 %s13, 4
    %s192 = int_to_ptr.hbm [resolvable:$true] %s191
    %s193 = sshll.u32 [#allocation4], 4
    %s194 = int_to_ptr.vmem [resolvable:$true] %s193
    %196 = dma.hbm_to_vmem [thread:$0]  %s192, 18176, %s194, %s183
    %s197 = scalar_lea.sflag [#allocation8], 3
    // Predicated region
    $region90: #{sdgcn_forward.1} parent=1 // pred_check
      _
    $region91: #{sdgcn_forward.1} parent=1 // pred_check_branch
      %199 = sbr.rel target = $region93
    $region92: #{sdgcn_forward.1} parent=1 // pred_region
      %200 = sst [smem:[#allocation26]] [#allocation33]
      %201 = sst [smem:[#allocation27]] [#allocation32]
    $region93: #{sdgcn_forward.1} parent=1 // pred_fallthru
      _
    %203 = shalt.err (0)
    %s205 = sshll.u32 %s14, 4
    %s206 = int_to_ptr.hbm [resolvable:$true] %s205
    %s207 = sshll.u32 [#allocation5], 4
    %s208 = int_to_ptr.vmem [resolvable:$true] %s207
    %210 = dma.hbm_to_vmem [thread:$0]  %s206, 18176, %s208, %s197
    %s211 = scalar_lea.sflag [#allocation8], 4
    // Predicated region
    $region94: #{sdgcn_forward.1} parent=1 // pred_check
      _
    $region95: #{sdgcn_forward.1} parent=1 // pred_check_branch
      %213 = sbr.rel target = $region97
    $region96: #{sdgcn_forward.1} parent=1 // pred_region
      %214 = sst [smem:[#allocation26]] [#allocation35]
      %215 = sst [smem:[#allocation27]] [#allocation34]
    $region97: #{sdgcn_forward.1} parent=1 // pred_fallthru
      _
    %217 = shalt.err (0)
    %s219 = sshll.u32 %s15, 4
    %s220 = int_to_ptr.hbm [resolvable:$true] %s219
    %s221 = sshll.u32 [#allocation6], 4
    %s222 = int_to_ptr.vmem [resolvable:$true] %s221
    %224 = dma.hbm_to_vmem [thread:$0]  %s220, 24576, %s222, %s211
    %s225 = scalar_lea.sflag [#allocation8], 5
    // Predicated region
    $region98: #{sdgcn_forward.1} parent=1 // pred_check
      _
    $region99: #{sdgcn_forward.1} parent=1 // pred_check_branch
      %227 = sbr.rel target = $region101
    $region100: #{sdgcn_forward.1} parent=1 // pred_region
      %228 = sst [smem:[#allocation26]] [#allocation37]
      %229 = sst [smem:[#allocation27]] [#allocation36]
    $region101: #{sdgcn_forward.1} parent=1 // pred_fallthru
      _
    %231 = shalt.err (0)
    %s233 = sshll.u32 %s16, 4
    %s234 = int_to_ptr.hbm [resolvable:$true] %s233
    %s235 = sshll.u32 [#allocation7], 4
    %s236 = int_to_ptr.vmem [resolvable:$true] %s235
    %238 = dma.hbm_to_vmem [thread:$0]  %s234, 4096, %s236, %s225
    %s239 = sld [smem:[#allocation9]]
    %s240 = sld [smem:[#allocation9 + $0x1]]
    %s241 = sld [smem:[#allocation9 + $0x2]]
    %s242 = sld [smem:[#allocation9 + $0x3]]
    %s243 = sld [smem:[#allocation9 + $0x4]]
    %s244 = sld [smem:[#allocation9 + $0x5]]
    %v245 = vld [vmem:[%s1] sm:$0xff]
    %v246 = vld [vmem:[%s1 + $0x8] sm:$0xff]
    %v247 = vld [vmem:[%s1 + $0x10] sm:$0xff]
    %v248 = vld [vmem:[%s1 + $0x18] sm:$0xff]
    %v249 = vld [vmem:[%s1 + $0x20] sm:$0xf]
    %v250 = vld [vmem:[%s1 + $0x24] sm:$0xff]
    %v251 = vld [vmem:[%s1 + $0x2c] sm:$0xff]
    %v252 = vld [vmem:[%s1 + $0x34] sm:$0xff]
    %v253 = vld [vmem:[%s1 + $0x3c] sm:$0xff]
    %v254 = vld [vmem:[%s1 + $0x44] sm:$0xf]
    %v255 = vld [vmem:[%s3] sm:$0xf]
    %v256 = vld [vmem:[%s3 + $0x4] sm:$0xf]
    %v257 = vld [vmem:[%s4] sm:$0xf]
    %v258 = vld [vmem:[%s4 + $0x4] sm:$0xf]
    %v259 = vld [vmem:[%s4 + $0x8] sm:$0xf]
    %v260 = vld [vmem:[%s4 + $0xc] sm:$0xf]
    %v261 = vld [vmem:[%s4 + $0x10] sm:$0xf]
    %v262 = vld [vmem:[%s4 + $0x14] sm:$0xf]
    %v263 = vld [vmem:[%s4 + $0x18] sm:$0xf]
    %v264 = vld [vmem:[%s4 + $0x1c] sm:$0xf]
    %v265 = vld [vmem:[%s4 + $0x20] sm:$0xf]
    %v266 = vld [vmem:[%s4 + $0x24] sm:$0xf]
    %v267 = vld [vmem:[%s4 + $0x28] sm:$0xf]
    %v268 = vld [vmem:[%s4 + $0x2c] sm:$0xf]
    %v269 = vld [vmem:[%s4 + $0x30] sm:$0xf]
    %v270 = vld [vmem:[%s4 + $0x34] sm:$0xf]
    %v271 = vld [vmem:[%s4 + $0x38] sm:$0xf]
    %v272 = vld [vmem:[%s4 + $0x3c] sm:$0xf]
    %v273 = vld [vmem:[%s4 + $0x40] sm:$0xf]
    %v274 = vld [vmem:[%s4 + $0x44] sm:$0xf]
    %v275 = vld [vmem:[%s4 + $0x48] sm:$0xf]
    %v276 = vld [vmem:[%s4 + $0x4c] sm:$0xf]
    %v277 = vld [vmem:[%s4 + $0x50] sm:$0xf]
    %v278 = vld [vmem:[%s4 + $0x54] sm:$0xf]
    %v279 = vld [vmem:[%s4 + $0x58] sm:$0xf]
    %v280 = vld [vmem:[%s4 + $0x5c] sm:$0xf]
    %v281 = vld [vmem:[%s4 + $0x60] sm:$0xf]
    %v282 = vld [vmem:[%s4 + $0x64] sm:$0xf]
    %v283 = vld [vmem:[%s4 + $0x68] sm:$0xf]
    %v284 = vld [vmem:[%s4 + $0x6c] sm:$0xf]
    %v285 = vld [vmem:[%s4 + $0x70] sm:$0xf]
    %v286 = vld [vmem:[%s4 + $0x74] sm:$0xf]
    %v287 = vld [vmem:[%s4 + $0x78] sm:$0xf]
    %v288 = vld [vmem:[%s4 + $0x7c] sm:$0xf]
    %v289 = vld [vmem:[%s4 + $0x80] sm:$0xf]
    %v290 = vld [vmem:[%s4 + $0x84] sm:$0xf]
    %v291 = vld [vmem:[%s4 + $0x88] sm:$0xf]
    %v292 = vld [vmem:[%s4 + $0x8c] sm:$0xf]
    %v293 = vld [vmem:[%s4 + $0x90] sm:$0xf]
    %v294 = vld [vmem:[%s4 + $0x94] sm:$0xf]
    %v295 = vld [vmem:[%s4 + $0x98] sm:$0xf]
    %v296 = vld [vmem:[%s4 + $0x9c] sm:$0xf]
    %v297 = vld [vmem:[%s4 + $0xa0] sm:$0xf]
    %v298 = vld [vmem:[%s4 + $0xa4] sm:$0xf]
    %v299 = vld [vmem:[%s4 + $0xa8] sm:$0xf]
    %v300 = vld [vmem:[%s4 + $0xac] sm:$0xf]
    %v301 = vld [vmem:[%s4 + $0xb0] sm:$0xf]
    %v302 = vld [vmem:[%s4 + $0xb4] sm:$0xf]
    %v303 = vld [vmem:[%s4 + $0xb8] sm:$0xf]
    %v304 = vld [vmem:[%s4 + $0xbc] sm:$0xf]
    %v305 = vld [vmem:[%s4 + $0xc0] sm:$0xf]
    %v306 = vld [vmem:[%s4 + $0xc4] sm:$0xf]
    %v307 = vld [vmem:[%s4 + $0xc8] sm:$0xf]
    %v308 = vld [vmem:[%s4 + $0xcc] sm:$0xf]
    %v309 = vld [vmem:[%s4 + $0xd0] sm:$0xf]
    %v310 = vld [vmem:[%s4 + $0xd4] sm:$0xf]
    %v311 = vld [vmem:[%s4 + $0xd8] sm:$0xf]
    %v312 = vld [vmem:[%s4 + $0xdc] sm:$0xf]
    %v313 = vld [vmem:[%s4 + $0xe0] sm:$0xf]
    %v314 = vld [vmem:[%s4 + $0xe4] sm:$0xf]
    %v315 = vld [vmem:[%s4 + $0xe8] sm:$0xf]
    %v316 = vld [vmem:[%s4 + $0xec] sm:$0xf]
    %v317 = vld [vmem:[%s4 + $0xf0] sm:$0xf]
    %v318 = vld [vmem:[%s4 + $0xf4] sm:$0xf]
    %v319 = vld [vmem:[%s4 + $0xf8] sm:$0xf]
    %v320 = vld [vmem:[%s4 + $0xfc] sm:$0xf]
    %v321 = vld [vmem:[%s4 + $0x100] sm:$0xf]
    %v322 = vld [vmem:[%s4 + $0x104] sm:$0xf]
    %v323 = vld [vmem:[%s4 + $0x108] sm:$0xf]
    %v324 = vld [vmem:[%s4 + $0x10c] sm:$0xf]
    %v325 = vld [vmem:[%s4 + $0x110] sm:$0xf]
    %v326 = vld [vmem:[%s4 + $0x114] sm:$0xf]
    %v327 = vld [vmem:[%s4 + $0x118] sm:$0xf]
    %v328 = vld [vmem:[%s4 + $0x11c] sm:$0xf]
    %v329 = vld [vmem:[%s4 + $0x120] sm:$0xf]
    %v330 = vld [vmem:[%s4 + $0x124] sm:$0xf]
    %v331 = vld [vmem:[%s4 + $0x128] sm:$0xf]
    %v332 = vld [vmem:[%s4 + $0x12c] sm:$0xf]
    %v333 = vld [vmem:[%s4 + $0x130] sm:$0xf]
    %v334 = vld [vmem:[%s4 + $0x134] sm:$0xf]
    %v335 = vld [vmem:[%s4 + $0x138] sm:$0xf]
    %v336 = vld [vmem:[%s4 + $0x13c] sm:$0xf]
    %v337 = vld [vmem:[%s4 + $0x140] sm:$0xf]
    %v338 = vld [vmem:[%s4 + $0x144] sm:$0xf]
    %v339 = vld [vmem:[%s4 + $0x148] sm:$0xf]
    %v340 = vld [vmem:[%s4 + $0x14c] sm:$0xf]
    %v341 = vld [vmem:[%s4 + $0x150] sm:$0xf]
    %v342 = vld [vmem:[%s4 + $0x154] sm:$0xf]
    %v343 = vld [vmem:[%s4 + $0x158] sm:$0xf]
    %v344 = vld [vmem:[%s4 + $0x15c] sm:$0xf]
    %v345 = vld [vmem:[%s4 + $0x160] sm:$0xf]
    %v346 = vld [vmem:[%s4 + $0x164] sm:$0xf]
    %v347 = vld [vmem:[%s4 + $0x168] sm:$0xf]
    %v348 = vld [vmem:[%s4 + $0x16c] sm:$0xf]
    %v349 = vld [vmem:[%s4 + $0x170] sm:$0xf]
    %v350 = vld [vmem:[%s4 + $0x174] sm:$0xf]
    %v351 = vld [vmem:[%s4 + $0x178] sm:$0xf]
    %v352 = vld [vmem:[%s4 + $0x17c] sm:$0xf]
    %v353 = vld [vmem:[%s4 + $0x180] sm:$0xf]
    %v354 = vld [vmem:[%s4 + $0x184] sm:$0xf]
    %v355 = vld [vmem:[%s4 + $0x188] sm:$0xf]
    %v356 = vld [vmem:[%s4 + $0x18c] sm:$0xf]
    %v357 = vld [vmem:[%s4 + $0x190] sm:$0xf]
    %v358 = vld [vmem:[%s4 + $0x194] sm:$0xf]
    %v359 = vld [vmem:[%s4 + $0x198] sm:$0xf]
    %v360 = vld [vmem:[%s4 + $0x19c] sm:$0xf]
    %v361 = vld [vmem:[%s4 + $0x1a0] sm:$0xf]
    %v362 = vld [vmem:[%s4 + $0x1a4] sm:$0xf]
    %v363 = vld [vmem:[%s4 + $0x1a8] sm:$0xf]
    %v364 = vld [vmem:[%s4 + $0x1ac] sm:$0xf]
    %v365 = vld [vmem:[%s4 + $0x1b0] sm:$0xf]
    %v366 = vld [vmem:[%s4 + $0x1b4] sm:$0xf]
    %v367 = vld [vmem:[%s4 + $0x1b8] sm:$0xf]
    %v368 = vld [vmem:[%s4 + $0x1bc] sm:$0xf]
    %v369 = vld [vmem:[%s4 + $0x1c0] sm:$0xf]
    %v370 = vld [vmem:[%s4 + $0x1c4] sm:$0xf]
    %v371 = vld [vmem:[%s4 + $0x1c8] sm:$0xf]
    %v372 = vld [vmem:[%s4 + $0x1cc] sm:$0xf]
    %v373 = vld [vmem:[%s4 + $0x1d0] sm:$0xf]
    %v374 = vld [vmem:[%s4 + $0x1d4] sm:$0xf]
    %v375 = vld [vmem:[%s4 + $0x1d8] sm:$0xf]
    %v376 = vld [vmem:[%s4 + $0x1dc] sm:$0xf]
    %v377 = vld [vmem:[%s4 + $0x1e0] sm:$0xf]
    %v378 = vld [vmem:[%s4 + $0x1e4] sm:$0xf]
    %v379 = vld [vmem:[%s4 + $0x1e8] sm:$0xf]
    %v380 = vld [vmem:[%s4 + $0x1ec] sm:$0xf]
    %v381 = vld [vmem:[%s4 + $0x1f0] sm:$0xf]
    %v382 = vld [vmem:[%s4 + $0x1f4] sm:$0xf]
    %v383 = vld [vmem:[%s4 + $0x1f8] sm:$0xf]
    %v384 = vld [vmem:[%s4 + $0x1fc] sm:$0xf]
    %v385 = vld [vmem:[%s4 + $0x200] sm:$0xf]
    %v386 = vld [vmem:[%s4 + $0x204] sm:$0xf]
    %v387 = vld [vmem:[%s4 + $0x208] sm:$0xf]
    %v388 = vld [vmem:[%s4 + $0x20c] sm:$0xf]
    %v389 = vld [vmem:[%s4 + $0x210] sm:$0xf]
    %v390 = vld [vmem:[%s4 + $0x214] sm:$0xf]
    %v391 = vld [vmem:[%s4 + $0x218] sm:$0xf]
    %v392 = vld [vmem:[%s4 + $0x21c] sm:$0xf]
    %v393 = vld [vmem:[%s4 + $0x220] sm:$0xf]
    %v394 = vld [vmem:[%s4 + $0x224] sm:$0xf]
    %v395 = vld [vmem:[%s4 + $0x228] sm:$0xf]
    %v396 = vld [vmem:[%s4 + $0x22c] sm:$0xf]
    %v397 = vld [vmem:[%s4 + $0x230] sm:$0xf]
    %v398 = vld [vmem:[%s4 + $0x234] sm:$0x7]
    %v399 = vstv %s243
    %v410 = vunpack.c.l.b16 %v245
    %v411 = vunpack.c.h.b16 %v245
    %v412 = vunpack.c.l.b16 %v246
    %v413 = vunpack.c.h.b16 %v246
    %v414 = vunpack.c.l.b16 %v247
    %v415 = vunpack.c.h.b16 %v247
    %v416 = vunpack.c.l.b16 %v248
    %v417 = vunpack.c.h.b16 %v248
    %v418 = vunpack.c.l.b16 %v249
    %v419 = vunpack.c.l.b16 %v250
    %v420 = vunpack.c.h.b16 %v250
    %v421 = vunpack.c.l.b16 %v251
    %v422 = vunpack.c.h.b16 %v251
    %v423 = vunpack.c.l.b16 %v252
    %v424 = vunpack.c.h.b16 %v252
    %v425 = vunpack.c.l.b16 %v253
    %v426 = vunpack.c.h.b16 %v253
    %v427 = vunpack.c.l.b16 %v254
    %v428 = vpack.c.b16 %v419, %v410
    %v429 = vpack.c.b16 %v420, %v411
    %v430 = vpack.c.b16 %v421, %v412
    %v431 = vpack.c.b16 %v422, %v413
    %v432 = vpack.c.b16 %v423, %v414
    %v433 = vpack.c.b16 %v424, %v415
    %v434 = vpack.c.b16 %v425, %v416
    %v435 = vpack.c.b16 %v426, %v417
    %v436 = vpack.c.b16 %v427, %v418
    %v587 = vunpack.c.l.b16 %v257
    %v588 = vunpack.c.l.b16 %v258
    %v589 = vunpack.c.l.b16 %v259
    %v590 = vunpack.c.l.b16 %v260
    %v591 = vunpack.c.l.b16 %v261
    %v592 = vunpack.c.l.b16 %v262
    %v593 = vunpack.c.l.b16 %v263
    %v594 = vunpack.c.l.b16 %v264
    %v595 = vunpack.c.l.b16 %v265
    %v596 = vunpack.c.l.b16 %v266
    %v597 = vunpack.c.l.b16 %v267
    %v598 = vunpack.c.l.b16 %v268
    %v599 = vunpack.c.l.b16 %v269
    %v600 = vunpack.c.l.b16 %v270
    %v601 = vunpack.c.l.b16 %v271
    %v602 = vunpack.c.l.b16 %v272
    %v603 = vunpack.c.l.b16 %v273
    %v604 = vunpack.c.l.b16 %v274
    %v605 = vunpack.c.l.b16 %v275
    %v606 = vunpack.c.l.b16 %v276
    %v607 = vunpack.c.l.b16 %v277
    %v608 = vunpack.c.l.b16 %v278
    %v609 = vunpack.c.l.b16 %v279
    %v610 = vunpack.c.l.b16 %v280
    %v611 = vunpack.c.l.b16 %v281
    %v612 = vunpack.c.l.b16 %v282
    %v613 = vunpack.c.l.b16 %v283
    %v614 = vunpack.c.l.b16 %v284
    %v615 = vunpack.c.l.b16 %v285
    %v616 = vunpack.c.l.b16 %v286
    %v617 = vunpack.c.l.b16 %v287
    %v618 = vunpack.c.l.b16 %v288
    %v619 = vunpack.c.l.b16 %v289
    %v620 = vunpack.c.l.b16 %v290
    %v621 = vunpack.c.l.b16 %v291
    %v622 = vunpack.c.l.b16 %v292
    %v623 = vunpack.c.l.b16 %v293
    %v624 = vunpack.c.l.b16 %v294
    %v625 = vunpack.c.l.b16 %v295
    %v626 = vunpack.c.l.b16 %v296
    %v627 = vunpack.c.l.b16 %v297
    %v628 = vunpack.c.l.b16 %v298
    %v629 = vunpack.c.l.b16 %v299
    %v630 = vunpack.c.l.b16 %v300
    %v631 = vunpack.c.l.b16 %v301
    %v632 = vunpack.c.l.b16 %v302
    %v633 = vunpack.c.l.b16 %v303
    %v634 = vunpack.c.l.b16 %v304
    %v635 = vunpack.c.l.b16 %v305
    %v636 = vunpack.c.l.b16 %v306
    %v637 = vunpack.c.l.b16 %v307
    %v638 = vunpack.c.l.b16 %v308
    %v639 = vunpack.c.l.b16 %v309
    %v640 = vunpack.c.l.b16 %v310
    %v641 = vunpack.c.l.b16 %v311
    %v642 = vunpack.c.l.b16 %v312
    %v643 = vunpack.c.l.b16 %v313
    %v644 = vunpack.c.l.b16 %v314
    %v645 = vunpack.c.l.b16 %v315
    %v646 = vunpack.c.l.b16 %v316
    %v647 = vunpack.c.l.b16 %v317
    %v648 = vunpack.c.l.b16 %v318
    %v649 = vunpack.c.l.b16 %v319
    %v650 = vunpack.c.l.b16 %v320
    %v651 = vunpack.c.l.b16 %v321
    %v652 = vunpack.c.l.b16 %v322
    %v653 = vunpack.c.l.b16 %v323
    %v654 = vunpack.c.l.b16 %v324
    %v655 = vunpack.c.l.b16 %v325
    %v656 = vunpack.c.l.b16 %v326
    %v657 = vunpack.c.l.b16 %v327
    %v658 = vunpack.c.l.b16 %v328
    %v659 = vunpack.c.l.b16 %v329
    %v660 = vunpack.c.l.b16 %v330
    %v661 = vunpack.c.l.b16 %v331
    %v662 = vunpack.c.l.b16 %v332
    %v663 = vunpack.c.l.b16 %v333
    %v664 = vunpack.c.l.b16 %v334
    %v665 = vunpack.c.l.b16 %v335
    %v666 = vunpack.c.l.b16 %v336
    %v667 = vunpack.c.l.b16 %v337
    %v668 = vunpack.c.l.b16 %v338
    %v669 = vunpack.c.l.b16 %v339
    %v670 = vunpack.c.l.b16 %v340
    %v671 = vunpack.c.l.b16 %v341
    %v672 = vunpack.c.l.b16 %v342
    %v673 = vunpack.c.l.b16 %v343
    %v674 = vunpack.c.l.b16 %v344
    %v675 = vunpack.c.l.b16 %v345
    %v676 = vunpack.c.l.b16 %v346
    %v677 = vunpack.c.l.b16 %v347
    %v678 = vunpack.c.l.b16 %v348
    %v679 = vunpack.c.l.b16 %v349
    %v680 = vunpack.c.l.b16 %v350
    %v681 = vunpack.c.l.b16 %v351
    %v682 = vunpack.c.l.b16 %v352
    %v683 = vunpack.c.l.b16 %v353
    %v684 = vunpack.c.l.b16 %v354
    %v685 = vunpack.c.l.b16 %v355
    %v686 = vunpack.c.l.b16 %v356
    %v687 = vunpack.c.l.b16 %v357
    %v688 = vunpack.c.l.b16 %v358
    %v689 = vunpack.c.l.b16 %v359
    %v690 = vunpack.c.l.b16 %v360
    %v691 = vunpack.c.l.b16 %v361
    %v692 = vunpack.c.l.b16 %v362
    %v693 = vunpack.c.l.b16 %v363
    %v694 = vunpack.c.l.b16 %v364
    %v695 = vunpack.c.l.b16 %v365
    %v696 = vunpack.c.l.b16 %v366
    %v697 = vunpack.c.l.b16 %v367
    %v698 = vunpack.c.l.b16 %v368
    %v699 = vunpack.c.l.b16 %v369
    %v700 = vunpack.c.l.b16 %v370
    %v701 = vunpack.c.l.b16 %v371
    %v702 = vunpack.c.l.b16 %v372
    %v703 = vunpack.c.l.b16 %v373
    %v704 = vunpack.c.l.b16 %v374
    %v705 = vunpack.c.l.b16 %v375
    %v706 = vunpack.c.l.b16 %v376
    %v707 = vunpack.c.l.b16 %v377
    %v708 = vunpack.c.l.b16 %v378
    %v709 = vunpack.c.l.b16 %v379
    %v710 = vunpack.c.l.b16 %v380
    %v711 = vunpack.c.l.b16 %v381
    %v712 = vunpack.c.l.b16 %v382
    %v713 = vunpack.c.l.b16 %v383
    %v714 = vunpack.c.l.b16 %v384
    %v715 = vunpack.c.l.b16 %v385
    %v716 = vunpack.c.l.b16 %v386
    %v717 = vunpack.c.l.b16 %v387
    %v718 = vunpack.c.l.b16 %v388
    %v719 = vunpack.c.l.b16 %v389
    %v720 = vunpack.c.l.b16 %v390
    %v721 = vunpack.c.l.b16 %v391
    %v722 = vunpack.c.l.b16 %v392
    %v723 = vunpack.c.l.b16 %v393
    %v724 = vunpack.c.l.b16 %v394
    %v725 = vunpack.c.l.b16 %v395
    %v726 = vunpack.c.l.b16 %v396
    %v727 = vunpack.c.l.b16 %v397
    %v728 = vunpack.c.l.b16 %v398
    %v729 = vpack.c.b16 %v588, %v587
    %v730 = vpack.c.b16 %v590, %v589
    %v731 = vpack.c.b16 %v592, %v591
    %v732 = vpack.c.b16 %v594, %v593
    %v733 = vpack.c.b16 %v596, %v595
    %v734 = vpack.c.b16 %v598, %v597
    %v735 = vpack.c.b16 %v600, %v599
    %v736 = vpack.c.b16 %v602, %v601
    %v737 = vpack.c.b16 %v604, %v603
    %v738 = vpack.c.b16 %v606, %v605
    %v739 = vpack.c.b16 %v608, %v607
    %v740 = vpack.c.b16 %v610, %v609
    %v741 = vpack.c.b16 %v612, %v611
    %v742 = vpack.c.b16 %v614, %v613
    %v743 = vpack.c.b16 %v616, %v615
    %v744 = vpack.c.b16 %v618, %v617
    %v745 = vpack.c.b16 %v620, %v619
    %v746 = vpack.c.b16 %v622, %v621
    %v747 = vpack.c.b16 %v624, %v623
    %v748 = vpack.c.b16 %v626, %v625
    %v749 = vpack.c.b16 %v628, %v627
    %v750 = vpack.c.b16 %v630, %v629
    %v751 = vpack.c.b16 %v632, %v631
    %v752 = vpack.c.b16 %v634, %v633
    %v753 = vpack.c.b16 %v636, %v635
    %v754 = vpack.c.b16 %v638, %v637
    %v755 = vpack.c.b16 %v640, %v639
    %v756 = vpack.c.b16 %v642, %v641
    %v757 = vpack.c.b16 %v644, %v643
    %v758 = vpack.c.b16 %v646, %v645
    %v759 = vpack.c.b16 %v648, %v647
    %v760 = vpack.c.b16 %v650, %v649
    %v761 = vpack.c.b16 %v652, %v651
    %v762 = vpack.c.b16 %v654, %v653
    %v763 = vpack.c.b16 %v656, %v655
    %v764 = vpack.c.b16 %v658, %v657
    %v765 = vpack.c.b16 %v660, %v659
    %v766 = vpack.c.b16 %v662, %v661
    %v767 = vpack.c.b16 %v664, %v663
    %v768 = vpack.c.b16 %v666, %v665
    %v769 = vpack.c.b16 %v668, %v667
    %v770 = vpack.c.b16 %v670, %v669
    %v771 = vpack.c.b16 %v672, %v671
    %v772 = vpack.c.b16 %v674, %v673
    %v773 = vpack.c.b16 %v676, %v675
    %v774 = vpack.c.b16 %v678, %v677
    %v775 = vpack.c.b16 %v680, %v679
    %v776 = vpack.c.b16 %v682, %v681
    %v777 = vpack.c.b16 %v684, %v683
    %v778 = vpack.c.b16 %v686, %v685
    %v779 = vpack.c.b16 %v688, %v687
    %v780 = vpack.c.b16 %v690, %v689
    %v781 = vpack.c.b16 %v692, %v691
    %v782 = vpack.c.b16 %v694, %v693
    %v783 = vpack.c.b16 %v696, %v695
    %v784 = vpack.c.b16 %v698, %v697
    %v785 = vpack.c.b16 %v700, %v699
    %v786 = vpack.c.b16 %v702, %v701
    %v787 = vpack.c.b16 %v704, %v703
    %v788 = vpack.c.b16 %v706, %v705
    %v789 = vpack.c.b16 %v708, %v707
    %v790 = vpack.c.b16 %v710, %v709
    %v791 = vpack.c.b16 %v712, %v711
    %v792 = vpack.c.b16 %v714, %v713
    %v793 = vpack.c.b16 %v716, %v715
    %v794 = vpack.c.b16 %v718, %v717
    %v795 = vpack.c.b16 %v720, %v719
    %v796 = vpack.c.b16 %v722, %v721
    %v797 = vpack.c.b16 %v724, %v723
    %v798 = vpack.c.b16 %v726, %v725
    %v799 = vpack.c.b16 %v728, %v727
    %vm870 = vcmask 900096
    %v872 = vsel %vm870, %v436, 0
    %vm874 = vcmask 1046528
    %v876 = vsel %vm874, %v799, 0
    %878 = vmatpush.bf16.msra.mxu0 %v736
    %879 = vmatpush.bf16.msra.mxu0 %v735
    %880 = vmatpush.bf16.msra.mxu0 %v734
    %881 = vmatpush.bf16.msra.mxu0 %v733
    %882 = vmatpush.bf16.msra.mxu0 %v732
    %883 = vmatpush.bf16.msra.mxu0 %v731
    %884 = vmatpush.bf16.msra.mxu0 %v730
    %885 = vmatpush.bf16.msra.mxu0 %v729
    %886 = vmatmul.bf16.gmra.mxu0 %v428
    %v887 = vpop.f32.mrf.mxu0
    %v888 = vadd.f32 %v399, %v887
    %v889 = vpop.f32.mrf.mxu0
    %v890 = vadd.f32 %v399, %v889
    %891 = vdwg.mxu0
    %892 = vmatpush.bf16.msra.mxu0 %v744
    %893 = vmatpush.bf16.msra.mxu0 %v743
    %894 = vmatpush.bf16.msra.mxu0 %v742
    %895 = vmatpush.bf16.msra.mxu0 %v741
    %896 = vmatpush.bf16.msra.mxu0 %v740
    %897 = vmatpush.bf16.msra.mxu0 %v739
    %898 = vmatpush.bf16.msra.mxu0 %v738
    %899 = vmatpush.bf16.msra.mxu0 %v737
    %900 = vmatmul.bf16.gmra.mxu0 %v429
    %v901 = vpop.f32.mrf.mxu0
    %v902 = vadd.f32 %v888, %v901
    %v903 = vpop.f32.mrf.mxu0
    %v904 = vadd.f32 %v890, %v903
    %905 = vdwg.mxu0
    %906 = vmatpush.bf16.msra.mxu0 %v752
    %907 = vmatpush.bf16.msra.mxu0 %v751
    %908 = vmatpush.bf16.msra.mxu0 %v750
    %909 = vmatpush.bf16.msra.mxu0 %v749
    %910 = vmatpush.bf16.msra.mxu0 %v748
    %911 = vmatpush.bf16.msra.mxu0 %v747
    %912 = vmatpush.bf16.msra.mxu0 %v746
    %913 = vmatpush.bf16.msra.mxu0 %v745
    %914 = vmatmul.bf16.gmra.mxu0 %v430
    %v915 = vpop.f32.mrf.mxu0
    %v916 = vadd.f32 %v902, %v915
    %v917 = vpop.f32.mrf.mxu0
    %v918 = vadd.f32 %v904, %v917
    %919 = vdwg.mxu0
    %920 = vmatpush.bf16.msra.mxu0 %v760
    %921 = vmatpush.bf16.msra.mxu0 %v759
    %922 = vmatpush.bf16.msra.mxu0 %v758
    %923 = vmatpush.bf16.msra.mxu0 %v757
    %924 = vmatpush.bf16.msra.mxu0 %v756
    %925 = vmatpush.bf16.msra.mxu0 %v755
    %926 = vmatpush.bf16.msra.mxu0 %v754
    %927 = vmatpush.bf16.msra.mxu0 %v753
    %928 = vmatmul.bf16.gmra.mxu0 %v431
    %v929 = vpop.f32.mrf.mxu0
    %v930 = vadd.f32 %v916, %v929
    %v931 = vpop.f32.mrf.mxu0
    %v932 = vadd.f32 %v918, %v931
    %933 = vdwg.mxu0
    %934 = vmatpush.bf16.msra.mxu0 %v768
    %935 = vmatpush.bf16.msra.mxu0 %v767
    %936 = vmatpush.bf16.msra.mxu0 %v766
    %937 = vmatpush.bf16.msra.mxu0 %v765
    %938 = vmatpush.bf16.msra.mxu0 %v764
    %939 = vmatpush.bf16.msra.mxu0 %v763
    %940 = vmatpush.bf16.msra.mxu0 %v762
    %941 = vmatpush.bf16.msra.mxu0 %v761
    %942 = vmatmul.bf16.gmra.mxu0 %v432
    %v943 = vpop.f32.mrf.mxu0
    %v944 = vadd.f32 %v930, %v943
    %v945 = vpop.f32.mrf.mxu0
    %v946 = vadd.f32 %v932, %v945
    %947 = vdwg.mxu0
    %948 = vmatpush.bf16.msra.mxu0 %v776
    %949 = vmatpush.bf16.msra.mxu0 %v775
    %950 = vmatpush.bf16.msra.mxu0 %v774
    %951 = vmatpush.bf16.msra.mxu0 %v773
    %952 = vmatpush.bf16.msra.mxu0 %v772
    %953 = vmatpush.bf16.msra.mxu0 %v771
    %954 = vmatpush.bf16.msra.mxu0 %v770
    %955 = vmatpush.bf16.msra.mxu0 %v769
    %956 = vmatmul.bf16.gmra.mxu0 %v433
    %v957 = vpop.f32.mrf.mxu0
    %v958 = vadd.f32 %v944, %v957
    %v959 = vpop.f32.mrf.mxu0
    %v960 = vadd.f32 %v946, %v959
    %961 = vdwg.mxu0
    %962 = vmatpush.bf16.msra.mxu0 %v784
    %963 = vmatpush.bf16.msra.mxu0 %v783
    %964 = vmatpush.bf16.msra.mxu0 %v782
    %965 = vmatpush.bf16.msra.mxu0 %v781
    %966 = vmatpush.bf16.msra.mxu0 %v780
    %967 = vmatpush.bf16.msra.mxu0 %v779
    %968 = vmatpush.bf16.msra.mxu0 %v778
    %969 = vmatpush.bf16.msra.mxu0 %v777
    %970 = vmatmul.bf16.gmra.mxu0 %v434
    %v971 = vpop.f32.mrf.mxu0
    %v972 = vadd.f32 %v958, %v971
    %v973 = vpop.f32.mrf.mxu0
    %v974 = vadd.f32 %v960, %v973
    %975 = vdwg.mxu0
    %976 = vmatpush.bf16.msra.mxu0 %v792
    %977 = vmatpush.bf16.msra.mxu0 %v791
    %978 = vmatpush.bf16.msra.mxu0 %v790
    %979 = vmatpush.bf16.msra.mxu0 %v789
    %980 = vmatpush.bf16.msra.mxu0 %v788
    %981 = vmatpush.bf16.msra.mxu0 %v787
    %982 = vmatpush.bf16.msra.mxu0 %v786
    %983 = vmatpush.bf16.msra.mxu0 %v785
    %984 = vmatmul.bf16.gmra.mxu0 %v435
    %v985 = vpop.f32.mrf.mxu0
    %v986 = vadd.f32 %v972, %v985
    %v987 = vpop.f32.mrf.mxu0
    %v988 = vadd.f32 %v974, %v987
    %989 = vdwg.mxu0
    %990 = vmatpush.bf16.msra.mxu0 0
    %991 = vmatpush.bf16.msra.mxu0 %v876
    %992 = vmatpush.bf16.msra.mxu0 %v798
    %993 = vmatpush.bf16.msra.mxu0 %v797
    %994 = vmatpush.bf16.msra.mxu0 %v796
    %995 = vmatpush.bf16.msra.mxu0 %v795
    %996 = vmatpush.bf16.msra.mxu0 %v794
    %997 = vmatpush.bf16.msra.mxu0 %v793
    %998 = vmatmul.bf16.gmra.mxu0 %v872
    %v999 = vpop.f32.mrf.mxu0
    %v1000 = vadd.f32 %v986, %v999
    %v1001 = vpop.f32.mrf.mxu0
    %v1002 = vadd.f32 %v988, %v1001
    %1003 = vdwg.mxu0
    %v1004 = vld [vmem:[#allocation14] sm:$0xff]
    %v1005 = vld [vmem:[#allocation14 + $0x8] sm:$0x1]
    %v1006 = vstv %s244
    %1008 = vst [vmem:[#allocation1] ss:$9 sm:$0xff] %v1004
    %v1009 = vld [vmem:[#allocation1] sm:$0xff]
    %v1010 = vld [vmem:[#allocation1 + $0x9] sm:$0xff]
    %v1011 = vld [vmem:[#allocation1 + $0x12] sm:$0xff]
    %v1012 = vld [vmem:[#allocation1 + $0x1b] sm:$0xff]
    %v1013 = vld [vmem:[#allocation1 + $0x24] sm:$0xff]
    %v1014 = vld [vmem:[#allocation1 + $0x2d] sm:$0xff]
    %v1015 = vld [vmem:[#allocation1 + $0x36] sm:$0xff]
    %v1016 = vld [vmem:[#allocation1 + $0x3f] sm:$0xff]
    %1018 = vst [vmem:[#allocation1] ss:$9 sm:$0xff] %v1005
    %v1019 = vld [vmem:[#allocation1] sm:$0xff]
    %v1028 = vsel %vm870, %v1019, 0
    %1030 = vmatpush.bf16.xpose.msra.mxu0 0
    %1031 = vmatpush.bf16.xpose.msra.mxu0 0
    %1032 = vmatpush.bf16.xpose.msra.mxu0 0
    %1033 = vmatpush.bf16.xpose.msra.mxu0 0
    %1034 = vmatpush.bf16.xpose.msra.mxu0 0
    %1035 = vmatpush.bf16.xpose.msra.mxu0 0
    %1036 = vmatpush.bf16.xpose.msra.mxu0 0
    %1037 = vmatpush.bf16.xpose.msra.mxu0 %v428
    %1038 = vmatmul.bf16.gmra.mxu0 %v1009
    %v1039 = vpop.f32.mrf.mxu0
    %v1040 = vadd.f32 %v1006, %v1039
    %v1041 = vpop.f32.mrf.mxu0
    %1042 = vdwg.mxu0
    %1043 = vmatpush.bf16.xpose.msra.mxu0 0
    %1044 = vmatpush.bf16.xpose.msra.mxu0 0
    %1045 = vmatpush.bf16.xpose.msra.mxu0 0
    %1046 = vmatpush.bf16.xpose.msra.mxu0 0
    %1047 = vmatpush.bf16.xpose.msra.mxu0 0
    %1048 = vmatpush.bf16.xpose.msra.mxu0 0
    %1049 = vmatpush.bf16.xpose.msra.mxu0 0
    %1050 = vmatpush.bf16.xpose.msra.mxu0 %v429
    %1051 = vmatmul.bf16.gmra.mxu0 %v1010
    %v1052 = vpop.f32.mrf.mxu0
    %v1053 = vadd.f32 %v1040, %v1052
    %v1054 = vpop.f32.mrf.mxu0
    %1055 = vdwg.mxu0
    %1056 = vmatpush.bf16.xpose.msra.mxu0 0
    %1057 = vmatpush.bf16.xpose.msra.mxu0 0
    %1058 = vmatpush.bf16.xpose.msra.mxu0 0
    %1059 = vmatpush.bf16.xpose.msra.mxu0 0
    %1060 = vmatpush.bf16.xpose.msra.mxu0 0
    %1061 = vmatpush.bf16.xpose.msra.mxu0 0
    %1062 = vmatpush.bf16.xpose.msra.mxu0 0
    %1063 = vmatpush.bf16.xpose.msra.mxu0 %v430
    %1064 = vmatmul.bf16.gmra.mxu0 %v1011
    %v1065 = vpop.f32.mrf.mxu0
    %v1066 = vadd.f32 %v1053, %v1065
    %v1067 = vpop.f32.mrf.mxu0
    %1068 = vdwg.mxu0
    %1069 = vmatpush.bf16.xpose.msra.mxu0 0
    %1070 = vmatpush.bf16.xpose.msra.mxu0 0
    %1071 = vmatpush.bf16.xpose.msra.mxu0 0
    %1072 = vmatpush.bf16.xpose.msra.mxu0 0
    %1073 = vmatpush.bf16.xpose.msra.mxu0 0
    %1074 = vmatpush.bf16.xpose.msra.mxu0 0
    %1075 = vmatpush.bf16.xpose.msra.mxu0 0
    %1076 = vmatpush.bf16.xpose.msra.mxu0 %v431
    %1077 = vmatmul.bf16.gmra.mxu0 %v1012
    %v1078 = vpop.f32.mrf.mxu0
    %v1079 = vadd.f32 %v1066, %v1078
    %v1080 = vpop.f32.mrf.mxu0
    %1081 = vdwg.mxu0
    %1082 = vmatpush.bf16.xpose.msra.mxu0 0
    %1083 = vmatpush.bf16.xpose.msra.mxu0 0
    %1084 = vmatpush.bf16.xpose.msra.mxu0 0
    %1085 = vmatpush.bf16.xpose.msra.mxu0 0
    %1086 = vmatpush.bf16.xpose.msra.mxu0 0
    %1087 = vmatpush.bf16.xpose.msra.mxu0 0
    %1088 = vmatpush.bf16.xpose.msra.mxu0 0
    %1089 = vmatpush.bf16.xpose.msra.mxu0 %v432
    %1090 = vmatmul.bf16.gmra.mxu0 %v1013
    %v1091 = vpop.f32.mrf.mxu0
    %v1092 = vadd.f32 %v1079, %v1091
    %v1093 = vpop.f32.mrf.mxu0
    %1094 = vdwg.mxu0
    %1095 = vmatpush.bf16.xpose.msra.mxu0 0
    %1096 = vmatpush.bf16.xpose.msra.mxu0 0
    %1097 = vmatpush.bf16.xpose.msra.mxu0 0
    %1098 = vmatpush.bf16.xpose.msra.mxu0 0
    %1099 = vmatpush.bf16.xpose.msra.mxu0 0
    %1100 = vmatpush.bf16.xpose.msra.mxu0 0
    %1101 = vmatpush.bf16.xpose.msra.mxu0 0
    %1102 = vmatpush.bf16.xpose.msra.mxu0 %v433
    %1103 = vmatmul.bf16.gmra.mxu0 %v1014
    %v1104 = vpop.f32.mrf.mxu0
    %v1105 = vadd.f32 %v1092, %v1104
    %v1106 = vpop.f32.mrf.mxu0
    %1107 = vdwg.mxu0
    %1108 = vmatpush.bf16.xpose.msra.mxu0 0
    %1109 = vmatpush.bf16.xpose.msra.mxu0 0
    %1110 = vmatpush.bf16.xpose.msra.mxu0 0
    %1111 = vmatpush.bf16.xpose.msra.mxu0 0
    %1112 = vmatpush.bf16.xpose.msra.mxu0 0
    %1113 = vmatpush.bf16.xpose.msra.mxu0 0
    %1114 = vmatpush.bf16.xpose.msra.mxu0 0
    %1115 = vmatpush.bf16.xpose.msra.mxu0 %v434
    %1116 = vmatmul.bf16.gmra.mxu0 %v1015
    %v1117 = vpop.f32.mrf.mxu0
    %v1118 = vadd.f32 %v1105, %v1117
    %v1119 = vpop.f32.mrf.mxu0
    %1120 = vdwg.mxu0
    %1121 = vmatpush.bf16.xpose.msra.mxu0 0
    %1122 = vmatpush.bf16.xpose.msra.mxu0 0
    %1123 = vmatpush.bf16.xpose.msra.mxu0 0
    %1124 = vmatpush.bf16.xpose.msra.mxu0 0
    %1125 = vmatpush.bf16.xpose.msra.mxu0 0
    %1126 = vmatpush.bf16.xpose.msra.mxu0 0
    %1127 = vmatpush.bf16.xpose.msra.mxu0 0
    %1128 = vmatpush.bf16.xpose.msra.mxu0 %v435
    %1129 = vmatmul.bf16.gmra.mxu0 %v1016
    %v1130 = vpop.f32.mrf.mxu0
    %v1131 = vadd.f32 %v1118, %v1130
    %v1132 = vpop.f32.mrf.mxu0
    %1133 = vdwg.mxu0
    %1134 = vmatpush.bf16.xpose.msra.mxu0 0
    %1135 = vmatpush.bf16.xpose.msra.mxu0 0
    %1136 = vmatpush.bf16.xpose.msra.mxu0 0
    %1137 = vmatpush.bf16.xpose.msra.mxu0 0
    %1138 = vmatpush.bf16.xpose.msra.mxu0 0
    %1139 = vmatpush.bf16.xpose.msra.mxu0 0
    %1140 = vmatpush.bf16.xpose.msra.mxu0 0
    %1141 = vmatpush.bf16.xpose.msra.mxu0 %v872
    %1142 = vmatmul.bf16.gmra.mxu0 %v1028
    %v1143 = vpop.f32.mrf.mxu0
    %v1144 = vadd.f32 %v1131, %v1143
    %v1145 = vpop.f32.mrf.mxu0
    %1146 = vdwg.mxu0
    %1148 = vset.pattern.permute.xlu0 0
    %1149 = vperm.xlu0 %1148, %v1000
    %v1150 = vpop.permute.xlu0 %1149
    %1153 = vset.pattern.permute.xlu0 0
    %1154 = vperm.xlu0 %1153, %v1002
    %v1155 = vpop.permute.xlu0 %1154
    %v1157 = vperm.slane %v1144, 0
    %v1158 = vadd.f32 %v1150, %v1157
    %v1159 = vadd.f32 %v1155, %v1157
    %v1160 = vxor.u32 %v1158, 2147483648
    %v1161 = vxor.u32 %v1159, 2147483648
    %v1162 = vmul.f32 %v1160, 1.442695
    %v1163 = vpow.pop %v1162
    %v1164 = vmul.f32 %v1161, 1.442695
    %v1165 = vpow.pop %v1164
    %v1166 = vadd.f32 %v1163, 1.0
    %v1167 = vadd.f32 %v1165, 1.0
    %v1168 = vrcp.pop %v1166
    %v1169 = vmul.f32 %v1166, %v1168
    %v1170 = vsub.f32 1.0, %v1169
    %v1171 = vmul.f32 %v1168, %v1170
    %v1172 = vadd.f32 %v1168, %v1171
    %vm1173 = vweird.f32 %v1166
    %vm1174 = vweird.f32 %v1168
    %vm1175 = vmor %vm1173, %vm1174
    %v1176 = vsel %vm1175, %v1168, %v1172
    %v1177 = vand.u32 2147483647, %v1166
    %vm1178 = vcmp.eq.f32.partialorder %v1177, 8.507059e+37
    %v1179 = vand.u32 %v1166, 2147483648
    %v1180 = vor.u32 1.1754944e-38, %v1179
    %v1181 = vsel %vm1178, %v1180, %v1176
    %v1182 = vmul.f32 1.0, %v1181
    %v1183 = vrcp.pop %v1167
    %v1184 = vmul.f32 %v1167, %v1183
    %v1185 = vsub.f32 1.0, %v1184
    %v1186 = vmul.f32 %v1183, %v1185
    %v1187 = vadd.f32 %v1183, %v1186
    %vm1188 = vweird.f32 %v1167
    %vm1189 = vweird.f32 %v1183
    %vm1190 = vmor %vm1188, %vm1189
    %v1191 = vsel %vm1190, %v1183, %v1187
    %v1192 = vand.u32 2147483647, %v1167
    %vm1193 = vcmp.eq.f32.partialorder %v1192, 8.507059e+37
    %v1194 = vand.u32 %v1167, 2147483648
    %v1195 = vor.u32 1.1754944e-38, %v1194
    %v1196 = vsel %vm1193, %v1195, %v1191
    %v1197 = vmul.f32 1.0, %v1196
    %v1198 = vld [vmem:[#allocation13] sm:$0xff]
    %v1199 = vld [vmem:[#allocation13 + $0x8] sm:$0xff]
    %v1200 = vstv %s239
    %v1201 = vmul.f32 %v1200, %v1198
    %v1202 = vmul.f32 %v1200, %v1199
    %v1203 = vstv %s240
    %v1204 = vmul.f32 %v1203, %v1182
    %v1205 = vmul.f32 %v1203, %v1197
    %v1206 = vadd.f32 %v1201, %v1204
    %v1207 = vadd.f32 %v1202, %v1205
    %v1208 = vlaneseq
    %v1209 = vshrl.u32 %v1208, 7
    %v1210 = vadd.s32 %v1209, 8
    %v1211 = vlaneseq
    %v1212 = vand.u32 %v1211, 127
    %vm1213 = vcmp.eq.s32.totalorder %v1209, %v1212
    %vm1214 = vcmp.eq.s32.totalorder %v1210, %v1212
    %v1215 = vstv %s241
    %v1216 = vmul.f32 %v1215, %v1206
    %v1217 = vmul.f32 %v1215, %v1207
    %v1218 = vsel %vm1213, %v1216, %v1206
    %v1219 = vsel %vm1214, %v1217, %v1207
    %v1220 = vpack.c.bf16 %v1219, %v1218
    %v1221 = vstv %s242
    %v1222 = vmul.f32 %v1221, %v1206
    %v1223 = vmul.f32 %v1221, %v1207
    %v1224 = vsel %vm1213, %v1222, %v1206
    %v1225 = vsel %vm1214, %v1223, %v1207
    %v1226 = vpack.c.bf16 %v1225, %v1224
    %v1229 = vunpack.c.l.b16 %v255
    %v1230 = vunpack.c.l.b16 %v256
    %v1231 = vpack.c.b16 %v1230, %v1229
    %vm1233 = vcmask 130048
    %v1235 = vsel %vm1233, %v1231, 0
    %1237 = vmatpush.bf16.msra.mxu0 0
    %1238 = vmatpush.bf16.msra.mxu0 0
    %1239 = vmatpush.bf16.msra.mxu0 0
    %1240 = vmatpush.bf16.msra.mxu0 0
    %1241 = vmatpush.bf16.msra.mxu0 0
    %1242 = vmatpush.bf16.msra.mxu0 0
    %1243 = vmatpush.bf16.msra.mxu0 0
    %1244 = vmatpush.bf16.msra.mxu0 %v428
    %1245 = vmatmul.bf16.gmra.mxu0 %v1235
    %v1246 = vpop.f32.mrf.mxu0
    %v1247 = vadd.f32 0.0, %v1246
    %v1248 = vpop.f32.mrf.mxu0
    %v1249 = vadd.f32 0.0, %v1248
    %1250 = vdwg.mxu0
    %1251 = vmatpush.bf16.msra.mxu0 0
    %1252 = vmatpush.bf16.msra.mxu0 0
    %1253 = vmatpush.bf16.msra.mxu0 0
    %1254 = vmatpush.bf16.msra.mxu0 0
    %1255 = vmatpush.bf16.msra.mxu0 0
    %1256 = vmatpush.bf16.msra.mxu0 0
    %1257 = vmatpush.bf16.msra.mxu0 0
    %1258 = vmatpush.bf16.msra.mxu0 %v429
    %1259 = vmatmul.bf16.gmra.mxu0 %v1235
    %v1260 = vpop.f32.mrf.mxu0
    %v1261 = vadd.f32 0.0, %v1260
    %v1262 = vpop.f32.mrf.mxu0
    %v1263 = vadd.f32 0.0, %v1262
    %1264 = vdwg.mxu0
    %1265 = vmatpush.bf16.msra.mxu0 0
    %1266 = vmatpush.bf16.msra.mxu0 0
    %1267 = vmatpush.bf16.msra.mxu0 0
    %1268 = vmatpush.bf16.msra.mxu0 0
    %1269 = vmatpush.bf16.msra.mxu0 0
    %1270 = vmatpush.bf16.msra.mxu0 0
    %1271 = vmatpush.bf16.msra.mxu0 0
    %1272 = vmatpush.bf16.msra.mxu0 %v430
    %1273 = vmatmul.bf16.gmra.mxu0 %v1235
    %v1274 = vpop.f32.mrf.mxu0
    %v1275 = vadd.f32 0.0, %v1274
    %v1276 = vpop.f32.mrf.mxu0
    %v1277 = vadd.f32 0.0, %v1276
    %1278 = vdwg.mxu0
    %1279 = vmatpush.bf16.msra.mxu0 0
    %1280 = vmatpush.bf16.msra.mxu0 0
    %1281 = vmatpush.bf16.msra.mxu0 0
    %1282 = vmatpush.bf16.msra.mxu0 0
    %1283 = vmatpush.bf16.msra.mxu0 0
    %1284 = vmatpush.bf16.msra.mxu0 0
    %1285 = vmatpush.bf16.msra.mxu0 0
    %1286 = vmatpush.bf16.msra.mxu0 %v431
    %1287 = vmatmul.bf16.gmra.mxu0 %v1235
    %v1288 = vpop.f32.mrf.mxu0
    %v1289 = vadd.f32 0.0, %v1288
    %v1290 = vpop.f32.mrf.mxu0
    %v1291 = vadd.f32 0.0, %v1290
    %1292 = vdwg.mxu0
    %1293 = vmatpush.bf16.msra.mxu0 0
    %1294 = vmatpush.bf16.msra.mxu0 0
    %1295 = vmatpush.bf16.msra.mxu0 0
    %1296 = vmatpush.bf16.msra.mxu0 0
    %1297 = vmatpush.bf16.msra.mxu0 0
    %1298 = vmatpush.bf16.msra.mxu0 0
    %1299 = vmatpush.bf16.msra.mxu0 0
    %1300 = vmatpush.bf16.msra.mxu0 %v432
    %1301 = vmatmul.bf16.gmra.mxu0 %v1235
    %v1302 = vpop.f32.mrf.mxu0
    %v1303 = vadd.f32 0.0, %v1302
    %v1304 = vpop.f32.mrf.mxu0
    %v1305 = vadd.f32 0.0, %v1304
    %1306 = vdwg.mxu0
    %1307 = vmatpush.bf16.msra.mxu0 0
    %1308 = vmatpush.bf16.msra.mxu0 0
    %1309 = vmatpush.bf16.msra.mxu0 0
    %1310 = vmatpush.bf16.msra.mxu0 0
    %1311 = vmatpush.bf16.msra.mxu0 0
    %1312 = vmatpush.bf16.msra.mxu0 0
    %1313 = vmatpush.bf16.msra.mxu0 0
    %1314 = vmatpush.bf16.msra.mxu0 %v433
    %1315 = vmatmul.bf16.gmra.mxu0 %v1235
    %v1316 = vpop.f32.mrf.mxu0
    %v1317 = vadd.f32 0.0, %v1316
    %v1318 = vpop.f32.mrf.mxu0
    %v1319 = vadd.f32 0.0, %v1318
    %1320 = vdwg.mxu0
    %1321 = vmatpush.bf16.msra.mxu0 0
    %1322 = vmatpush.bf16.msra.mxu0 0
    %1323 = vmatpush.bf16.msra.mxu0 0
    %1324 = vmatpush.bf16.msra.mxu0 0
    %1325 = vmatpush.bf16.msra.mxu0 0
    %1326 = vmatpush.bf16.msra.mxu0 0
    %1327 = vmatpush.bf16.msra.mxu0 0
    %1328 = vmatpush.bf16.msra.mxu0 %v434
    %1329 = vmatmul.bf16.gmra.mxu0 %v1235
    %v1330 = vpop.f32.mrf.mxu0
    %v1331 = vadd.f32 0.0, %v1330
    %v1332 = vpop.f32.mrf.mxu0
    %v1333 = vadd.f32 0.0, %v1332
    %1334 = vdwg.mxu0
    %1335 = vmatpush.bf16.msra.mxu0 0
    %1336 = vmatpush.bf16.msra.mxu0 0
    %1337 = vmatpush.bf16.msra.mxu0 0
    %1338 = vmatpush.bf16.msra.mxu0 0
    %1339 = vmatpush.bf16.msra.mxu0 0
    %1340 = vmatpush.bf16.msra.mxu0 0
    %1341 = vmatpush.bf16.msra.mxu0 0
    %1342 = vmatpush.bf16.msra.mxu0 %v435
    %1343 = vmatmul.bf16.gmra.mxu0 %v1235
    %v1344 = vpop.f32.mrf.mxu0
    %v1345 = vadd.f32 0.0, %v1344
    %v1346 = vpop.f32.mrf.mxu0
    %v1347 = vadd.f32 0.0, %v1346
    %1348 = vdwg.mxu0
    %1349 = vmatpush.bf16.msra.mxu0 0
    %1350 = vmatpush.bf16.msra.mxu0 0
    %1351 = vmatpush.bf16.msra.mxu0 0
    %1352 = vmatpush.bf16.msra.mxu0 0
    %1353 = vmatpush.bf16.msra.mxu0 0
    %1354 = vmatpush.bf16.msra.mxu0 0
    %1355 = vmatpush.bf16.msra.mxu0 0
    %1356 = vmatpush.bf16.msra.mxu0 %v436
    %1357 = vmatmul.bf16.gmra.mxu0 %v1235
    %v1358 = vpop.f32.mrf.mxu0
    %v1359 = vadd.f32 0.0, %v1358
    %v1360 = vpop.f32.mrf.mxu0
    %v1361 = vadd.f32 0.0, %v1360
    %1362 = vdwg.mxu0
    %v1363 = vpack.c.bf16 %v1247, %v1247
    %v1364 = vpack.c.bf16 %v1261, %v1261
    %v1365 = vpack.c.bf16 %v1275, %v1275
    %v1366 = vpack.c.bf16 %v1289, %v1289
    %v1367 = vpack.c.bf16 %v1303, %v1303
    %v1368 = vpack.c.bf16 %v1317, %v1317
    %v1369 = vpack.c.bf16 %v1331, %v1331
    %v1370 = vpack.c.bf16 %v1345, %v1345
    %v1371 = vpack.c.bf16 %v1359, %v1359
    %v1372 = vpack.c.bf16 %v1249, %v1249
    %v1373 = vpack.c.bf16 %v1263, %v1263
    %v1374 = vpack.c.bf16 %v1277, %v1277
    %v1375 = vpack.c.bf16 %v1291, %v1291
    %v1376 = vpack.c.bf16 %v1305, %v1305
    %v1377 = vpack.c.bf16 %v1319, %v1319
    %v1378 = vpack.c.bf16 %v1333, %v1333
    %v1379 = vpack.c.bf16 %v1347, %v1347
    %v1380 = vpack.c.bf16 %v1361, %v1361
    %s1381 = smul.u32 4, 142
    %s1382 = smul.u32 %s1381, 4
    %s1383 = sshll.u32 %s1382, 4
    %1384 = dma.done [#allocation8], %s1383
    %v1385 = vld [vmem:[#allocation2] sm:$0xff]
    %v1386 = vld [vmem:[#allocation2 + $0x8] sm:$0xff]
    %v1387 = vld [vmem:[#allocation2 + $0x10] sm:$0xff]
    %v1388 = vld [vmem:[#allocation2 + $0x18] sm:$0xff]
    %v1389 = vld [vmem:[#allocation2 + $0x20] sm:$0xff]
    %v1390 = vld [vmem:[#allocation2 + $0x28] sm:$0xff]
    %v1391 = vld [vmem:[#allocation2 + $0x30] sm:$0xff]
    %v1392 = vld [vmem:[#allocation2 + $0x38] sm:$0xff]
    %v1393 = vld [vmem:[#allocation2 + $0x40] sm:$0xff]
    %v1394 = vld [vmem:[#allocation2 + $0x48] sm:$0xff]
    %v1395 = vld [vmem:[#allocation2 + $0x50] sm:$0xff]
    %v1396 = vld [vmem:[#allocation2 + $0x58] sm:$0xff]
    %v1397 = vld [vmem:[#allocation2 + $0x60] sm:$0xff]
    %v1398 = vld [vmem:[#allocation2 + $0x68] sm:$0xff]
    %v1399 = vld [vmem:[#allocation2 + $0x70] sm:$0xff]
    %v1400 = vld [vmem:[#allocation2 + $0x78] sm:$0xff]
    %v1401 = vld [vmem:[#allocation2 + $0x80] sm:$0xff]
    %v1402 = vld [vmem:[#allocation2 + $0x88] sm:$0xff]
    %v1403 = vld [vmem:[#allocation2 + $0x90] sm:$0xff]
    %v1404 = vld [vmem:[#allocation2 + $0x98] sm:$0xff]
    %v1405 = vld [vmem:[#allocation2 + $0xa0] sm:$0xff]
    %v1406 = vld [vmem:[#allocation2 + $0xa8] sm:$0xff]
    %v1407 = vld [vmem:[#allocation2 + $0xb0] sm:$0xff]
    %v1408 = vld [vmem:[#allocation2 + $0xb8] sm:$0xff]
    %v1409 = vld [vmem:[#allocation2 + $0xc0] sm:$0xff]
    %v1410 = vld [vmem:[#allocation2 + $0xc8] sm:$0xff]
    %v1411 = vld [vmem:[#allocation2 + $0xd0] sm:$0xff]
    %v1412 = vld [vmem:[#allocation2 + $0xd8] sm:$0xff]
    %v1413 = vld [vmem:[#allocation2 + $0xe0] sm:$0xff]
    %v1414 = vld [vmem:[#allocation2 + $0xe8] sm:$0xff]
    %v1415 = vld [vmem:[#allocation2 + $0xf0] sm:$0xff]
    %v1416 = vld [vmem:[#allocation2 + $0xf8] sm:$0xff]
    %v1417 = vld [vmem:[#allocation2 + $0x100] sm:$0xff]
    %v1418 = vld [vmem:[#allocation2 + $0x108] sm:$0xff]
    %v1419 = vld [vmem:[#allocation2 + $0x110] sm:$0xff]
    %v1420 = vld [vmem:[#allocation2 + $0x118] sm:$0xff]
    %v1421 = vld [vmem:[#allocation2 + $0x120] sm:$0xff]
    %v1422 = vld [vmem:[#allocation2 + $0x128] sm:$0xff]
    %v1423 = vld [vmem:[#allocation2 + $0x130] sm:$0xff]
    %v1424 = vld [vmem:[#allocation2 + $0x138] sm:$0xff]
    %v1425 = vld [vmem:[#allocation2 + $0x140] sm:$0xff]
    %v1426 = vld [vmem:[#allocation2 + $0x148] sm:$0xff]
    %v1427 = vld [vmem:[#allocation2 + $0x150] sm:$0xff]
    %v1428 = vld [vmem:[#allocation2 + $0x158] sm:$0xff]
    %v1429 = vld [vmem:[#allocation2 + $0x160] sm:$0xff]
    %v1430 = vld [vmem:[#allocation2 + $0x168] sm:$0xff]
    %v1431 = vld [vmem:[#allocation2 + $0x170] sm:$0xff]
    %v1432 = vld [vmem:[#allocation2 + $0x178] sm:$0xff]
    %v1433 = vld [vmem:[#allocation2 + $0x180] sm:$0xff]
    %v1434 = vld [vmem:[#allocation2 + $0x188] sm:$0xff]
    %v1435 = vld [vmem:[#allocation2 + $0x190] sm:$0xff]
    %v1436 = vld [vmem:[#allocation2 + $0x198] sm:$0xff]
    %v1437 = vld [vmem:[#allocation2 + $0x1a0] sm:$0xff]
    %v1438 = vld [vmem:[#allocation2 + $0x1a8] sm:$0xff]
    %v1439 = vld [vmem:[#allocation2 + $0x1b0] sm:$0xff]
    %v1440 = vld [vmem:[#allocation2 + $0x1b8] sm:$0xff]
    %v1441 = vld [vmem:[#allocation2 + $0x1c0] sm:$0xff]
    %v1442 = vld [vmem:[#allocation2 + $0x1c8] sm:$0xff]
    %v1443 = vld [vmem:[#allocation2 + $0x1d0] sm:$0xff]
    %v1444 = vld [vmem:[#allocation2 + $0x1d8] sm:$0xff]
    %v1445 = vld [vmem:[#allocation2 + $0x1e0] sm:$0xff]
    %v1446 = vld [vmem:[#allocation2 + $0x1e8] sm:$0xff]
    %v1447 = vld [vmem:[#allocation2 + $0x1f0] sm:$0xff]
    %v1448 = vld [vmem:[#allocation2 + $0x1f8] sm:$0xff]
    %v1449 = vld [vmem:[#allocation2 + $0x200] sm:$0xff]
    %v1450 = vld [vmem:[#allocation2 + $0x208] sm:$0xff]
    %v1451 = vld [vmem:[#allocation2 + $0x210] sm:$0xff]
    %v1452 = vld [vmem:[#allocation2 + $0x218] sm:$0xff]
    %v1453 = vld [vmem:[#allocation2 + $0x220] sm:$0xff]
    %v1454 = vld [vmem:[#allocation2 + $0x228] sm:$0xff]
    %v1455 = vld [vmem:[#allocation2 + $0x230] sm:$0xff]
    %v1456 = vld [vmem:[#allocation2 + $0x238] sm:$0xff]
    %v1457 = vld [vmem:[#allocation2 + $0x240] sm:$0xff]
    %v1458 = vld [vmem:[#allocation2 + $0x248] sm:$0xff]
    %v1459 = vld [vmem:[#allocation2 + $0x250] sm:$0xff]
    %v1460 = vld [vmem:[#allocation2 + $0x258] sm:$0xff]
    %v1461 = vld [vmem:[#allocation2 + $0x260] sm:$0xff]
    %v1462 = vld [vmem:[#allocation2 + $0x268] sm:$0xff]
    %v1463 = vld [vmem:[#allocation2 + $0x270] sm:$0xff]
    %v1464 = vld [vmem:[#allocation2 + $0x278] sm:$0xff]
    %v1465 = vld [vmem:[#allocation2 + $0x280] sm:$0xff]
    %v1466 = vld [vmem:[#allocation2 + $0x288] sm:$0xff]
    %v1467 = vld [vmem:[#allocation2 + $0x290] sm:$0xff]
    %v1468 = vld [vmem:[#allocation2 + $0x298] sm:$0xff]
    %v1469 = vld [vmem:[#allocation2 + $0x2a0] sm:$0xff]
    %v1470 = vld [vmem:[#allocation2 + $0x2a8] sm:$0xff]
    %v1471 = vld [vmem:[#allocation2 + $0x2b0] sm:$0xff]
    %v1472 = vld [vmem:[#allocation2 + $0x2b8] sm:$0xff]
    %v1473 = vld [vmem:[#allocation2 + $0x2c0] sm:$0xff]
    %v1474 = vld [vmem:[#allocation2 + $0x2c8] sm:$0xff]
    %v1475 = vld [vmem:[#allocation2 + $0x2d0] sm:$0xff]
    %v1476 = vld [vmem:[#allocation2 + $0x2d8] sm:$0xff]
    %v1477 = vld [vmem:[#allocation2 + $0x2e0] sm:$0xff]
    %v1478 = vld [vmem:[#allocation2 + $0x2e8] sm:$0xff]
    %v1479 = vld [vmem:[#allocation2 + $0x2f0] sm:$0xff]
    %v1480 = vld [vmem:[#allocation2 + $0x2f8] sm:$0xff]
    %v1481 = vld [vmem:[#allocation2 + $0x300] sm:$0xff]
    %v1482 = vld [vmem:[#allocation2 + $0x308] sm:$0xff]
    %v1483 = vld [vmem:[#allocation2 + $0x310] sm:$0xff]
    %v1484 = vld [vmem:[#allocation2 + $0x318] sm:$0xff]
    %v1485 = vld [vmem:[#allocation2 + $0x320] sm:$0xff]
    %v1486 = vld [vmem:[#allocation2 + $0x328] sm:$0xff]
    %v1487 = vld [vmem:[#allocation2 + $0x330] sm:$0xff]
    %v1488 = vld [vmem:[#allocation2 + $0x338] sm:$0xff]
    %v1489 = vld [vmem:[#allocation2 + $0x340] sm:$0xff]
    %v1490 = vld [vmem:[#allocation2 + $0x348] sm:$0xff]
    %v1491 = vld [vmem:[#allocation2 + $0x350] sm:$0xff]
    %v1492 = vld [vmem:[#allocation2 + $0x358] sm:$0xff]
    %v1493 = vld [vmem:[#allocation2 + $0x360] sm:$0xff]
    %v1494 = vld [vmem:[#allocation2 + $0x368] sm:$0xff]
    %v1495 = vld [vmem:[#allocation2 + $0x370] sm:$0xff]
    %v1496 = vld [vmem:[#allocation2 + $0x378] sm:$0xff]
    %v1497 = vld [vmem:[#allocation2 + $0x380] sm:$0xff]
    %v1498 = vld [vmem:[#allocation2 + $0x388] sm:$0xff]
    %v1499 = vld [vmem:[#allocation2 + $0x390] sm:$0xff]
    %v1500 = vld [vmem:[#allocation2 + $0x398] sm:$0xff]
    %v1501 = vld [vmem:[#allocation2 + $0x3a0] sm:$0xff]
    %v1502 = vld [vmem:[#allocation2 + $0x3a8] sm:$0xff]
    %v1503 = vld [vmem:[#allocation2 + $0x3b0] sm:$0xff]
    %v1504 = vld [vmem:[#allocation2 + $0x3b8] sm:$0xff]
    %v1505 = vld [vmem:[#allocation2 + $0x3c0] sm:$0xff]
    %v1506 = vld [vmem:[#allocation2 + $0x3c8] sm:$0xff]
    %v1507 = vld [vmem:[#allocation2 + $0x3d0] sm:$0xff]
    %v1508 = vld [vmem:[#allocation2 + $0x3d8] sm:$0xff]
    %v1509 = vld [vmem:[#allocation2 + $0x3e0] sm:$0xff]
    %v1510 = vld [vmem:[#allocation2 + $0x3e8] sm:$0xff]
    %v1511 = vld [vmem:[#allocation2 + $0x3f0] sm:$0xff]
    %v1512 = vld [vmem:[#allocation2 + $0x3f8] sm:$0xff]
    %v1513 = vld [vmem:[#allocation2 + $0x400] sm:$0xff]
    %v1514 = vld [vmem:[#allocation2 + $0x408] sm:$0xff]
    %v1515 = vld [vmem:[#allocation2 + $0x410] sm:$0xff]
    %v1516 = vld [vmem:[#allocation2 + $0x418] sm:$0xff]
    %v1517 = vld [vmem:[#allocation2 + $0x420] sm:$0xff]
    %v1518 = vld [vmem:[#allocation2 + $0x428] sm:$0xff]
    %v1519 = vld [vmem:[#allocation2 + $0x430] sm:$0xff]
    %v1520 = vld [vmem:[#allocation2 + $0x438] sm:$0xff]
    %v1521 = vld [vmem:[#allocation2 + $0x440] sm:$0xff]
    %v1522 = vld [vmem:[#allocation2 + $0x448] sm:$0xff]
    %v1523 = vld [vmem:[#allocation2 + $0x450] sm:$0xff]
    %v1524 = vld [vmem:[#allocation2 + $0x458] sm:$0xff]
    %v1525 = vld [vmem:[#allocation2 + $0x460] sm:$0xff]
    %v1526 = vld [vmem:[#allocation2 + $0x468] sm:$0xff]
    %v1527 = vld [vmem:[#allocation2 + $0x470] sm:$0xff]
    %v1528 = vld [vmem:[#allocation2 + $0x478] sm:$0xff]
    %v1529 = vld [vmem:[#allocation2 + $0x480] sm:$0xff]
    %v1530 = vld [vmem:[#allocation2 + $0x488] sm:$0xff]
    %v1531 = vld [vmem:[#allocation2 + $0x490] sm:$0xff]
    %v1532 = vld [vmem:[#allocation2 + $0x498] sm:$0xff]
    %v1533 = vld [vmem:[#allocation2 + $0x4a0] sm:$0xff]
    %v1534 = vld [vmem:[#allocation2 + $0x4a8] sm:$0xff]
    %v1535 = vld [vmem:[#allocation2 + $0x4b0] sm:$0xff]
    %v1536 = vld [vmem:[#allocation2 + $0x4b8] sm:$0xff]
    %v1537 = vld [vmem:[#allocation2 + $0x4c0] sm:$0xff]
    %v1538 = vld [vmem:[#allocation2 + $0x4c8] sm:$0xff]
    %v1539 = vld [vmem:[#allocation2 + $0x4d0] sm:$0xff]
    %v1540 = vld [vmem:[#allocation2 + $0x4d8] sm:$0xff]
    %v1541 = vld [vmem:[#allocation2 + $0x4e0] sm:$0xff]
    %v1542 = vld [vmem:[#allocation2 + $0x4e8] sm:$0xff]
    %v1543 = vld [vmem:[#allocation2 + $0x4f0] sm:$0xff]
    %v1544 = vld [vmem:[#allocation2 + $0x4f8] sm:$0xff]
    %v1545 = vld [vmem:[#allocation2 + $0x500] sm:$0xff]
    %v1546 = vld [vmem:[#allocation2 + $0x508] sm:$0xff]
    %v1547 = vld [vmem:[#allocation2 + $0x510] sm:$0xff]
    %v1548 = vld [vmem:[#allocation2 + $0x518] sm:$0xff]
    %v1549 = vld [vmem:[#allocation2 + $0x520] sm:$0xff]
    %v1550 = vld [vmem:[#allocation2 + $0x528] sm:$0xff]
    %v1551 = vld [vmem:[#allocation2 + $0x530] sm:$0xff]
    %v1552 = vld [vmem:[#allocation2 + $0x538] sm:$0xff]
    %v1553 = vld [vmem:[#allocation2 + $0x540] sm:$0xff]
    %v1554 = vld [vmem:[#allocation2 + $0x548] sm:$0xff]
    %v1555 = vld [vmem:[#allocation2 + $0x550] sm:$0xff]
    %v1556 = vld [vmem:[#allocation2 + $0x558] sm:$0xff]
    %v1557 = vld [vmem:[#allocation2 + $0x560] sm:$0xff]
    %v1558 = vld [vmem:[#allocation2 + $0x568] sm:$0xff]
    %v1559 = vld [vmem:[#allocation2 + $0x570] sm:$0xff]
    %v1560 = vld [vmem:[#allocation2 + $0x578] sm:$0xff]
    %v1561 = vld [vmem:[#allocation2 + $0x580] sm:$0xff]
    %v1562 = vld [vmem:[#allocation2 + $0x588] sm:$0xff]
    %v1563 = vld [vmem:[#allocation2 + $0x590] sm:$0xff]
    %v1564 = vld [vmem:[#allocation2 + $0x598] sm:$0xff]
    %v1565 = vld [vmem:[#allocation2 + $0x5a0] sm:$0xff]
    %v1566 = vld [vmem:[#allocation2 + $0x5a8] sm:$0xff]
    %v1567 = vld [vmem:[#allocation2 + $0x5b0] sm:$0xff]
    %v1568 = vld [vmem:[#allocation2 + $0x5b8] sm:$0xff]
    %v1569 = vld [vmem:[#allocation2 + $0x5c0] sm:$0xff]
    %v1570 = vld [vmem:[#allocation2 + $0x5c8] sm:$0xff]
    %v1571 = vld [vmem:[#allocation2 + $0x5d0] sm:$0xff]
    %v1572 = vld [vmem:[#allocation2 + $0x5d8] sm:$0xff]
    %v1573 = vld [vmem:[#allocation2 + $0x5e0] sm:$0xff]
    %v1574 = vld [vmem:[#allocation2 + $0x5e8] sm:$0xff]
    %v1575 = vld [vmem:[#allocation2 + $0x5f0] sm:$0xff]
    %v1576 = vld [vmem:[#allocation2 + $0x5f8] sm:$0xff]
    %v1577 = vld [vmem:[#allocation2 + $0x600] sm:$0xff]
    %v1578 = vld [vmem:[#allocation2 + $0x608] sm:$0xff]
    %v1579 = vld [vmem:[#allocation2 + $0x610] sm:$0xff]
    %v1580 = vld [vmem:[#allocation2 + $0x618] sm:$0xff]
    %v1581 = vld [vmem:[#allocation2 + $0x620] sm:$0xff]
    %v1582 = vld [vmem:[#allocation2 + $0x628] sm:$0xff]
    %v1583 = vld [vmem:[#allocation2 + $0x630] sm:$0xff]
    %v1584 = vld [vmem:[#allocation2 + $0x638] sm:$0xff]
    %v1585 = vld [vmem:[#allocation2 + $0x640] sm:$0xff]
    %v1586 = vld [vmem:[#allocation2 + $0x648] sm:$0xff]
    %v1587 = vld [vmem:[#allocation2 + $0x650] sm:$0xff]
    %v1588 = vld [vmem:[#allocation2 + $0x658] sm:$0xff]
    %v1589 = vld [vmem:[#allocation2 + $0x660] sm:$0xff]
    %v1590 = vld [vmem:[#allocation2 + $0x668] sm:$0xff]
    %v1591 = vld [vmem:[#allocation2 + $0x670] sm:$0xff]
    %v1592 = vld [vmem:[#allocation2 + $0x678] sm:$0xff]
    %v1593 = vld [vmem:[#allocation2 + $0x680] sm:$0xff]
    %v1594 = vld [vmem:[#allocation2 + $0x688] sm:$0xff]
    %v1595 = vld [vmem:[#allocation2 + $0x690] sm:$0xff]
    %v1596 = vld [vmem:[#allocation2 + $0x698] sm:$0xff]
    %v1597 = vld [vmem:[#allocation2 + $0x6a0] sm:$0xff]
    %v1598 = vld [vmem:[#allocation2 + $0x6a8] sm:$0xff]
    %v1599 = vld [vmem:[#allocation2 + $0x6b0] sm:$0xff]
    %v1600 = vld [vmem:[#allocation2 + $0x6b8] sm:$0xff]
    %v1601 = vld [vmem:[#allocation2 + $0x6c0] sm:$0xff]
    %v1602 = vld [vmem:[#allocation2 + $0x6c8] sm:$0xff]
    %v1603 = vld [vmem:[#allocation2 + $0x6d0] sm:$0xff]
    %v1604 = vld [vmem:[#allocation2 + $0x6d8] sm:$0xff]
    %v1605 = vld [vmem:[#allocation2 + $0x6e0] sm:$0xff]
    %v1606 = vld [vmem:[#allocation2 + $0x6e8] sm:$0xff]
    %v1607 = vld [vmem:[#allocation2 + $0x6f0] sm:$0xff]
    %v1608 = vld [vmem:[#allocation2 + $0x6f8] sm:$0xff]
    %v1609 = vld [vmem:[#allocation2 + $0x700] sm:$0xff]
    %v1610 = vld [vmem:[#allocation2 + $0x708] sm:$0xff]
    %v1611 = vld [vmem:[#allocation2 + $0x710] sm:$0xff]
    %v1612 = vld [vmem:[#allocation2 + $0x718] sm:$0xff]
    %v1613 = vld [vmem:[#allocation2 + $0x720] sm:$0xff]
    %v1614 = vld [vmem:[#allocation2 + $0x728] sm:$0xff]
    %v1615 = vld [vmem:[#allocation2 + $0x730] sm:$0xff]
    %v1616 = vld [vmem:[#allocation2 + $0x738] sm:$0xff]
    %v1617 = vld [vmem:[#allocation2 + $0x740] sm:$0xff]
    %v1618 = vld [vmem:[#allocation2 + $0x748] sm:$0xff]
    %v1619 = vld [vmem:[#allocation2 + $0x750] sm:$0xff]
    %v1620 = vld [vmem:[#allocation2 + $0x758] sm:$0xff]
    %v1621 = vld [vmem:[#allocation2 + $0x760] sm:$0xff]
    %v1622 = vld [vmem:[#allocation2 + $0x768] sm:$0xff]
    %v1623 = vld [vmem:[#allocation2 + $0x770] sm:$0xff]
    %v1624 = vld [vmem:[#allocation2 + $0x778] sm:$0xff]
    %v1625 = vld [vmem:[#allocation2 + $0x780] sm:$0xff]
    %v1626 = vld [vmem:[#allocation2 + $0x788] sm:$0xff]
    %v1627 = vld [vmem:[#allocation2 + $0x790] sm:$0xff]
    %v1628 = vld [vmem:[#allocation2 + $0x798] sm:$0xff]
    %v1629 = vld [vmem:[#allocation2 + $0x7a0] sm:$0xff]
    %v1630 = vld [vmem:[#allocation2 + $0x7a8] sm:$0xff]
    %v1631 = vld [vmem:[#allocation2 + $0x7b0] sm:$0xff]
    %v1632 = vld [vmem:[#allocation2 + $0x7b8] sm:$0xff]
    %v1633 = vld [vmem:[#allocation2 + $0x7c0] sm:$0xff]
    %v1634 = vld [vmem:[#allocation2 + $0x7c8] sm:$0xff]
    %v1635 = vld [vmem:[#allocation2 + $0x7d0] sm:$0xff]
    %v1636 = vld [vmem:[#allocation2 + $0x7d8] sm:$0xff]
    %v1637 = vld [vmem:[#allocation2 + $0x7e0] sm:$0xff]
    %v1638 = vld [vmem:[#allocation2 + $0x7e8] sm:$0xff]
    %v1639 = vld [vmem:[#allocation2 + $0x7f0] sm:$0xff]
    %v1640 = vld [vmem:[#allocation2 + $0x7f8] sm:$0xff]
    %v1641 = vld [vmem:[#allocation2 + $0x800] sm:$0xff]
    %v1642 = vld [vmem:[#allocation2 + $0x808] sm:$0xff]
    %v1643 = vld [vmem:[#allocation2 + $0x810] sm:$0xff]
    %v1644 = vld [vmem:[#allocation2 + $0x818] sm:$0xff]
    %v1645 = vld [vmem:[#allocation2 + $0x820] sm:$0xff]
    %v1646 = vld [vmem:[#allocation2 + $0x828] sm:$0xff]
    %v1647 = vld [vmem:[#allocation2 + $0x830] sm:$0xff]
    %v1648 = vld [vmem:[#allocation2 + $0x838] sm:$0xff]
    %v1649 = vld [vmem:[#allocation2 + $0x840] sm:$0xff]
    %v1650 = vld [vmem:[#allocation2 + $0x848] sm:$0xff]
    %v1651 = vld [vmem:[#allocation2 + $0x850] sm:$0xff]
    %v1652 = vld [vmem:[#allocation2 + $0x858] sm:$0xff]
    %v1653 = vld [vmem:[#allocation2 + $0x860] sm:$0xff]
    %v1654 = vld [vmem:[#allocation2 + $0x868] sm:$0xff]
    %v1655 = vld [vmem:[#allocation2 + $0x870] sm:$0xff]
    %v1656 = vld [vmem:[#allocation2 + $0x878] sm:$0xff]
    %v1657 = vld [vmem:[#allocation2 + $0x880] sm:$0xff]
    %v1658 = vld [vmem:[#allocation2 + $0x888] sm:$0xff]
    %v1659 = vld [vmem:[#allocation2 + $0x890] sm:$0xff]
    %v1660 = vld [vmem:[#allocation2 + $0x898] sm:$0xff]
    %v1661 = vld [vmem:[#allocation2 + $0x8a0] sm:$0xff]
    %v1662 = vld [vmem:[#allocation2 + $0x8a8] sm:$0xff]
    %v1663 = vld [vmem:[#allocation2 + $0x8b0] sm:$0xff]
    %v1664 = vld [vmem:[#allocation2 + $0x8b8] sm:$0xff]
    %v1665 = vld [vmem:[#allocation2 + $0x8c0] sm:$0xff]
    %v1666 = vld [vmem:[#allocation2 + $0x8c8] sm:$0xff]
    %v1667 = vld [vmem:[#allocation2 + $0x8d0] sm:$0x77]
    %v1668 = vld [vmem:[#allocation2 + $0x8d8] sm:$0x77]
    %v1953 = vunpack.c.l.b16 %v1385
    %v1954 = vunpack.c.h.b16 %v1385
    %v1955 = vunpack.c.l.b16 %v1386
    %v1956 = vunpack.c.h.b16 %v1386
    %v1957 = vunpack.c.l.b16 %v1387
    %v1958 = vunpack.c.h.b16 %v1387
    %v1959 = vunpack.c.l.b16 %v1388
    %v1960 = vunpack.c.h.b16 %v1388
    %v1961 = vunpack.c.l.b16 %v1389
    %v1962 = vunpack.c.h.b16 %v1389
    %v1963 = vunpack.c.l.b16 %v1390
    %v1964 = vunpack.c.h.b16 %v1390
    %v1965 = vunpack.c.l.b16 %v1391
    %v1966 = vunpack.c.h.b16 %v1391
    %v1967 = vunpack.c.l.b16 %v1392
    %v1968 = vunpack.c.h.b16 %v1392
    %v1969 = vunpack.c.l.b16 %v1393
    %v1970 = vunpack.c.h.b16 %v1393
    %v1971 = vunpack.c.l.b16 %v1394
    %v1972 = vunpack.c.h.b16 %v1394
    %v1973 = vunpack.c.l.b16 %v1395
    %v1974 = vunpack.c.h.b16 %v1395
    %v1975 = vunpack.c.l.b16 %v1396
    %v1976 = vunpack.c.h.b16 %v1396
    %v1977 = vunpack.c.l.b16 %v1397
    %v1978 = vunpack.c.h.b16 %v1397
    %v1979 = vunpack.c.l.b16 %v1398
    %v1980 = vunpack.c.h.b16 %v1398
    %v1981 = vunpack.c.l.b16 %v1399
    %v1982 = vunpack.c.h.b16 %v1399
    %v1983 = vunpack.c.l.b16 %v1400
    %v1984 = vunpack.c.h.b16 %v1400
    %v1985 = vunpack.c.l.b16 %v1401
    %v1986 = vunpack.c.h.b16 %v1401
    %v1987 = vunpack.c.l.b16 %v1402
    %v1988 = vunpack.c.h.b16 %v1402
    %v1989 = vunpack.c.l.b16 %v1403
    %v1990 = vunpack.c.h.b16 %v1403
    %v1991 = vunpack.c.l.b16 %v1404
    %v1992 = vunpack.c.h.b16 %v1404
    %v1993 = vunpack.c.l.b16 %v1405
    %v1994 = vunpack.c.h.b16 %v1405
    %v1995 = vunpack.c.l.b16 %v1406
    %v1996 = vunpack.c.h.b16 %v1406
    %v1997 = vunpack.c.l.b16 %v1407
    %v1998 = vunpack.c.h.b16 %v1407
    %v1999 = vunpack.c.l.b16 %v1408
    %v2000 = vunpack.c.h.b16 %v1408
    %v2001 = vunpack.c.l.b16 %v1409
    %v2002 = vunpack.c.h.b16 %v1409
    %v2003 = vunpack.c.l.b16 %v1410
    %v2004 = vunpack.c.h.b16 %v1410
    %v2005 = vunpack.c.l.b16 %v1411
    %v2006 = vunpack.c.h.b16 %v1411
    %v2007 = vunpack.c.l.b16 %v1412
    %v2008 = vunpack.c.h.b16 %v1412
    %v2009 = vunpack.c.l.b16 %v1413
    %v2010 = vunpack.c.h.b16 %v1413
    %v2011 = vunpack.c.l.b16 %v1414
    %v2012 = vunpack.c.h.b16 %v1414
    %v2013 = vunpack.c.l.b16 %v1415
    %v2014 = vunpack.c.h.b16 %v1415
    %v2015 = vunpack.c.l.b16 %v1416
    %v2016 = vunpack.c.h.b16 %v1416
    %v2017 = vunpack.c.l.b16 %v1417
    %v2018 = vunpack.c.h.b16 %v1417
    %v2019 = vunpack.c.l.b16 %v1418
    %v2020 = vunpack.c.h.b16 %v1418
    %v2021 = vunpack.c.l.b16 %v1419
    %v2022 = vunpack.c.h.b16 %v1419
    %v2023 = vunpack.c.l.b16 %v1420
    %v2024 = vunpack.c.h.b16 %v1420
    %v2025 = vunpack.c.l.b16 %v1421
    %v2026 = vunpack.c.h.b16 %v1421
    %v2027 = vunpack.c.l.b16 %v1422
    %v2028 = vunpack.c.h.b16 %v1422
    %v2029 = vunpack.c.l.b16 %v1423
    %v2030 = vunpack.c.h.b16 %v1423
    %v2031 = vunpack.c.l.b16 %v1424
    %v2032 = vunpack.c.h.b16 %v1424
    %v2033 = vunpack.c.l.b16 %v1425
    %v2034 = vunpack.c.h.b16 %v1425
    %v2035 = vunpack.c.l.b16 %v1426
    %v2036 = vunpack.c.h.b16 %v1426
    %v2037 = vunpack.c.l.b16 %v1427
    %v2038 = vunpack.c.h.b16 %v1427
    %v2039 = vunpack.c.l.b16 %v1428
    %v2040 = vunpack.c.h.b16 %v1428
    %v2041 = vunpack.c.l.b16 %v1429
    %v2042 = vunpack.c.h.b16 %v1429
    %v2043 = vunpack.c.l.b16 %v1430
    %v2044 = vunpack.c.h.b16 %v1430
    %v2045 = vunpack.c.l.b16 %v1431
    %v2046 = vunpack.c.h.b16 %v1431
    %v2047 = vunpack.c.l.b16 %v1432
    %v2048 = vunpack.c.h.b16 %v1432
    %v2049 = vunpack.c.l.b16 %v1433
    %v2050 = vunpack.c.h.b16 %v1433
    %v2051 = vunpack.c.l.b16 %v1434
    %v2052 = vunpack.c.h.b16 %v1434
    %v2053 = vunpack.c.l.b16 %v1435
    %v2054 = vunpack.c.h.b16 %v1435
    %v2055 = vunpack.c.l.b16 %v1436
    %v2056 = vunpack.c.h.b16 %v1436
    %v2057 = vunpack.c.l.b16 %v1437
    %v2058 = vunpack.c.h.b16 %v1437
    %v2059 = vunpack.c.l.b16 %v1438
    %v2060 = vunpack.c.h.b16 %v1438
    %v2061 = vunpack.c.l.b16 %v1439
    %v2062 = vunpack.c.h.b16 %v1439
    %v2063 = vunpack.c.l.b16 %v1440
    %v2064 = vunpack.c.h.b16 %v1440
    %v2065 = vunpack.c.l.b16 %v1441
    %v2066 = vunpack.c.h.b16 %v1441
    %v2067 = vunpack.c.l.b16 %v1442
    %v2068 = vunpack.c.h.b16 %v1442
    %v2069 = vunpack.c.l.b16 %v1443
    %v2070 = vunpack.c.h.b16 %v1443
    %v2071 = vunpack.c.l.b16 %v1444
    %v2072 = vunpack.c.h.b16 %v1444
    %v2073 = vunpack.c.l.b16 %v1445
    %v2074 = vunpack.c.h.b16 %v1445
    %v2075 = vunpack.c.l.b16 %v1446
    %v2076 = vunpack.c.h.b16 %v1446
    %v2077 = vunpack.c.l.b16 %v1447
    %v2078 = vunpack.c.h.b16 %v1447
    %v2079 = vunpack.c.l.b16 %v1448
    %v2080 = vunpack.c.h.b16 %v1448
    %v2081 = vunpack.c.l.b16 %v1449
    %v2082 = vunpack.c.h.b16 %v1449
    %v2083 = vunpack.c.l.b16 %v1450
    %v2084 = vunpack.c.h.b16 %v1450
    %v2085 = vunpack.c.l.b16 %v1451
    %v2086 = vunpack.c.h.b16 %v1451
    %v2087 = vunpack.c.l.b16 %v1452
    %v2088 = vunpack.c.h.b16 %v1452
    %v2089 = vunpack.c.l.b16 %v1453
    %v2090 = vunpack.c.h.b16 %v1453
    %v2091 = vunpack.c.l.b16 %v1454
    %v2092 = vunpack.c.h.b16 %v1454
    %v2093 = vunpack.c.l.b16 %v1455
    %v2094 = vunpack.c.h.b16 %v1455
    %v2095 = vunpack.c.l.b16 %v1456
    %v2096 = vunpack.c.h.b16 %v1456
    %v2097 = vunpack.c.l.b16 %v1457
    %v2098 = vunpack.c.h.b16 %v1457
    %v2099 = vunpack.c.l.b16 %v1458
    %v2100 = vunpack.c.h.b16 %v1458
    %v2101 = vunpack.c.l.b16 %v1459
    %v2102 = vunpack.c.h.b16 %v1459
    %v2103 = vunpack.c.l.b16 %v1460
    %v2104 = vunpack.c.h.b16 %v1460
    %v2105 = vunpack.c.l.b16 %v1461
    %v2106 = vunpack.c.h.b16 %v1461
    %v2107 = vunpack.c.l.b16 %v1462
    %v2108 = vunpack.c.h.b16 %v1462
    %v2109 = vunpack.c.l.b16 %v1463
    %v2110 = vunpack.c.h.b16 %v1463
    %v2111 = vunpack.c.l.b16 %v1464
    %v2112 = vunpack.c.h.b16 %v1464
    %v2113 = vunpack.c.l.b16 %v1465
    %v2114 = vunpack.c.h.b16 %v1465
    %v2115 = vunpack.c.l.b16 %v1466
    %v2116 = vunpack.c.h.b16 %v1466
    %v2117 = vunpack.c.l.b16 %v1467
    %v2118 = vunpack.c.h.b16 %v1467
    %v2119 = vunpack.c.l.b16 %v1468
    %v2120 = vunpack.c.h.b16 %v1468
    %v2121 = vunpack.c.l.b16 %v1469
    %v2122 = vunpack.c.h.b16 %v1469
    %v2123 = vunpack.c.l.b16 %v1470
    %v2124 = vunpack.c.h.b16 %v1470
    %v2125 = vunpack.c.l.b16 %v1471
    %v2126 = vunpack.c.h.b16 %v1471
    %v2127 = vunpack.c.l.b16 %v1472
    %v2128 = vunpack.c.h.b16 %v1472
    %v2129 = vunpack.c.l.b16 %v1473
    %v2130 = vunpack.c.h.b16 %v1473
    %v2131 = vunpack.c.l.b16 %v1474
    %v2132 = vunpack.c.h.b16 %v1474
    %v2133 = vunpack.c.l.b16 %v1475
    %v2134 = vunpack.c.h.b16 %v1475
    %v2135 = vunpack.c.l.b16 %v1476
    %v2136 = vunpack.c.h.b16 %v1476
    %v2137 = vunpack.c.l.b16 %v1477
    %v2138 = vunpack.c.h.b16 %v1477
    %v2139 = vunpack.c.l.b16 %v1478
    %v2140 = vunpack.c.h.b16 %v1478
    %v2141 = vunpack.c.l.b16 %v1479
    %v2142 = vunpack.c.h.b16 %v1479
    %v2143 = vunpack.c.l.b16 %v1480
    %v2144 = vunpack.c.h.b16 %v1480
    %v2145 = vunpack.c.l.b16 %v1481
    %v2146 = vunpack.c.h.b16 %v1481
    %v2147 = vunpack.c.l.b16 %v1482
    %v2148 = vunpack.c.h.b16 %v1482
    %v2149 = vunpack.c.l.b16 %v1483
    %v2150 = vunpack.c.h.b16 %v1483
    %v2151 = vunpack.c.l.b16 %v1484
    %v2152 = vunpack.c.h.b16 %v1484
    %v2153 = vunpack.c.l.b16 %v1485
    %v2154 = vunpack.c.h.b16 %v1485
    %v2155 = vunpack.c.l.b16 %v1486
    %v2156 = vunpack.c.h.b16 %v1486
    %v2157 = vunpack.c.l.b16 %v1487
    %v2158 = vunpack.c.h.b16 %v1487
    %v2159 = vunpack.c.l.b16 %v1488
    %v2160 = vunpack.c.h.b16 %v1488
    %v2161 = vunpack.c.l.b16 %v1489
    %v2162 = vunpack.c.h.b16 %v1489
    %v2163 = vunpack.c.l.b16 %v1490
    %v2164 = vunpack.c.h.b16 %v1490
    %v2165 = vunpack.c.l.b16 %v1491
    %v2166 = vunpack.c.h.b16 %v1491
    %v2167 = vunpack.c.l.b16 %v1492
    %v2168 = vunpack.c.h.b16 %v1492
    %v2169 = vunpack.c.l.b16 %v1493
    %v2170 = vunpack.c.h.b16 %v1493
    %v2171 = vunpack.c.l.b16 %v1494
    %v2172 = vunpack.c.h.b16 %v1494
    %v2173 = vunpack.c.l.b16 %v1495
    %v2174 = vunpack.c.h.b16 %v1495
    %v2175 = vunpack.c.l.b16 %v1496
    %v2176 = vunpack.c.h.b16 %v1496
    %v2177 = vunpack.c.l.b16 %v1497
    %v2178 = vunpack.c.h.b16 %v1497
    %v2179 = vunpack.c.l.b16 %v1498
    %v2180 = vunpack.c.h.b16 %v1498
    %v2181 = vunpack.c.l.b16 %v1499
    %v2182 = vunpack.c.h.b16 %v1499
    %v2183 = vunpack.c.l.b16 %v1500
    %v2184 = vunpack.c.h.b16 %v1500
    %v2185 = vunpack.c.l.b16 %v1501
    %v2186 = vunpack.c.h.b16 %v1501
    %v2187 = vunpack.c.l.b16 %v1502
    %v2188 = vunpack.c.h.b16 %v1502
    %v2189 = vunpack.c.l.b16 %v1503
    %v2190 = vunpack.c.h.b16 %v1503
    %v2191 = vunpack.c.l.b16 %v1504
    %v2192 = vunpack.c.h.b16 %v1504
    %v2193 = vunpack.c.l.b16 %v1505
    %v2194 = vunpack.c.h.b16 %v1505
    %v2195 = vunpack.c.l.b16 %v1506
    %v2196 = vunpack.c.h.b16 %v1506
    %v2197 = vunpack.c.l.b16 %v1507
    %v2198 = vunpack.c.h.b16 %v1507
    %v2199 = vunpack.c.l.b16 %v1508
    %v2200 = vunpack.c.h.b16 %v1508
    %v2201 = vunpack.c.l.b16 %v1509
    %v2202 = vunpack.c.h.b16 %v1509
    %v2203 = vunpack.c.l.b16 %v1510
    %v2204 = vunpack.c.h.b16 %v1510
    %v2205 = vunpack.c.l.b16 %v1511
    %v2206 = vunpack.c.h.b16 %v1511
    %v2207 = vunpack.c.l.b16 %v1512
    %v2208 = vunpack.c.h.b16 %v1512
    %v2209 = vunpack.c.l.b16 %v1513
    %v2210 = vunpack.c.h.b16 %v1513
    %v2211 = vunpack.c.l.b16 %v1514
    %v2212 = vunpack.c.h.b16 %v1514
    %v2213 = vunpack.c.l.b16 %v1515
    %v2214 = vunpack.c.h.b16 %v1515
    %v2215 = vunpack.c.l.b16 %v1516
    %v2216 = vunpack.c.h.b16 %v1516
    %v2217 = vunpack.c.l.b16 %v1517
    %v2218 = vunpack.c.h.b16 %v1517
    %v2219 = vunpack.c.l.b16 %v1518
    %v2220 = vunpack.c.h.b16 %v1518
    %v2221 = vunpack.c.l.b16 %v1519
    %v2222 = vunpack.c.h.b16 %v1519
    %v2223 = vunpack.c.l.b16 %v1520
    %v2224 = vunpack.c.h.b16 %v1520
    %v2225 = vunpack.c.l.b16 %v1521
    %v2226 = vunpack.c.h.b16 %v1521
    %v2227 = vunpack.c.l.b16 %v1522
    %v2228 = vunpack.c.h.b16 %v1522
    %v2229 = vunpack.c.l.b16 %v1523
    %v2230 = vunpack.c.h.b16 %v1523
    %v2231 = vunpack.c.l.b16 %v1524
    %v2232 = vunpack.c.h.b16 %v1524
    %v2233 = vunpack.c.l.b16 %v1525
    %v2234 = vunpack.c.h.b16 %v1525
    %v2235 = vunpack.c.l.b16 %v1526
    %v2236 = vunpack.c.h.b16 %v1526
    %v2237 = vunpack.c.l.b16 %v1527
    %v2238 = vunpack.c.h.b16 %v1527
    %v2239 = vunpack.c.l.b16 %v1528
    %v2240 = vunpack.c.h.b16 %v1528
    %v2241 = vunpack.c.l.b16 %v1529
    %v2242 = vunpack.c.h.b16 %v1529
    %v2243 = vunpack.c.l.b16 %v1530
    %v2244 = vunpack.c.h.b16 %v1530
    %v2245 = vunpack.c.l.b16 %v1531
    %v2246 = vunpack.c.h.b16 %v1531
    %v2247 = vunpack.c.l.b16 %v1532
    %v2248 = vunpack.c.h.b16 %v1532
    %v2249 = vunpack.c.l.b16 %v1533
    %v2250 = vunpack.c.h.b16 %v1533
    %v2251 = vunpack.c.l.b16 %v1534
    %v2252 = vunpack.c.h.b16 %v1534
    %v2253 = vunpack.c.l.b16 %v1535
    %v2254 = vunpack.c.h.b16 %v1535
    %v2255 = vunpack.c.l.b16 %v1536
    %v2256 = vunpack.c.h.b16 %v1536
    %v2257 = vunpack.c.l.b16 %v1537
    %v2258 = vunpack.c.h.b16 %v1537
    %v2259 = vunpack.c.l.b16 %v1538
    %v2260 = vunpack.c.h.b16 %v1538
    %v2261 = vunpack.c.l.b16 %v1539
    %v2262 = vunpack.c.h.b16 %v1539
    %v2263 = vunpack.c.l.b16 %v1540
    %v2264 = vunpack.c.h.b16 %v1540
    %v2265 = vunpack.c.l.b16 %v1541
    %v2266 = vunpack.c.h.b16 %v1541
    %v2267 = vunpack.c.l.b16 %v1542
    %v2268 = vunpack.c.h.b16 %v1542
    %v2269 = vunpack.c.l.b16 %v1543
    %v2270 = vunpack.c.h.b16 %v1543
    %v2271 = vunpack.c.l.b16 %v1544
    %v2272 = vunpack.c.h.b16 %v1544
    %v2273 = vunpack.c.l.b16 %v1545
    %v2274 = vunpack.c.h.b16 %v1545
    %v2275 = vunpack.c.l.b16 %v1546
    %v2276 = vunpack.c.h.b16 %v1546
    %v2277 = vunpack.c.l.b16 %v1547
    %v2278 = vunpack.c.h.b16 %v1547
    %v2279 = vunpack.c.l.b16 %v1548
    %v2280 = vunpack.c.h.b16 %v1548
    %v2281 = vunpack.c.l.b16 %v1549
    %v2282 = vunpack.c.h.b16 %v1549
    %v2283 = vunpack.c.l.b16 %v1550
    %v2284 = vunpack.c.h.b16 %v1550
    %v2285 = vunpack.c.l.b16 %v1551
    %v2286 = vunpack.c.h.b16 %v1551
    %v2287 = vunpack.c.l.b16 %v1552
    %v2288 = vunpack.c.h.b16 %v1552
    %v2289 = vunpack.c.l.b16 %v1553
    %v2290 = vunpack.c.h.b16 %v1553
    %v2291 = vunpack.c.l.b16 %v1554
    %v2292 = vunpack.c.h.b16 %v1554
    %v2293 = vunpack.c.l.b16 %v1555
    %v2294 = vunpack.c.h.b16 %v1555
    %v2295 = vunpack.c.l.b16 %v1556
    %v2296 = vunpack.c.h.b16 %v1556
    %v2297 = vunpack.c.l.b16 %v1557
    %v2298 = vunpack.c.h.b16 %v1557
    %v2299 = vunpack.c.l.b16 %v1558
    %v2300 = vunpack.c.h.b16 %v1558
    %v2301 = vunpack.c.l.b16 %v1559
    %v2302 = vunpack.c.h.b16 %v1559
    %v2303 = vunpack.c.l.b16 %v1560
    %v2304 = vunpack.c.h.b16 %v1560
    %v2305 = vunpack.c.l.b16 %v1561
    %v2306 = vunpack.c.h.b16 %v1561
    %v2307 = vunpack.c.l.b16 %v1562
    %v2308 = vunpack.c.h.b16 %v1562
    %v2309 = vunpack.c.l.b16 %v1563
    %v2310 = vunpack.c.h.b16 %v1563
    %v2311 = vunpack.c.l.b16 %v1564
    %v2312 = vunpack.c.h.b16 %v1564
    %v2313 = vunpack.c.l.b16 %v1565
    %v2314 = vunpack.c.h.b16 %v1565
    %v2315 = vunpack.c.l.b16 %v1566
    %v2316 = vunpack.c.h.b16 %v1566
    %v2317 = vunpack.c.l.b16 %v1567
    %v2318 = vunpack.c.h.b16 %v1567
    %v2319 = vunpack.c.l.b16 %v1568
    %v2320 = vunpack.c.h.b16 %v1568
    %v2321 = vunpack.c.l.b16 %v1569
    %v2322 = vunpack.c.h.b16 %v1569
    %v2323 = vunpack.c.l.b16 %v1570
    %v2324 = vunpack.c.h.b16 %v1570
    %v2325 = vunpack.c.l.b16 %v1571
    %v2326 = vunpack.c.h.b16 %v1571
    %v2327 = vunpack.c.l.b16 %v1572
    %v2328 = vunpack.c.h.b16 %v1572
    %v2329 = vunpack.c.l.b16 %v1573
    %v2330 = vunpack.c.h.b16 %v1573
    %v2331 = vunpack.c.l.b16 %v1574
    %v2332 = vunpack.c.h.b16 %v1574
    %v2333 = vunpack.c.l.b16 %v1575
    %v2334 = vunpack.c.h.b16 %v1575
    %v2335 = vunpack.c.l.b16 %v1576
    %v2336 = vunpack.c.h.b16 %v1576
    %v2337 = vunpack.c.l.b16 %v1577
    %v2338 = vunpack.c.h.b16 %v1577
    %v2339 = vunpack.c.l.b16 %v1578
    %v2340 = vunpack.c.h.b16 %v1578
    %v2341 = vunpack.c.l.b16 %v1579
    %v2342 = vunpack.c.h.b16 %v1579
    %v2343 = vunpack.c.l.b16 %v1580
    %v2344 = vunpack.c.h.b16 %v1580
    %v2345 = vunpack.c.l.b16 %v1581
    %v2346 = vunpack.c.h.b16 %v1581
    %v2347 = vunpack.c.l.b16 %v1582
    %v2348 = vunpack.c.h.b16 %v1582
    %v2349 = vunpack.c.l.b16 %v1583
    %v2350 = vunpack.c.h.b16 %v1583
    %v2351 = vunpack.c.l.b16 %v1584
    %v2352 = vunpack.c.h.b16 %v1584
    %v2353 = vunpack.c.l.b16 %v1585
    %v2354 = vunpack.c.h.b16 %v1585
    %v2355 = vunpack.c.l.b16 %v1586
    %v2356 = vunpack.c.h.b16 %v1586
    %v2357 = vunpack.c.l.b16 %v1587
    %v2358 = vunpack.c.h.b16 %v1587
    %v2359 = vunpack.c.l.b16 %v1588
    %v2360 = vunpack.c.h.b16 %v1588
    %v2361 = vunpack.c.l.b16 %v1589
    %v2362 = vunpack.c.h.b16 %v1589
    %v2363 = vunpack.c.l.b16 %v1590
    %v2364 = vunpack.c.h.b16 %v1590
    %v2365 = vunpack.c.l.b16 %v1591
    %v2366 = vunpack.c.h.b16 %v1591
    %v2367 = vunpack.c.l.b16 %v1592
    %v2368 = vunpack.c.h.b16 %v1592
    %v2369 = vunpack.c.l.b16 %v1593
    %v2370 = vunpack.c.h.b16 %v1593
    %v2371 = vunpack.c.l.b16 %v1594
    %v2372 = vunpack.c.h.b16 %v1594
    %v2373 = vunpack.c.l.b16 %v1595
    %v2374 = vunpack.c.h.b16 %v1595
    %v2375 = vunpack.c.l.b16 %v1596
    %v2376 = vunpack.c.h.b16 %v1596
    %v2377 = vunpack.c.l.b16 %v1597
    %v2378 = vunpack.c.h.b16 %v1597
    %v2379 = vunpack.c.l.b16 %v1598
    %v2380 = vunpack.c.h.b16 %v1598
    %v2381 = vunpack.c.l.b16 %v1599
    %v2382 = vunpack.c.h.b16 %v1599
    %v2383 = vunpack.c.l.b16 %v1600
    %v2384 = vunpack.c.h.b16 %v1600
    %v2385 = vunpack.c.l.b16 %v1601
    %v2386 = vunpack.c.h.b16 %v1601
    %v2387 = vunpack.c.l.b16 %v1602
    %v2388 = vunpack.c.h.b16 %v1602
    %v2389 = vunpack.c.l.b16 %v1603
    %v2390 = vunpack.c.h.b16 %v1603
    %v2391 = vunpack.c.l.b16 %v1604
    %v2392 = vunpack.c.h.b16 %v1604
    %v2393 = vunpack.c.l.b16 %v1605
    %v2394 = vunpack.c.h.b16 %v1605
    %v2395 = vunpack.c.l.b16 %v1606
    %v2396 = vunpack.c.h.b16 %v1606
    %v2397 = vunpack.c.l.b16 %v1607
    %v2398 = vunpack.c.h.b16 %v1607
    %v2399 = vunpack.c.l.b16 %v1608
    %v2400 = vunpack.c.h.b16 %v1608
    %v2401 = vunpack.c.l.b16 %v1609
    %v2402 = vunpack.c.h.b16 %v1609
    %v2403 = vunpack.c.l.b16 %v1610
    %v2404 = vunpack.c.h.b16 %v1610
    %v2405 = vunpack.c.l.b16 %v1611
    %v2406 = vunpack.c.h.b16 %v1611
    %v2407 = vunpack.c.l.b16 %v1612
    %v2408 = vunpack.c.h.b16 %v1612
    %v2409 = vunpack.c.l.b16 %v1613
    %v2410 = vunpack.c.h.b16 %v1613
    %v2411 = vunpack.c.l.b16 %v1614
    %v2412 = vunpack.c.h.b16 %v1614
    %v2413 = vunpack.c.l.b16 %v1615
    %v2414 = vunpack.c.h.b16 %v1615
    %v2415 = vunpack.c.l.b16 %v1616
    %v2416 = vunpack.c.h.b16 %v1616
    %v2417 = vunpack.c.l.b16 %v1617
    %v2418 = vunpack.c.h.b16 %v1617
    %v2419 = vunpack.c.l.b16 %v1618
    %v2420 = vunpack.c.h.b16 %v1618
    %v2421 = vunpack.c.l.b16 %v1619
    %v2422 = vunpack.c.h.b16 %v1619
    %v2423 = vunpack.c.l.b16 %v1620
    %v2424 = vunpack.c.h.b16 %v1620
    %v2425 = vunpack.c.l.b16 %v1621
    %v2426 = vunpack.c.h.b16 %v1621
    %v2427 = vunpack.c.l.b16 %v1622
    %v2428 = vunpack.c.h.b16 %v1622
    %v2429 = vunpack.c.l.b16 %v1623
    %v2430 = vunpack.c.h.b16 %v1623
    %v2431 = vunpack.c.l.b16 %v1624
    %v2432 = vunpack.c.h.b16 %v1624
    %v2433 = vunpack.c.l.b16 %v1625
    %v2434 = vunpack.c.h.b16 %v1625
    %v2435 = vunpack.c.l.b16 %v1626
    %v2436 = vunpack.c.h.b16 %v1626
    %v2437 = vunpack.c.l.b16 %v1627
    %v2438 = vunpack.c.h.b16 %v1627
    %v2439 = vunpack.c.l.b16 %v1628
    %v2440 = vunpack.c.h.b16 %v1628
    %v2441 = vunpack.c.l.b16 %v1629
    %v2442 = vunpack.c.h.b16 %v1629
    %v2443 = vunpack.c.l.b16 %v1630
    %v2444 = vunpack.c.h.b16 %v1630
    %v2445 = vunpack.c.l.b16 %v1631
    %v2446 = vunpack.c.h.b16 %v1631
    %v2447 = vunpack.c.l.b16 %v1632
    %v2448 = vunpack.c.h.b16 %v1632
    %v2449 = vunpack.c.l.b16 %v1633
    %v2450 = vunpack.c.h.b16 %v1633
    %v2451 = vunpack.c.l.b16 %v1634
    %v2452 = vunpack.c.h.b16 %v1634
    %v2453 = vunpack.c.l.b16 %v1635
    %v2454 = vunpack.c.h.b16 %v1635
    %v2455 = vunpack.c.l.b16 %v1636
    %v2456 = vunpack.c.h.b16 %v1636
    %v2457 = vunpack.c.l.b16 %v1637
    %v2458 = vunpack.c.h.b16 %v1637
    %v2459 = vunpack.c.l.b16 %v1638
    %v2460 = vunpack.c.h.b16 %v1638
    %v2461 = vunpack.c.l.b16 %v1639
    %v2462 = vunpack.c.h.b16 %v1639
    %v2463 = vunpack.c.l.b16 %v1640
    %v2464 = vunpack.c.h.b16 %v1640
    %v2465 = vunpack.c.l.b16 %v1641
    %v2466 = vunpack.c.h.b16 %v1641
    %v2467 = vunpack.c.l.b16 %v1642
    %v2468 = vunpack.c.h.b16 %v1642
    %v2469 = vunpack.c.l.b16 %v1643
    %v2470 = vunpack.c.h.b16 %v1643
    %v2471 = vunpack.c.l.b16 %v1644
    %v2472 = vunpack.c.h.b16 %v1644
    %v2473 = vunpack.c.l.b16 %v1645
    %v2474 = vunpack.c.h.b16 %v1645
    %v2475 = vunpack.c.l.b16 %v1646
    %v2476 = vunpack.c.h.b16 %v1646
    %v2477 = vunpack.c.l.b16 %v1647
    %v2478 = vunpack.c.h.b16 %v1647
    %v2479 = vunpack.c.l.b16 %v1648
    %v2480 = vunpack.c.h.b16 %v1648
    %v2481 = vunpack.c.l.b16 %v1649
    %v2482 = vunpack.c.h.b16 %v1649
    %v2483 = vunpack.c.l.b16 %v1650
    %v2484 = vunpack.c.h.b16 %v1650
    %v2485 = vunpack.c.l.b16 %v1651
    %v2486 = vunpack.c.h.b16 %v1651
    %v2487 = vunpack.c.l.b16 %v1652
    %v2488 = vunpack.c.h.b16 %v1652
    %v2489 = vunpack.c.l.b16 %v1653
    %v2490 = vunpack.c.h.b16 %v1653
    %v2491 = vunpack.c.l.b16 %v1654
    %v2492 = vunpack.c.h.b16 %v1654
    %v2493 = vunpack.c.l.b16 %v1655
    %v2494 = vunpack.c.h.b16 %v1655
    %v2495 = vunpack.c.l.b16 %v1656
    %v2496 = vunpack.c.h.b16 %v1656
    %v2497 = vunpack.c.l.b16 %v1657
    %v2498 = vunpack.c.h.b16 %v1657
    %v2499 = vunpack.c.l.b16 %v1658
    %v2500 = vunpack.c.h.b16 %v1658
    %v2501 = vunpack.c.l.b16 %v1659
    %v2502 = vunpack.c.h.b16 %v1659
    %v2503 = vunpack.c.l.b16 %v1660
    %v2504 = vunpack.c.h.b16 %v1660
    %v2505 = vunpack.c.l.b16 %v1661
    %v2506 = vunpack.c.h.b16 %v1661
    %v2507 = vunpack.c.l.b16 %v1662
    %v2508 = vunpack.c.h.b16 %v1662
    %v2509 = vunpack.c.l.b16 %v1663
    %v2510 = vunpack.c.h.b16 %v1663
    %v2511 = vunpack.c.l.b16 %v1664
    %v2512 = vunpack.c.h.b16 %v1664
    %v2513 = vunpack.c.l.b16 %v1665
    %v2514 = vunpack.c.h.b16 %v1665
    %v2515 = vunpack.c.l.b16 %v1666
    %v2516 = vunpack.c.h.b16 %v1666
    %v2517 = vunpack.c.l.b16 %v1667
    %v2518 = vunpack.c.h.b16 %v1667
    %v2519 = vunpack.c.l.b16 %v1668
    %v2520 = vunpack.c.h.b16 %v1668
    %v2521 = vpack.c.b16 %v1957, %v1953
    %v2522 = vpack.c.b16 %v1958, %v1954
    %v2523 = vpack.c.b16 %v1959, %v1955
    %v2524 = vpack.c.b16 %v1960, %v1956
    %v2525 = vpack.c.b16 %v1965, %v1961
    %v2526 = vpack.c.b16 %v1966, %v1962
    %v2527 = vpack.c.b16 %v1967, %v1963
    %v2528 = vpack.c.b16 %v1968, %v1964
    %v2529 = vpack.c.b16 %v1973, %v1969
    %v2530 = vpack.c.b16 %v1974, %v1970
    %v2531 = vpack.c.b16 %v1975, %v1971
    %v2532 = vpack.c.b16 %v1976, %v1972
    %v2533 = vpack.c.b16 %v1981, %v1977
    %v2534 = vpack.c.b16 %v1982, %v1978
    %v2535 = vpack.c.b16 %v1983, %v1979
    %v2536 = vpack.c.b16 %v1984, %v1980
    %v2537 = vpack.c.b16 %v1989, %v1985
    %v2538 = vpack.c.b16 %v1990, %v1986
    %v2539 = vpack.c.b16 %v1991, %v1987
    %v2540 = vpack.c.b16 %v1992, %v1988
    %v2541 = vpack.c.b16 %v1997, %v1993
    %v2542 = vpack.c.b16 %v1998, %v1994
    %v2543 = vpack.c.b16 %v1999, %v1995
    %v2544 = vpack.c.b16 %v2000, %v1996
    %v2545 = vpack.c.b16 %v2005, %v2001
    %v2546 = vpack.c.b16 %v2006, %v2002
    %v2547 = vpack.c.b16 %v2007, %v2003
    %v2548 = vpack.c.b16 %v2008, %v2004
    %v2549 = vpack.c.b16 %v2013, %v2009
    %v2550 = vpack.c.b16 %v2014, %v2010
    %v2551 = vpack.c.b16 %v2015, %v2011
    %v2552 = vpack.c.b16 %v2016, %v2012
    %v2553 = vpack.c.b16 %v2021, %v2017
    %v2554 = vpack.c.b16 %v2022, %v2018
    %v2555 = vpack.c.b16 %v2023, %v2019
    %v2556 = vpack.c.b16 %v2024, %v2020
    %v2557 = vpack.c.b16 %v2029, %v2025
    %v2558 = vpack.c.b16 %v2030, %v2026
    %v2559 = vpack.c.b16 %v2031, %v2027
    %v2560 = vpack.c.b16 %v2032, %v2028
    %v2561 = vpack.c.b16 %v2037, %v2033
    %v2562 = vpack.c.b16 %v2038, %v2034
    %v2563 = vpack.c.b16 %v2039, %v2035
    %v2564 = vpack.c.b16 %v2040, %v2036
    %v2565 = vpack.c.b16 %v2045, %v2041
    %v2566 = vpack.c.b16 %v2046, %v2042
    %v2567 = vpack.c.b16 %v2047, %v2043
    %v2568 = vpack.c.b16 %v2048, %v2044
    %v2569 = vpack.c.b16 %v2053, %v2049
    %v2570 = vpack.c.b16 %v2054, %v2050
    %v2571 = vpack.c.b16 %v2055, %v2051
    %v2572 = vpack.c.b16 %v2056, %v2052
    %v2573 = vpack.c.b16 %v2061, %v2057
    %v2574 = vpack.c.b16 %v2062, %v2058
    %v2575 = vpack.c.b16 %v2063, %v2059
    %v2576 = vpack.c.b16 %v2064, %v2060
    %v2577 = vpack.c.b16 %v2069, %v2065
    %v2578 = vpack.c.b16 %v2070, %v2066
    %v2579 = vpack.c.b16 %v2071, %v2067
    %v2580 = vpack.c.b16 %v2072, %v2068
    %v2581 = vpack.c.b16 %v2077, %v2073
    %v2582 = vpack.c.b16 %v2078, %v2074
    %v2583 = vpack.c.b16 %v2079, %v2075
    %v2584 = vpack.c.b16 %v2080, %v2076
    %v2585 = vpack.c.b16 %v2085, %v2081
    %v2586 = vpack.c.b16 %v2086, %v2082
    %v2587 = vpack.c.b16 %v2087, %v2083
    %v2588 = vpack.c.b16 %v2088, %v2084
    %v2589 = vpack.c.b16 %v2093, %v2089
    %v2590 = vpack.c.b16 %v2094, %v2090
    %v2591 = vpack.c.b16 %v2095, %v2091
    %v2592 = vpack.c.b16 %v2096, %v2092
    %v2593 = vpack.c.b16 %v2101, %v2097
    %v2594 = vpack.c.b16 %v2102, %v2098
    %v2595 = vpack.c.b16 %v2103, %v2099
    %v2596 = vpack.c.b16 %v2104, %v2100
    %v2597 = vpack.c.b16 %v2109, %v2105
    %v2598 = vpack.c.b16 %v2110, %v2106
    %v2599 = vpack.c.b16 %v2111, %v2107
    %v2600 = vpack.c.b16 %v2112, %v2108
    %v2601 = vpack.c.b16 %v2117, %v2113
    %v2602 = vpack.c.b16 %v2118, %v2114
    %v2603 = vpack.c.b16 %v2119, %v2115
    %v2604 = vpack.c.b16 %v2120, %v2116
    %v2605 = vpack.c.b16 %v2125, %v2121
    %v2606 = vpack.c.b16 %v2126, %v2122
    %v2607 = vpack.c.b16 %v2127, %v2123
    %v2608 = vpack.c.b16 %v2128, %v2124
    %v2609 = vpack.c.b16 %v2133, %v2129
    %v2610 = vpack.c.b16 %v2134, %v2130
    %v2611 = vpack.c.b16 %v2135, %v2131
    %v2612 = vpack.c.b16 %v2136, %v2132
    %v2613 = vpack.c.b16 %v2141, %v2137
    %v2614 = vpack.c.b16 %v2142, %v2138
    %v2615 = vpack.c.b16 %v2143, %v2139
    %v2616 = vpack.c.b16 %v2144, %v2140
    %v2617 = vpack.c.b16 %v2149, %v2145
    %v2618 = vpack.c.b16 %v2150, %v2146
    %v2619 = vpack.c.b16 %v2151, %v2147
    %v2620 = vpack.c.b16 %v2152, %v2148
    %v2621 = vpack.c.b16 %v2157, %v2153
    %v2622 = vpack.c.b16 %v2158, %v2154
    %v2623 = vpack.c.b16 %v2159, %v2155
    %v2624 = vpack.c.b16 %v2160, %v2156
    %v2625 = vpack.c.b16 %v2165, %v2161
    %v2626 = vpack.c.b16 %v2166, %v2162
    %v2627 = vpack.c.b16 %v2167, %v2163
    %v2628 = vpack.c.b16 %v2168, %v2164
    %v2629 = vpack.c.b16 %v2173, %v2169
    %v2630 = vpack.c.b16 %v2174, %v2170
    %v2631 = vpack.c.b16 %v2175, %v2171
    %v2632 = vpack.c.b16 %v2176, %v2172
    %v2633 = vpack.c.b16 %v2181, %v2177
    %v2634 = vpack.c.b16 %v2182, %v2178
    %v2635 = vpack.c.b16 %v2183, %v2179
    %v2636 = vpack.c.b16 %v2184, %v2180
    %v2637 = vpack.c.b16 %v2189, %v2185
    %v2638 = vpack.c.b16 %v2190, %v2186
    %v2639 = vpack.c.b16 %v2191, %v2187
    %v2640 = vpack.c.b16 %v2192, %v2188
    %v2641 = vpack.c.b16 %v2197, %v2193
    %v2642 = vpack.c.b16 %v2198, %v2194
    %v2643 = vpack.c.b16 %v2199, %v2195
    %v2644 = vpack.c.b16 %v2200, %v2196
    %v2645 = vpack.c.b16 %v2205, %v2201
    %v2646 = vpack.c.b16 %v2206, %v2202
    %v2647 = vpack.c.b16 %v2207, %v2203
    %v2648 = vpack.c.b16 %v2208, %v2204
    %v2649 = vpack.c.b16 %v2213, %v2209
    %v2650 = vpack.c.b16 %v2214, %v2210
    %v2651 = vpack.c.b16 %v2215, %v2211
    %v2652 = vpack.c.b16 %v2216, %v2212
    %v2653 = vpack.c.b16 %v2221, %v2217
    %v2654 = vpack.c.b16 %v2222, %v2218
    %v2655 = vpack.c.b16 %v2223, %v2219
    %v2656 = vpack.c.b16 %v2224, %v2220
    %v2657 = vpack.c.b16 %v2229, %v2225
    %v2658 = vpack.c.b16 %v2230, %v2226
    %v2659 = vpack.c.b16 %v2231, %v2227
    %v2660 = vpack.c.b16 %v2232, %v2228
    %v2661 = vpack.c.b16 %v2237, %v2233
    %v2662 = vpack.c.b16 %v2238, %v2234
    %v2663 = vpack.c.b16 %v2239, %v2235
    %v2664 = vpack.c.b16 %v2240, %v2236
    %v2665 = vpack.c.b16 %v2245, %v2241
    %v2666 = vpack.c.b16 %v2246, %v2242
    %v2667 = vpack.c.b16 %v2247, %v2243
    %v2668 = vpack.c.b16 %v2248, %v2244
    %v2669 = vpack.c.b16 %v2253, %v2249
    %v2670 = vpack.c.b16 %v2254, %v2250
    %v2671 = vpack.c.b16 %v2255, %v2251
    %v2672 = vpack.c.b16 %v2256, %v2252
    %v2673 = vpack.c.b16 %v2261, %v2257
    %v2674 = vpack.c.b16 %v2262, %v2258
    %v2675 = vpack.c.b16 %v2263, %v2259
    %v2676 = vpack.c.b16 %v2264, %v2260
    %v2677 = vpack.c.b16 %v2269, %v2265
    %v2678 = vpack.c.b16 %v2270, %v2266
    %v2679 = vpack.c.b16 %v2271, %v2267
    %v2680 = vpack.c.b16 %v2272, %v2268
    %v2681 = vpack.c.b16 %v2277, %v2273
    %v2682 = vpack.c.b16 %v2278, %v2274
    %v2683 = vpack.c.b16 %v2279, %v2275
    %v2684 = vpack.c.b16 %v2280, %v2276
    %v2685 = vpack.c.b16 %v2285, %v2281
    %v2686 = vpack.c.b16 %v2286, %v2282
    %v2687 = vpack.c.b16 %v2287, %v2283
    %v2688 = vpack.c.b16 %v2288, %v2284
    %v2689 = vpack.c.b16 %v2293, %v2289
    %v2690 = vpack.c.b16 %v2294, %v2290
    %v2691 = vpack.c.b16 %v2295, %v2291
    %v2692 = vpack.c.b16 %v2296, %v2292
    %v2693 = vpack.c.b16 %v2301, %v2297
    %v2694 = vpack.c.b16 %v2302, %v2298
    %v2695 = vpack.c.b16 %v2303, %v2299
    %v2696 = vpack.c.b16 %v2304, %v2300
    %v2697 = vpack.c.b16 %v2309, %v2305
    %v2698 = vpack.c.b16 %v2310, %v2306
    %v2699 = vpack.c.b16 %v2311, %v2307
    %v2700 = vpack.c.b16 %v2312, %v2308
    %v2701 = vpack.c.b16 %v2317, %v2313
    %v2702 = vpack.c.b16 %v2318, %v2314
    %v2703 = vpack.c.b16 %v2319, %v2315
    %v2704 = vpack.c.b16 %v2320, %v2316
    %v2705 = vpack.c.b16 %v2325, %v2321
    %v2706 = vpack.c.b16 %v2326, %v2322
    %v2707 = vpack.c.b16 %v2327, %v2323
    %v2708 = vpack.c.b16 %v2328, %v2324
    %v2709 = vpack.c.b16 %v2333, %v2329
    %v2710 = vpack.c.b16 %v2334, %v2330
    %v2711 = vpack.c.b16 %v2335, %v2331
    %v2712 = vpack.c.b16 %v2336, %v2332
    %v2713 = vpack.c.b16 %v2341, %v2337
    %v2714 = vpack.c.b16 %v2342, %v2338
    %v2715 = vpack.c.b16 %v2343, %v2339
    %v2716 = vpack.c.b16 %v2344, %v2340
    %v2717 = vpack.c.b16 %v2349, %v2345
    %v2718 = vpack.c.b16 %v2350, %v2346
    %v2719 = vpack.c.b16 %v2351, %v2347
    %v2720 = vpack.c.b16 %v2352, %v2348
    %v2721 = vpack.c.b16 %v2357, %v2353
    %v2722 = vpack.c.b16 %v2358, %v2354
    %v2723 = vpack.c.b16 %v2359, %v2355
    %v2724 = vpack.c.b16 %v2360, %v2356
    %v2725 = vpack.c.b16 %v2365, %v2361
    %v2726 = vpack.c.b16 %v2366, %v2362
    %v2727 = vpack.c.b16 %v2367, %v2363
    %v2728 = vpack.c.b16 %v2368, %v2364
    %v2729 = vpack.c.b16 %v2373, %v2369
    %v2730 = vpack.c.b16 %v2374, %v2370
    %v2731 = vpack.c.b16 %v2375, %v2371
    %v2732 = vpack.c.b16 %v2376, %v2372
    %v2733 = vpack.c.b16 %v2381, %v2377
    %v2734 = vpack.c.b16 %v2382, %v2378
    %v2735 = vpack.c.b16 %v2383, %v2379
    %v2736 = vpack.c.b16 %v2384, %v2380
    %v2737 = vpack.c.b16 %v2389, %v2385
    %v2738 = vpack.c.b16 %v2390, %v2386
    %v2739 = vpack.c.b16 %v2391, %v2387
    %v2740 = vpack.c.b16 %v2392, %v2388
    %v2741 = vpack.c.b16 %v2397, %v2393
    %v2742 = vpack.c.b16 %v2398, %v2394
    %v2743 = vpack.c.b16 %v2399, %v2395
    %v2744 = vpack.c.b16 %v2400, %v2396
    %v2745 = vpack.c.b16 %v2405, %v2401
    %v2746 = vpack.c.b16 %v2406, %v2402
    %v2747 = vpack.c.b16 %v2407, %v2403
    %v2748 = vpack.c.b16 %v2408, %v2404
    %v2749 = vpack.c.b16 %v2413, %v2409
    %v2750 = vpack.c.b16 %v2414, %v2410
    %v2751 = vpack.c.b16 %v2415, %v2411
    %v2752 = vpack.c.b16 %v2416, %v2412
    %v2753 = vpack.c.b16 %v2421, %v2417
    %v2754 = vpack.c.b16 %v2422, %v2418
    %v2755 = vpack.c.b16 %v2423, %v2419
    %v2756 = vpack.c.b16 %v2424, %v2420
    %v2757 = vpack.c.b16 %v2429, %v2425
    %v2758 = vpack.c.b16 %v2430, %v2426
    %v2759 = vpack.c.b16 %v2431, %v2427
    %v2760 = vpack.c.b16 %v2432, %v2428
    %v2761 = vpack.c.b16 %v2437, %v2433
    %v2762 = vpack.c.b16 %v2438, %v2434
    %v2763 = vpack.c.b16 %v2439, %v2435
    %v2764 = vpack.c.b16 %v2440, %v2436
    %v2765 = vpack.c.b16 %v2445, %v2441
    %v2766 = vpack.c.b16 %v2446, %v2442
    %v2767 = vpack.c.b16 %v2447, %v2443
    %v2768 = vpack.c.b16 %v2448, %v2444
    %v2769 = vpack.c.b16 %v2453, %v2449
    %v2770 = vpack.c.b16 %v2454, %v2450
    %v2771 = vpack.c.b16 %v2455, %v2451
    %v2772 = vpack.c.b16 %v2456, %v2452
    %v2773 = vpack.c.b16 %v2461, %v2457
    %v2774 = vpack.c.b16 %v2462, %v2458
    %v2775 = vpack.c.b16 %v2463, %v2459
    %v2776 = vpack.c.b16 %v2464, %v2460
    %v2777 = vpack.c.b16 %v2469, %v2465
    %v2778 = vpack.c.b16 %v2470, %v2466
    %v2779 = vpack.c.b16 %v2471, %v2467
    %v2780 = vpack.c.b16 %v2472, %v2468
    %v2781 = vpack.c.b16 %v2477, %v2473
    %v2782 = vpack.c.b16 %v2478, %v2474
    %v2783 = vpack.c.b16 %v2479, %v2475
    %v2784 = vpack.c.b16 %v2480, %v2476
    %v2785 = vpack.c.b16 %v2485, %v2481
    %v2786 = vpack.c.b16 %v2486, %v2482
    %v2787 = vpack.c.b16 %v2487, %v2483
    %v2788 = vpack.c.b16 %v2488, %v2484
    %v2789 = vpack.c.b16 %v2493, %v2489
    %v2790 = vpack.c.b16 %v2494, %v2490
    %v2791 = vpack.c.b16 %v2495, %v2491
    %v2792 = vpack.c.b16 %v2496, %v2492
    %v2793 = vpack.c.b16 %v2501, %v2497
    %v2794 = vpack.c.b16 %v2502, %v2498
    %v2795 = vpack.c.b16 %v2503, %v2499
    %v2796 = vpack.c.b16 %v2504, %v2500
    %v2797 = vpack.c.b16 %v2509, %v2505
    %v2798 = vpack.c.b16 %v2510, %v2506
    %v2799 = vpack.c.b16 %v2511, %v2507
    %v2800 = vpack.c.b16 %v2512, %v2508
    %v2801 = vpack.c.b16 %v2517, %v2513
    %v2802 = vpack.c.b16 %v2518, %v2514
    %v2803 = vpack.c.b16 %v2519, %v2515
    %v2804 = vpack.c.b16 %v2520, %v2516
    %v3086 = vsel %vm874, %v2801, 0
    %v3089 = vsel %vm874, %v2802, 0
    %v3092 = vsel %vm874, %v2803, 0
    %v3095 = vsel %vm874, %v2804, 0
    %3097 = vmatpush.bf16.msra.mxu0 %v2549
    %3098 = vmatpush.bf16.msra.mxu0 %v2545
    %3099 = vmatpush.bf16.msra.mxu0 %v2541
    %3100 = vmatpush.bf16.msra.mxu0 %v2537
    %3101 = vmatpush.bf16.msra.mxu0 %v2533
    %3102 = vmatpush.bf16.msra.mxu0 %v2529
    %3103 = vmatpush.bf16.msra.mxu0 %v2525
    %3104 = vmatpush.bf16.msra.mxu0 %v2521
    %3105 = vmatmul.bf16.gmra.mxu0 %v428
    %v3106 = vpop.f32.mrf.mxu0
    %v3107 = vadd.f32 0.0, %v3106
    %v3108 = vpop.f32.mrf.mxu0
    %v3109 = vadd.f32 0.0, %v3108
    %3110 = vdwg.mxu0
    %3111 = vmatpush.bf16.msra.mxu0 %v2581
    %3112 = vmatpush.bf16.msra.mxu0 %v2577
    %3113 = vmatpush.bf16.msra.mxu0 %v2573
    %3114 = vmatpush.bf16.msra.mxu0 %v2569
    %3115 = vmatpush.bf16.msra.mxu0 %v2565
    %3116 = vmatpush.bf16.msra.mxu0 %v2561
    %3117 = vmatpush.bf16.msra.mxu0 %v2557
    %3118 = vmatpush.bf16.msra.mxu0 %v2553
    %3119 = vmatmul.bf16.gmra.mxu0 %v429
    %v3120 = vpop.f32.mrf.mxu0
    %v3121 = vadd.f32 %v3107, %v3120
    %v3122 = vpop.f32.mrf.mxu0
    %v3123 = vadd.f32 %v3109, %v3122
    %3124 = vdwg.mxu0
    %3125 = vmatpush.bf16.msra.mxu0 %v2613
    %3126 = vmatpush.bf16.msra.mxu0 %v2609
    %3127 = vmatpush.bf16.msra.mxu0 %v2605
    %3128 = vmatpush.bf16.msra.mxu0 %v2601
    %3129 = vmatpush.bf16.msra.mxu0 %v2597
    %3130 = vmatpush.bf16.msra.mxu0 %v2593
    %3131 = vmatpush.bf16.msra.mxu0 %v2589
    %3132 = vmatpush.bf16.msra.mxu0 %v2585
    %3133 = vmatmul.bf16.gmra.mxu0 %v430
    %v3134 = vpop.f32.mrf.mxu0
    %v3135 = vadd.f32 %v3121, %v3134
    %v3136 = vpop.f32.mrf.mxu0
    %v3137 = vadd.f32 %v3123, %v3136
    %3138 = vdwg.mxu0
    %3139 = vmatpush.bf16.msra.mxu0 %v2645
    %3140 = vmatpush.bf16.msra.mxu0 %v2641
    %3141 = vmatpush.bf16.msra.mxu0 %v2637
    %3142 = vmatpush.bf16.msra.mxu0 %v2633
    %3143 = vmatpush.bf16.msra.mxu0 %v2629
    %3144 = vmatpush.bf16.msra.mxu0 %v2625
    %3145 = vmatpush.bf16.msra.mxu0 %v2621
    %3146 = vmatpush.bf16.msra.mxu0 %v2617
    %3147 = vmatmul.bf16.gmra.mxu0 %v431
    %v3148 = vpop.f32.mrf.mxu0
    %v3149 = vadd.f32 %v3135, %v3148
    %v3150 = vpop.f32.mrf.mxu0
    %v3151 = vadd.f32 %v3137, %v3150
    %3152 = vdwg.mxu0
    %3153 = vmatpush.bf16.msra.mxu0 %v2677
    %3154 = vmatpush.bf16.msra.mxu0 %v2673
    %3155 = vmatpush.bf16.msra.mxu0 %v2669
    %3156 = vmatpush.bf16.msra.mxu0 %v2665
    %3157 = vmatpush.bf16.msra.mxu0 %v2661
    %3158 = vmatpush.bf16.msra.mxu0 %v2657
    %3159 = vmatpush.bf16.msra.mxu0 %v2653
    %3160 = vmatpush.bf16.msra.mxu0 %v2649
    %3161 = vmatmul.bf16.gmra.mxu0 %v432
    %v3162 = vpop.f32.mrf.mxu0
    %v3163 = vadd.f32 %v3149, %v3162
    %v3164 = vpop.f32.mrf.mxu0
    %v3165 = vadd.f32 %v3151, %v3164
    %3166 = vdwg.mxu0
    %3167 = vmatpush.bf16.msra.mxu0 %v2709
    %3168 = vmatpush.bf16.msra.mxu0 %v2705
    %3169 = vmatpush.bf16.msra.mxu0 %v2701
    %3170 = vmatpush.bf16.msra.mxu0 %v2697
    %3171 = vmatpush.bf16.msra.mxu0 %v2693
    %3172 = vmatpush.bf16.msra.mxu0 %v2689
    %3173 = vmatpush.bf16.msra.mxu0 %v2685
    %3174 = vmatpush.bf16.msra.mxu0 %v2681
    %3175 = vmatmul.bf16.gmra.mxu0 %v433
    %v3176 = vpop.f32.mrf.mxu0
    %v3177 = vadd.f32 %v3163, %v3176
    %v3178 = vpop.f32.mrf.mxu0
    %v3179 = vadd.f32 %v3165, %v3178
    %3180 = vdwg.mxu0
    %3181 = vmatpush.bf16.msra.mxu0 %v2741
    %3182 = vmatpush.bf16.msra.mxu0 %v2737
    %3183 = vmatpush.bf16.msra.mxu0 %v2733
    %3184 = vmatpush.bf16.msra.mxu0 %v2729
    %3185 = vmatpush.bf16.msra.mxu0 %v2725
    %3186 = vmatpush.bf16.msra.mxu0 %v2721
    %3187 = vmatpush.bf16.msra.mxu0 %v2717
    %3188 = vmatpush.bf16.msra.mxu0 %v2713
    %3189 = vmatmul.bf16.gmra.mxu0 %v434
    %v3190 = vpop.f32.mrf.mxu0
    %v3191 = vadd.f32 %v3177, %v3190
    %v3192 = vpop.f32.mrf.mxu0
    %v3193 = vadd.f32 %v3179, %v3192
    %3194 = vdwg.mxu0
    %3195 = vmatpush.bf16.msra.mxu0 %v2773
    %3196 = vmatpush.bf16.msra.mxu0 %v2769
    %3197 = vmatpush.bf16.msra.mxu0 %v2765
    %3198 = vmatpush.bf16.msra.mxu0 %v2761
    %3199 = vmatpush.bf16.msra.mxu0 %v2757
    %3200 = vmatpush.bf16.msra.mxu0 %v2753
    %3201 = vmatpush.bf16.msra.mxu0 %v2749
    %3202 = vmatpush.bf16.msra.mxu0 %v2745
    %3203 = vmatmul.bf16.gmra.mxu0 %v435
    %v3204 = vpop.f32.mrf.mxu0
    %v3205 = vadd.f32 %v3191, %v3204
    %v3206 = vpop.f32.mrf.mxu0
    %v3207 = vadd.f32 %v3193, %v3206
    %3208 = vdwg.mxu0
    %3209 = vmatpush.bf16.msra.mxu0 0
    %3210 = vmatpush.bf16.msra.mxu0 %v3086
    %3211 = vmatpush.bf16.msra.mxu0 %v2797
    %3212 = vmatpush.bf16.msra.mxu0 %v2793
    %3213 = vmatpush.bf16.msra.mxu0 %v2789
    %3214 = vmatpush.bf16.msra.mxu0 %v2785
    %3215 = vmatpush.bf16.msra.mxu0 %v2781
    %3216 = vmatpush.bf16.msra.mxu0 %v2777
    %3217 = vmatmul.bf16.gmra.mxu0 %v872
    %v3218 = vpop.f32.mrf.mxu0
    %v3219 = vadd.f32 %v3205, %v3218
    %v3220 = vpop.f32.mrf.mxu0
    %v3221 = vadd.f32 %v3207, %v3220
    %3222 = vdwg.mxu0
    %3223 = vmatpush.bf16.msra.mxu0 %v2550
    %3224 = vmatpush.bf16.msra.mxu0 %v2546
    %3225 = vmatpush.bf16.msra.mxu0 %v2542
    %3226 = vmatpush.bf16.msra.mxu0 %v2538
    %3227 = vmatpush.bf16.msra.mxu0 %v2534
    %3228 = vmatpush.bf16.msra.mxu0 %v2530
    %3229 = vmatpush.bf16.msra.mxu0 %v2526
    %3230 = vmatpush.bf16.msra.mxu0 %v2522
    %3231 = vmatmul.bf16.gmra.mxu0 %v428
    %v3232 = vpop.f32.mrf.mxu0
    %v3233 = vadd.f32 0.0, %v3232
    %v3234 = vpop.f32.mrf.mxu0
    %v3235 = vadd.f32 0.0, %v3234
    %3236 = vdwg.mxu0
    %3237 = vmatpush.bf16.msra.mxu0 %v2582
    %3238 = vmatpush.bf16.msra.mxu0 %v2578
    %3239 = vmatpush.bf16.msra.mxu0 %v2574
    %3240 = vmatpush.bf16.msra.mxu0 %v2570
    %3241 = vmatpush.bf16.msra.mxu0 %v2566
    %3242 = vmatpush.bf16.msra.mxu0 %v2562
    %3243 = vmatpush.bf16.msra.mxu0 %v2558
    %3244 = vmatpush.bf16.msra.mxu0 %v2554
    %3245 = vmatmul.bf16.gmra.mxu0 %v429
    %v3246 = vpop.f32.mrf.mxu0
    %v3247 = vadd.f32 %v3233, %v3246
    %v3248 = vpop.f32.mrf.mxu0
    %v3249 = vadd.f32 %v3235, %v3248
    %3250 = vdwg.mxu0
    %3251 = vmatpush.bf16.msra.mxu0 %v2614
    %3252 = vmatpush.bf16.msra.mxu0 %v2610
    %3253 = vmatpush.bf16.msra.mxu0 %v2606
    %3254 = vmatpush.bf16.msra.mxu0 %v2602
    %3255 = vmatpush.bf16.msra.mxu0 %v2598
    %3256 = vmatpush.bf16.msra.mxu0 %v2594
    %3257 = vmatpush.bf16.msra.mxu0 %v2590
    %3258 = vmatpush.bf16.msra.mxu0 %v2586
    %3259 = vmatmul.bf16.gmra.mxu0 %v430
    %v3260 = vpop.f32.mrf.mxu0
    %v3261 = vadd.f32 %v3247, %v3260
    %v3262 = vpop.f32.mrf.mxu0
    %v3263 = vadd.f32 %v3249, %v3262
    %3264 = vdwg.mxu0
    %3265 = vmatpush.bf16.msra.mxu0 %v2646
    %3266 = vmatpush.bf16.msra.mxu0 %v2642
    %3267 = vmatpush.bf16.msra.mxu0 %v2638
    %3268 = vmatpush.bf16.msra.mxu0 %v2634
    %3269 = vmatpush.bf16.msra.mxu0 %v2630
    %3270 = vmatpush.bf16.msra.mxu0 %v2626
    %3271 = vmatpush.bf16.msra.mxu0 %v2622
    %3272 = vmatpush.bf16.msra.mxu0 %v2618
    %3273 = vmatmul.bf16.gmra.mxu0 %v431
    %v3274 = vpop.f32.mrf.mxu0
    %v3275 = vadd.f32 %v3261, %v3274
    %v3276 = vpop.f32.mrf.mxu0
    %v3277 = vadd.f32 %v3263, %v3276
    %3278 = vdwg.mxu0
    %3279 = vmatpush.bf16.msra.mxu0 %v2678
    %3280 = vmatpush.bf16.msra.mxu0 %v2674
    %3281 = vmatpush.bf16.msra.mxu0 %v2670
    %3282 = vmatpush.bf16.msra.mxu0 %v2666
    %3283 = vmatpush.bf16.msra.mxu0 %v2662
    %3284 = vmatpush.bf16.msra.mxu0 %v2658
    %3285 = vmatpush.bf16.msra.mxu0 %v2654
    %3286 = vmatpush.bf16.msra.mxu0 %v2650
    %3287 = vmatmul.bf16.gmra.mxu0 %v432
    %v3288 = vpop.f32.mrf.mxu0
    %v3289 = vadd.f32 %v3275, %v3288
    %v3290 = vpop.f32.mrf.mxu0
    %v3291 = vadd.f32 %v3277, %v3290
    %3292 = vdwg.mxu0
    %3293 = vmatpush.bf16.msra.mxu0 %v2710
    %3294 = vmatpush.bf16.msra.mxu0 %v2706
    %3295 = vmatpush.bf16.msra.mxu0 %v2702
    %3296 = vmatpush.bf16.msra.mxu0 %v2698
    %3297 = vmatpush.bf16.msra.mxu0 %v2694
    %3298 = vmatpush.bf16.msra.mxu0 %v2690
    %3299 = vmatpush.bf16.msra.mxu0 %v2686
    %3300 = vmatpush.bf16.msra.mxu0 %v2682
    %3301 = vmatmul.bf16.gmra.mxu0 %v433
    %v3302 = vpop.f32.mrf.mxu0
    %v3303 = vadd.f32 %v3289, %v3302
    %v3304 = vpop.f32.mrf.mxu0
    %v3305 = vadd.f32 %v3291, %v3304
    %3306 = vdwg.mxu0
    %3307 = vmatpush.bf16.msra.mxu0 %v2742
    %3308 = vmatpush.bf16.msra.mxu0 %v2738
    %3309 = vmatpush.bf16.msra.mxu0 %v2734
    %3310 = vmatpush.bf16.msra.mxu0 %v2730
    %3311 = vmatpush.bf16.msra.mxu0 %v2726
    %3312 = vmatpush.bf16.msra.mxu0 %v2722
    %3313 = vmatpush.bf16.msra.mxu0 %v2718
    %3314 = vmatpush.bf16.msra.mxu0 %v2714
    %3315 = vmatmul.bf16.gmra.mxu0 %v434
    %v3316 = vpop.f32.mrf.mxu0
    %v3317 = vadd.f32 %v3303, %v3316
    %v3318 = vpop.f32.mrf.mxu0
    %v3319 = vadd.f32 %v3305, %v3318
    %3320 = vdwg.mxu0
    %3321 = vmatpush.bf16.msra.mxu0 %v2774
    %3322 = vmatpush.bf16.msra.mxu0 %v2770
    %3323 = vmatpush.bf16.msra.mxu0 %v2766
    %3324 = vmatpush.bf16.msra.mxu0 %v2762
    %3325 = vmatpush.bf16.msra.mxu0 %v2758
    %3326 = vmatpush.bf16.msra.mxu0 %v2754
    %3327 = vmatpush.bf16.msra.mxu0 %v2750
    %3328 = vmatpush.bf16.msra.mxu0 %v2746
    %3329 = vmatmul.bf16.gmra.mxu0 %v435
    %v3330 = vpop.f32.mrf.mxu0
    %v3331 = vadd.f32 %v3317, %v3330
    %v3332 = vpop.f32.mrf.mxu0
    %v3333 = vadd.f32 %v3319, %v3332
    %3334 = vdwg.mxu0
    %3335 = vmatpush.bf16.msra.mxu0 0
    %3336 = vmatpush.bf16.msra.mxu0 %v3089
    %3337 = vmatpush.bf16.msra.mxu0 %v2798
    %3338 = vmatpush.bf16.msra.mxu0 %v2794
    %3339 = vmatpush.bf16.msra.mxu0 %v2790
    %3340 = vmatpush.bf16.msra.mxu0 %v2786
    %3341 = vmatpush.bf16.msra.mxu0 %v2782
    %3342 = vmatpush.bf16.msra.mxu0 %v2778
    %3343 = vmatmul.bf16.gmra.mxu0 %v872
    %v3344 = vpop.f32.mrf.mxu0
    %v3345 = vadd.f32 %v3331, %v3344
    %v3346 = vpop.f32.mrf.mxu0
    %v3347 = vadd.f32 %v3333, %v3346
    %3348 = vdwg.mxu0
    %3349 = vmatpush.bf16.msra.mxu0 %v2551
    %3350 = vmatpush.bf16.msra.mxu0 %v2547
    %3351 = vmatpush.bf16.msra.mxu0 %v2543
    %3352 = vmatpush.bf16.msra.mxu0 %v2539
    %3353 = vmatpush.bf16.msra.mxu0 %v2535
    %3354 = vmatpush.bf16.msra.mxu0 %v2531
    %3355 = vmatpush.bf16.msra.mxu0 %v2527
    %3356 = vmatpush.bf16.msra.mxu0 %v2523
    %3357 = vmatmul.bf16.gmra.mxu0 %v428
    %v3358 = vpop.f32.mrf.mxu0
    %v3359 = vadd.f32 0.0, %v3358
    %v3360 = vpop.f32.mrf.mxu0
    %v3361 = vadd.f32 0.0, %v3360
    %3362 = vdwg.mxu0
    %3363 = vmatpush.bf16.msra.mxu0 %v2583
    %3364 = vmatpush.bf16.msra.mxu0 %v2579
    %3365 = vmatpush.bf16.msra.mxu0 %v2575
    %3366 = vmatpush.bf16.msra.mxu0 %v2571
    %3367 = vmatpush.bf16.msra.mxu0 %v2567
    %3368 = vmatpush.bf16.msra.mxu0 %v2563
    %3369 = vmatpush.bf16.msra.mxu0 %v2559
    %3370 = vmatpush.bf16.msra.mxu0 %v2555
    %3371 = vmatmul.bf16.gmra.mxu0 %v429
    %v3372 = vpop.f32.mrf.mxu0
    %v3373 = vadd.f32 %v3359, %v3372
    %v3374 = vpop.f32.mrf.mxu0
    %v3375 = vadd.f32 %v3361, %v3374
    %3376 = vdwg.mxu0
    %3377 = vmatpush.bf16.msra.mxu0 %v2615
    %3378 = vmatpush.bf16.msra.mxu0 %v2611
    %3379 = vmatpush.bf16.msra.mxu0 %v2607
    %3380 = vmatpush.bf16.msra.mxu0 %v2603
    %3381 = vmatpush.bf16.msra.mxu0 %v2599
    %3382 = vmatpush.bf16.msra.mxu0 %v2595
    %3383 = vmatpush.bf16.msra.mxu0 %v2591
    %3384 = vmatpush.bf16.msra.mxu0 %v2587
    %3385 = vmatmul.bf16.gmra.mxu0 %v430
    %v3386 = vpop.f32.mrf.mxu0
    %v3387 = vadd.f32 %v3373, %v3386
    %v3388 = vpop.f32.mrf.mxu0
    %v3389 = vadd.f32 %v3375, %v3388
    %3390 = vdwg.mxu0
    %3391 = vmatpush.bf16.msra.mxu0 %v2647
    %3392 = vmatpush.bf16.msra.mxu0 %v2643
    %3393 = vmatpush.bf16.msra.mxu0 %v2639
    %3394 = vmatpush.bf16.msra.mxu0 %v2635
    %3395 = vmatpush.bf16.msra.mxu0 %v2631
    %3396 = vmatpush.bf16.msra.mxu0 %v2627
    %3397 = vmatpush.bf16.msra.mxu0 %v2623
    %3398 = vmatpush.bf16.msra.mxu0 %v2619
    %3399 = vmatmul.bf16.gmra.mxu0 %v431
    %v3400 = vpop.f32.mrf.mxu0
    %v3401 = vadd.f32 %v3387, %v3400
    %v3402 = vpop.f32.mrf.mxu0
    %v3403 = vadd.f32 %v3389, %v3402
    %3404 = vdwg.mxu0
    %3405 = vmatpush.bf16.msra.mxu0 %v2679
    %3406 = vmatpush.bf16.msra.mxu0 %v2675
    %3407 = vmatpush.bf16.msra.mxu0 %v2671
    %3408 = vmatpush.bf16.msra.mxu0 %v2667
    %3409 = vmatpush.bf16.msra.mxu0 %v2663
    %3410 = vmatpush.bf16.msra.mxu0 %v2659
    %3411 = vmatpush.bf16.msra.mxu0 %v2655
    %3412 = vmatpush.bf16.msra.mxu0 %v2651
    %3413 = vmatmul.bf16.gmra.mxu0 %v432
    %v3414 = vpop.f32.mrf.mxu0
    %v3415 = vadd.f32 %v3401, %v3414
    %v3416 = vpop.f32.mrf.mxu0
    %v3417 = vadd.f32 %v3403, %v3416
    %3418 = vdwg.mxu0
    %3419 = vmatpush.bf16.msra.mxu0 %v2711
    %3420 = vmatpush.bf16.msra.mxu0 %v2707
    %3421 = vmatpush.bf16.msra.mxu0 %v2703
    %3422 = vmatpush.bf16.msra.mxu0 %v2699
    %3423 = vmatpush.bf16.msra.mxu0 %v2695
    %3424 = vmatpush.bf16.msra.mxu0 %v2691
    %3425 = vmatpush.bf16.msra.mxu0 %v2687
    %3426 = vmatpush.bf16.msra.mxu0 %v2683
    %3427 = vmatmul.bf16.gmra.mxu0 %v433
    %v3428 = vpop.f32.mrf.mxu0
    %v3429 = vadd.f32 %v3415, %v3428
    %v3430 = vpop.f32.mrf.mxu0
    %v3431 = vadd.f32 %v3417, %v3430
    %3432 = vdwg.mxu0
    %3433 = vmatpush.bf16.msra.mxu0 %v2743
    %3434 = vmatpush.bf16.msra.mxu0 %v2739
    %3435 = vmatpush.bf16.msra.mxu0 %v2735
    %3436 = vmatpush.bf16.msra.mxu0 %v2731
    %3437 = vmatpush.bf16.msra.mxu0 %v2727
    %3438 = vmatpush.bf16.msra.mxu0 %v2723
    %3439 = vmatpush.bf16.msra.mxu0 %v2719
    %3440 = vmatpush.bf16.msra.mxu0 %v2715
    %3441 = vmatmul.bf16.gmra.mxu0 %v434
    %v3442 = vpop.f32.mrf.mxu0
    %v3443 = vadd.f32 %v3429, %v3442
    %v3444 = vpop.f32.mrf.mxu0
    %v3445 = vadd.f32 %v3431, %v3444
    %3446 = vdwg.mxu0
    %3447 = vmatpush.bf16.msra.mxu0 %v2775
    %3448 = vmatpush.bf16.msra.mxu0 %v2771
    %3449 = vmatpush.bf16.msra.mxu0 %v2767
    %3450 = vmatpush.bf16.msra.mxu0 %v2763
    %3451 = vmatpush.bf16.msra.mxu0 %v2759
    %3452 = vmatpush.bf16.msra.mxu0 %v2755
    %3453 = vmatpush.bf16.msra.mxu0 %v2751
    %3454 = vmatpush.bf16.msra.mxu0 %v2747
    %3455 = vmatmul.bf16.gmra.mxu0 %v435
    %v3456 = vpop.f32.mrf.mxu0
    %v3457 = vadd.f32 %v3443, %v3456
    %v3458 = vpop.f32.mrf.mxu0
    %v3459 = vadd.f32 %v3445, %v3458
    %3460 = vdwg.mxu0
    %3461 = vmatpush.bf16.msra.mxu0 0
    %3462 = vmatpush.bf16.msra.mxu0 %v3092
    %3463 = vmatpush.bf16.msra.mxu0 %v2799
    %3464 = vmatpush.bf16.msra.mxu0 %v2795
    %3465 = vmatpush.bf16.msra.mxu0 %v2791
    %3466 = vmatpush.bf16.msra.mxu0 %v2787
    %3467 = vmatpush.bf16.msra.mxu0 %v2783
    %3468 = vmatpush.bf16.msra.mxu0 %v2779
    %3469 = vmatmul.bf16.gmra.mxu0 %v872
    %v3470 = vpop.f32.mrf.mxu0
    %v3471 = vadd.f32 %v3457, %v3470
    %v3472 = vpop.f32.mrf.mxu0
    %v3473 = vadd.f32 %v3459, %v3472
    %3474 = vdwg.mxu0
    %3475 = vmatpush.bf16.msra.mxu0 %v2552
    %3476 = vmatpush.bf16.msra.mxu0 %v2548
    %3477 = vmatpush.bf16.msra.mxu0 %v2544
    %3478 = vmatpush.bf16.msra.mxu0 %v2540
    %3479 = vmatpush.bf16.msra.mxu0 %v2536
    %3480 = vmatpush.bf16.msra.mxu0 %v2532
    %3481 = vmatpush.bf16.msra.mxu0 %v2528
    %3482 = vmatpush.bf16.msra.mxu0 %v2524
    %3483 = vmatmul.bf16.gmra.mxu0 %v428
    %v3484 = vpop.f32.mrf.mxu0
    %v3485 = vadd.f32 0.0, %v3484
    %v3486 = vpop.f32.mrf.mxu0
    %v3487 = vadd.f32 0.0, %v3486
    %3488 = vdwg.mxu0
    %3489 = vmatpush.bf16.msra.mxu0 %v2584
    %3490 = vmatpush.bf16.msra.mxu0 %v2580
    %3491 = vmatpush.bf16.msra.mxu0 %v2576
    %3492 = vmatpush.bf16.msra.mxu0 %v2572
    %3493 = vmatpush.bf16.msra.mxu0 %v2568
    %3494 = vmatpush.bf16.msra.mxu0 %v2564
    %3495 = vmatpush.bf16.msra.mxu0 %v2560
    %3496 = vmatpush.bf16.msra.mxu0 %v2556
    %3497 = vmatmul.bf16.gmra.mxu0 %v429
    %v3498 = vpop.f32.mrf.mxu0
    %v3499 = vadd.f32 %v3485, %v3498
    %v3500 = vpop.f32.mrf.mxu0
    %v3501 = vadd.f32 %v3487, %v3500
    %3502 = vdwg.mxu0
    %3503 = vmatpush.bf16.msra.mxu0 %v2616
    %3504 = vmatpush.bf16.msra.mxu0 %v2612
    %3505 = vmatpush.bf16.msra.mxu0 %v2608
    %3506 = vmatpush.bf16.msra.mxu0 %v2604
    %3507 = vmatpush.bf16.msra.mxu0 %v2600
    %3508 = vmatpush.bf16.msra.mxu0 %v2596
    %3509 = vmatpush.bf16.msra.mxu0 %v2592
    %3510 = vmatpush.bf16.msra.mxu0 %v2588
    %3511 = vmatmul.bf16.gmra.mxu0 %v430
    %v3512 = vpop.f32.mrf.mxu0
    %v3513 = vadd.f32 %v3499, %v3512
    %v3514 = vpop.f32.mrf.mxu0
    %v3515 = vadd.f32 %v3501, %v3514
    %3516 = vdwg.mxu0
    %3517 = vmatpush.bf16.msra.mxu0 %v2648
    %3518 = vmatpush.bf16.msra.mxu0 %v2644
    %3519 = vmatpush.bf16.msra.mxu0 %v2640
    %3520 = vmatpush.bf16.msra.mxu0 %v2636
    %3521 = vmatpush.bf16.msra.mxu0 %v2632
    %3522 = vmatpush.bf16.msra.mxu0 %v2628
    %3523 = vmatpush.bf16.msra.mxu0 %v2624
    %3524 = vmatpush.bf16.msra.mxu0 %v2620
    %3525 = vmatmul.bf16.gmra.mxu0 %v431
    %v3526 = vpop.f32.mrf.mxu0
    %v3527 = vadd.f32 %v3513, %v3526
    %v3528 = vpop.f32.mrf.mxu0
    %v3529 = vadd.f32 %v3515, %v3528
    %3530 = vdwg.mxu0
    %3531 = vmatpush.bf16.msra.mxu0 %v2680
    %3532 = vmatpush.bf16.msra.mxu0 %v2676
    %3533 = vmatpush.bf16.msra.mxu0 %v2672
    %3534 = vmatpush.bf16.msra.mxu0 %v2668
    %3535 = vmatpush.bf16.msra.mxu0 %v2664
    %3536 = vmatpush.bf16.msra.mxu0 %v2660
    %3537 = vmatpush.bf16.msra.mxu0 %v2656
    %3538 = vmatpush.bf16.msra.mxu0 %v2652
    %3539 = vmatmul.bf16.gmra.mxu0 %v432
    %v3540 = vpop.f32.mrf.mxu0
    %v3541 = vadd.f32 %v3527, %v3540
    %v3542 = vpop.f32.mrf.mxu0
    %v3543 = vadd.f32 %v3529, %v3542
    %3544 = vdwg.mxu0
    %3545 = vmatpush.bf16.msra.mxu0 %v2712
    %3546 = vmatpush.bf16.msra.mxu0 %v2708
    %3547 = vmatpush.bf16.msra.mxu0 %v2704
    %3548 = vmatpush.bf16.msra.mxu0 %v2700
    %3549 = vmatpush.bf16.msra.mxu0 %v2696
    %3550 = vmatpush.bf16.msra.mxu0 %v2692
    %3551 = vmatpush.bf16.msra.mxu0 %v2688
    %3552 = vmatpush.bf16.msra.mxu0 %v2684
    %3553 = vmatmul.bf16.gmra.mxu0 %v433
    %v3554 = vpop.f32.mrf.mxu0
    %v3555 = vadd.f32 %v3541, %v3554
    %v3556 = vpop.f32.mrf.mxu0
    %v3557 = vadd.f32 %v3543, %v3556
    %3558 = vdwg.mxu0
    %3559 = vmatpush.bf16.msra.mxu0 %v2744
    %3560 = vmatpush.bf16.msra.mxu0 %v2740
    %3561 = vmatpush.bf16.msra.mxu0 %v2736
    %3562 = vmatpush.bf16.msra.mxu0 %v2732
    %3563 = vmatpush.bf16.msra.mxu0 %v2728
    %3564 = vmatpush.bf16.msra.mxu0 %v2724
    %3565 = vmatpush.bf16.msra.mxu0 %v2720
    %3566 = vmatpush.bf16.msra.mxu0 %v2716
    %3567 = vmatmul.bf16.gmra.mxu0 %v434
    %v3568 = vpop.f32.mrf.mxu0
    %v3569 = vadd.f32 %v3555, %v3568
    %v3570 = vpop.f32.mrf.mxu0
    %v3571 = vadd.f32 %v3557, %v3570
    %3572 = vdwg.mxu0
    %3573 = vmatpush.bf16.msra.mxu0 %v2776
    %3574 = vmatpush.bf16.msra.mxu0 %v2772
    %3575 = vmatpush.bf16.msra.mxu0 %v2768
    %3576 = vmatpush.bf16.msra.mxu0 %v2764
    %3577 = vmatpush.bf16.msra.mxu0 %v2760
    %3578 = vmatpush.bf16.msra.mxu0 %v2756
    %3579 = vmatpush.bf16.msra.mxu0 %v2752
    %3580 = vmatpush.bf16.msra.mxu0 %v2748
    %3581 = vmatmul.bf16.gmra.mxu0 %v435
    %v3582 = vpop.f32.mrf.mxu0
    %v3583 = vadd.f32 %v3569, %v3582
    %v3584 = vpop.f32.mrf.mxu0
    %v3585 = vadd.f32 %v3571, %v3584
    %3586 = vdwg.mxu0
    %3587 = vmatpush.bf16.msra.mxu0 0
    %3588 = vmatpush.bf16.msra.mxu0 %v3095
    %3589 = vmatpush.bf16.msra.mxu0 %v2800
    %3590 = vmatpush.bf16.msra.mxu0 %v2796
    %3591 = vmatpush.bf16.msra.mxu0 %v2792
    %3592 = vmatpush.bf16.msra.mxu0 %v2788
    %3593 = vmatpush.bf16.msra.mxu0 %v2784
    %3594 = vmatpush.bf16.msra.mxu0 %v2780
    %3595 = vmatmul.bf16.gmra.mxu0 %v872
    %v3596 = vpop.f32.mrf.mxu0
    %v3597 = vadd.f32 %v3583, %v3596
    %v3598 = vpop.f32.mrf.mxu0
    %v3599 = vadd.f32 %v3585, %v3598
    %3600 = vdwg.mxu0
    %v3601 = vpack.c.bf16 %v3221, %v3219
    %v3602 = vpack.c.bf16 %v3347, %v3345
    %v3603 = vpack.c.bf16 %v3473, %v3471
    %v3604 = vpack.c.bf16 %v3599, %v3597
    %v3605 = vld [vmem:[#allocation16] sm:$0xf]
    %v3607 = vperm.slane %v3605, 0
    %v3608 = vperm.slane %v3605, 1
    %v3609 = vperm.slane %v3605, 2
    %v3610 = vperm.slane %v3605, 3
    %v3616 = vsel %vm1233, %v1220, 0
    %3618 = vmatpush.bf16.msra.mxu0 0
    %3619 = vmatpush.bf16.msra.mxu0 0
    %3620 = vmatpush.bf16.msra.mxu0 0
    %3621 = vmatpush.bf16.msra.mxu0 0
    %3622 = vmatpush.bf16.msra.mxu0 0
    %3623 = vmatpush.bf16.msra.mxu0 0
    %3624 = vmatpush.bf16.msra.mxu0 0
    %3625 = vmatpush.bf16.msra.mxu0 %v3601
    %3626 = vmatmul.bf16.gmra.mxu0 %v3616
    %v3627 = vpop.f32.mrf.mxu0
    %v3628 = vadd.f32 %v3607, %v3627
    %v3629 = vpop.f32.mrf.mxu0
    %v3630 = vadd.f32 %v3607, %v3629
    %3631 = vdwg.mxu0
    %3632 = vmatpush.bf16.msra.mxu0 0
    %3633 = vmatpush.bf16.msra.mxu0 0
    %3634 = vmatpush.bf16.msra.mxu0 0
    %3635 = vmatpush.bf16.msra.mxu0 0
    %3636 = vmatpush.bf16.msra.mxu0 0
    %3637 = vmatpush.bf16.msra.mxu0 0
    %3638 = vmatpush.bf16.msra.mxu0 0
    %3639 = vmatpush.bf16.msra.mxu0 %v3602
    %3640 = vmatmul.bf16.gmra.mxu0 %v3616
    %v3641 = vpop.f32.mrf.mxu0
    %v3642 = vadd.f32 %v3608, %v3641
    %v3643 = vpop.f32.mrf.mxu0
    %v3644 = vadd.f32 %v3608, %v3643
    %3645 = vdwg.mxu0
    %3646 = vmatpush.bf16.msra.mxu0 0
    %3647 = vmatpush.bf16.msra.mxu0 0
    %3648 = vmatpush.bf16.msra.mxu0 0
    %3649 = vmatpush.bf16.msra.mxu0 0
    %3650 = vmatpush.bf16.msra.mxu0 0
    %3651 = vmatpush.bf16.msra.mxu0 0
    %3652 = vmatpush.bf16.msra.mxu0 0
    %3653 = vmatpush.bf16.msra.mxu0 %v3603
    %3654 = vmatmul.bf16.gmra.mxu0 %v3616
    %v3655 = vpop.f32.mrf.mxu0
    %v3656 = vadd.f32 %v3609, %v3655
    %v3657 = vpop.f32.mrf.mxu0
    %v3658 = vadd.f32 %v3609, %v3657
    %3659 = vdwg.mxu0
    %3660 = vmatpush.bf16.msra.mxu0 0
    %3661 = vmatpush.bf16.msra.mxu0 0
    %3662 = vmatpush.bf16.msra.mxu0 0
    %3663 = vmatpush.bf16.msra.mxu0 0
    %3664 = vmatpush.bf16.msra.mxu0 0
    %3665 = vmatpush.bf16.msra.mxu0 0
    %3666 = vmatpush.bf16.msra.mxu0 0
    %3667 = vmatpush.bf16.msra.mxu0 %v3604
    %3668 = vmatmul.bf16.gmra.mxu0 %v3616
    %v3669 = vpop.f32.mrf.mxu0
    %v3670 = vadd.f32 %v3610, %v3669
    %v3671 = vpop.f32.mrf.mxu0
    %v3672 = vadd.f32 %v3610, %v3671
    %3673 = vdwg.mxu0
    %v3674 = vmax.f32 %v3628, 0.0
    %v3675 = vmax.f32 %v3642, 0.0
    %v3676 = vmax.f32 %v3656, 0.0
    %v3677 = vmax.f32 %v3670, 0.0
    %v3678 = vmax.f32 %v3630, 0.0
    %v3679 = vmax.f32 %v3644, 0.0
    %v3680 = vmax.f32 %v3658, 0.0
    %v3681 = vmax.f32 %v3672, 0.0
    %s3682 = smul.u32 4, 64
    %s3683 = smul.u32 %s3682, 2
    %s3684 = sshll.u32 %s3683, 4
    %3685 = dma.done %s169, %s3684
    %v3686 = vpack.c.bf16 %v3675, %v3674
    %v3687 = vpack.c.bf16 %v3677, %v3676
    %v3688 = vpack.c.bf16 %v3679, %v3678
    %v3689 = vpack.c.bf16 %v3681, %v3680
    %v3690 = vld [vmem:[#allocation3] sm:$0xff]
    %v3691 = vld [vmem:[#allocation3 + $0x8] sm:$0xff]
    %v3692 = vld [vmem:[#allocation3 + $0x10] sm:$0xff]
    %v3693 = vld [vmem:[#allocation3 + $0x18] sm:$0xff]
    %v3694 = vld [vmem:[#allocation3 + $0x20] sm:$0xff]
    %v3695 = vld [vmem:[#allocation3 + $0x28] sm:$0xff]
    %v3696 = vld [vmem:[#allocation3 + $0x30] sm:$0xff]
    %v3697 = vld [vmem:[#allocation3 + $0x38] sm:$0xff]
    %v3698 = vld [vmem:[#allocation3 + $0x40] sm:$0xff]
    %v3699 = vld [vmem:[#allocation3 + $0x48] sm:$0xff]
    %v3700 = vld [vmem:[#allocation3 + $0x50] sm:$0xff]
    %v3701 = vld [vmem:[#allocation3 + $0x58] sm:$0xff]
    %v3702 = vld [vmem:[#allocation3 + $0x60] sm:$0xff]
    %v3703 = vld [vmem:[#allocation3 + $0x68] sm:$0xff]
    %v3704 = vld [vmem:[#allocation3 + $0x70] sm:$0xff]
    %v3705 = vld [vmem:[#allocation3 + $0x78] sm:$0xff]
    %v3706 = vld [vmem:[#allocation3 + $0x80] sm:$0xff]
    %v3707 = vld [vmem:[#allocation3 + $0x88] sm:$0xff]
    %v3708 = vld [vmem:[#allocation3 + $0x90] sm:$0xff]
    %v3709 = vld [vmem:[#allocation3 + $0x98] sm:$0xff]
    %v3710 = vld [vmem:[#allocation3 + $0xa0] sm:$0xff]
    %v3711 = vld [vmem:[#allocation3 + $0xa8] sm:$0xff]
    %v3712 = vld [vmem:[#allocation3 + $0xb0] sm:$0xff]
    %v3713 = vld [vmem:[#allocation3 + $0xb8] sm:$0xff]
    %v3714 = vld [vmem:[#allocation3 + $0xc0] sm:$0xff]
    %v3715 = vld [vmem:[#allocation3 + $0xc8] sm:$0xff]
    %v3716 = vld [vmem:[#allocation3 + $0xd0] sm:$0xff]
    %v3717 = vld [vmem:[#allocation3 + $0xd8] sm:$0xff]
    %v3718 = vld [vmem:[#allocation3 + $0xe0] sm:$0xff]
    %v3719 = vld [vmem:[#allocation3 + $0xe8] sm:$0xff]
    %v3720 = vld [vmem:[#allocation3 + $0xf0] sm:$0xff]
    %v3721 = vld [vmem:[#allocation3 + $0xf8] sm:$0xff]
    %v3722 = vld [vmem:[#allocation3 + $0x100] sm:$0xff]
    %v3723 = vld [vmem:[#allocation3 + $0x108] sm:$0xff]
    %v3724 = vld [vmem:[#allocation3 + $0x110] sm:$0xff]
    %v3725 = vld [vmem:[#allocation3 + $0x118] sm:$0xff]
    %v3726 = vld [vmem:[#allocation3 + $0x120] sm:$0xff]
    %v3727 = vld [vmem:[#allocation3 + $0x128] sm:$0xff]
    %v3728 = vld [vmem:[#allocation3 + $0x130] sm:$0xff]
    %v3729 = vld [vmem:[#allocation3 + $0x138] sm:$0xff]
    %v3730 = vld [vmem:[#allocation3 + $0x140] sm:$0xff]
    %v3731 = vld [vmem:[#allocation3 + $0x148] sm:$0xff]
    %v3732 = vld [vmem:[#allocation3 + $0x150] sm:$0xff]
    %v3733 = vld [vmem:[#allocation3 + $0x158] sm:$0xff]
    %v3734 = vld [vmem:[#allocation3 + $0x160] sm:$0xff]
    %v3735 = vld [vmem:[#allocation3 + $0x168] sm:$0xff]
    %v3736 = vld [vmem:[#allocation3 + $0x170] sm:$0xff]
    %v3737 = vld [vmem:[#allocation3 + $0x178] sm:$0xff]
    %v3738 = vld [vmem:[#allocation3 + $0x180] sm:$0xff]
    %v3739 = vld [vmem:[#allocation3 + $0x188] sm:$0xff]
    %v3740 = vld [vmem:[#allocation3 + $0x190] sm:$0xff]
    %v3741 = vld [vmem:[#allocation3 + $0x198] sm:$0xff]
    %v3742 = vld [vmem:[#allocation3 + $0x1a0] sm:$0xff]
    %v3743 = vld [vmem:[#allocation3 + $0x1a8] sm:$0xff]
    %v3744 = vld [vmem:[#allocation3 + $0x1b0] sm:$0xff]
    %v3745 = vld [vmem:[#allocation3 + $0x1b8] sm:$0xff]
    %v3746 = vld [vmem:[#allocation3 + $0x1c0] sm:$0xff]
    %v3747 = vld [vmem:[#allocation3 + $0x1c8] sm:$0xff]
    %v3748 = vld [vmem:[#allocation3 + $0x1d0] sm:$0xff]
    %v3749 = vld [vmem:[#allocation3 + $0x1d8] sm:$0xff]
    %v3750 = vld [vmem:[#allocation3 + $0x1e0] sm:$0xff]
    %v3751 = vld [vmem:[#allocation3 + $0x1e8] sm:$0xff]
    %v3752 = vld [vmem:[#allocation3 + $0x1f0] sm:$0xff]
    %v3753 = vld [vmem:[#allocation3 + $0x1f8] sm:$0xff]
    %v3758 = vunpack.c.l.b16 %v3686
    %v3759 = vunpack.c.h.b16 %v3686
    %v3760 = vunpack.c.l.b16 %v3687
    %v3761 = vunpack.c.h.b16 %v3687
    %v3762 = vunpack.c.l.b16 %v3688
    %v3763 = vunpack.c.h.b16 %v3688
    %v3764 = vunpack.c.l.b16 %v3689
    %v3765 = vunpack.c.h.b16 %v3689
    %v3766 = vpack.c.b16 %v3762, %v3758
    %v3767 = vpack.c.b16 %v3763, %v3759
    %v3768 = vpack.c.b16 %v3764, %v3760
    %v3769 = vpack.c.b16 %v3765, %v3761
    %v3838 = vunpack.c.l.b16 %v3690
    %v3839 = vunpack.c.h.b16 %v3690
    %v3840 = vunpack.c.l.b16 %v3691
    %v3841 = vunpack.c.h.b16 %v3691
    %v3842 = vunpack.c.l.b16 %v3692
    %v3843 = vunpack.c.h.b16 %v3692
    %v3844 = vunpack.c.l.b16 %v3693
    %v3845 = vunpack.c.h.b16 %v3693
    %v3846 = vunpack.c.l.b16 %v3694
    %v3847 = vunpack.c.h.b16 %v3694
    %v3848 = vunpack.c.l.b16 %v3695
    %v3849 = vunpack.c.h.b16 %v3695
    %v3850 = vunpack.c.l.b16 %v3696
    %v3851 = vunpack.c.h.b16 %v3696
    %v3852 = vunpack.c.l.b16 %v3697
    %v3853 = vunpack.c.h.b16 %v3697
    %v3854 = vunpack.c.l.b16 %v3698
    %v3855 = vunpack.c.h.b16 %v3698
    %v3856 = vunpack.c.l.b16 %v3699
    %v3857 = vunpack.c.h.b16 %v3699
    %v3858 = vunpack.c.l.b16 %v3700
    %v3859 = vunpack.c.h.b16 %v3700
    %v3860 = vunpack.c.l.b16 %v3701
    %v3861 = vunpack.c.h.b16 %v3701
    %v3862 = vunpack.c.l.b16 %v3702
    %v3863 = vunpack.c.h.b16 %v3702
    %v3864 = vunpack.c.l.b16 %v3703
    %v3865 = vunpack.c.h.b16 %v3703
    %v3866 = vunpack.c.l.b16 %v3704
    %v3867 = vunpack.c.h.b16 %v3704
    %v3868 = vunpack.c.l.b16 %v3705
    %v3869 = vunpack.c.h.b16 %v3705
    %v3870 = vunpack.c.l.b16 %v3706
    %v3871 = vunpack.c.h.b16 %v3706
    %v3872 = vunpack.c.l.b16 %v3707
    %v3873 = vunpack.c.h.b16 %v3707
    %v3874 = vunpack.c.l.b16 %v3708
    %v3875 = vunpack.c.h.b16 %v3708
    %v3876 = vunpack.c.l.b16 %v3709
    %v3877 = vunpack.c.h.b16 %v3709
    %v3878 = vunpack.c.l.b16 %v3710
    %v3879 = vunpack.c.h.b16 %v3710
    %v3880 = vunpack.c.l.b16 %v3711
    %v3881 = vunpack.c.h.b16 %v3711
    %v3882 = vunpack.c.l.b16 %v3712
    %v3883 = vunpack.c.h.b16 %v3712
    %v3884 = vunpack.c.l.b16 %v3713
    %v3885 = vunpack.c.h.b16 %v3713
    %v3886 = vunpack.c.l.b16 %v3714
    %v3887 = vunpack.c.h.b16 %v3714
    %v3888 = vunpack.c.l.b16 %v3715
    %v3889 = vunpack.c.h.b16 %v3715
    %v3890 = vunpack.c.l.b16 %v3716
    %v3891 = vunpack.c.h.b16 %v3716
    %v3892 = vunpack.c.l.b16 %v3717
    %v3893 = vunpack.c.h.b16 %v3717
    %v3894 = vunpack.c.l.b16 %v3718
    %v3895 = vunpack.c.h.b16 %v3718
    %v3896 = vunpack.c.l.b16 %v3719
    %v3897 = vunpack.c.h.b16 %v3719
    %v3898 = vunpack.c.l.b16 %v3720
    %v3899 = vunpack.c.h.b16 %v3720
    %v3900 = vunpack.c.l.b16 %v3721
    %v3901 = vunpack.c.h.b16 %v3721
    %v3902 = vunpack.c.l.b16 %v3722
    %v3903 = vunpack.c.h.b16 %v3722
    %v3904 = vunpack.c.l.b16 %v3723
    %v3905 = vunpack.c.h.b16 %v3723
    %v3906 = vunpack.c.l.b16 %v3724
    %v3907 = vunpack.c.h.b16 %v3724
    %v3908 = vunpack.c.l.b16 %v3725
    %v3909 = vunpack.c.h.b16 %v3725
    %v3910 = vunpack.c.l.b16 %v3726
    %v3911 = vunpack.c.h.b16 %v3726
    %v3912 = vunpack.c.l.b16 %v3727
    %v3913 = vunpack.c.h.b16 %v3727
    %v3914 = vunpack.c.l.b16 %v3728
    %v3915 = vunpack.c.h.b16 %v3728
    %v3916 = vunpack.c.l.b16 %v3729
    %v3917 = vunpack.c.h.b16 %v3729
    %v3918 = vunpack.c.l.b16 %v3730
    %v3919 = vunpack.c.h.b16 %v3730
    %v3920 = vunpack.c.l.b16 %v3731
    %v3921 = vunpack.c.h.b16 %v3731
    %v3922 = vunpack.c.l.b16 %v3732
    %v3923 = vunpack.c.h.b16 %v3732
    %v3924 = vunpack.c.l.b16 %v3733
    %v3925 = vunpack.c.h.b16 %v3733
    %v3926 = vunpack.c.l.b16 %v3734
    %v3927 = vunpack.c.h.b16 %v3734
    %v3928 = vunpack.c.l.b16 %v3735
    %v3929 = vunpack.c.h.b16 %v3735
    %v3930 = vunpack.c.l.b16 %v3736
    %v3931 = vunpack.c.h.b16 %v3736
    %v3932 = vunpack.c.l.b16 %v3737
    %v3933 = vunpack.c.h.b16 %v3737
    %v3934 = vunpack.c.l.b16 %v3738
    %v3935 = vunpack.c.h.b16 %v3738
    %v3936 = vunpack.c.l.b16 %v3739
    %v3937 = vunpack.c.h.b16 %v3739
    %v3938 = vunpack.c.l.b16 %v3740
    %v3939 = vunpack.c.h.b16 %v3740
    %v3940 = vunpack.c.l.b16 %v3741
    %v3941 = vunpack.c.h.b16 %v3741
    %v3942 = vunpack.c.l.b16 %v3742
    %v3943 = vunpack.c.h.b16 %v3742
    %v3944 = vunpack.c.l.b16 %v3743
    %v3945 = vunpack.c.h.b16 %v3743
    %v3946 = vunpack.c.l.b16 %v3744
    %v3947 = vunpack.c.h.b16 %v3744
    %v3948 = vunpack.c.l.b16 %v3745
    %v3949 = vunpack.c.h.b16 %v3745
    %v3950 = vunpack.c.l.b16 %v3746
    %v3951 = vunpack.c.h.b16 %v3746
    %v3952 = vunpack.c.l.b16 %v3747
    %v3953 = vunpack.c.h.b16 %v3747
    %v3954 = vunpack.c.l.b16 %v3748
    %v3955 = vunpack.c.h.b16 %v3748
    %v3956 = vunpack.c.l.b16 %v3749
    %v3957 = vunpack.c.h.b16 %v3749
    %v3958 = vunpack.c.l.b16 %v3750
    %v3959 = vunpack.c.h.b16 %v3750
    %v3960 = vunpack.c.l.b16 %v3751
    %v3961 = vunpack.c.h.b16 %v3751
    %v3962 = vunpack.c.l.b16 %v3752
    %v3963 = vunpack.c.h.b16 %v3752
    %v3964 = vunpack.c.l.b16 %v3753
    %v3965 = vunpack.c.h.b16 %v3753
    %v3966 = vpack.c.b16 %v3840, %v3838
    %v3967 = vpack.c.b16 %v3841, %v3839
    %v3968 = vpack.c.b16 %v3844, %v3842
    %v3969 = vpack.c.b16 %v3845, %v3843
    %v3970 = vpack.c.b16 %v3848, %v3846
    %v3971 = vpack.c.b16 %v3849, %v3847
    %v3972 = vpack.c.b16 %v3852, %v3850
    %v3973 = vpack.c.b16 %v3853, %v3851
    %v3974 = vpack.c.b16 %v3856, %v3854
    %v3975 = vpack.c.b16 %v3857, %v3855
    %v3976 = vpack.c.b16 %v3860, %v3858
    %v3977 = vpack.c.b16 %v3861, %v3859
    %v3978 = vpack.c.b16 %v3864, %v3862
    %v3979 = vpack.c.b16 %v3865, %v3863
    %v3980 = vpack.c.b16 %v3868, %v3866
    %v3981 = vpack.c.b16 %v3869, %v3867
    %v3982 = vpack.c.b16 %v3872, %v3870
    %v3983 = vpack.c.b16 %v3873, %v3871
    %v3984 = vpack.c.b16 %v3876, %v3874
    %v3985 = vpack.c.b16 %v3877, %v3875
    %v3986 = vpack.c.b16 %v3880, %v3878
    %v3987 = vpack.c.b16 %v3881, %v3879
    %v3988 = vpack.c.b16 %v3884, %v3882
    %v3989 = vpack.c.b16 %v3885, %v3883
    %v3990 = vpack.c.b16 %v3888, %v3886
    %v3991 = vpack.c.b16 %v3889, %v3887
    %v3992 = vpack.c.b16 %v3892, %v3890
    %v3993 = vpack.c.b16 %v3893, %v3891
    %v3994 = vpack.c.b16 %v3896, %v3894
    %v3995 = vpack.c.b16 %v3897, %v3895
    %v3996 = vpack.c.b16 %v3900, %v3898
    %v3997 = vpack.c.b16 %v3901, %v3899
    %v3998 = vpack.c.b16 %v3904, %v3902
    %v3999 = vpack.c.b16 %v3905, %v3903
    %v4000 = vpack.c.b16 %v3908, %v3906
    %v4001 = vpack.c.b16 %v3909, %v3907
    %v4002 = vpack.c.b16 %v3912, %v3910
    %v4003 = vpack.c.b16 %v3913, %v3911
    %v4004 = vpack.c.b16 %v3916, %v3914
    %v4005 = vpack.c.b16 %v3917, %v3915
    %v4006 = vpack.c.b16 %v3920, %v3918
    %v4007 = vpack.c.b16 %v3921, %v3919
    %v4008 = vpack.c.b16 %v3924, %v3922
    %v4009 = vpack.c.b16 %v3925, %v3923
    %v4010 = vpack.c.b16 %v3928, %v3926
    %v4011 = vpack.c.b16 %v3929, %v3927
    %v4012 = vpack.c.b16 %v3932, %v3930
    %v4013 = vpack.c.b16 %v3933, %v3931
    %v4014 = vpack.c.b16 %v3936, %v3934
    %v4015 = vpack.c.b16 %v3937, %v3935
    %v4016 = vpack.c.b16 %v3940, %v3938
    %v4017 = vpack.c.b16 %v3941, %v3939
    %v4018 = vpack.c.b16 %v3944, %v3942
    %v4019 = vpack.c.b16 %v3945, %v3943
    %v4020 = vpack.c.b16 %v3948, %v3946
    %v4021 = vpack.c.b16 %v3949, %v3947
    %v4022 = vpack.c.b16 %v3952, %v3950
    %v4023 = vpack.c.b16 %v3953, %v3951
    %v4024 = vpack.c.b16 %v3956, %v3954
    %v4025 = vpack.c.b16 %v3957, %v3955
    %v4026 = vpack.c.b16 %v3960, %v3958
    %v4027 = vpack.c.b16 %v3961, %v3959
    %v4028 = vpack.c.b16 %v3964, %v3962
    %v4029 = vpack.c.b16 %v3965, %v3963
    %4094 = vmatpush.bf16.msra.mxu0 %v3980
    %4095 = vmatpush.bf16.msra.mxu0 %v3978
    %4096 = vmatpush.bf16.msra.mxu0 %v3976
    %4097 = vmatpush.bf16.msra.mxu0 %v3974
    %4098 = vmatpush.bf16.msra.mxu0 %v3972
    %4099 = vmatpush.bf16.msra.mxu0 %v3970
    %4100 = vmatpush.bf16.msra.mxu0 %v3968
    %4101 = vmatpush.bf16.msra.mxu0 %v3966
    %4102 = vmatmul.bf16.gmra.mxu0 %v3766
    %v4103 = vpop.f32.mrf.mxu0
    %v4104 = vadd.f32 0.0, %v4103
    %v4105 = vpop.f32.mrf.mxu0
    %v4106 = vadd.f32 0.0, %v4105
    %4107 = vdwg.mxu0
    %4108 = vmatpush.bf16.msra.mxu0 %v3996
    %4109 = vmatpush.bf16.msra.mxu0 %v3994
    %4110 = vmatpush.bf16.msra.mxu0 %v3992
    %4111 = vmatpush.bf16.msra.mxu0 %v3990
    %4112 = vmatpush.bf16.msra.mxu0 %v3988
    %4113 = vmatpush.bf16.msra.mxu0 %v3986
    %4114 = vmatpush.bf16.msra.mxu0 %v3984
    %4115 = vmatpush.bf16.msra.mxu0 %v3982
    %4116 = vmatmul.bf16.gmra.mxu0 %v3767
    %v4117 = vpop.f32.mrf.mxu0
    %v4118 = vadd.f32 %v4104, %v4117
    %v4119 = vpop.f32.mrf.mxu0
    %v4120 = vadd.f32 %v4106, %v4119
    %4121 = vdwg.mxu0
    %4122 = vmatpush.bf16.msra.mxu0 %v4012
    %4123 = vmatpush.bf16.msra.mxu0 %v4010
    %4124 = vmatpush.bf16.msra.mxu0 %v4008
    %4125 = vmatpush.bf16.msra.mxu0 %v4006
    %4126 = vmatpush.bf16.msra.mxu0 %v4004
    %4127 = vmatpush.bf16.msra.mxu0 %v4002
    %4128 = vmatpush.bf16.msra.mxu0 %v4000
    %4129 = vmatpush.bf16.msra.mxu0 %v3998
    %4130 = vmatmul.bf16.gmra.mxu0 %v3768
    %v4131 = vpop.f32.mrf.mxu0
    %v4132 = vadd.f32 %v4118, %v4131
    %v4133 = vpop.f32.mrf.mxu0
    %v4134 = vadd.f32 %v4120, %v4133
    %4135 = vdwg.mxu0
    %4136 = vmatpush.bf16.msra.mxu0 %v4028
    %4137 = vmatpush.bf16.msra.mxu0 %v4026
    %4138 = vmatpush.bf16.msra.mxu0 %v4024
    %4139 = vmatpush.bf16.msra.mxu0 %v4022
    %4140 = vmatpush.bf16.msra.mxu0 %v4020
    %4141 = vmatpush.bf16.msra.mxu0 %v4018
    %4142 = vmatpush.bf16.msra.mxu0 %v4016
    %4143 = vmatpush.bf16.msra.mxu0 %v4014
    %4144 = vmatmul.bf16.gmra.mxu0 %v3769
    %v4145 = vpop.f32.mrf.mxu0
    %v4146 = vadd.f32 %v4132, %v4145
    %v4147 = vpop.f32.mrf.mxu0
    %v4148 = vadd.f32 %v4134, %v4147
    %4149 = vdwg.mxu0
    %4150 = vmatpush.bf16.msra.mxu0 %v3981
    %4151 = vmatpush.bf16.msra.mxu0 %v3979
    %4152 = vmatpush.bf16.msra.mxu0 %v3977
    %4153 = vmatpush.bf16.msra.mxu0 %v3975
    %4154 = vmatpush.bf16.msra.mxu0 %v3973
    %4155 = vmatpush.bf16.msra.mxu0 %v3971
    %4156 = vmatpush.bf16.msra.mxu0 %v3969
    %4157 = vmatpush.bf16.msra.mxu0 %v3967
    %4158 = vmatmul.bf16.gmra.mxu0 %v3766
    %v4159 = vpop.f32.mrf.mxu0
    %v4160 = vadd.f32 0.0, %v4159
    %v4161 = vpop.f32.mrf.mxu0
    %v4162 = vadd.f32 0.0, %v4161
    %4163 = vdwg.mxu0
    %4164 = vmatpush.bf16.msra.mxu0 %v3997
    %4165 = vmatpush.bf16.msra.mxu0 %v3995
    %4166 = vmatpush.bf16.msra.mxu0 %v3993
    %4167 = vmatpush.bf16.msra.mxu0 %v3991
    %4168 = vmatpush.bf16.msra.mxu0 %v3989
    %4169 = vmatpush.bf16.msra.mxu0 %v3987
    %4170 = vmatpush.bf16.msra.mxu0 %v3985
    %4171 = vmatpush.bf16.msra.mxu0 %v3983
    %4172 = vmatmul.bf16.gmra.mxu0 %v3767
    %v4173 = vpop.f32.mrf.mxu0
    %v4174 = vadd.f32 %v4160, %v4173
    %v4175 = vpop.f32.mrf.mxu0
    %v4176 = vadd.f32 %v4162, %v4175
    %4177 = vdwg.mxu0
    %4178 = vmatpush.bf16.msra.mxu0 %v4013
    %4179 = vmatpush.bf16.msra.mxu0 %v4011
    %4180 = vmatpush.bf16.msra.mxu0 %v4009
    %4181 = vmatpush.bf16.msra.mxu0 %v4007
    %4182 = vmatpush.bf16.msra.mxu0 %v4005
    %4183 = vmatpush.bf16.msra.mxu0 %v4003
    %4184 = vmatpush.bf16.msra.mxu0 %v4001
    %4185 = vmatpush.bf16.msra.mxu0 %v3999
    %4186 = vmatmul.bf16.gmra.mxu0 %v3768
    %v4187 = vpop.f32.mrf.mxu0
    %v4188 = vadd.f32 %v4174, %v4187
    %v4189 = vpop.f32.mrf.mxu0
    %v4190 = vadd.f32 %v4176, %v4189
    %4191 = vdwg.mxu0
    %4192 = vmatpush.bf16.msra.mxu0 %v4029
    %4193 = vmatpush.bf16.msra.mxu0 %v4027
    %4194 = vmatpush.bf16.msra.mxu0 %v4025
    %4195 = vmatpush.bf16.msra.mxu0 %v4023
    %4196 = vmatpush.bf16.msra.mxu0 %v4021
    %4197 = vmatpush.bf16.msra.mxu0 %v4019
    %4198 = vmatpush.bf16.msra.mxu0 %v4017
    %4199 = vmatpush.bf16.msra.mxu0 %v4015
    %4200 = vmatmul.bf16.gmra.mxu0 %v3769
    %v4201 = vpop.f32.mrf.mxu0
    %v4202 = vadd.f32 %v4188, %v4201
    %v4203 = vpop.f32.mrf.mxu0
    %v4204 = vadd.f32 %v4190, %v4203
    %4205 = vdwg.mxu0
    %v4206 = vpack.c.bf16 %v4148, %v4146
    %v4207 = vpack.c.bf16 %v4204, %v4202
    %v4208 = vld [vmem:[#allocation17] sm:$0x3]
    %v4210 = vperm.slane %v4208, 0
    %v4211 = vperm.slane %v4208, 1
    %v4215 = vsel %vm1233, %v1226, 0
    %4217 = vmatpush.bf16.msra.mxu0 0
    %4218 = vmatpush.bf16.msra.mxu0 0
    %4219 = vmatpush.bf16.msra.mxu0 0
    %4220 = vmatpush.bf16.msra.mxu0 0
    %4221 = vmatpush.bf16.msra.mxu0 0
    %4222 = vmatpush.bf16.msra.mxu0 0
    %4223 = vmatpush.bf16.msra.mxu0 0
    %4224 = vmatpush.bf16.msra.mxu0 %v4206
    %4225 = vmatmul.bf16.gmra.mxu0 %v4215
    %v4226 = vpop.f32.mrf.mxu0
    %v4227 = vadd.f32 %v4210, %v4226
    %v4228 = vpop.f32.mrf.mxu0
    %v4229 = vadd.f32 %v4210, %v4228
    %4230 = vdwg.mxu0
    %4231 = vmatpush.bf16.msra.mxu0 0
    %4232 = vmatpush.bf16.msra.mxu0 0
    %4233 = vmatpush.bf16.msra.mxu0 0
    %4234 = vmatpush.bf16.msra.mxu0 0
    %4235 = vmatpush.bf16.msra.mxu0 0
    %4236 = vmatpush.bf16.msra.mxu0 0
    %4237 = vmatpush.bf16.msra.mxu0 0
    %4238 = vmatpush.bf16.msra.mxu0 %v4207
    %4239 = vmatmul.bf16.gmra.mxu0 %v4215
    %v4240 = vpop.f32.mrf.mxu0
    %v4241 = vadd.f32 %v4211, %v4240
    %v4242 = vpop.f32.mrf.mxu0
    %v4243 = vadd.f32 %v4211, %v4242
    %4244 = vdwg.mxu0
    %s4245 = smul.u32 %s1381, 2
    %s4246 = sshll.u32 %s4245, 4
    %4247 = dma.done %s183, %s4246
    %s4248 = sshll.u32 %s4245, 4
    %4249 = dma.done %s197, %s4248
    %v4250 = vld [vmem:[#allocation4] sm:$0xff]
    %v4251 = vld [vmem:[#allocation4 + $0x8] sm:$0xff]
    %v4252 = vld [vmem:[#allocation4 + $0x10] sm:$0xff]
    %v4253 = vld [vmem:[#allocation4 + $0x18] sm:$0xff]
    %v4254 = vld [vmem:[#allocation4 + $0x20] sm:$0xff]
    %v4255 = vld [vmem:[#allocation4 + $0x28] sm:$0xff]
    %v4256 = vld [vmem:[#allocation4 + $0x30] sm:$0xff]
    %v4257 = vld [vmem:[#allocation4 + $0x38] sm:$0xff]
    %v4258 = vld [vmem:[#allocation4 + $0x40] sm:$0xff]
    %v4259 = vld [vmem:[#allocation4 + $0x48] sm:$0xff]
    %v4260 = vld [vmem:[#allocation4 + $0x50] sm:$0xff]
    %v4261 = vld [vmem:[#allocation4 + $0x58] sm:$0xff]
    %v4262 = vld [vmem:[#allocation4 + $0x60] sm:$0xff]
    %v4263 = vld [vmem:[#allocation4 + $0x68] sm:$0xff]
    %v4264 = vld [vmem:[#allocation4 + $0x70] sm:$0xff]
    %v4265 = vld [vmem:[#allocation4 + $0x78] sm:$0xff]
    %v4266 = vld [vmem:[#allocation4 + $0x80] sm:$0xff]
    %v4267 = vld [vmem:[#allocation4 + $0x88] sm:$0xff]
    %v4268 = vld [vmem:[#allocation4 + $0x90] sm:$0xff]
    %v4269 = vld [vmem:[#allocation4 + $0x98] sm:$0xff]
    %v4270 = vld [vmem:[#allocation4 + $0xa0] sm:$0xff]
    %v4271 = vld [vmem:[#allocation4 + $0xa8] sm:$0xff]
    %v4272 = vld [vmem:[#allocation4 + $0xb0] sm:$0xff]
    %v4273 = vld [vmem:[#allocation4 + $0xb8] sm:$0xff]
    %v4274 = vld [vmem:[#allocation4 + $0xc0] sm:$0xff]
    %v4275 = vld [vmem:[#allocation4 + $0xc8] sm:$0xff]
    %v4276 = vld [vmem:[#allocation4 + $0xd0] sm:$0xff]
    %v4277 = vld [vmem:[#allocation4 + $0xd8] sm:$0xff]
    %v4278 = vld [vmem:[#allocation4 + $0xe0] sm:$0xff]
    %v4279 = vld [vmem:[#allocation4 + $0xe8] sm:$0xff]
    %v4280 = vld [vmem:[#allocation4 + $0xf0] sm:$0xff]
    %v4281 = vld [vmem:[#allocation4 + $0xf8] sm:$0xff]
    %v4282 = vld [vmem:[#allocation4 + $0x100] sm:$0xff]
    %v4283 = vld [vmem:[#allocation4 + $0x108] sm:$0xff]
    %v4284 = vld [vmem:[#allocation4 + $0x110] sm:$0xff]
    %v4285 = vld [vmem:[#allocation4 + $0x118] sm:$0xff]
    %v4286 = vld [vmem:[#allocation4 + $0x120] sm:$0xff]
    %v4287 = vld [vmem:[#allocation4 + $0x128] sm:$0xff]
    %v4288 = vld [vmem:[#allocation4 + $0x130] sm:$0xff]
    %v4289 = vld [vmem:[#allocation4 + $0x138] sm:$0xff]
    %v4290 = vld [vmem:[#allocation4 + $0x140] sm:$0xff]
    %v4291 = vld [vmem:[#allocation4 + $0x148] sm:$0xff]
    %v4292 = vld [vmem:[#allocation4 + $0x150] sm:$0xff]
    %v4293 = vld [vmem:[#allocation4 + $0x158] sm:$0xff]
    %v4294 = vld [vmem:[#allocation4 + $0x160] sm:$0xff]
    %v4295 = vld [vmem:[#allocation4 + $0x168] sm:$0xff]
    %v4296 = vld [vmem:[#allocation4 + $0x170] sm:$0xff]
    %v4297 = vld [vmem:[#allocation4 + $0x178] sm:$0xff]
    %v4298 = vld [vmem:[#allocation4 + $0x180] sm:$0xff]
    %v4299 = vld [vmem:[#allocation4 + $0x188] sm:$0xff]
    %v4300 = vld [vmem:[#allocation4 + $0x190] sm:$0xff]
    %v4301 = vld [vmem:[#allocation4 + $0x198] sm:$0xff]
    %v4302 = vld [vmem:[#allocation4 + $0x1a0] sm:$0xff]
    %v4303 = vld [vmem:[#allocation4 + $0x1a8] sm:$0xff]
    %v4304 = vld [vmem:[#allocation4 + $0x1b0] sm:$0xff]
    %v4305 = vld [vmem:[#allocation4 + $0x1b8] sm:$0xff]
    %v4306 = vld [vmem:[#allocation4 + $0x1c0] sm:$0xff]
    %v4307 = vld [vmem:[#allocation4 + $0x1c8] sm:$0xff]
    %v4308 = vld [vmem:[#allocation4 + $0x1d0] sm:$0xff]
    %v4309 = vld [vmem:[#allocation4 + $0x1d8] sm:$0xff]
    %v4310 = vld [vmem:[#allocation4 + $0x1e0] sm:$0xff]
    %v4311 = vld [vmem:[#allocation4 + $0x1e8] sm:$0xff]
    %v4312 = vld [vmem:[#allocation4 + $0x1f0] sm:$0xff]
    %v4313 = vld [vmem:[#allocation4 + $0x1f8] sm:$0xff]
    %v4314 = vld [vmem:[#allocation4 + $0x200] sm:$0xff]
    %v4315 = vld [vmem:[#allocation4 + $0x208] sm:$0xff]
    %v4316 = vld [vmem:[#allocation4 + $0x210] sm:$0xff]
    %v4317 = vld [vmem:[#allocation4 + $0x218] sm:$0xff]
    %v4318 = vld [vmem:[#allocation4 + $0x220] sm:$0xff]
    %v4319 = vld [vmem:[#allocation4 + $0x228] sm:$0xff]
    %v4320 = vld [vmem:[#allocation4 + $0x230] sm:$0xff]
    %v4321 = vld [vmem:[#allocation4 + $0x238] sm:$0xff]
    %v4322 = vld [vmem:[#allocation4 + $0x240] sm:$0xff]
    %v4323 = vld [vmem:[#allocation4 + $0x248] sm:$0xff]
    %v4324 = vld [vmem:[#allocation4 + $0x250] sm:$0xff]
    %v4325 = vld [vmem:[#allocation4 + $0x258] sm:$0xff]
    %v4326 = vld [vmem:[#allocation4 + $0x260] sm:$0xff]
    %v4327 = vld [vmem:[#allocation4 + $0x268] sm:$0xff]
    %v4328 = vld [vmem:[#allocation4 + $0x270] sm:$0xff]
    %v4329 = vld [vmem:[#allocation4 + $0x278] sm:$0xff]
    %v4330 = vld [vmem:[#allocation4 + $0x280] sm:$0xff]
    %v4331 = vld [vmem:[#allocation4 + $0x288] sm:$0xff]
    %v4332 = vld [vmem:[#allocation4 + $0x290] sm:$0xff]
    %v4333 = vld [vmem:[#allocation4 + $0x298] sm:$0xff]
    %v4334 = vld [vmem:[#allocation4 + $0x2a0] sm:$0xff]
    %v4335 = vld [vmem:[#allocation4 + $0x2a8] sm:$0xff]
    %v4336 = vld [vmem:[#allocation4 + $0x2b0] sm:$0xff]
    %v4337 = vld [vmem:[#allocation4 + $0x2b8] sm:$0xff]
    %v4338 = vld [vmem:[#allocation4 + $0x2c0] sm:$0xff]
    %v4339 = vld [vmem:[#allocation4 + $0x2c8] sm:$0xff]
    %v4340 = vld [vmem:[#allocation4 + $0x2d0] sm:$0xff]
    %v4341 = vld [vmem:[#allocation4 + $0x2d8] sm:$0xff]
    %v4342 = vld [vmem:[#allocation4 + $0x2e0] sm:$0xff]
    %v4343 = vld [vmem:[#allocation4 + $0x2e8] sm:$0xff]
    %v4344 = vld [vmem:[#allocation4 + $0x2f0] sm:$0xff]
    %v4345 = vld [vmem:[#allocation4 + $0x2f8] sm:$0xff]
    %v4346 = vld [vmem:[#allocation4 + $0x300] sm:$0xff]
    %v4347 = vld [vmem:[#allocation4 + $0x308] sm:$0xff]
    %v4348 = vld [vmem:[#allocation4 + $0x310] sm:$0xff]
    %v4349 = vld [vmem:[#allocation4 + $0x318] sm:$0xff]
    %v4350 = vld [vmem:[#allocation4 + $0x320] sm:$0xff]
    %v4351 = vld [vmem:[#allocation4 + $0x328] sm:$0xff]
    %v4352 = vld [vmem:[#allocation4 + $0x330] sm:$0xff]
    %v4353 = vld [vmem:[#allocation4 + $0x338] sm:$0xff]
    %v4354 = vld [vmem:[#allocation4 + $0x340] sm:$0xff]
    %v4355 = vld [vmem:[#allocation4 + $0x348] sm:$0xff]
    %v4356 = vld [vmem:[#allocation4 + $0x350] sm:$0xff]
    %v4357 = vld [vmem:[#allocation4 + $0x358] sm:$0xff]
    %v4358 = vld [vmem:[#allocation4 + $0x360] sm:$0xff]
    %v4359 = vld [vmem:[#allocation4 + $0x368] sm:$0xff]
    %v4360 = vld [vmem:[#allocation4 + $0x370] sm:$0xff]
    %v4361 = vld [vmem:[#allocation4 + $0x378] sm:$0xff]
    %v4362 = vld [vmem:[#allocation4 + $0x380] sm:$0xff]
    %v4363 = vld [vmem:[#allocation4 + $0x388] sm:$0xff]
    %v4364 = vld [vmem:[#allocation4 + $0x390] sm:$0xff]
    %v4365 = vld [vmem:[#allocation4 + $0x398] sm:$0xff]
    %v4366 = vld [vmem:[#allocation4 + $0x3a0] sm:$0xff]
    %v4367 = vld [vmem:[#allocation4 + $0x3a8] sm:$0xff]
    %v4368 = vld [vmem:[#allocation4 + $0x3b0] sm:$0xff]
    %v4369 = vld [vmem:[#allocation4 + $0x3b8] sm:$0xff]
    %v4370 = vld [vmem:[#allocation4 + $0x3c0] sm:$0xff]
    %v4371 = vld [vmem:[#allocation4 + $0x3c8] sm:$0xff]
    %v4372 = vld [vmem:[#allocation4 + $0x3d0] sm:$0xff]
    %v4373 = vld [vmem:[#allocation4 + $0x3d8] sm:$0xff]
    %v4374 = vld [vmem:[#allocation4 + $0x3e0] sm:$0xff]
    %v4375 = vld [vmem:[#allocation4 + $0x3e8] sm:$0xff]
    %v4376 = vld [vmem:[#allocation4 + $0x3f0] sm:$0xff]
    %v4377 = vld [vmem:[#allocation4 + $0x3f8] sm:$0xff]
    %v4378 = vld [vmem:[#allocation4 + $0x400] sm:$0xff]
    %v4379 = vld [vmem:[#allocation4 + $0x408] sm:$0xff]
    %v4380 = vld [vmem:[#allocation4 + $0x410] sm:$0xff]
    %v4381 = vld [vmem:[#allocation4 + $0x418] sm:$0xff]
    %v4382 = vld [vmem:[#allocation4 + $0x420] sm:$0xff]
    %v4383 = vld [vmem:[#allocation4 + $0x428] sm:$0xff]
    %v4384 = vld [vmem:[#allocation4 + $0x430] sm:$0xff]
    %v4385 = vld [vmem:[#allocation4 + $0x438] sm:$0xff]
    %v4386 = vld [vmem:[#allocation4 + $0x440] sm:$0xff]
    %v4387 = vld [vmem:[#allocation4 + $0x448] sm:$0xff]
    %v4388 = vld [vmem:[#allocation4 + $0x450] sm:$0xff]
    %v4389 = vld [vmem:[#allocation4 + $0x458] sm:$0xff]
    %v4390 = vld [vmem:[#allocation4 + $0x460] sm:$0xff]
    %v4391 = vld [vmem:[#allocation4 + $0x468] sm:$0x77]
    %v4392 = vld [vmem:[#allocation5] sm:$0xff]
    %v4393 = vld [vmem:[#allocation5 + $0x8] sm:$0xff]
    %v4394 = vld [vmem:[#allocation5 + $0x10] sm:$0xff]
    %v4395 = vld [vmem:[#allocation5 + $0x18] sm:$0xff]
    %v4396 = vld [vmem:[#allocation5 + $0x20] sm:$0xff]
    %v4397 = vld [vmem:[#allocation5 + $0x28] sm:$0xff]
    %v4398 = vld [vmem:[#allocation5 + $0x30] sm:$0xff]
    %v4399 = vld [vmem:[#allocation5 + $0x38] sm:$0xff]
    %v4400 = vld [vmem:[#allocation5 + $0x40] sm:$0xff]
    %v4401 = vld [vmem:[#allocation5 + $0x48] sm:$0xff]
    %v4402 = vld [vmem:[#allocation5 + $0x50] sm:$0xff]
    %v4403 = vld [vmem:[#allocation5 + $0x58] sm:$0xff]
    %v4404 = vld [vmem:[#allocation5 + $0x60] sm:$0xff]
    %v4405 = vld [vmem:[#allocation5 + $0x68] sm:$0xff]
    %v4406 = vld [vmem:[#allocation5 + $0x70] sm:$0xff]
    %v4407 = vld [vmem:[#allocation5 + $0x78] sm:$0xff]
    %v4408 = vld [vmem:[#allocation5 + $0x80] sm:$0xff]
    %v4409 = vld [vmem:[#allocation5 + $0x88] sm:$0xff]
    %v4410 = vld [vmem:[#allocation5 + $0x90] sm:$0xff]
    %v4411 = vld [vmem:[#allocation5 + $0x98] sm:$0xff]
    %v4412 = vld [vmem:[#allocation5 + $0xa0] sm:$0xff]
    %v4413 = vld [vmem:[#allocation5 + $0xa8] sm:$0xff]
    %v4414 = vld [vmem:[#allocation5 + $0xb0] sm:$0xff]
    %v4415 = vld [vmem:[#allocation5 + $0xb8] sm:$0xff]
    %v4416 = vld [vmem:[#allocation5 + $0xc0] sm:$0xff]
    %v4417 = vld [vmem:[#allocation5 + $0xc8] sm:$0xff]
    %v4418 = vld [vmem:[#allocation5 + $0xd0] sm:$0xff]
    %v4419 = vld [vmem:[#allocation5 + $0xd8] sm:$0xff]
    %v4420 = vld [vmem:[#allocation5 + $0xe0] sm:$0xff]
    %v4421 = vld [vmem:[#allocation5 + $0xe8] sm:$0xff]
    %v4422 = vld [vmem:[#allocation5 + $0xf0] sm:$0xff]
    %v4423 = vld [vmem:[#allocation5 + $0xf8] sm:$0xff]
    %v4424 = vld [vmem:[#allocation5 + $0x100] sm:$0xff]
    %v4425 = vld [vmem:[#allocation5 + $0x108] sm:$0xff]
    %v4426 = vld [vmem:[#allocation5 + $0x110] sm:$0xff]
    %v4427 = vld [vmem:[#allocation5 + $0x118] sm:$0xff]
    %v4428 = vld [vmem:[#allocation5 + $0x120] sm:$0xff]
    %v4429 = vld [vmem:[#allocation5 + $0x128] sm:$0xff]
    %v4430 = vld [vmem:[#allocation5 + $0x130] sm:$0xff]
    %v4431 = vld [vmem:[#allocation5 + $0x138] sm:$0xff]
    %v4432 = vld [vmem:[#allocation5 + $0x140] sm:$0xff]
    %v4433 = vld [vmem:[#allocation5 + $0x148] sm:$0xff]
    %v4434 = vld [vmem:[#allocation5 + $0x150] sm:$0xff]
    %v4435 = vld [vmem:[#allocation5 + $0x158] sm:$0xff]
    %v4436 = vld [vmem:[#allocation5 + $0x160] sm:$0xff]
    %v4437 = vld [vmem:[#allocation5 + $0x168] sm:$0xff]
    %v4438 = vld [vmem:[#allocation5 + $0x170] sm:$0xff]
    %v4439 = vld [vmem:[#allocation5 + $0x178] sm:$0xff]
    %v4440 = vld [vmem:[#allocation5 + $0x180] sm:$0xff]
    %v4441 = vld [vmem:[#allocation5 + $0x188] sm:$0xff]
    %v4442 = vld [vmem:[#allocation5 + $0x190] sm:$0xff]
    %v4443 = vld [vmem:[#allocation5 + $0x198] sm:$0xff]
    %v4444 = vld [vmem:[#allocation5 + $0x1a0] sm:$0xff]
    %v4445 = vld [vmem:[#allocation5 + $0x1a8] sm:$0xff]
    %v4446 = vld [vmem:[#allocation5 + $0x1b0] sm:$0xff]
    %v4447 = vld [vmem:[#allocation5 + $0x1b8] sm:$0xff]
    %v4448 = vld [vmem:[#allocation5 + $0x1c0] sm:$0xff]
    %v4449 = vld [vmem:[#allocation5 + $0x1c8] sm:$0xff]
    %v4450 = vld [vmem:[#allocation5 + $0x1d0] sm:$0xff]
    %v4451 = vld [vmem:[#allocation5 + $0x1d8] sm:$0xff]
    %v4452 = vld [vmem:[#allocation5 + $0x1e0] sm:$0xff]
    %v4453 = vld [vmem:[#allocation5 + $0x1e8] sm:$0xff]
    %v4454 = vld [vmem:[#allocation5 + $0x1f0] sm:$0xff]
    %v4455 = vld [vmem:[#allocation5 + $0x1f8] sm:$0xff]
    %v4456 = vld [vmem:[#allocation5 + $0x200] sm:$0xff]
    %v4457 = vld [vmem:[#allocation5 + $0x208] sm:$0xff]
    %v4458 = vld [vmem:[#allocation5 + $0x210] sm:$0xff]
    %v4459 = vld [vmem:[#allocation5 + $0x218] sm:$0xff]
    %v4460 = vld [vmem:[#allocation5 + $0x220] sm:$0xff]
    %v4461 = vld [vmem:[#allocation5 + $0x228] sm:$0xff]
    %v4462 = vld [vmem:[#allocation5 + $0x230] sm:$0xff]
    %v4463 = vld [vmem:[#allocation5 + $0x238] sm:$0xff]
    %v4464 = vld [vmem:[#allocation5 + $0x240] sm:$0xff]
    %v4465 = vld [vmem:[#allocation5 + $0x248] sm:$0xff]
    %v4466 = vld [vmem:[#allocation5 + $0x250] sm:$0xff]
    %v4467 = vld [vmem:[#allocation5 + $0x258] sm:$0xff]
    %v4468 = vld [vmem:[#allocation5 + $0x260] sm:$0xff]
    %v4469 = vld [vmem:[#allocation5 + $0x268] sm:$0xff]
    %v4470 = vld [vmem:[#allocation5 + $0x270] sm:$0xff]
    %v4471 = vld [vmem:[#allocation5 + $0x278] sm:$0xff]
    %v4472 = vld [vmem:[#allocation5 + $0x280] sm:$0xff]
    %v4473 = vld [vmem:[#allocation5 + $0x288] sm:$0xff]
    %v4474 = vld [vmem:[#allocation5 + $0x290] sm:$0xff]
    %v4475 = vld [vmem:[#allocation5 + $0x298] sm:$0xff]
    %v4476 = vld [vmem:[#allocation5 + $0x2a0] sm:$0xff]
    %v4477 = vld [vmem:[#allocation5 + $0x2a8] sm:$0xff]
    %v4478 = vld [vmem:[#allocation5 + $0x2b0] sm:$0xff]
    %v4479 = vld [vmem:[#allocation5 + $0x2b8] sm:$0xff]
    %v4480 = vld [vmem:[#allocation5 + $0x2c0] sm:$0xff]
    %v4481 = vld [vmem:[#allocation5 + $0x2c8] sm:$0xff]
    %v4482 = vld [vmem:[#allocation5 + $0x2d0] sm:$0xff]
    %v4483 = vld [vmem:[#allocation5 + $0x2d8] sm:$0xff]
    %v4484 = vld [vmem:[#allocation5 + $0x2e0] sm:$0xff]
    %v4485 = vld [vmem:[#allocation5 + $0x2e8] sm:$0xff]
    %v4486 = vld [vmem:[#allocation5 + $0x2f0] sm:$0xff]
    %v4487 = vld [vmem:[#allocation5 + $0x2f8] sm:$0xff]
    %v4488 = vld [vmem:[#allocation5 + $0x300] sm:$0xff]
    %v4489 = vld [vmem:[#allocation5 + $0x308] sm:$0xff]
    %v4490 = vld [vmem:[#allocation5 + $0x310] sm:$0xff]
    %v4491 = vld [vmem:[#allocation5 + $0x318] sm:$0xff]
    %v4492 = vld [vmem:[#allocation5 + $0x320] sm:$0xff]
    %v4493 = vld [vmem:[#allocation5 + $0x328] sm:$0xff]
    %v4494 = vld [vmem:[#allocation5 + $0x330] sm:$0xff]
    %v4495 = vld [vmem:[#allocation5 + $0x338] sm:$0xff]
    %v4496 = vld [vmem:[#allocation5 + $0x340] sm:$0xff]
    %v4497 = vld [vmem:[#allocation5 + $0x348] sm:$0xff]
    %v4498 = vld [vmem:[#allocation5 + $0x350] sm:$0xff]
    %v4499 = vld [vmem:[#allocation5 + $0x358] sm:$0xff]
    %v4500 = vld [vmem:[#allocation5 + $0x360] sm:$0xff]
    %v4501 = vld [vmem:[#allocation5 + $0x368] sm:$0xff]
    %v4502 = vld [vmem:[#allocation5 + $0x370] sm:$0xff]
    %v4503 = vld [vmem:[#allocation5 + $0x378] sm:$0xff]
    %v4504 = vld [vmem:[#allocation5 + $0x380] sm:$0xff]
    %v4505 = vld [vmem:[#allocation5 + $0x388] sm:$0xff]
    %v4506 = vld [vmem:[#allocation5 + $0x390] sm:$0xff]
    %v4507 = vld [vmem:[#allocation5 + $0x398] sm:$0xff]
    %v4508 = vld [vmem:[#allocation5 + $0x3a0] sm:$0xff]
    %v4509 = vld [vmem:[#allocation5 + $0x3a8] sm:$0xff]
    %v4510 = vld [vmem:[#allocation5 + $0x3b0] sm:$0xff]
    %v4511 = vld [vmem:[#allocation5 + $0x3b8] sm:$0xff]
    %v4512 = vld [vmem:[#allocation5 + $0x3c0] sm:$0xff]
    %v4513 = vld [vmem:[#allocation5 + $0x3c8] sm:$0xff]
    %v4514 = vld [vmem:[#allocation5 + $0x3d0] sm:$0xff]
    %v4515 = vld [vmem:[#allocation5 + $0x3d8] sm:$0xff]
    %v4516 = vld [vmem:[#allocation5 + $0x3e0] sm:$0xff]
    %v4517 = vld [vmem:[#allocation5 + $0x3e8] sm:$0xff]
    %v4518 = vld [vmem:[#allocation5 + $0x3f0] sm:$0xff]
    %v4519 = vld [vmem:[#allocation5 + $0x3f8] sm:$0xff]
    %v4520 = vld [vmem:[#allocation5 + $0x400] sm:$0xff]
    %v4521 = vld [vmem:[#allocation5 + $0x408] sm:$0xff]
    %v4522 = vld [vmem:[#allocation5 + $0x410] sm:$0xff]
    %v4523 = vld [vmem:[#allocation5 + $0x418] sm:$0xff]
    %v4524 = vld [vmem:[#allocation5 + $0x420] sm:$0xff]
    %v4525 = vld [vmem:[#allocation5 + $0x428] sm:$0xff]
    %v4526 = vld [vmem:[#allocation5 + $0x430] sm:$0xff]
    %v4527 = vld [vmem:[#allocation5 + $0x438] sm:$0xff]
    %v4528 = vld [vmem:[#allocation5 + $0x440] sm:$0xff]
    %v4529 = vld [vmem:[#allocation5 + $0x448] sm:$0xff]
    %v4530 = vld [vmem:[#allocation5 + $0x450] sm:$0xff]
    %v4531 = vld [vmem:[#allocation5 + $0x458] sm:$0xff]
    %v4532 = vld [vmem:[#allocation5 + $0x460] sm:$0xff]
    %v4533 = vld [vmem:[#allocation5 + $0x468] sm:$0x77]
    %v4676 = vunpack.c.l.b16 %v4392
    %v4677 = vunpack.c.h.b16 %v4392
    %v4678 = vunpack.c.l.b16 %v4393
    %v4679 = vunpack.c.h.b16 %v4393
    %v4680 = vunpack.c.l.b16 %v4394
    %v4681 = vunpack.c.h.b16 %v4394
    %v4682 = vunpack.c.l.b16 %v4395
    %v4683 = vunpack.c.h.b16 %v4395
    %v4684 = vunpack.c.l.b16 %v4396
    %v4685 = vunpack.c.h.b16 %v4396
    %v4686 = vunpack.c.l.b16 %v4397
    %v4687 = vunpack.c.h.b16 %v4397
    %v4688 = vunpack.c.l.b16 %v4398
    %v4689 = vunpack.c.h.b16 %v4398
    %v4690 = vunpack.c.l.b16 %v4399
    %v4691 = vunpack.c.h.b16 %v4399
    %v4692 = vunpack.c.l.b16 %v4400
    %v4693 = vunpack.c.h.b16 %v4400
    %v4694 = vunpack.c.l.b16 %v4401
    %v4695 = vunpack.c.h.b16 %v4401
    %v4696 = vunpack.c.l.b16 %v4402
    %v4697 = vunpack.c.h.b16 %v4402
    %v4698 = vunpack.c.l.b16 %v4403
    %v4699 = vunpack.c.h.b16 %v4403
    %v4700 = vunpack.c.l.b16 %v4404
    %v4701 = vunpack.c.h.b16 %v4404
    %v4702 = vunpack.c.l.b16 %v4405
    %v4703 = vunpack.c.h.b16 %v4405
    %v4704 = vunpack.c.l.b16 %v4406
    %v4705 = vunpack.c.h.b16 %v4406
    %v4706 = vunpack.c.l.b16 %v4407
    %v4707 = vunpack.c.h.b16 %v4407
    %v4708 = vunpack.c.l.b16 %v4408
    %v4709 = vunpack.c.h.b16 %v4408
    %v4710 = vunpack.c.l.b16 %v4409
    %v4711 = vunpack.c.h.b16 %v4409
    %v4712 = vunpack.c.l.b16 %v4410
    %v4713 = vunpack.c.h.b16 %v4410
    %v4714 = vunpack.c.l.b16 %v4411
    %v4715 = vunpack.c.h.b16 %v4411
    %v4716 = vunpack.c.l.b16 %v4412
    %v4717 = vunpack.c.h.b16 %v4412
    %v4718 = vunpack.c.l.b16 %v4413
    %v4719 = vunpack.c.h.b16 %v4413
    %v4720 = vunpack.c.l.b16 %v4414
    %v4721 = vunpack.c.h.b16 %v4414
    %v4722 = vunpack.c.l.b16 %v4415
    %v4723 = vunpack.c.h.b16 %v4415
    %v4724 = vunpack.c.l.b16 %v4416
    %v4725 = vunpack.c.h.b16 %v4416
    %v4726 = vunpack.c.l.b16 %v4417
    %v4727 = vunpack.c.h.b16 %v4417
    %v4728 = vunpack.c.l.b16 %v4418
    %v4729 = vunpack.c.h.b16 %v4418
    %v4730 = vunpack.c.l.b16 %v4419
    %v4731 = vunpack.c.h.b16 %v4419
    %v4732 = vunpack.c.l.b16 %v4420
    %v4733 = vunpack.c.h.b16 %v4420
    %v4734 = vunpack.c.l.b16 %v4421
    %v4735 = vunpack.c.h.b16 %v4421
    %v4736 = vunpack.c.l.b16 %v4422
    %v4737 = vunpack.c.h.b16 %v4422
    %v4738 = vunpack.c.l.b16 %v4423
    %v4739 = vunpack.c.h.b16 %v4423
    %v4740 = vunpack.c.l.b16 %v4424
    %v4741 = vunpack.c.h.b16 %v4424
    %v4742 = vunpack.c.l.b16 %v4425
    %v4743 = vunpack.c.h.b16 %v4425
    %v4744 = vunpack.c.l.b16 %v4426
    %v4745 = vunpack.c.h.b16 %v4426
    %v4746 = vunpack.c.l.b16 %v4427
    %v4747 = vunpack.c.h.b16 %v4427
    %v4748 = vunpack.c.l.b16 %v4428
    %v4749 = vunpack.c.h.b16 %v4428
    %v4750 = vunpack.c.l.b16 %v4429
    %v4751 = vunpack.c.h.b16 %v4429
    %v4752 = vunpack.c.l.b16 %v4430
    %v4753 = vunpack.c.h.b16 %v4430
    %v4754 = vunpack.c.l.b16 %v4431
    %v4755 = vunpack.c.h.b16 %v4431
    %v4756 = vunpack.c.l.b16 %v4432
    %v4757 = vunpack.c.h.b16 %v4432
    %v4758 = vunpack.c.l.b16 %v4433
    %v4759 = vunpack.c.h.b16 %v4433
    %v4760 = vunpack.c.l.b16 %v4434
    %v4761 = vunpack.c.h.b16 %v4434
    %v4762 = vunpack.c.l.b16 %v4435
    %v4763 = vunpack.c.h.b16 %v4435
    %v4764 = vunpack.c.l.b16 %v4436
    %v4765 = vunpack.c.h.b16 %v4436
    %v4766 = vunpack.c.l.b16 %v4437
    %v4767 = vunpack.c.h.b16 %v4437
    %v4768 = vunpack.c.l.b16 %v4438
    %v4769 = vunpack.c.h.b16 %v4438
    %v4770 = vunpack.c.l.b16 %v4439
    %v4771 = vunpack.c.h.b16 %v4439
    %v4772 = vunpack.c.l.b16 %v4440
    %v4773 = vunpack.c.h.b16 %v4440
    %v4774 = vunpack.c.l.b16 %v4441
    %v4775 = vunpack.c.h.b16 %v4441
    %v4776 = vunpack.c.l.b16 %v4442
    %v4777 = vunpack.c.h.b16 %v4442
    %v4778 = vunpack.c.l.b16 %v4443
    %v4779 = vunpack.c.h.b16 %v4443
    %v4780 = vunpack.c.l.b16 %v4444
    %v4781 = vunpack.c.h.b16 %v4444
    %v4782 = vunpack.c.l.b16 %v4445
    %v4783 = vunpack.c.h.b16 %v4445
    %v4784 = vunpack.c.l.b16 %v4446
    %v4785 = vunpack.c.h.b16 %v4446
    %v4786 = vunpack.c.l.b16 %v4447
    %v4787 = vunpack.c.h.b16 %v4447
    %v4788 = vunpack.c.l.b16 %v4448
    %v4789 = vunpack.c.h.b16 %v4448
    %v4790 = vunpack.c.l.b16 %v4449
    %v4791 = vunpack.c.h.b16 %v4449
    %v4792 = vunpack.c.l.b16 %v4450
    %v4793 = vunpack.c.h.b16 %v4450
    %v4794 = vunpack.c.l.b16 %v4451
    %v4795 = vunpack.c.h.b16 %v4451
    %v4796 = vunpack.c.l.b16 %v4452
    %v4797 = vunpack.c.h.b16 %v4452
    %v4798 = vunpack.c.l.b16 %v4453
    %v4799 = vunpack.c.h.b16 %v4453
    %v4800 = vunpack.c.l.b16 %v4454
    %v4801 = vunpack.c.h.b16 %v4454
    %v4802 = vunpack.c.l.b16 %v4455
    %v4803 = vunpack.c.h.b16 %v4455
    %v4804 = vunpack.c.l.b16 %v4456
    %v4805 = vunpack.c.h.b16 %v4456
    %v4806 = vunpack.c.l.b16 %v4457
    %v4807 = vunpack.c.h.b16 %v4457
    %v4808 = vunpack.c.l.b16 %v4458
    %v4809 = vunpack.c.h.b16 %v4458
    %v4810 = vunpack.c.l.b16 %v4459
    %v4811 = vunpack.c.h.b16 %v4459
    %v4812 = vunpack.c.l.b16 %v4460
    %v4813 = vunpack.c.h.b16 %v4460
    %v4814 = vunpack.c.l.b16 %v4461
    %v4815 = vunpack.c.h.b16 %v4461
    %v4816 = vunpack.c.l.b16 %v4462
    %v4817 = vunpack.c.h.b16 %v4462
    %v4818 = vunpack.c.l.b16 %v4463
    %v4819 = vunpack.c.h.b16 %v4463
    %v4820 = vunpack.c.l.b16 %v4464
    %v4821 = vunpack.c.h.b16 %v4464
    %v4822 = vunpack.c.l.b16 %v4465
    %v4823 = vunpack.c.h.b16 %v4465
    %v4824 = vunpack.c.l.b16 %v4466
    %v4825 = vunpack.c.h.b16 %v4466
    %v4826 = vunpack.c.l.b16 %v4467
    %v4827 = vunpack.c.h.b16 %v4467
    %v4828 = vunpack.c.l.b16 %v4468
    %v4829 = vunpack.c.h.b16 %v4468
    %v4830 = vunpack.c.l.b16 %v4469
    %v4831 = vunpack.c.h.b16 %v4469
    %v4832 = vunpack.c.l.b16 %v4470
    %v4833 = vunpack.c.h.b16 %v4470
    %v4834 = vunpack.c.l.b16 %v4471
    %v4835 = vunpack.c.h.b16 %v4471
    %v4836 = vunpack.c.l.b16 %v4472
    %v4837 = vunpack.c.h.b16 %v4472
    %v4838 = vunpack.c.l.b16 %v4473
    %v4839 = vunpack.c.h.b16 %v4473
    %v4840 = vunpack.c.l.b16 %v4474
    %v4841 = vunpack.c.h.b16 %v4474
    %v4842 = vunpack.c.l.b16 %v4475
    %v4843 = vunpack.c.h.b16 %v4475
    %v4844 = vunpack.c.l.b16 %v4476
    %v4845 = vunpack.c.h.b16 %v4476
    %v4846 = vunpack.c.l.b16 %v4477
    %v4847 = vunpack.c.h.b16 %v4477
    %v4848 = vunpack.c.l.b16 %v4478
    %v4849 = vunpack.c.h.b16 %v4478
    %v4850 = vunpack.c.l.b16 %v4479
    %v4851 = vunpack.c.h.b16 %v4479
    %v4852 = vunpack.c.l.b16 %v4480
    %v4853 = vunpack.c.h.b16 %v4480
    %v4854 = vunpack.c.l.b16 %v4481
    %v4855 = vunpack.c.h.b16 %v4481
    %v4856 = vunpack.c.l.b16 %v4482
    %v4857 = vunpack.c.h.b16 %v4482
    %v4858 = vunpack.c.l.b16 %v4483
    %v4859 = vunpack.c.h.b16 %v4483
    %v4860 = vunpack.c.l.b16 %v4484
    %v4861 = vunpack.c.h.b16 %v4484
    %v4862 = vunpack.c.l.b16 %v4485
    %v4863 = vunpack.c.h.b16 %v4485
    %v4864 = vunpack.c.l.b16 %v4486
    %v4865 = vunpack.c.h.b16 %v4486
    %v4866 = vunpack.c.l.b16 %v4487
    %v4867 = vunpack.c.h.b16 %v4487
    %v4868 = vunpack.c.l.b16 %v4488
    %v4869 = vunpack.c.h.b16 %v4488
    %v4870 = vunpack.c.l.b16 %v4489
    %v4871 = vunpack.c.h.b16 %v4489
    %v4872 = vunpack.c.l.b16 %v4490
    %v4873 = vunpack.c.h.b16 %v4490
    %v4874 = vunpack.c.l.b16 %v4491
    %v4875 = vunpack.c.h.b16 %v4491
    %v4876 = vunpack.c.l.b16 %v4492
    %v4877 = vunpack.c.h.b16 %v4492
    %v4878 = vunpack.c.l.b16 %v4493
    %v4879 = vunpack.c.h.b16 %v4493
    %v4880 = vunpack.c.l.b16 %v4494
    %v4881 = vunpack.c.h.b16 %v4494
    %v4882 = vunpack.c.l.b16 %v4495
    %v4883 = vunpack.c.h.b16 %v4495
    %v4884 = vunpack.c.l.b16 %v4496
    %v4885 = vunpack.c.h.b16 %v4496
    %v4886 = vunpack.c.l.b16 %v4497
    %v4887 = vunpack.c.h.b16 %v4497
    %v4888 = vunpack.c.l.b16 %v4498
    %v4889 = vunpack.c.h.b16 %v4498
    %v4890 = vunpack.c.l.b16 %v4499
    %v4891 = vunpack.c.h.b16 %v4499
    %v4892 = vunpack.c.l.b16 %v4500
    %v4893 = vunpack.c.h.b16 %v4500
    %v4894 = vunpack.c.l.b16 %v4501
    %v4895 = vunpack.c.h.b16 %v4501
    %v4896 = vunpack.c.l.b16 %v4502
    %v4897 = vunpack.c.h.b16 %v4502
    %v4898 = vunpack.c.l.b16 %v4503
    %v4899 = vunpack.c.h.b16 %v4503
    %v4900 = vunpack.c.l.b16 %v4504
    %v4901 = vunpack.c.h.b16 %v4504
    %v4902 = vunpack.c.l.b16 %v4505
    %v4903 = vunpack.c.h.b16 %v4505
    %v4904 = vunpack.c.l.b16 %v4506
    %v4905 = vunpack.c.h.b16 %v4506
    %v4906 = vunpack.c.l.b16 %v4507
    %v4907 = vunpack.c.h.b16 %v4507
    %v4908 = vunpack.c.l.b16 %v4508
    %v4909 = vunpack.c.h.b16 %v4508
    %v4910 = vunpack.c.l.b16 %v4509
    %v4911 = vunpack.c.h.b16 %v4509
    %v4912 = vunpack.c.l.b16 %v4510
    %v4913 = vunpack.c.h.b16 %v4510
    %v4914 = vunpack.c.l.b16 %v4511
    %v4915 = vunpack.c.h.b16 %v4511
    %v4916 = vunpack.c.l.b16 %v4512
    %v4917 = vunpack.c.h.b16 %v4512
    %v4918 = vunpack.c.l.b16 %v4513
    %v4919 = vunpack.c.h.b16 %v4513
    %v4920 = vunpack.c.l.b16 %v4514
    %v4921 = vunpack.c.h.b16 %v4514
    %v4922 = vunpack.c.l.b16 %v4515
    %v4923 = vunpack.c.h.b16 %v4515
    %v4924 = vunpack.c.l.b16 %v4516
    %v4925 = vunpack.c.h.b16 %v4516
    %v4926 = vunpack.c.l.b16 %v4517
    %v4927 = vunpack.c.h.b16 %v4517
    %v4928 = vunpack.c.l.b16 %v4518
    %v4929 = vunpack.c.h.b16 %v4518
    %v4930 = vunpack.c.l.b16 %v4519
    %v4931 = vunpack.c.h.b16 %v4519
    %v4932 = vunpack.c.l.b16 %v4520
    %v4933 = vunpack.c.h.b16 %v4520
    %v4934 = vunpack.c.l.b16 %v4521
    %v4935 = vunpack.c.h.b16 %v4521
    %v4936 = vunpack.c.l.b16 %v4522
    %v4937 = vunpack.c.h.b16 %v4522
    %v4938 = vunpack.c.l.b16 %v4523
    %v4939 = vunpack.c.h.b16 %v4523
    %v4940 = vunpack.c.l.b16 %v4524
    %v4941 = vunpack.c.h.b16 %v4524
    %v4942 = vunpack.c.l.b16 %v4525
    %v4943 = vunpack.c.h.b16 %v4525
    %v4944 = vunpack.c.l.b16 %v4526
    %v4945 = vunpack.c.h.b16 %v4526
    %v4946 = vunpack.c.l.b16 %v4527
    %v4947 = vunpack.c.h.b16 %v4527
    %v4948 = vunpack.c.l.b16 %v4528
    %v4949 = vunpack.c.h.b16 %v4528
    %v4950 = vunpack.c.l.b16 %v4529
    %v4951 = vunpack.c.h.b16 %v4529
    %v4952 = vunpack.c.l.b16 %v4530
    %v4953 = vunpack.c.h.b16 %v4530
    %v4954 = vunpack.c.l.b16 %v4531
    %v4955 = vunpack.c.h.b16 %v4531
    %v4956 = vunpack.c.l.b16 %v4532
    %v4957 = vunpack.c.h.b16 %v4532
    %v4958 = vunpack.c.l.b16 %v4533
    %v4959 = vunpack.c.h.b16 %v4533
    %v4960 = vpack.c.b16 %v4678, %v4676
    %v4961 = vpack.c.b16 %v4679, %v4677
    %v4962 = vpack.c.b16 %v4682, %v4680
    %v4963 = vpack.c.b16 %v4683, %v4681
    %v4964 = vpack.c.b16 %v4686, %v4684
    %v4965 = vpack.c.b16 %v4687, %v4685
    %v4966 = vpack.c.b16 %v4690, %v4688
    %v4967 = vpack.c.b16 %v4691, %v4689
    %v4968 = vpack.c.b16 %v4694, %v4692
    %v4969 = vpack.c.b16 %v4695, %v4693
    %v4970 = vpack.c.b16 %v4698, %v4696
    %v4971 = vpack.c.b16 %v4699, %v4697
    %v4972 = vpack.c.b16 %v4702, %v4700
    %v4973 = vpack.c.b16 %v4703, %v4701
    %v4974 = vpack.c.b16 %v4706, %v4704
    %v4975 = vpack.c.b16 %v4707, %v4705
    %v4976 = vpack.c.b16 %v4710, %v4708
    %v4977 = vpack.c.b16 %v4711, %v4709
    %v4978 = vpack.c.b16 %v4714, %v4712
    %v4979 = vpack.c.b16 %v4715, %v4713
    %v4980 = vpack.c.b16 %v4718, %v4716
    %v4981 = vpack.c.b16 %v4719, %v4717
    %v4982 = vpack.c.b16 %v4722, %v4720
    %v4983 = vpack.c.b16 %v4723, %v4721
    %v4984 = vpack.c.b16 %v4726, %v4724
    %v4985 = vpack.c.b16 %v4727, %v4725
    %v4986 = vpack.c.b16 %v4730, %v4728
    %v4987 = vpack.c.b16 %v4731, %v4729
    %v4988 = vpack.c.b16 %v4734, %v4732
    %v4989 = vpack.c.b16 %v4735, %v4733
    %v4990 = vpack.c.b16 %v4738, %v4736
    %v4991 = vpack.c.b16 %v4739, %v4737
    %v4992 = vpack.c.b16 %v4742, %v4740
    %v4993 = vpack.c.b16 %v4743, %v4741
    %v4994 = vpack.c.b16 %v4746, %v4744
    %v4995 = vpack.c.b16 %v4747, %v4745
    %v4996 = vpack.c.b16 %v4750, %v4748
    %v4997 = vpack.c.b16 %v4751, %v4749
    %v4998 = vpack.c.b16 %v4754, %v4752
    %v4999 = vpack.c.b16 %v4755, %v4753
    %v5000 = vpack.c.b16 %v4758, %v4756
    %v5001 = vpack.c.b16 %v4759, %v4757
    %v5002 = vpack.c.b16 %v4762, %v4760
    %v5003 = vpack.c.b16 %v4763, %v4761
    %v5004 = vpack.c.b16 %v4766, %v4764
    %v5005 = vpack.c.b16 %v4767, %v4765
    %v5006 = vpack.c.b16 %v4770, %v4768
    %v5007 = vpack.c.b16 %v4771, %v4769
    %v5008 = vpack.c.b16 %v4774, %v4772
    %v5009 = vpack.c.b16 %v4775, %v4773
    %v5010 = vpack.c.b16 %v4778, %v4776
    %v5011 = vpack.c.b16 %v4779, %v4777
    %v5012 = vpack.c.b16 %v4782, %v4780
    %v5013 = vpack.c.b16 %v4783, %v4781
    %v5014 = vpack.c.b16 %v4786, %v4784
    %v5015 = vpack.c.b16 %v4787, %v4785
    %v5016 = vpack.c.b16 %v4790, %v4788
    %v5017 = vpack.c.b16 %v4791, %v4789
    %v5018 = vpack.c.b16 %v4794, %v4792
    %v5019 = vpack.c.b16 %v4795, %v4793
    %v5020 = vpack.c.b16 %v4798, %v4796
    %v5021 = vpack.c.b16 %v4799, %v4797
    %v5022 = vpack.c.b16 %v4802, %v4800
    %v5023 = vpack.c.b16 %v4803, %v4801
    %v5024 = vpack.c.b16 %v4806, %v4804
    %v5025 = vpack.c.b16 %v4807, %v4805
    %v5026 = vpack.c.b16 %v4810, %v4808
    %v5027 = vpack.c.b16 %v4811, %v4809
    %v5028 = vpack.c.b16 %v4814, %v4812
    %v5029 = vpack.c.b16 %v4815, %v4813
    %v5030 = vpack.c.b16 %v4818, %v4816
    %v5031 = vpack.c.b16 %v4819, %v4817
    %v5032 = vpack.c.b16 %v4822, %v4820
    %v5033 = vpack.c.b16 %v4823, %v4821
    %v5034 = vpack.c.b16 %v4826, %v4824
    %v5035 = vpack.c.b16 %v4827, %v4825
    %v5036 = vpack.c.b16 %v4830, %v4828
    %v5037 = vpack.c.b16 %v4831, %v4829
    %v5038 = vpack.c.b16 %v4834, %v4832
    %v5039 = vpack.c.b16 %v4835, %v4833
    %v5040 = vpack.c.b16 %v4838, %v4836
    %v5041 = vpack.c.b16 %v4839, %v4837
    %v5042 = vpack.c.b16 %v4842, %v4840
    %v5043 = vpack.c.b16 %v4843, %v4841
    %v5044 = vpack.c.b16 %v4846, %v4844
    %v5045 = vpack.c.b16 %v4847, %v4845
    %v5046 = vpack.c.b16 %v4850, %v4848
    %v5047 = vpack.c.b16 %v4851, %v4849
    %v5048 = vpack.c.b16 %v4854, %v4852
    %v5049 = vpack.c.b16 %v4855, %v4853
    %v5050 = vpack.c.b16 %v4858, %v4856
    %v5051 = vpack.c.b16 %v4859, %v4857
    %v5052 = vpack.c.b16 %v4862, %v4860
    %v5053 = vpack.c.b16 %v4863, %v4861
    %v5054 = vpack.c.b16 %v4866, %v4864
    %v5055 = vpack.c.b16 %v4867, %v4865
    %v5056 = vpack.c.b16 %v4870, %v4868
    %v5057 = vpack.c.b16 %v4871, %v4869
    %v5058 = vpack.c.b16 %v4874, %v4872
    %v5059 = vpack.c.b16 %v4875, %v4873
    %v5060 = vpack.c.b16 %v4878, %v4876
    %v5061 = vpack.c.b16 %v4879, %v4877
    %v5062 = vpack.c.b16 %v4882, %v4880
    %v5063 = vpack.c.b16 %v4883, %v4881
    %v5064 = vpack.c.b16 %v4886, %v4884
    %v5065 = vpack.c.b16 %v4887, %v4885
    %v5066 = vpack.c.b16 %v4890, %v4888
    %v5067 = vpack.c.b16 %v4891, %v4889
    %v5068 = vpack.c.b16 %v4894, %v4892
    %v5069 = vpack.c.b16 %v4895, %v4893
    %v5070 = vpack.c.b16 %v4898, %v4896
    %v5071 = vpack.c.b16 %v4899, %v4897
    %v5072 = vpack.c.b16 %v4902, %v4900
    %v5073 = vpack.c.b16 %v4903, %v4901
    %v5074 = vpack.c.b16 %v4906, %v4904
    %v5075 = vpack.c.b16 %v4907, %v4905
    %v5076 = vpack.c.b16 %v4910, %v4908
    %v5077 = vpack.c.b16 %v4911, %v4909
    %v5078 = vpack.c.b16 %v4914, %v4912
    %v5079 = vpack.c.b16 %v4915, %v4913
    %v5080 = vpack.c.b16 %v4918, %v4916
    %v5081 = vpack.c.b16 %v4919, %v4917
    %v5082 = vpack.c.b16 %v4922, %v4920
    %v5083 = vpack.c.b16 %v4923, %v4921
    %v5084 = vpack.c.b16 %v4926, %v4924
    %v5085 = vpack.c.b16 %v4927, %v4925
    %v5086 = vpack.c.b16 %v4930, %v4928
    %v5087 = vpack.c.b16 %v4931, %v4929
    %v5088 = vpack.c.b16 %v4934, %v4932
    %v5089 = vpack.c.b16 %v4935, %v4933
    %v5090 = vpack.c.b16 %v4938, %v4936
    %v5091 = vpack.c.b16 %v4939, %v4937
    %v5092 = vpack.c.b16 %v4942, %v4940
    %v5093 = vpack.c.b16 %v4943, %v4941
    %v5094 = vpack.c.b16 %v4946, %v4944
    %v5095 = vpack.c.b16 %v4947, %v4945
    %v5096 = vpack.c.b16 %v4950, %v4948
    %v5097 = vpack.c.b16 %v4951, %v4949
    %v5098 = vpack.c.b16 %v4954, %v4952
    %v5099 = vpack.c.b16 %v4955, %v4953
    %v5100 = vpack.c.b16 %v4958, %v4956
    %v5101 = vpack.c.b16 %v4959, %v4957
    %v5243 = vsel %vm870, %v1380, 0
    %v5246 = vsel %vm874, %v5100, 0
    %v5249 = vsel %vm874, %v5101, 0
    %5251 = vmatpush.bf16.msra.mxu0 %v4974
    %5252 = vmatpush.bf16.msra.mxu0 %v4972
    %5253 = vmatpush.bf16.msra.mxu0 %v4970
    %5254 = vmatpush.bf16.msra.mxu0 %v4968
    %5255 = vmatpush.bf16.msra.mxu0 %v4966
    %5256 = vmatpush.bf16.msra.mxu0 %v4964
    %5257 = vmatpush.bf16.msra.mxu0 %v4962
    %5258 = vmatpush.bf16.msra.mxu0 %v4960
    %5259 = vmatmul.bf16.gmra.mxu0 %v1372
    %v5260 = vpop.f32.mrf.mxu0
    %v5261 = vadd.f32 0.0, %v5260
    %v5262 = vpop.f32.mrf.mxu0
    %5263 = vdwg.mxu0
    %5264 = vmatpush.bf16.msra.mxu0 %v4990
    %5265 = vmatpush.bf16.msra.mxu0 %v4988
    %5266 = vmatpush.bf16.msra.mxu0 %v4986
    %5267 = vmatpush.bf16.msra.mxu0 %v4984
    %5268 = vmatpush.bf16.msra.mxu0 %v4982
    %5269 = vmatpush.bf16.msra.mxu0 %v4980
    %5270 = vmatpush.bf16.msra.mxu0 %v4978
    %5271 = vmatpush.bf16.msra.mxu0 %v4976
    %5272 = vmatmul.bf16.gmra.mxu0 %v1373
    %v5273 = vpop.f32.mrf.mxu0
    %v5274 = vadd.f32 %v5261, %v5273
    %v5275 = vpop.f32.mrf.mxu0
    %5276 = vdwg.mxu0
    %5277 = vmatpush.bf16.msra.mxu0 %v5006
    %5278 = vmatpush.bf16.msra.mxu0 %v5004
    %5279 = vmatpush.bf16.msra.mxu0 %v5002
    %5280 = vmatpush.bf16.msra.mxu0 %v5000
    %5281 = vmatpush.bf16.msra.mxu0 %v4998
    %5282 = vmatpush.bf16.msra.mxu0 %v4996
    %5283 = vmatpush.bf16.msra.mxu0 %v4994
    %5284 = vmatpush.bf16.msra.mxu0 %v4992
    %5285 = vmatmul.bf16.gmra.mxu0 %v1374
    %v5286 = vpop.f32.mrf.mxu0
    %v5287 = vadd.f32 %v5274, %v5286
    %v5288 = vpop.f32.mrf.mxu0
    %5289 = vdwg.mxu0
    %5290 = vmatpush.bf16.msra.mxu0 %v5022
    %5291 = vmatpush.bf16.msra.mxu0 %v5020
    %5292 = vmatpush.bf16.msra.mxu0 %v5018
    %5293 = vmatpush.bf16.msra.mxu0 %v5016
    %5294 = vmatpush.bf16.msra.mxu0 %v5014
    %5295 = vmatpush.bf16.msra.mxu0 %v5012
    %5296 = vmatpush.bf16.msra.mxu0 %v5010
    %5297 = vmatpush.bf16.msra.mxu0 %v5008
    %5298 = vmatmul.bf16.gmra.mxu0 %v1375
    %v5299 = vpop.f32.mrf.mxu0
    %v5300 = vadd.f32 %v5287, %v5299
    %v5301 = vpop.f32.mrf.mxu0
    %5302 = vdwg.mxu0
    %5303 = vmatpush.bf16.msra.mxu0 %v5038
    %5304 = vmatpush.bf16.msra.mxu0 %v5036
    %5305 = vmatpush.bf16.msra.mxu0 %v5034
    %5306 = vmatpush.bf16.msra.mxu0 %v5032
    %5307 = vmatpush.bf16.msra.mxu0 %v5030
    %5308 = vmatpush.bf16.msra.mxu0 %v5028
    %5309 = vmatpush.bf16.msra.mxu0 %v5026
    %5310 = vmatpush.bf16.msra.mxu0 %v5024
    %5311 = vmatmul.bf16.gmra.mxu0 %v1376
    %v5312 = vpop.f32.mrf.mxu0
    %v5313 = vadd.f32 %v5300, %v5312
    %v5314 = vpop.f32.mrf.mxu0
    %5315 = vdwg.mxu0
    %5316 = vmatpush.bf16.msra.mxu0 %v5054
    %5317 = vmatpush.bf16.msra.mxu0 %v5052
    %5318 = vmatpush.bf16.msra.mxu0 %v5050
    %5319 = vmatpush.bf16.msra.mxu0 %v5048
    %5320 = vmatpush.bf16.msra.mxu0 %v5046
    %5321 = vmatpush.bf16.msra.mxu0 %v5044
    %5322 = vmatpush.bf16.msra.mxu0 %v5042
    %5323 = vmatpush.bf16.msra.mxu0 %v5040
    %5324 = vmatmul.bf16.gmra.mxu0 %v1377
    %v5325 = vpop.f32.mrf.mxu0
    %v5326 = vadd.f32 %v5313, %v5325
    %v5327 = vpop.f32.mrf.mxu0
    %5328 = vdwg.mxu0
    %5329 = vmatpush.bf16.msra.mxu0 %v5070
    %5330 = vmatpush.bf16.msra.mxu0 %v5068
    %5331 = vmatpush.bf16.msra.mxu0 %v5066
    %5332 = vmatpush.bf16.msra.mxu0 %v5064
    %5333 = vmatpush.bf16.msra.mxu0 %v5062
    %5334 = vmatpush.bf16.msra.mxu0 %v5060
    %5335 = vmatpush.bf16.msra.mxu0 %v5058
    %5336 = vmatpush.bf16.msra.mxu0 %v5056
    %5337 = vmatmul.bf16.gmra.mxu0 %v1378
    %v5338 = vpop.f32.mrf.mxu0
    %v5339 = vadd.f32 %v5326, %v5338
    %v5340 = vpop.f32.mrf.mxu0
    %5341 = vdwg.mxu0
    %5342 = vmatpush.bf16.msra.mxu0 %v5086
    %5343 = vmatpush.bf16.msra.mxu0 %v5084
    %5344 = vmatpush.bf16.msra.mxu0 %v5082
    %5345 = vmatpush.bf16.msra.mxu0 %v5080
    %5346 = vmatpush.bf16.msra.mxu0 %v5078
    %5347 = vmatpush.bf16.msra.mxu0 %v5076
    %5348 = vmatpush.bf16.msra.mxu0 %v5074
    %5349 = vmatpush.bf16.msra.mxu0 %v5072
    %5350 = vmatmul.bf16.gmra.mxu0 %v1379
    %v5351 = vpop.f32.mrf.mxu0
    %v5352 = vadd.f32 %v5339, %v5351
    %v5353 = vpop.f32.mrf.mxu0
    %5354 = vdwg.mxu0
    %5355 = vmatpush.bf16.msra.mxu0 0
    %5356 = vmatpush.bf16.msra.mxu0 %v5246
    %5357 = vmatpush.bf16.msra.mxu0 %v5098
    %5358 = vmatpush.bf16.msra.mxu0 %v5096
    %5359 = vmatpush.bf16.msra.mxu0 %v5094
    %5360 = vmatpush.bf16.msra.mxu0 %v5092
    %5361 = vmatpush.bf16.msra.mxu0 %v5090
    %5362 = vmatpush.bf16.msra.mxu0 %v5088
    %5363 = vmatmul.bf16.gmra.mxu0 %v5243
    %v5364 = vpop.f32.mrf.mxu0
    %v5365 = vadd.f32 %v5352, %v5364
    %v5366 = vpop.f32.mrf.mxu0
    %5367 = vdwg.mxu0
    %5368 = vmatpush.bf16.msra.mxu0 %v4975
    %5369 = vmatpush.bf16.msra.mxu0 %v4973
    %5370 = vmatpush.bf16.msra.mxu0 %v4971
    %5371 = vmatpush.bf16.msra.mxu0 %v4969
    %5372 = vmatpush.bf16.msra.mxu0 %v4967
    %5373 = vmatpush.bf16.msra.mxu0 %v4965
    %5374 = vmatpush.bf16.msra.mxu0 %v4963
    %5375 = vmatpush.bf16.msra.mxu0 %v4961
    %5376 = vmatmul.bf16.gmra.mxu0 %v1372
    %v5377 = vpop.f32.mrf.mxu0
    %v5378 = vadd.f32 0.0, %v5377
    %v5379 = vpop.f32.mrf.mxu0
    %5380 = vdwg.mxu0
    %5381 = vmatpush.bf16.msra.mxu0 %v4991
    %5382 = vmatpush.bf16.msra.mxu0 %v4989
    %5383 = vmatpush.bf16.msra.mxu0 %v4987
    %5384 = vmatpush.bf16.msra.mxu0 %v4985
    %5385 = vmatpush.bf16.msra.mxu0 %v4983
    %5386 = vmatpush.bf16.msra.mxu0 %v4981
    %5387 = vmatpush.bf16.msra.mxu0 %v4979
    %5388 = vmatpush.bf16.msra.mxu0 %v4977
    %5389 = vmatmul.bf16.gmra.mxu0 %v1373
    %v5390 = vpop.f32.mrf.mxu0
    %v5391 = vadd.f32 %v5378, %v5390
    %v5392 = vpop.f32.mrf.mxu0
    %5393 = vdwg.mxu0
    %5394 = vmatpush.bf16.msra.mxu0 %v5007
    %5395 = vmatpush.bf16.msra.mxu0 %v5005
    %5396 = vmatpush.bf16.msra.mxu0 %v5003
    %5397 = vmatpush.bf16.msra.mxu0 %v5001
    %5398 = vmatpush.bf16.msra.mxu0 %v4999
    %5399 = vmatpush.bf16.msra.mxu0 %v4997
    %5400 = vmatpush.bf16.msra.mxu0 %v4995
    %5401 = vmatpush.bf16.msra.mxu0 %v4993
    %5402 = vmatmul.bf16.gmra.mxu0 %v1374
    %v5403 = vpop.f32.mrf.mxu0
    %v5404 = vadd.f32 %v5391, %v5403
    %v5405 = vpop.f32.mrf.mxu0
    %5406 = vdwg.mxu0
    %5407 = vmatpush.bf16.msra.mxu0 %v5023
    %5408 = vmatpush.bf16.msra.mxu0 %v5021
    %5409 = vmatpush.bf16.msra.mxu0 %v5019
    %5410 = vmatpush.bf16.msra.mxu0 %v5017
    %5411 = vmatpush.bf16.msra.mxu0 %v5015
    %5412 = vmatpush.bf16.msra.mxu0 %v5013
    %5413 = vmatpush.bf16.msra.mxu0 %v5011
    %5414 = vmatpush.bf16.msra.mxu0 %v5009
    %5415 = vmatmul.bf16.gmra.mxu0 %v1375
    %v5416 = vpop.f32.mrf.mxu0
    %v5417 = vadd.f32 %v5404, %v5416
    %v5418 = vpop.f32.mrf.mxu0
    %5419 = vdwg.mxu0
    %5420 = vmatpush.bf16.msra.mxu0 %v5039
    %5421 = vmatpush.bf16.msra.mxu0 %v5037
    %5422 = vmatpush.bf16.msra.mxu0 %v5035
    %5423 = vmatpush.bf16.msra.mxu0 %v5033
    %5424 = vmatpush.bf16.msra.mxu0 %v5031
    %5425 = vmatpush.bf16.msra.mxu0 %v5029
    %5426 = vmatpush.bf16.msra.mxu0 %v5027
    %5427 = vmatpush.bf16.msra.mxu0 %v5025
    %5428 = vmatmul.bf16.gmra.mxu0 %v1376
    %v5429 = vpop.f32.mrf.mxu0
    %v5430 = vadd.f32 %v5417, %v5429
    %v5431 = vpop.f32.mrf.mxu0
    %5432 = vdwg.mxu0
    %5433 = vmatpush.bf16.msra.mxu0 %v5055
    %5434 = vmatpush.bf16.msra.mxu0 %v5053
    %5435 = vmatpush.bf16.msra.mxu0 %v5051
    %5436 = vmatpush.bf16.msra.mxu0 %v5049
    %5437 = vmatpush.bf16.msra.mxu0 %v5047
    %5438 = vmatpush.bf16.msra.mxu0 %v5045
    %5439 = vmatpush.bf16.msra.mxu0 %v5043
    %5440 = vmatpush.bf16.msra.mxu0 %v5041
    %5441 = vmatmul.bf16.gmra.mxu0 %v1377
    %v5442 = vpop.f32.mrf.mxu0
    %v5443 = vadd.f32 %v5430, %v5442
    %v5444 = vpop.f32.mrf.mxu0
    %5445 = vdwg.mxu0
    %5446 = vmatpush.bf16.msra.mxu0 %v5071
    %5447 = vmatpush.bf16.msra.mxu0 %v5069
    %5448 = vmatpush.bf16.msra.mxu0 %v5067
    %5449 = vmatpush.bf16.msra.mxu0 %v5065
    %5450 = vmatpush.bf16.msra.mxu0 %v5063
    %5451 = vmatpush.bf16.msra.mxu0 %v5061
    %5452 = vmatpush.bf16.msra.mxu0 %v5059
    %5453 = vmatpush.bf16.msra.mxu0 %v5057
    %5454 = vmatmul.bf16.gmra.mxu0 %v1378
    %v5455 = vpop.f32.mrf.mxu0
    %v5456 = vadd.f32 %v5443, %v5455
    %v5457 = vpop.f32.mrf.mxu0
    %5458 = vdwg.mxu0
    %5459 = vmatpush.bf16.msra.mxu0 %v5087
    %5460 = vmatpush.bf16.msra.mxu0 %v5085
    %5461 = vmatpush.bf16.msra.mxu0 %v5083
    %5462 = vmatpush.bf16.msra.mxu0 %v5081
    %5463 = vmatpush.bf16.msra.mxu0 %v5079
    %5464 = vmatpush.bf16.msra.mxu0 %v5077
    %5465 = vmatpush.bf16.msra.mxu0 %v5075
    %5466 = vmatpush.bf16.msra.mxu0 %v5073
    %5467 = vmatmul.bf16.gmra.mxu0 %v1379
    %v5468 = vpop.f32.mrf.mxu0
    %v5469 = vadd.f32 %v5456, %v5468
    %v5470 = vpop.f32.mrf.mxu0
    %5471 = vdwg.mxu0
    %5472 = vmatpush.bf16.msra.mxu0 0
    %5473 = vmatpush.bf16.msra.mxu0 %v5249
    %5474 = vmatpush.bf16.msra.mxu0 %v5099
    %5475 = vmatpush.bf16.msra.mxu0 %v5097
    %5476 = vmatpush.bf16.msra.mxu0 %v5095
    %5477 = vmatpush.bf16.msra.mxu0 %v5093
    %5478 = vmatpush.bf16.msra.mxu0 %v5091
    %5479 = vmatpush.bf16.msra.mxu0 %v5089
    %5480 = vmatmul.bf16.gmra.mxu0 %v5243
    %v5481 = vpop.f32.mrf.mxu0
    %v5482 = vadd.f32 %v5469, %v5481
    %v5483 = vpop.f32.mrf.mxu0
    %5484 = vdwg.mxu0
    %v5627 = vunpack.c.l.b16 %v4250
    %v5628 = vunpack.c.h.b16 %v4250
    %v5629 = vunpack.c.l.b16 %v4251
    %v5630 = vunpack.c.h.b16 %v4251
    %v5631 = vunpack.c.l.b16 %v4252
    %v5632 = vunpack.c.h.b16 %v4252
    %v5633 = vunpack.c.l.b16 %v4253
    %v5634 = vunpack.c.h.b16 %v4253
    %v5635 = vunpack.c.l.b16 %v4254
    %v5636 = vunpack.c.h.b16 %v4254
    %v5637 = vunpack.c.l.b16 %v4255
    %v5638 = vunpack.c.h.b16 %v4255
    %v5639 = vunpack.c.l.b16 %v4256
    %v5640 = vunpack.c.h.b16 %v4256
    %v5641 = vunpack.c.l.b16 %v4257
    %v5642 = vunpack.c.h.b16 %v4257
    %v5643 = vunpack.c.l.b16 %v4258
    %v5644 = vunpack.c.h.b16 %v4258
    %v5645 = vunpack.c.l.b16 %v4259
    %v5646 = vunpack.c.h.b16 %v4259
    %v5647 = vunpack.c.l.b16 %v4260
    %v5648 = vunpack.c.h.b16 %v4260
    %v5649 = vunpack.c.l.b16 %v4261
    %v5650 = vunpack.c.h.b16 %v4261
    %v5651 = vunpack.c.l.b16 %v4262
    %v5652 = vunpack.c.h.b16 %v4262
    %v5653 = vunpack.c.l.b16 %v4263
    %v5654 = vunpack.c.h.b16 %v4263
    %v5655 = vunpack.c.l.b16 %v4264
    %v5656 = vunpack.c.h.b16 %v4264
    %v5657 = vunpack.c.l.b16 %v4265
    %v5658 = vunpack.c.h.b16 %v4265
    %v5659 = vunpack.c.l.b16 %v4266
    %v5660 = vunpack.c.h.b16 %v4266
    %v5661 = vunpack.c.l.b16 %v4267
    %v5662 = vunpack.c.h.b16 %v4267
    %v5663 = vunpack.c.l.b16 %v4268
    %v5664 = vunpack.c.h.b16 %v4268
    %v5665 = vunpack.c.l.b16 %v4269
    %v5666 = vunpack.c.h.b16 %v4269
    %v5667 = vunpack.c.l.b16 %v4270
    %v5668 = vunpack.c.h.b16 %v4270
    %v5669 = vunpack.c.l.b16 %v4271
    %v5670 = vunpack.c.h.b16 %v4271
    %v5671 = vunpack.c.l.b16 %v4272
    %v5672 = vunpack.c.h.b16 %v4272
    %v5673 = vunpack.c.l.b16 %v4273
    %v5674 = vunpack.c.h.b16 %v4273
    %v5675 = vunpack.c.l.b16 %v4274
    %v5676 = vunpack.c.h.b16 %v4274
    %v5677 = vunpack.c.l.b16 %v4275
    %v5678 = vunpack.c.h.b16 %v4275
    %v5679 = vunpack.c.l.b16 %v4276
    %v5680 = vunpack.c.h.b16 %v4276
    %v5681 = vunpack.c.l.b16 %v4277
    %v5682 = vunpack.c.h.b16 %v4277
    %v5683 = vunpack.c.l.b16 %v4278
    %v5684 = vunpack.c.h.b16 %v4278
    %v5685 = vunpack.c.l.b16 %v4279
    %v5686 = vunpack.c.h.b16 %v4279
    %v5687 = vunpack.c.l.b16 %v4280
    %v5688 = vunpack.c.h.b16 %v4280
    %v5689 = vunpack.c.l.b16 %v4281
    %v5690 = vunpack.c.h.b16 %v4281
    %v5691 = vunpack.c.l.b16 %v4282
    %v5692 = vunpack.c.h.b16 %v4282
    %v5693 = vunpack.c.l.b16 %v4283
    %v5694 = vunpack.c.h.b16 %v4283
    %v5695 = vunpack.c.l.b16 %v4284
    %v5696 = vunpack.c.h.b16 %v4284
    %v5697 = vunpack.c.l.b16 %v4285
    %v5698 = vunpack.c.h.b16 %v4285
    %v5699 = vunpack.c.l.b16 %v4286
    %v5700 = vunpack.c.h.b16 %v4286
    %v5701 = vunpack.c.l.b16 %v4287
    %v5702 = vunpack.c.h.b16 %v4287
    %v5703 = vunpack.c.l.b16 %v4288
    %v5704 = vunpack.c.h.b16 %v4288
    %v5705 = vunpack.c.l.b16 %v4289
    %v5706 = vunpack.c.h.b16 %v4289
    %v5707 = vunpack.c.l.b16 %v4290
    %v5708 = vunpack.c.h.b16 %v4290
    %v5709 = vunpack.c.l.b16 %v4291
    %v5710 = vunpack.c.h.b16 %v4291
    %v5711 = vunpack.c.l.b16 %v4292
    %v5712 = vunpack.c.h.b16 %v4292
    %v5713 = vunpack.c.l.b16 %v4293
    %v5714 = vunpack.c.h.b16 %v4293
    %v5715 = vunpack.c.l.b16 %v4294
    %v5716 = vunpack.c.h.b16 %v4294
    %v5717 = vunpack.c.l.b16 %v4295
    %v5718 = vunpack.c.h.b16 %v4295
    %v5719 = vunpack.c.l.b16 %v4296
    %v5720 = vunpack.c.h.b16 %v4296
    %v5721 = vunpack.c.l.b16 %v4297
    %v5722 = vunpack.c.h.b16 %v4297
    %v5723 = vunpack.c.l.b16 %v4298
    %v5724 = vunpack.c.h.b16 %v4298
    %v5725 = vunpack.c.l.b16 %v4299
    %v5726 = vunpack.c.h.b16 %v4299
    %v5727 = vunpack.c.l.b16 %v4300
    %v5728 = vunpack.c.h.b16 %v4300
    %v5729 = vunpack.c.l.b16 %v4301
    %v5730 = vunpack.c.h.b16 %v4301
    %v5731 = vunpack.c.l.b16 %v4302
    %v5732 = vunpack.c.h.b16 %v4302
    %v5733 = vunpack.c.l.b16 %v4303
    %v5734 = vunpack.c.h.b16 %v4303
    %v5735 = vunpack.c.l.b16 %v4304
    %v5736 = vunpack.c.h.b16 %v4304
    %v5737 = vunpack.c.l.b16 %v4305
    %v5738 = vunpack.c.h.b16 %v4305
    %v5739 = vunpack.c.l.b16 %v4306
    %v5740 = vunpack.c.h.b16 %v4306
    %v5741 = vunpack.c.l.b16 %v4307
    %v5742 = vunpack.c.h.b16 %v4307
    %v5743 = vunpack.c.l.b16 %v4308
    %v5744 = vunpack.c.h.b16 %v4308
    %v5745 = vunpack.c.l.b16 %v4309
    %v5746 = vunpack.c.h.b16 %v4309
    %v5747 = vunpack.c.l.b16 %v4310
    %v5748 = vunpack.c.h.b16 %v4310
    %v5749 = vunpack.c.l.b16 %v4311
    %v5750 = vunpack.c.h.b16 %v4311
    %v5751 = vunpack.c.l.b16 %v4312
    %v5752 = vunpack.c.h.b16 %v4312
    %v5753 = vunpack.c.l.b16 %v4313
    %v5754 = vunpack.c.h.b16 %v4313
    %v5755 = vunpack.c.l.b16 %v4314
    %v5756 = vunpack.c.h.b16 %v4314
    %v5757 = vunpack.c.l.b16 %v4315
    %v5758 = vunpack.c.h.b16 %v4315
    %v5759 = vunpack.c.l.b16 %v4316
    %v5760 = vunpack.c.h.b16 %v4316
    %v5761 = vunpack.c.l.b16 %v4317
    %v5762 = vunpack.c.h.b16 %v4317
    %v5763 = vunpack.c.l.b16 %v4318
    %v5764 = vunpack.c.h.b16 %v4318
    %v5765 = vunpack.c.l.b16 %v4319
    %v5766 = vunpack.c.h.b16 %v4319
    %v5767 = vunpack.c.l.b16 %v4320
    %v5768 = vunpack.c.h.b16 %v4320
    %v5769 = vunpack.c.l.b16 %v4321
    %v5770 = vunpack.c.h.b16 %v4321
    %v5771 = vunpack.c.l.b16 %v4322
    %v5772 = vunpack.c.h.b16 %v4322
    %v5773 = vunpack.c.l.b16 %v4323
    %v5774 = vunpack.c.h.b16 %v4323
    %v5775 = vunpack.c.l.b16 %v4324
    %v5776 = vunpack.c.h.b16 %v4324
    %v5777 = vunpack.c.l.b16 %v4325
    %v5778 = vunpack.c.h.b16 %v4325
    %v5779 = vunpack.c.l.b16 %v4326
    %v5780 = vunpack.c.h.b16 %v4326
    %v5781 = vunpack.c.l.b16 %v4327
    %v5782 = vunpack.c.h.b16 %v4327
    %v5783 = vunpack.c.l.b16 %v4328
    %v5784 = vunpack.c.h.b16 %v4328
    %v5785 = vunpack.c.l.b16 %v4329
    %v5786 = vunpack.c.h.b16 %v4329
    %v5787 = vunpack.c.l.b16 %v4330
    %v5788 = vunpack.c.h.b16 %v4330
    %v5789 = vunpack.c.l.b16 %v4331
    %v5790 = vunpack.c.h.b16 %v4331
    %v5791 = vunpack.c.l.b16 %v4332
    %v5792 = vunpack.c.h.b16 %v4332
    %v5793 = vunpack.c.l.b16 %v4333
    %v5794 = vunpack.c.h.b16 %v4333
    %v5795 = vunpack.c.l.b16 %v4334
    %v5796 = vunpack.c.h.b16 %v4334
    %v5797 = vunpack.c.l.b16 %v4335
    %v5798 = vunpack.c.h.b16 %v4335
    %v5799 = vunpack.c.l.b16 %v4336
    %v5800 = vunpack.c.h.b16 %v4336
    %v5801 = vunpack.c.l.b16 %v4337
    %v5802 = vunpack.c.h.b16 %v4337
    %v5803 = vunpack.c.l.b16 %v4338
    %v5804 = vunpack.c.h.b16 %v4338
    %v5805 = vunpack.c.l.b16 %v4339
    %v5806 = vunpack.c.h.b16 %v4339
    %v5807 = vunpack.c.l.b16 %v4340
    %v5808 = vunpack.c.h.b16 %v4340
    %v5809 = vunpack.c.l.b16 %v4341
    %v5810 = vunpack.c.h.b16 %v4341
    %v5811 = vunpack.c.l.b16 %v4342
    %v5812 = vunpack.c.h.b16 %v4342
    %v5813 = vunpack.c.l.b16 %v4343
    %v5814 = vunpack.c.h.b16 %v4343
    %v5815 = vunpack.c.l.b16 %v4344
    %v5816 = vunpack.c.h.b16 %v4344
    %v5817 = vunpack.c.l.b16 %v4345
    %v5818 = vunpack.c.h.b16 %v4345
    %v5819 = vunpack.c.l.b16 %v4346
    %v5820 = vunpack.c.h.b16 %v4346
    %v5821 = vunpack.c.l.b16 %v4347
    %v5822 = vunpack.c.h.b16 %v4347
    %v5823 = vunpack.c.l.b16 %v4348
    %v5824 = vunpack.c.h.b16 %v4348
    %v5825 = vunpack.c.l.b16 %v4349
    %v5826 = vunpack.c.h.b16 %v4349
    %v5827 = vunpack.c.l.b16 %v4350
    %v5828 = vunpack.c.h.b16 %v4350
    %v5829 = vunpack.c.l.b16 %v4351
    %v5830 = vunpack.c.h.b16 %v4351
    %v5831 = vunpack.c.l.b16 %v4352
    %v5832 = vunpack.c.h.b16 %v4352
    %v5833 = vunpack.c.l.b16 %v4353
    %v5834 = vunpack.c.h.b16 %v4353
    %v5835 = vunpack.c.l.b16 %v4354
    %v5836 = vunpack.c.h.b16 %v4354
    %v5837 = vunpack.c.l.b16 %v4355
    %v5838 = vunpack.c.h.b16 %v4355
    %v5839 = vunpack.c.l.b16 %v4356
    %v5840 = vunpack.c.h.b16 %v4356
    %v5841 = vunpack.c.l.b16 %v4357
    %v5842 = vunpack.c.h.b16 %v4357
    %v5843 = vunpack.c.l.b16 %v4358
    %v5844 = vunpack.c.h.b16 %v4358
    %v5845 = vunpack.c.l.b16 %v4359
    %v5846 = vunpack.c.h.b16 %v4359
    %v5847 = vunpack.c.l.b16 %v4360
    %v5848 = vunpack.c.h.b16 %v4360
    %v5849 = vunpack.c.l.b16 %v4361
    %v5850 = vunpack.c.h.b16 %v4361
    %v5851 = vunpack.c.l.b16 %v4362
    %v5852 = vunpack.c.h.b16 %v4362
    %v5853 = vunpack.c.l.b16 %v4363
    %v5854 = vunpack.c.h.b16 %v4363
    %v5855 = vunpack.c.l.b16 %v4364
    %v5856 = vunpack.c.h.b16 %v4364
    %v5857 = vunpack.c.l.b16 %v4365
    %v5858 = vunpack.c.h.b16 %v4365
    %v5859 = vunpack.c.l.b16 %v4366
    %v5860 = vunpack.c.h.b16 %v4366
    %v5861 = vunpack.c.l.b16 %v4367
    %v5862 = vunpack.c.h.b16 %v4367
    %v5863 = vunpack.c.l.b16 %v4368
    %v5864 = vunpack.c.h.b16 %v4368
    %v5865 = vunpack.c.l.b16 %v4369
    %v5866 = vunpack.c.h.b16 %v4369
    %v5867 = vunpack.c.l.b16 %v4370
    %v5868 = vunpack.c.h.b16 %v4370
    %v5869 = vunpack.c.l.b16 %v4371
    %v5870 = vunpack.c.h.b16 %v4371
    %v5871 = vunpack.c.l.b16 %v4372
    %v5872 = vunpack.c.h.b16 %v4372
    %v5873 = vunpack.c.l.b16 %v4373
    %v5874 = vunpack.c.h.b16 %v4373
    %v5875 = vunpack.c.l.b16 %v4374
    %v5876 = vunpack.c.h.b16 %v4374
    %v5877 = vunpack.c.l.b16 %v4375
    %v5878 = vunpack.c.h.b16 %v4375
    %v5879 = vunpack.c.l.b16 %v4376
    %v5880 = vunpack.c.h.b16 %v4376
    %v5881 = vunpack.c.l.b16 %v4377
    %v5882 = vunpack.c.h.b16 %v4377
    %v5883 = vunpack.c.l.b16 %v4378
    %v5884 = vunpack.c.h.b16 %v4378
    %v5885 = vunpack.c.l.b16 %v4379
    %v5886 = vunpack.c.h.b16 %v4379
    %v5887 = vunpack.c.l.b16 %v4380
    %v5888 = vunpack.c.h.b16 %v4380
    %v5889 = vunpack.c.l.b16 %v4381
    %v5890 = vunpack.c.h.b16 %v4381
    %v5891 = vunpack.c.l.b16 %v4382
    %v5892 = vunpack.c.h.b16 %v4382
    %v5893 = vunpack.c.l.b16 %v4383
    %v5894 = vunpack.c.h.b16 %v4383
    %v5895 = vunpack.c.l.b16 %v4384
    %v5896 = vunpack.c.h.b16 %v4384
    %v5897 = vunpack.c.l.b16 %v4385
    %v5898 = vunpack.c.h.b16 %v4385
    %v5899 = vunpack.c.l.b16 %v4386
    %v5900 = vunpack.c.h.b16 %v4386
    %v5901 = vunpack.c.l.b16 %v4387
    %v5902 = vunpack.c.h.b16 %v4387
    %v5903 = vunpack.c.l.b16 %v4388
    %v5904 = vunpack.c.h.b16 %v4388
    %v5905 = vunpack.c.l.b16 %v4389
    %v5906 = vunpack.c.h.b16 %v4389
    %v5907 = vunpack.c.l.b16 %v4390
    %v5908 = vunpack.c.h.b16 %v4390
    %v5909 = vunpack.c.l.b16 %v4391
    %v5910 = vunpack.c.h.b16 %v4391
    %v5911 = vpack.c.b16 %v5629, %v5627
    %v5912 = vpack.c.b16 %v5630, %v5628
    %v5913 = vpack.c.b16 %v5633, %v5631
    %v5914 = vpack.c.b16 %v5634, %v5632
    %v5915 = vpack.c.b16 %v5637, %v5635
    %v5916 = vpack.c.b16 %v5638, %v5636
    %v5917 = vpack.c.b16 %v5641, %v5639
    %v5918 = vpack.c.b16 %v5642, %v5640
    %v5919 = vpack.c.b16 %v5645, %v5643
    %v5920 = vpack.c.b16 %v5646, %v5644
    %v5921 = vpack.c.b16 %v5649, %v5647
    %v5922 = vpack.c.b16 %v5650, %v5648
    %v5923 = vpack.c.b16 %v5653, %v5651
    %v5924 = vpack.c.b16 %v5654, %v5652
    %v5925 = vpack.c.b16 %v5657, %v5655
    %v5926 = vpack.c.b16 %v5658, %v5656
    %v5927 = vpack.c.b16 %v5661, %v5659
    %v5928 = vpack.c.b16 %v5662, %v5660
    %v5929 = vpack.c.b16 %v5665, %v5663
    %v5930 = vpack.c.b16 %v5666, %v5664
    %v5931 = vpack.c.b16 %v5669, %v5667
    %v5932 = vpack.c.b16 %v5670, %v5668
    %v5933 = vpack.c.b16 %v5673, %v5671
    %v5934 = vpack.c.b16 %v5674, %v5672
    %v5935 = vpack.c.b16 %v5677, %v5675
    %v5936 = vpack.c.b16 %v5678, %v5676
    %v5937 = vpack.c.b16 %v5681, %v5679
    %v5938 = vpack.c.b16 %v5682, %v5680
    %v5939 = vpack.c.b16 %v5685, %v5683
    %v5940 = vpack.c.b16 %v5686, %v5684
    %v5941 = vpack.c.b16 %v5689, %v5687
    %v5942 = vpack.c.b16 %v5690, %v5688
    %v5943 = vpack.c.b16 %v5693, %v5691
    %v5944 = vpack.c.b16 %v5694, %v5692
    %v5945 = vpack.c.b16 %v5697, %v5695
    %v5946 = vpack.c.b16 %v5698, %v5696
    %v5947 = vpack.c.b16 %v5701, %v5699
    %v5948 = vpack.c.b16 %v5702, %v5700
    %v5949 = vpack.c.b16 %v5705, %v5703
    %v5950 = vpack.c.b16 %v5706, %v5704
    %v5951 = vpack.c.b16 %v5709, %v5707
    %v5952 = vpack.c.b16 %v5710, %v5708
    %v5953 = vpack.c.b16 %v5713, %v5711
    %v5954 = vpack.c.b16 %v5714, %v5712
    %v5955 = vpack.c.b16 %v5717, %v5715
    %v5956 = vpack.c.b16 %v5718, %v5716
    %v5957 = vpack.c.b16 %v5721, %v5719
    %v5958 = vpack.c.b16 %v5722, %v5720
    %v5959 = vpack.c.b16 %v5725, %v5723
    %v5960 = vpack.c.b16 %v5726, %v5724
    %v5961 = vpack.c.b16 %v5729, %v5727
    %v5962 = vpack.c.b16 %v5730, %v5728
    %v5963 = vpack.c.b16 %v5733, %v5731
    %v5964 = vpack.c.b16 %v5734, %v5732
    %v5965 = vpack.c.b16 %v5737, %v5735
    %v5966 = vpack.c.b16 %v5738, %v5736
    %v5967 = vpack.c.b16 %v5741, %v5739
    %v5968 = vpack.c.b16 %v5742, %v5740
    %v5969 = vpack.c.b16 %v5745, %v5743
    %v5970 = vpack.c.b16 %v5746, %v5744
    %v5971 = vpack.c.b16 %v5749, %v5747
    %v5972 = vpack.c.b16 %v5750, %v5748
    %v5973 = vpack.c.b16 %v5753, %v5751
    %v5974 = vpack.c.b16 %v5754, %v5752
    %v5975 = vpack.c.b16 %v5757, %v5755
    %v5976 = vpack.c.b16 %v5758, %v5756
    %v5977 = vpack.c.b16 %v5761, %v5759
    %v5978 = vpack.c.b16 %v5762, %v5760
    %v5979 = vpack.c.b16 %v5765, %v5763
    %v5980 = vpack.c.b16 %v5766, %v5764
    %v5981 = vpack.c.b16 %v5769, %v5767
    %v5982 = vpack.c.b16 %v5770, %v5768
    %v5983 = vpack.c.b16 %v5773, %v5771
    %v5984 = vpack.c.b16 %v5774, %v5772
    %v5985 = vpack.c.b16 %v5777, %v5775
    %v5986 = vpack.c.b16 %v5778, %v5776
    %v5987 = vpack.c.b16 %v5781, %v5779
    %v5988 = vpack.c.b16 %v5782, %v5780
    %v5989 = vpack.c.b16 %v5785, %v5783
    %v5990 = vpack.c.b16 %v5786, %v5784
    %v5991 = vpack.c.b16 %v5789, %v5787
    %v5992 = vpack.c.b16 %v5790, %v5788
    %v5993 = vpack.c.b16 %v5793, %v5791
    %v5994 = vpack.c.b16 %v5794, %v5792
    %v5995 = vpack.c.b16 %v5797, %v5795
    %v5996 = vpack.c.b16 %v5798, %v5796
    %v5997 = vpack.c.b16 %v5801, %v5799
    %v5998 = vpack.c.b16 %v5802, %v5800
    %v5999 = vpack.c.b16 %v5805, %v5803
    %v6000 = vpack.c.b16 %v5806, %v5804
    %v6001 = vpack.c.b16 %v5809, %v5807
    %v6002 = vpack.c.b16 %v5810, %v5808
    %v6003 = vpack.c.b16 %v5813, %v5811
    %v6004 = vpack.c.b16 %v5814, %v5812
    %v6005 = vpack.c.b16 %v5817, %v5815
    %v6006 = vpack.c.b16 %v5818, %v5816
    %v6007 = vpack.c.b16 %v5821, %v5819
    %v6008 = vpack.c.b16 %v5822, %v5820
    %v6009 = vpack.c.b16 %v5825, %v5823
    %v6010 = vpack.c.b16 %v5826, %v5824
    %v6011 = vpack.c.b16 %v5829, %v5827
    %v6012 = vpack.c.b16 %v5830, %v5828
    %v6013 = vpack.c.b16 %v5833, %v5831
    %v6014 = vpack.c.b16 %v5834, %v5832
    %v6015 = vpack.c.b16 %v5837, %v5835
    %v6016 = vpack.c.b16 %v5838, %v5836
    %v6017 = vpack.c.b16 %v5841, %v5839
    %v6018 = vpack.c.b16 %v5842, %v5840
    %v6019 = vpack.c.b16 %v5845, %v5843
    %v6020 = vpack.c.b16 %v5846, %v5844
    %v6021 = vpack.c.b16 %v5849, %v5847
    %v6022 = vpack.c.b16 %v5850, %v5848
    %v6023 = vpack.c.b16 %v5853, %v5851
    %v6024 = vpack.c.b16 %v5854, %v5852
    %v6025 = vpack.c.b16 %v5857, %v5855
    %v6026 = vpack.c.b16 %v5858, %v5856
    %v6027 = vpack.c.b16 %v5861, %v5859
    %v6028 = vpack.c.b16 %v5862, %v5860
    %v6029 = vpack.c.b16 %v5865, %v5863
    %v6030 = vpack.c.b16 %v5866, %v5864
    %v6031 = vpack.c.b16 %v5869, %v5867
    %v6032 = vpack.c.b16 %v5870, %v5868
    %v6033 = vpack.c.b16 %v5873, %v5871
    %v6034 = vpack.c.b16 %v5874, %v5872
    %v6035 = vpack.c.b16 %v5877, %v5875
    %v6036 = vpack.c.b16 %v5878, %v5876
    %v6037 = vpack.c.b16 %v5881, %v5879
    %v6038 = vpack.c.b16 %v5882, %v5880
    %v6039 = vpack.c.b16 %v5885, %v5883
    %v6040 = vpack.c.b16 %v5886, %v5884
    %v6041 = vpack.c.b16 %v5889, %v5887
    %v6042 = vpack.c.b16 %v5890, %v5888
    %v6043 = vpack.c.b16 %v5893, %v5891
    %v6044 = vpack.c.b16 %v5894, %v5892
    %v6045 = vpack.c.b16 %v5897, %v5895
    %v6046 = vpack.c.b16 %v5898, %v5896
    %v6047 = vpack.c.b16 %v5901, %v5899
    %v6048 = vpack.c.b16 %v5902, %v5900
    %v6049 = vpack.c.b16 %v5905, %v5903
    %v6050 = vpack.c.b16 %v5906, %v5904
    %v6051 = vpack.c.b16 %v5909, %v5907
    %v6052 = vpack.c.b16 %v5910, %v5908
    %v6194 = vsel %vm870, %v1371, 0
    %v6197 = vsel %vm874, %v6051, 0
    %v6200 = vsel %vm874, %v6052, 0
    %6202 = vmatpush.bf16.msra.mxu0 %v5925
    %6203 = vmatpush.bf16.msra.mxu0 %v5923
    %6204 = vmatpush.bf16.msra.mxu0 %v5921
    %6205 = vmatpush.bf16.msra.mxu0 %v5919
    %6206 = vmatpush.bf16.msra.mxu0 %v5917
    %6207 = vmatpush.bf16.msra.mxu0 %v5915
    %6208 = vmatpush.bf16.msra.mxu0 %v5913
    %6209 = vmatpush.bf16.msra.mxu0 %v5911
    %6210 = vmatmul.bf16.gmra.mxu0 %v1363
    %v6211 = vpop.f32.mrf.mxu0
    %v6212 = vadd.f32 %v5365, %v6211
    %v6213 = vpop.f32.mrf.mxu0
    %6214 = vdwg.mxu0
    %6215 = vmatpush.bf16.msra.mxu0 %v5941
    %6216 = vmatpush.bf16.msra.mxu0 %v5939
    %6217 = vmatpush.bf16.msra.mxu0 %v5937
    %6218 = vmatpush.bf16.msra.mxu0 %v5935
    %6219 = vmatpush.bf16.msra.mxu0 %v5933
    %6220 = vmatpush.bf16.msra.mxu0 %v5931
    %6221 = vmatpush.bf16.msra.mxu0 %v5929
    %6222 = vmatpush.bf16.msra.mxu0 %v5927
    %6223 = vmatmul.bf16.gmra.mxu0 %v1364
    %v6224 = vpop.f32.mrf.mxu0
    %v6225 = vadd.f32 %v6212, %v6224
    %v6226 = vpop.f32.mrf.mxu0
    %6227 = vdwg.mxu0
    %6228 = vmatpush.bf16.msra.mxu0 %v5957
    %6229 = vmatpush.bf16.msra.mxu0 %v5955
    %6230 = vmatpush.bf16.msra.mxu0 %v5953
    %6231 = vmatpush.bf16.msra.mxu0 %v5951
    %6232 = vmatpush.bf16.msra.mxu0 %v5949
    %6233 = vmatpush.bf16.msra.mxu0 %v5947
    %6234 = vmatpush.bf16.msra.mxu0 %v5945
    %6235 = vmatpush.bf16.msra.mxu0 %v5943
    %6236 = vmatmul.bf16.gmra.mxu0 %v1365
    %v6237 = vpop.f32.mrf.mxu0
    %v6238 = vadd.f32 %v6225, %v6237
    %v6239 = vpop.f32.mrf.mxu0
    %6240 = vdwg.mxu0
    %6241 = vmatpush.bf16.msra.mxu0 %v5973
    %6242 = vmatpush.bf16.msra.mxu0 %v5971
    %6243 = vmatpush.bf16.msra.mxu0 %v5969
    %6244 = vmatpush.bf16.msra.mxu0 %v5967
    %6245 = vmatpush.bf16.msra.mxu0 %v5965
    %6246 = vmatpush.bf16.msra.mxu0 %v5963
    %6247 = vmatpush.bf16.msra.mxu0 %v5961
    %6248 = vmatpush.bf16.msra.mxu0 %v5959
    %6249 = vmatmul.bf16.gmra.mxu0 %v1366
    %v6250 = vpop.f32.mrf.mxu0
    %v6251 = vadd.f32 %v6238, %v6250
    %v6252 = vpop.f32.mrf.mxu0
    %6253 = vdwg.mxu0
    %6254 = vmatpush.bf16.msra.mxu0 %v5989
    %6255 = vmatpush.bf16.msra.mxu0 %v5987
    %6256 = vmatpush.bf16.msra.mxu0 %v5985
    %6257 = vmatpush.bf16.msra.mxu0 %v5983
    %6258 = vmatpush.bf16.msra.mxu0 %v5981
    %6259 = vmatpush.bf16.msra.mxu0 %v5979
    %6260 = vmatpush.bf16.msra.mxu0 %v5977
    %6261 = vmatpush.bf16.msra.mxu0 %v5975
    %6262 = vmatmul.bf16.gmra.mxu0 %v1367
    %v6263 = vpop.f32.mrf.mxu0
    %v6264 = vadd.f32 %v6251, %v6263
    %v6265 = vpop.f32.mrf.mxu0
    %6266 = vdwg.mxu0
    %6267 = vmatpush.bf16.msra.mxu0 %v6005
    %6268 = vmatpush.bf16.msra.mxu0 %v6003
    %6269 = vmatpush.bf16.msra.mxu0 %v6001
    %6270 = vmatpush.bf16.msra.mxu0 %v5999
    %6271 = vmatpush.bf16.msra.mxu0 %v5997
    %6272 = vmatpush.bf16.msra.mxu0 %v5995
    %6273 = vmatpush.bf16.msra.mxu0 %v5993
    %6274 = vmatpush.bf16.msra.mxu0 %v5991
    %6275 = vmatmul.bf16.gmra.mxu0 %v1368
    %v6276 = vpop.f32.mrf.mxu0
    %v6277 = vadd.f32 %v6264, %v6276
    %v6278 = vpop.f32.mrf.mxu0
    %6279 = vdwg.mxu0
    %6280 = vmatpush.bf16.msra.mxu0 %v6021
    %6281 = vmatpush.bf16.msra.mxu0 %v6019
    %6282 = vmatpush.bf16.msra.mxu0 %v6017
    %6283 = vmatpush.bf16.msra.mxu0 %v6015
    %6284 = vmatpush.bf16.msra.mxu0 %v6013
    %6285 = vmatpush.bf16.msra.mxu0 %v6011
    %6286 = vmatpush.bf16.msra.mxu0 %v6009
    %6287 = vmatpush.bf16.msra.mxu0 %v6007
    %6288 = vmatmul.bf16.gmra.mxu0 %v1369
    %v6289 = vpop.f32.mrf.mxu0
    %v6290 = vadd.f32 %v6277, %v6289
    %v6291 = vpop.f32.mrf.mxu0
    %6292 = vdwg.mxu0
    %6293 = vmatpush.bf16.msra.mxu0 %v6037
    %6294 = vmatpush.bf16.msra.mxu0 %v6035
    %6295 = vmatpush.bf16.msra.mxu0 %v6033
    %6296 = vmatpush.bf16.msra.mxu0 %v6031
    %6297 = vmatpush.bf16.msra.mxu0 %v6029
    %6298 = vmatpush.bf16.msra.mxu0 %v6027
    %6299 = vmatpush.bf16.msra.mxu0 %v6025
    %6300 = vmatpush.bf16.msra.mxu0 %v6023
    %6301 = vmatmul.bf16.gmra.mxu0 %v1370
    %v6302 = vpop.f32.mrf.mxu0
    %v6303 = vadd.f32 %v6290, %v6302
    %v6304 = vpop.f32.mrf.mxu0
    %6305 = vdwg.mxu0
    %6306 = vmatpush.bf16.msra.mxu0 0
    %6307 = vmatpush.bf16.msra.mxu0 %v6197
    %6308 = vmatpush.bf16.msra.mxu0 %v6049
    %6309 = vmatpush.bf16.msra.mxu0 %v6047
    %6310 = vmatpush.bf16.msra.mxu0 %v6045
    %6311 = vmatpush.bf16.msra.mxu0 %v6043
    %6312 = vmatpush.bf16.msra.mxu0 %v6041
    %6313 = vmatpush.bf16.msra.mxu0 %v6039
    %6314 = vmatmul.bf16.gmra.mxu0 %v6194
    %v6315 = vpop.f32.mrf.mxu0
    %v6316 = vadd.f32 %v6303, %v6315
    %v6317 = vpop.f32.mrf.mxu0
    %6318 = vdwg.mxu0
    %6319 = vmatpush.bf16.msra.mxu0 %v5926
    %6320 = vmatpush.bf16.msra.mxu0 %v5924
    %6321 = vmatpush.bf16.msra.mxu0 %v5922
    %6322 = vmatpush.bf16.msra.mxu0 %v5920
    %6323 = vmatpush.bf16.msra.mxu0 %v5918
    %6324 = vmatpush.bf16.msra.mxu0 %v5916
    %6325 = vmatpush.bf16.msra.mxu0 %v5914
    %6326 = vmatpush.bf16.msra.mxu0 %v5912
    %6327 = vmatmul.bf16.gmra.mxu0 %v1363
    %v6328 = vpop.f32.mrf.mxu0
    %v6329 = vadd.f32 %v5482, %v6328
    %v6330 = vpop.f32.mrf.mxu0
    %6331 = vdwg.mxu0
    %6332 = vmatpush.bf16.msra.mxu0 %v5942
    %6333 = vmatpush.bf16.msra.mxu0 %v5940
    %6334 = vmatpush.bf16.msra.mxu0 %v5938
    %6335 = vmatpush.bf16.msra.mxu0 %v5936
    %6336 = vmatpush.bf16.msra.mxu0 %v5934
    %6337 = vmatpush.bf16.msra.mxu0 %v5932
    %6338 = vmatpush.bf16.msra.mxu0 %v5930
    %6339 = vmatpush.bf16.msra.mxu0 %v5928
    %6340 = vmatmul.bf16.gmra.mxu0 %v1364
    %v6341 = vpop.f32.mrf.mxu0
    %v6342 = vadd.f32 %v6329, %v6341
    %v6343 = vpop.f32.mrf.mxu0
    %6344 = vdwg.mxu0
    %6345 = vmatpush.bf16.msra.mxu0 %v5958
    %6346 = vmatpush.bf16.msra.mxu0 %v5956
    %6347 = vmatpush.bf16.msra.mxu0 %v5954
    %6348 = vmatpush.bf16.msra.mxu0 %v5952
    %6349 = vmatpush.bf16.msra.mxu0 %v5950
    %6350 = vmatpush.bf16.msra.mxu0 %v5948
    %6351 = vmatpush.bf16.msra.mxu0 %v5946
    %6352 = vmatpush.bf16.msra.mxu0 %v5944
    %6353 = vmatmul.bf16.gmra.mxu0 %v1365
    %v6354 = vpop.f32.mrf.mxu0
    %v6355 = vadd.f32 %v6342, %v6354
    %v6356 = vpop.f32.mrf.mxu0
    %6357 = vdwg.mxu0
    %6358 = vmatpush.bf16.msra.mxu0 %v5974
    %6359 = vmatpush.bf16.msra.mxu0 %v5972
    %6360 = vmatpush.bf16.msra.mxu0 %v5970
    %6361 = vmatpush.bf16.msra.mxu0 %v5968
    %6362 = vmatpush.bf16.msra.mxu0 %v5966
    %6363 = vmatpush.bf16.msra.mxu0 %v5964
    %6364 = vmatpush.bf16.msra.mxu0 %v5962
    %6365 = vmatpush.bf16.msra.mxu0 %v5960
    %6366 = vmatmul.bf16.gmra.mxu0 %v1366
    %v6367 = vpop.f32.mrf.mxu0
    %v6368 = vadd.f32 %v6355, %v6367
    %v6369 = vpop.f32.mrf.mxu0
    %6370 = vdwg.mxu0
    %6371 = vmatpush.bf16.msra.mxu0 %v5990
    %6372 = vmatpush.bf16.msra.mxu0 %v5988
    %6373 = vmatpush.bf16.msra.mxu0 %v5986
    %6374 = vmatpush.bf16.msra.mxu0 %v5984
    %6375 = vmatpush.bf16.msra.mxu0 %v5982
    %6376 = vmatpush.bf16.msra.mxu0 %v5980
    %6377 = vmatpush.bf16.msra.mxu0 %v5978
    %6378 = vmatpush.bf16.msra.mxu0 %v5976
    %6379 = vmatmul.bf16.gmra.mxu0 %v1367
    %v6380 = vpop.f32.mrf.mxu0
    %v6381 = vadd.f32 %v6368, %v6380
    %v6382 = vpop.f32.mrf.mxu0
    %6383 = vdwg.mxu0
    %6384 = vmatpush.bf16.msra.mxu0 %v6006
    %6385 = vmatpush.bf16.msra.mxu0 %v6004
    %6386 = vmatpush.bf16.msra.mxu0 %v6002
    %6387 = vmatpush.bf16.msra.mxu0 %v6000
    %6388 = vmatpush.bf16.msra.mxu0 %v5998
    %6389 = vmatpush.bf16.msra.mxu0 %v5996
    %6390 = vmatpush.bf16.msra.mxu0 %v5994
    %6391 = vmatpush.bf16.msra.mxu0 %v5992
    %6392 = vmatmul.bf16.gmra.mxu0 %v1368
    %v6393 = vpop.f32.mrf.mxu0
    %v6394 = vadd.f32 %v6381, %v6393
    %v6395 = vpop.f32.mrf.mxu0
    %6396 = vdwg.mxu0
    %6397 = vmatpush.bf16.msra.mxu0 %v6022
    %6398 = vmatpush.bf16.msra.mxu0 %v6020
    %6399 = vmatpush.bf16.msra.mxu0 %v6018
    %6400 = vmatpush.bf16.msra.mxu0 %v6016
    %6401 = vmatpush.bf16.msra.mxu0 %v6014
    %6402 = vmatpush.bf16.msra.mxu0 %v6012
    %6403 = vmatpush.bf16.msra.mxu0 %v6010
    %6404 = vmatpush.bf16.msra.mxu0 %v6008
    %6405 = vmatmul.bf16.gmra.mxu0 %v1369
    %v6406 = vpop.f32.mrf.mxu0
    %v6407 = vadd.f32 %v6394, %v6406
    %v6408 = vpop.f32.mrf.mxu0
    %6409 = vdwg.mxu0
    %6410 = vmatpush.bf16.msra.mxu0 %v6038
    %6411 = vmatpush.bf16.msra.mxu0 %v6036
    %6412 = vmatpush.bf16.msra.mxu0 %v6034
    %6413 = vmatpush.bf16.msra.mxu0 %v6032
    %6414 = vmatpush.bf16.msra.mxu0 %v6030
    %6415 = vmatpush.bf16.msra.mxu0 %v6028
    %6416 = vmatpush.bf16.msra.mxu0 %v6026
    %6417 = vmatpush.bf16.msra.mxu0 %v6024
    %6418 = vmatmul.bf16.gmra.mxu0 %v1370
    %v6419 = vpop.f32.mrf.mxu0
    %v6420 = vadd.f32 %v6407, %v6419
    %v6421 = vpop.f32.mrf.mxu0
    %6422 = vdwg.mxu0
    %6423 = vmatpush.bf16.msra.mxu0 0
    %6424 = vmatpush.bf16.msra.mxu0 %v6200
    %6425 = vmatpush.bf16.msra.mxu0 %v6050
    %6426 = vmatpush.bf16.msra.mxu0 %v6048
    %6427 = vmatpush.bf16.msra.mxu0 %v6046
    %6428 = vmatpush.bf16.msra.mxu0 %v6044
    %6429 = vmatpush.bf16.msra.mxu0 %v6042
    %6430 = vmatpush.bf16.msra.mxu0 %v6040
    %6431 = vmatmul.bf16.gmra.mxu0 %v6194
    %v6432 = vpop.f32.mrf.mxu0
    %v6433 = vadd.f32 %v6420, %v6432
    %v6434 = vpop.f32.mrf.mxu0
    %6435 = vdwg.mxu0
    %v6436 = vld [vmem:[#allocation19] sm:$0x3]
    %v6438 = vperm.slane %v6436, 0
    %v6439 = vperm.slane %v6436, 1
    %v6442 = vadd.f32 %v6316, %v6438
    %v6443 = vadd.f32 %v6433, %v6439
    %v6444 = vmax.f32 %v6442, 0.0
    %v6445 = vmax.f32 %v6443, 0.0
    %v6446 = vpack.c.bf16 %v4241, %v4227
    %v6447 = vpack.c.bf16 %v4243, %v4229
    %v6450 = vunpack.c.l.b16 %v6446
    %v6451 = vunpack.c.h.b16 %v6446
    %v6452 = vunpack.c.l.b16 %v6447
    %v6453 = vunpack.c.h.b16 %v6447
    %v6454 = vpack.c.b16 %v6452, %v6450
    %v6455 = vpack.c.b16 %v6453, %v6451
    %6458 = vmatpush.bf16.msra.mxu0 0
    %6459 = vmatpush.bf16.msra.mxu0 0
    %6460 = vmatpush.bf16.msra.mxu0 0
    %6461 = vmatpush.bf16.msra.mxu0 0
    %6462 = vmatpush.bf16.msra.mxu0 0
    %6463 = vmatpush.bf16.msra.mxu0 0
    %6464 = vmatpush.bf16.msra.mxu0 0
    %6465 = vmatpush.bf16.msra.mxu0 %v3766
    %6466 = vmatmul.bf16.gmra.mxu0 %v1235
    %v6467 = vpop.f32.mrf.mxu0
    %v6468 = vadd.f32 0.0, %v6467
    %v6469 = vpop.f32.mrf.mxu0
    %v6470 = vadd.f32 0.0, %v6469
    %6471 = vdwg.mxu0
    %6472 = vmatpush.bf16.msra.mxu0 0
    %6473 = vmatpush.bf16.msra.mxu0 0
    %6474 = vmatpush.bf16.msra.mxu0 0
    %6475 = vmatpush.bf16.msra.mxu0 0
    %6476 = vmatpush.bf16.msra.mxu0 0
    %6477 = vmatpush.bf16.msra.mxu0 0
    %6478 = vmatpush.bf16.msra.mxu0 0
    %6479 = vmatpush.bf16.msra.mxu0 %v3767
    %6480 = vmatmul.bf16.gmra.mxu0 %v1235
    %v6481 = vpop.f32.mrf.mxu0
    %v6482 = vadd.f32 0.0, %v6481
    %v6483 = vpop.f32.mrf.mxu0
    %v6484 = vadd.f32 0.0, %v6483
    %6485 = vdwg.mxu0
    %6486 = vmatpush.bf16.msra.mxu0 0
    %6487 = vmatpush.bf16.msra.mxu0 0
    %6488 = vmatpush.bf16.msra.mxu0 0
    %6489 = vmatpush.bf16.msra.mxu0 0
    %6490 = vmatpush.bf16.msra.mxu0 0
    %6491 = vmatpush.bf16.msra.mxu0 0
    %6492 = vmatpush.bf16.msra.mxu0 0
    %6493 = vmatpush.bf16.msra.mxu0 %v3768
    %6494 = vmatmul.bf16.gmra.mxu0 %v1235
    %v6495 = vpop.f32.mrf.mxu0
    %v6496 = vadd.f32 0.0, %v6495
    %v6497 = vpop.f32.mrf.mxu0
    %v6498 = vadd.f32 0.0, %v6497
    %6499 = vdwg.mxu0
    %6500 = vmatpush.bf16.msra.mxu0 0
    %6501 = vmatpush.bf16.msra.mxu0 0
    %6502 = vmatpush.bf16.msra.mxu0 0
    %6503 = vmatpush.bf16.msra.mxu0 0
    %6504 = vmatpush.bf16.msra.mxu0 0
    %6505 = vmatpush.bf16.msra.mxu0 0
    %6506 = vmatpush.bf16.msra.mxu0 0
    %6507 = vmatpush.bf16.msra.mxu0 %v3769
    %6508 = vmatmul.bf16.gmra.mxu0 %v1235
    %v6509 = vpop.f32.mrf.mxu0
    %v6510 = vadd.f32 0.0, %v6509
    %v6511 = vpop.f32.mrf.mxu0
    %v6512 = vadd.f32 0.0, %v6511
    %6513 = vdwg.mxu0
    %6514 = vmatpush.bf16.msra.mxu0 0
    %6515 = vmatpush.bf16.msra.mxu0 0
    %6516 = vmatpush.bf16.msra.mxu0 0
    %6517 = vmatpush.bf16.msra.mxu0 0
    %6518 = vmatpush.bf16.msra.mxu0 0
    %6519 = vmatpush.bf16.msra.mxu0 0
    %6520 = vmatpush.bf16.msra.mxu0 0
    %6521 = vmatpush.bf16.msra.mxu0 %v6454
    %6522 = vmatmul.bf16.gmra.mxu0 %v1235
    %v6523 = vpop.f32.mrf.mxu0
    %v6524 = vadd.f32 0.0, %v6523
    %v6525 = vpop.f32.mrf.mxu0
    %v6526 = vadd.f32 0.0, %v6525
    %6527 = vdwg.mxu0
    %6528 = vmatpush.bf16.msra.mxu0 0
    %6529 = vmatpush.bf16.msra.mxu0 0
    %6530 = vmatpush.bf16.msra.mxu0 0
    %6531 = vmatpush.bf16.msra.mxu0 0
    %6532 = vmatpush.bf16.msra.mxu0 0
    %6533 = vmatpush.bf16.msra.mxu0 0
    %6534 = vmatpush.bf16.msra.mxu0 0
    %6535 = vmatpush.bf16.msra.mxu0 %v6455
    %6536 = vmatmul.bf16.gmra.mxu0 %v1235
    %v6537 = vpop.f32.mrf.mxu0
    %v6538 = vadd.f32 0.0, %v6537
    %v6539 = vpop.f32.mrf.mxu0
    %v6540 = vadd.f32 0.0, %v6539
    %6541 = vdwg.mxu0
    %v6542 = vpack.c.bf16 %v6468, %v6468
    %v6543 = vpack.c.bf16 %v6482, %v6482
    %v6544 = vpack.c.bf16 %v6496, %v6496
    %v6545 = vpack.c.bf16 %v6510, %v6510
    %v6546 = vpack.c.bf16 %v6524, %v6524
    %v6547 = vpack.c.bf16 %v6538, %v6538
    %v6548 = vpack.c.bf16 %v6470, %v6470
    %v6549 = vpack.c.bf16 %v6484, %v6484
    %v6550 = vpack.c.bf16 %v6498, %v6498
    %v6551 = vpack.c.bf16 %v6512, %v6512
    %v6552 = vpack.c.bf16 %v6526, %v6526
    %v6553 = vpack.c.bf16 %v6540, %v6540
    %s6554 = smul.u32 4, 192
    %s6555 = smul.u32 %s6554, 2
    %s6556 = sshll.u32 %s6555, 4
    %6557 = dma.done %s211, %s6556
    %v6558 = vld [vmem:[#allocation6] sm:$0xff]
    %v6559 = vld [vmem:[#allocation6 + $0x8] sm:$0xff]
    %v6560 = vld [vmem:[#allocation6 + $0x10] sm:$0xff]
    %v6561 = vld [vmem:[#allocation6 + $0x18] sm:$0xff]
    %v6562 = vld [vmem:[#allocation6 + $0x20] sm:$0xff]
    %v6563 = vld [vmem:[#allocation6 + $0x28] sm:$0xff]
    %v6564 = vld [vmem:[#allocation6 + $0x30] sm:$0xff]
    %v6565 = vld [vmem:[#allocation6 + $0x38] sm:$0xff]
    %v6566 = vld [vmem:[#allocation6 + $0x40] sm:$0xff]
    %v6567 = vld [vmem:[#allocation6 + $0x48] sm:$0xff]
    %v6568 = vld [vmem:[#allocation6 + $0x50] sm:$0xff]
    %v6569 = vld [vmem:[#allocation6 + $0x58] sm:$0xff]
    %v6570 = vld [vmem:[#allocation6 + $0x60] sm:$0xff]
    %v6571 = vld [vmem:[#allocation6 + $0x68] sm:$0xff]
    %v6572 = vld [vmem:[#allocation6 + $0x70] sm:$0xff]
    %v6573 = vld [vmem:[#allocation6 + $0x78] sm:$0xff]
    %v6574 = vld [vmem:[#allocation6 + $0x80] sm:$0xff]
    %v6575 = vld [vmem:[#allocation6 + $0x88] sm:$0xff]
    %v6576 = vld [vmem:[#allocation6 + $0x90] sm:$0xff]
    %v6577 = vld [vmem:[#allocation6 + $0x98] sm:$0xff]
    %v6578 = vld [vmem:[#allocation6 + $0xa0] sm:$0xff]
    %v6579 = vld [vmem:[#allocation6 + $0xa8] sm:$0xff]
    %v6580 = vld [vmem:[#allocation6 + $0xb0] sm:$0xff]
    %v6581 = vld [vmem:[#allocation6 + $0xb8] sm:$0xff]
    %v6582 = vld [vmem:[#allocation6 + $0xc0] sm:$0xff]
    %v6583 = vld [vmem:[#allocation6 + $0xc8] sm:$0xff]
    %v6584 = vld [vmem:[#allocation6 + $0xd0] sm:$0xff]
    %v6585 = vld [vmem:[#allocation6 + $0xd8] sm:$0xff]
    %v6586 = vld [vmem:[#allocation6 + $0xe0] sm:$0xff]
    %v6587 = vld [vmem:[#allocation6 + $0xe8] sm:$0xff]
    %v6588 = vld [vmem:[#allocation6 + $0xf0] sm:$0xff]
    %v6589 = vld [vmem:[#allocation6 + $0xf8] sm:$0xff]
    %v6590 = vld [vmem:[#allocation6 + $0x100] sm:$0xff]
    %v6591 = vld [vmem:[#allocation6 + $0x108] sm:$0xff]
    %v6592 = vld [vmem:[#allocation6 + $0x110] sm:$0xff]
    %v6593 = vld [vmem:[#allocation6 + $0x118] sm:$0xff]
    %v6594 = vld [vmem:[#allocation6 + $0x120] sm:$0xff]
    %v6595 = vld [vmem:[#allocation6 + $0x128] sm:$0xff]
    %v6596 = vld [vmem:[#allocation6 + $0x130] sm:$0xff]
    %v6597 = vld [vmem:[#allocation6 + $0x138] sm:$0xff]
    %v6598 = vld [vmem:[#allocation6 + $0x140] sm:$0xff]
    %v6599 = vld [vmem:[#allocation6 + $0x148] sm:$0xff]
    %v6600 = vld [vmem:[#allocation6 + $0x150] sm:$0xff]
    %v6601 = vld [vmem:[#allocation6 + $0x158] sm:$0xff]
    %v6602 = vld [vmem:[#allocation6 + $0x160] sm:$0xff]
    %v6603 = vld [vmem:[#allocation6 + $0x168] sm:$0xff]
    %v6604 = vld [vmem:[#allocation6 + $0x170] sm:$0xff]
    %v6605 = vld [vmem:[#allocation6 + $0x178] sm:$0xff]
    %v6606 = vld [vmem:[#allocation6 + $0x180] sm:$0xff]
    %v6607 = vld [vmem:[#allocation6 + $0x188] sm:$0xff]
    %v6608 = vld [vmem:[#allocation6 + $0x190] sm:$0xff]
    %v6609 = vld [vmem:[#allocation6 + $0x198] sm:$0xff]
    %v6610 = vld [vmem:[#allocation6 + $0x1a0] sm:$0xff]
    %v6611 = vld [vmem:[#allocation6 + $0x1a8] sm:$0xff]
    %v6612 = vld [vmem:[#allocation6 + $0x1b0] sm:$0xff]
    %v6613 = vld [vmem:[#allocation6 + $0x1b8] sm:$0xff]
    %v6614 = vld [vmem:[#allocation6 + $0x1c0] sm:$0xff]
    %v6615 = vld [vmem:[#allocation6 + $0x1c8] sm:$0xff]
    %v6616 = vld [vmem:[#allocation6 + $0x1d0] sm:$0xff]
    %v6617 = vld [vmem:[#allocation6 + $0x1d8] sm:$0xff]
    %v6618 = vld [vmem:[#allocation6 + $0x1e0] sm:$0xff]
    %v6619 = vld [vmem:[#allocation6 + $0x1e8] sm:$0xff]
    %v6620 = vld [vmem:[#allocation6 + $0x1f0] sm:$0xff]
    %v6621 = vld [vmem:[#allocation6 + $0x1f8] sm:$0xff]
    %v6622 = vld [vmem:[#allocation6 + $0x200] sm:$0xff]
    %v6623 = vld [vmem:[#allocation6 + $0x208] sm:$0xff]
    %v6624 = vld [vmem:[#allocation6 + $0x210] sm:$0xff]
    %v6625 = vld [vmem:[#allocation6 + $0x218] sm:$0xff]
    %v6626 = vld [vmem:[#allocation6 + $0x220] sm:$0xff]
    %v6627 = vld [vmem:[#allocation6 + $0x228] sm:$0xff]
    %v6628 = vld [vmem:[#allocation6 + $0x230] sm:$0xff]
    %v6629 = vld [vmem:[#allocation6 + $0x238] sm:$0xff]
    %v6630 = vld [vmem:[#allocation6 + $0x240] sm:$0xff]
    %v6631 = vld [vmem:[#allocation6 + $0x248] sm:$0xff]
    %v6632 = vld [vmem:[#allocation6 + $0x250] sm:$0xff]
    %v6633 = vld [vmem:[#allocation6 + $0x258] sm:$0xff]
    %v6634 = vld [vmem:[#allocation6 + $0x260] sm:$0xff]
    %v6635 = vld [vmem:[#allocation6 + $0x268] sm:$0xff]
    %v6636 = vld [vmem:[#allocation6 + $0x270] sm:$0xff]
    %v6637 = vld [vmem:[#allocation6 + $0x278] sm:$0xff]
    %v6638 = vld [vmem:[#allocation6 + $0x280] sm:$0xff]
    %v6639 = vld [vmem:[#allocation6 + $0x288] sm:$0xff]
    %v6640 = vld [vmem:[#allocation6 + $0x290] sm:$0xff]
    %v6641 = vld [vmem:[#allocation6 + $0x298] sm:$0xff]
    %v6642 = vld [vmem:[#allocation6 + $0x2a0] sm:$0xff]
    %v6643 = vld [vmem:[#allocation6 + $0x2a8] sm:$0xff]
    %v6644 = vld [vmem:[#allocation6 + $0x2b0] sm:$0xff]
    %v6645 = vld [vmem:[#allocation6 + $0x2b8] sm:$0xff]
    %v6646 = vld [vmem:[#allocation6 + $0x2c0] sm:$0xff]
    %v6647 = vld [vmem:[#allocation6 + $0x2c8] sm:$0xff]
    %v6648 = vld [vmem:[#allocation6 + $0x2d0] sm:$0xff]
    %v6649 = vld [vmem:[#allocation6 + $0x2d8] sm:$0xff]
    %v6650 = vld [vmem:[#allocation6 + $0x2e0] sm:$0xff]
    %v6651 = vld [vmem:[#allocation6 + $0x2e8] sm:$0xff]
    %v6652 = vld [vmem:[#allocation6 + $0x2f0] sm:$0xff]
    %v6653 = vld [vmem:[#allocation6 + $0x2f8] sm:$0xff]
    %v6654 = vld [vmem:[#allocation6 + $0x300] sm:$0xff]
    %v6655 = vld [vmem:[#allocation6 + $0x308] sm:$0xff]
    %v6656 = vld [vmem:[#allocation6 + $0x310] sm:$0xff]
    %v6657 = vld [vmem:[#allocation6 + $0x318] sm:$0xff]
    %v6658 = vld [vmem:[#allocation6 + $0x320] sm:$0xff]
    %v6659 = vld [vmem:[#allocation6 + $0x328] sm:$0xff]
    %v6660 = vld [vmem:[#allocation6 + $0x330] sm:$0xff]
    %v6661 = vld [vmem:[#allocation6 + $0x338] sm:$0xff]
    %v6662 = vld [vmem:[#allocation6 + $0x340] sm:$0xff]
    %v6663 = vld [vmem:[#allocation6 + $0x348] sm:$0xff]
    %v6664 = vld [vmem:[#allocation6 + $0x350] sm:$0xff]
    %v6665 = vld [vmem:[#allocation6 + $0x358] sm:$0xff]
    %v6666 = vld [vmem:[#allocation6 + $0x360] sm:$0xff]
    %v6667 = vld [vmem:[#allocation6 + $0x368] sm:$0xff]
    %v6668 = vld [vmem:[#allocation6 + $0x370] sm:$0xff]
    %v6669 = vld [vmem:[#allocation6 + $0x378] sm:$0xff]
    %v6670 = vld [vmem:[#allocation6 + $0x380] sm:$0xff]
    %v6671 = vld [vmem:[#allocation6 + $0x388] sm:$0xff]
    %v6672 = vld [vmem:[#allocation6 + $0x390] sm:$0xff]
    %v6673 = vld [vmem:[#allocation6 + $0x398] sm:$0xff]
    %v6674 = vld [vmem:[#allocation6 + $0x3a0] sm:$0xff]
    %v6675 = vld [vmem:[#allocation6 + $0x3a8] sm:$0xff]
    %v6676 = vld [vmem:[#allocation6 + $0x3b0] sm:$0xff]
    %v6677 = vld [vmem:[#allocation6 + $0x3b8] sm:$0xff]
    %v6678 = vld [vmem:[#allocation6 + $0x3c0] sm:$0xff]
    %v6679 = vld [vmem:[#allocation6 + $0x3c8] sm:$0xff]
    %v6680 = vld [vmem:[#allocation6 + $0x3d0] sm:$0xff]
    %v6681 = vld [vmem:[#allocation6 + $0x3d8] sm:$0xff]
    %v6682 = vld [vmem:[#allocation6 + $0x3e0] sm:$0xff]
    %v6683 = vld [vmem:[#allocation6 + $0x3e8] sm:$0xff]
    %v6684 = vld [vmem:[#allocation6 + $0x3f0] sm:$0xff]
    %v6685 = vld [vmem:[#allocation6 + $0x3f8] sm:$0xff]
    %v6686 = vld [vmem:[#allocation6 + $0x400] sm:$0xff]
    %v6687 = vld [vmem:[#allocation6 + $0x408] sm:$0xff]
    %v6688 = vld [vmem:[#allocation6 + $0x410] sm:$0xff]
    %v6689 = vld [vmem:[#allocation6 + $0x418] sm:$0xff]
    %v6690 = vld [vmem:[#allocation6 + $0x420] sm:$0xff]
    %v6691 = vld [vmem:[#allocation6 + $0x428] sm:$0xff]
    %v6692 = vld [vmem:[#allocation6 + $0x430] sm:$0xff]
    %v6693 = vld [vmem:[#allocation6 + $0x438] sm:$0xff]
    %v6694 = vld [vmem:[#allocation6 + $0x440] sm:$0xff]
    %v6695 = vld [vmem:[#allocation6 + $0x448] sm:$0xff]
    %v6696 = vld [vmem:[#allocation6 + $0x450] sm:$0xff]
    %v6697 = vld [vmem:[#allocation6 + $0x458] sm:$0xff]
    %v6698 = vld [vmem:[#allocation6 + $0x460] sm:$0xff]
    %v6699 = vld [vmem:[#allocation6 + $0x468] sm:$0xff]
    %v6700 = vld [vmem:[#allocation6 + $0x470] sm:$0xff]
    %v6701 = vld [vmem:[#allocation6 + $0x478] sm:$0xff]
    %v6702 = vld [vmem:[#allocation6 + $0x480] sm:$0xff]
    %v6703 = vld [vmem:[#allocation6 + $0x488] sm:$0xff]
    %v6704 = vld [vmem:[#allocation6 + $0x490] sm:$0xff]
    %v6705 = vld [vmem:[#allocation6 + $0x498] sm:$0xff]
    %v6706 = vld [vmem:[#allocation6 + $0x4a0] sm:$0xff]
    %v6707 = vld [vmem:[#allocation6 + $0x4a8] sm:$0xff]
    %v6708 = vld [vmem:[#allocation6 + $0x4b0] sm:$0xff]
    %v6709 = vld [vmem:[#allocation6 + $0x4b8] sm:$0xff]
    %v6710 = vld [vmem:[#allocation6 + $0x4c0] sm:$0xff]
    %v6711 = vld [vmem:[#allocation6 + $0x4c8] sm:$0xff]
    %v6712 = vld [vmem:[#allocation6 + $0x4d0] sm:$0xff]
    %v6713 = vld [vmem:[#allocation6 + $0x4d8] sm:$0xff]
    %v6714 = vld [vmem:[#allocation6 + $0x4e0] sm:$0xff]
    %v6715 = vld [vmem:[#allocation6 + $0x4e8] sm:$0xff]
    %v6716 = vld [vmem:[#allocation6 + $0x4f0] sm:$0xff]
    %v6717 = vld [vmem:[#allocation6 + $0x4f8] sm:$0xff]
    %v6718 = vld [vmem:[#allocation6 + $0x500] sm:$0xff]
    %v6719 = vld [vmem:[#allocation6 + $0x508] sm:$0xff]
    %v6720 = vld [vmem:[#allocation6 + $0x510] sm:$0xff]
    %v6721 = vld [vmem:[#allocation6 + $0x518] sm:$0xff]
    %v6722 = vld [vmem:[#allocation6 + $0x520] sm:$0xff]
    %v6723 = vld [vmem:[#allocation6 + $0x528] sm:$0xff]
    %v6724 = vld [vmem:[#allocation6 + $0x530] sm:$0xff]
    %v6725 = vld [vmem:[#allocation6 + $0x538] sm:$0xff]
    %v6726 = vld [vmem:[#allocation6 + $0x540] sm:$0xff]
    %v6727 = vld [vmem:[#allocation6 + $0x548] sm:$0xff]
    %v6728 = vld [vmem:[#allocation6 + $0x550] sm:$0xff]
    %v6729 = vld [vmem:[#allocation6 + $0x558] sm:$0xff]
    %v6730 = vld [vmem:[#allocation6 + $0x560] sm:$0xff]
    %v6731 = vld [vmem:[#allocation6 + $0x568] sm:$0xff]
    %v6732 = vld [vmem:[#allocation6 + $0x570] sm:$0xff]
    %v6733 = vld [vmem:[#allocation6 + $0x578] sm:$0xff]
    %v6734 = vld [vmem:[#allocation6 + $0x580] sm:$0xff]
    %v6735 = vld [vmem:[#allocation6 + $0x588] sm:$0xff]
    %v6736 = vld [vmem:[#allocation6 + $0x590] sm:$0xff]
    %v6737 = vld [vmem:[#allocation6 + $0x598] sm:$0xff]
    %v6738 = vld [vmem:[#allocation6 + $0x5a0] sm:$0xff]
    %v6739 = vld [vmem:[#allocation6 + $0x5a8] sm:$0xff]
    %v6740 = vld [vmem:[#allocation6 + $0x5b0] sm:$0xff]
    %v6741 = vld [vmem:[#allocation6 + $0x5b8] sm:$0xff]
    %v6742 = vld [vmem:[#allocation6 + $0x5c0] sm:$0xff]
    %v6743 = vld [vmem:[#allocation6 + $0x5c8] sm:$0xff]
    %v6744 = vld [vmem:[#allocation6 + $0x5d0] sm:$0xff]
    %v6745 = vld [vmem:[#allocation6 + $0x5d8] sm:$0xff]
    %v6746 = vld [vmem:[#allocation6 + $0x5e0] sm:$0xff]
    %v6747 = vld [vmem:[#allocation6 + $0x5e8] sm:$0xff]
    %v6748 = vld [vmem:[#allocation6 + $0x5f0] sm:$0xff]
    %v6749 = vld [vmem:[#allocation6 + $0x5f8] sm:$0xff]
    %v6750 = vld [vmem:[#allocation20] sm:$0x3]
    %v6752 = vperm.slane %v6750, 0
    %v6753 = vperm.slane %v6750, 1
    %v6948 = vunpack.c.l.b16 %v6558
    %v6949 = vunpack.c.h.b16 %v6558
    %v6950 = vunpack.c.l.b16 %v6559
    %v6951 = vunpack.c.h.b16 %v6559
    %v6952 = vunpack.c.l.b16 %v6560
    %v6953 = vunpack.c.h.b16 %v6560
    %v6954 = vunpack.c.l.b16 %v6561
    %v6955 = vunpack.c.h.b16 %v6561
    %v6956 = vunpack.c.l.b16 %v6562
    %v6957 = vunpack.c.h.b16 %v6562
    %v6958 = vunpack.c.l.b16 %v6563
    %v6959 = vunpack.c.h.b16 %v6563
    %v6960 = vunpack.c.l.b16 %v6564
    %v6961 = vunpack.c.h.b16 %v6564
    %v6962 = vunpack.c.l.b16 %v6565
    %v6963 = vunpack.c.h.b16 %v6565
    %v6964 = vunpack.c.l.b16 %v6566
    %v6965 = vunpack.c.h.b16 %v6566
    %v6966 = vunpack.c.l.b16 %v6567
    %v6967 = vunpack.c.h.b16 %v6567
    %v6968 = vunpack.c.l.b16 %v6568
    %v6969 = vunpack.c.h.b16 %v6568
    %v6970 = vunpack.c.l.b16 %v6569
    %v6971 = vunpack.c.h.b16 %v6569
    %v6972 = vunpack.c.l.b16 %v6570
    %v6973 = vunpack.c.h.b16 %v6570
    %v6974 = vunpack.c.l.b16 %v6571
    %v6975 = vunpack.c.h.b16 %v6571
    %v6976 = vunpack.c.l.b16 %v6572
    %v6977 = vunpack.c.h.b16 %v6572
    %v6978 = vunpack.c.l.b16 %v6573
    %v6979 = vunpack.c.h.b16 %v6573
    %v6980 = vunpack.c.l.b16 %v6574
    %v6981 = vunpack.c.h.b16 %v6574
    %v6982 = vunpack.c.l.b16 %v6575
    %v6983 = vunpack.c.h.b16 %v6575
    %v6984 = vunpack.c.l.b16 %v6576
    %v6985 = vunpack.c.h.b16 %v6576
    %v6986 = vunpack.c.l.b16 %v6577
    %v6987 = vunpack.c.h.b16 %v6577
    %v6988 = vunpack.c.l.b16 %v6578
    %v6989 = vunpack.c.h.b16 %v6578
    %v6990 = vunpack.c.l.b16 %v6579
    %v6991 = vunpack.c.h.b16 %v6579
    %v6992 = vunpack.c.l.b16 %v6580
    %v6993 = vunpack.c.h.b16 %v6580
    %v6994 = vunpack.c.l.b16 %v6581
    %v6995 = vunpack.c.h.b16 %v6581
    %v6996 = vunpack.c.l.b16 %v6582
    %v6997 = vunpack.c.h.b16 %v6582
    %v6998 = vunpack.c.l.b16 %v6583
    %v6999 = vunpack.c.h.b16 %v6583
    %v7000 = vunpack.c.l.b16 %v6584
    %v7001 = vunpack.c.h.b16 %v6584
    %v7002 = vunpack.c.l.b16 %v6585
    %v7003 = vunpack.c.h.b16 %v6585
    %v7004 = vunpack.c.l.b16 %v6586
    %v7005 = vunpack.c.h.b16 %v6586
    %v7006 = vunpack.c.l.b16 %v6587
    %v7007 = vunpack.c.h.b16 %v6587
    %v7008 = vunpack.c.l.b16 %v6588
    %v7009 = vunpack.c.h.b16 %v6588
    %v7010 = vunpack.c.l.b16 %v6589
    %v7011 = vunpack.c.h.b16 %v6589
    %v7012 = vunpack.c.l.b16 %v6590
    %v7013 = vunpack.c.h.b16 %v6590
    %v7014 = vunpack.c.l.b16 %v6591
    %v7015 = vunpack.c.h.b16 %v6591
    %v7016 = vunpack.c.l.b16 %v6592
    %v7017 = vunpack.c.h.b16 %v6592
    %v7018 = vunpack.c.l.b16 %v6593
    %v7019 = vunpack.c.h.b16 %v6593
    %v7020 = vunpack.c.l.b16 %v6594
    %v7021 = vunpack.c.h.b16 %v6594
    %v7022 = vunpack.c.l.b16 %v6595
    %v7023 = vunpack.c.h.b16 %v6595
    %v7024 = vunpack.c.l.b16 %v6596
    %v7025 = vunpack.c.h.b16 %v6596
    %v7026 = vunpack.c.l.b16 %v6597
    %v7027 = vunpack.c.h.b16 %v6597
    %v7028 = vunpack.c.l.b16 %v6598
    %v7029 = vunpack.c.h.b16 %v6598
    %v7030 = vunpack.c.l.b16 %v6599
    %v7031 = vunpack.c.h.b16 %v6599
    %v7032 = vunpack.c.l.b16 %v6600
    %v7033 = vunpack.c.h.b16 %v6600
    %v7034 = vunpack.c.l.b16 %v6601
    %v7035 = vunpack.c.h.b16 %v6601
    %v7036 = vunpack.c.l.b16 %v6602
    %v7037 = vunpack.c.h.b16 %v6602
    %v7038 = vunpack.c.l.b16 %v6603
    %v7039 = vunpack.c.h.b16 %v6603
    %v7040 = vunpack.c.l.b16 %v6604
    %v7041 = vunpack.c.h.b16 %v6604
    %v7042 = vunpack.c.l.b16 %v6605
    %v7043 = vunpack.c.h.b16 %v6605
    %v7044 = vunpack.c.l.b16 %v6606
    %v7045 = vunpack.c.h.b16 %v6606
    %v7046 = vunpack.c.l.b16 %v6607
    %v7047 = vunpack.c.h.b16 %v6607
    %v7048 = vunpack.c.l.b16 %v6608
    %v7049 = vunpack.c.h.b16 %v6608
    %v7050 = vunpack.c.l.b16 %v6609
    %v7051 = vunpack.c.h.b16 %v6609
    %v7052 = vunpack.c.l.b16 %v6610
    %v7053 = vunpack.c.h.b16 %v6610
    %v7054 = vunpack.c.l.b16 %v6611
    %v7055 = vunpack.c.h.b16 %v6611
    %v7056 = vunpack.c.l.b16 %v6612
    %v7057 = vunpack.c.h.b16 %v6612
    %v7058 = vunpack.c.l.b16 %v6613
    %v7059 = vunpack.c.h.b16 %v6613
    %v7060 = vunpack.c.l.b16 %v6614
    %v7061 = vunpack.c.h.b16 %v6614
    %v7062 = vunpack.c.l.b16 %v6615
    %v7063 = vunpack.c.h.b16 %v6615
    %v7064 = vunpack.c.l.b16 %v6616
    %v7065 = vunpack.c.h.b16 %v6616
    %v7066 = vunpack.c.l.b16 %v6617
    %v7067 = vunpack.c.h.b16 %v6617
    %v7068 = vunpack.c.l.b16 %v6618
    %v7069 = vunpack.c.h.b16 %v6618
    %v7070 = vunpack.c.l.b16 %v6619
    %v7071 = vunpack.c.h.b16 %v6619
    %v7072 = vunpack.c.l.b16 %v6620
    %v7073 = vunpack.c.h.b16 %v6620
    %v7074 = vunpack.c.l.b16 %v6621
    %v7075 = vunpack.c.h.b16 %v6621
    %v7076 = vunpack.c.l.b16 %v6622
    %v7077 = vunpack.c.h.b16 %v6622
    %v7078 = vunpack.c.l.b16 %v6623
    %v7079 = vunpack.c.h.b16 %v6623
    %v7080 = vunpack.c.l.b16 %v6624
    %v7081 = vunpack.c.h.b16 %v6624
    %v7082 = vunpack.c.l.b16 %v6625
    %v7083 = vunpack.c.h.b16 %v6625
    %v7084 = vunpack.c.l.b16 %v6626
    %v7085 = vunpack.c.h.b16 %v6626
    %v7086 = vunpack.c.l.b16 %v6627
    %v7087 = vunpack.c.h.b16 %v6627
    %v7088 = vunpack.c.l.b16 %v6628
    %v7089 = vunpack.c.h.b16 %v6628
    %v7090 = vunpack.c.l.b16 %v6629
    %v7091 = vunpack.c.h.b16 %v6629
    %v7092 = vunpack.c.l.b16 %v6630
    %v7093 = vunpack.c.h.b16 %v6630
    %v7094 = vunpack.c.l.b16 %v6631
    %v7095 = vunpack.c.h.b16 %v6631
    %v7096 = vunpack.c.l.b16 %v6632
    %v7097 = vunpack.c.h.b16 %v6632
    %v7098 = vunpack.c.l.b16 %v6633
    %v7099 = vunpack.c.h.b16 %v6633
    %v7100 = vunpack.c.l.b16 %v6634
    %v7101 = vunpack.c.h.b16 %v6634
    %v7102 = vunpack.c.l.b16 %v6635
    %v7103 = vunpack.c.h.b16 %v6635
    %v7104 = vunpack.c.l.b16 %v6636
    %v7105 = vunpack.c.h.b16 %v6636
    %v7106 = vunpack.c.l.b16 %v6637
    %v7107 = vunpack.c.h.b16 %v6637
    %v7108 = vunpack.c.l.b16 %v6638
    %v7109 = vunpack.c.h.b16 %v6638
    %v7110 = vunpack.c.l.b16 %v6639
    %v7111 = vunpack.c.h.b16 %v6639
    %v7112 = vunpack.c.l.b16 %v6640
    %v7113 = vunpack.c.h.b16 %v6640
    %v7114 = vunpack.c.l.b16 %v6641
    %v7115 = vunpack.c.h.b16 %v6641
    %v7116 = vunpack.c.l.b16 %v6642
    %v7117 = vunpack.c.h.b16 %v6642
    %v7118 = vunpack.c.l.b16 %v6643
    %v7119 = vunpack.c.h.b16 %v6643
    %v7120 = vunpack.c.l.b16 %v6644
    %v7121 = vunpack.c.h.b16 %v6644
    %v7122 = vunpack.c.l.b16 %v6645
    %v7123 = vunpack.c.h.b16 %v6645
    %v7124 = vunpack.c.l.b16 %v6646
    %v7125 = vunpack.c.h.b16 %v6646
    %v7126 = vunpack.c.l.b16 %v6647
    %v7127 = vunpack.c.h.b16 %v6647
    %v7128 = vunpack.c.l.b16 %v6648
    %v7129 = vunpack.c.h.b16 %v6648
    %v7130 = vunpack.c.l.b16 %v6649
    %v7131 = vunpack.c.h.b16 %v6649
    %v7132 = vunpack.c.l.b16 %v6650
    %v7133 = vunpack.c.h.b16 %v6650
    %v7134 = vunpack.c.l.b16 %v6651
    %v7135 = vunpack.c.h.b16 %v6651
    %v7136 = vunpack.c.l.b16 %v6652
    %v7137 = vunpack.c.h.b16 %v6652
    %v7138 = vunpack.c.l.b16 %v6653
    %v7139 = vunpack.c.h.b16 %v6653
    %v7140 = vunpack.c.l.b16 %v6654
    %v7141 = vunpack.c.h.b16 %v6654
    %v7142 = vunpack.c.l.b16 %v6655
    %v7143 = vunpack.c.h.b16 %v6655
    %v7144 = vunpack.c.l.b16 %v6656
    %v7145 = vunpack.c.h.b16 %v6656
    %v7146 = vunpack.c.l.b16 %v6657
    %v7147 = vunpack.c.h.b16 %v6657
    %v7148 = vunpack.c.l.b16 %v6658
    %v7149 = vunpack.c.h.b16 %v6658
    %v7150 = vunpack.c.l.b16 %v6659
    %v7151 = vunpack.c.h.b16 %v6659
    %v7152 = vunpack.c.l.b16 %v6660
    %v7153 = vunpack.c.h.b16 %v6660
    %v7154 = vunpack.c.l.b16 %v6661
    %v7155 = vunpack.c.h.b16 %v6661
    %v7156 = vunpack.c.l.b16 %v6662
    %v7157 = vunpack.c.h.b16 %v6662
    %v7158 = vunpack.c.l.b16 %v6663
    %v7159 = vunpack.c.h.b16 %v6663
    %v7160 = vunpack.c.l.b16 %v6664
    %v7161 = vunpack.c.h.b16 %v6664
    %v7162 = vunpack.c.l.b16 %v6665
    %v7163 = vunpack.c.h.b16 %v6665
    %v7164 = vunpack.c.l.b16 %v6666
    %v7165 = vunpack.c.h.b16 %v6666
    %v7166 = vunpack.c.l.b16 %v6667
    %v7167 = vunpack.c.h.b16 %v6667
    %v7168 = vunpack.c.l.b16 %v6668
    %v7169 = vunpack.c.h.b16 %v6668
    %v7170 = vunpack.c.l.b16 %v6669
    %v7171 = vunpack.c.h.b16 %v6669
    %v7172 = vunpack.c.l.b16 %v6670
    %v7173 = vunpack.c.h.b16 %v6670
    %v7174 = vunpack.c.l.b16 %v6671
    %v7175 = vunpack.c.h.b16 %v6671
    %v7176 = vunpack.c.l.b16 %v6672
    %v7177 = vunpack.c.h.b16 %v6672
    %v7178 = vunpack.c.l.b16 %v6673
    %v7179 = vunpack.c.h.b16 %v6673
    %v7180 = vunpack.c.l.b16 %v6674
    %v7181 = vunpack.c.h.b16 %v6674
    %v7182 = vunpack.c.l.b16 %v6675
    %v7183 = vunpack.c.h.b16 %v6675
    %v7184 = vunpack.c.l.b16 %v6676
    %v7185 = vunpack.c.h.b16 %v6676
    %v7186 = vunpack.c.l.b16 %v6677
    %v7187 = vunpack.c.h.b16 %v6677
    %v7188 = vunpack.c.l.b16 %v6678
    %v7189 = vunpack.c.h.b16 %v6678
    %v7190 = vunpack.c.l.b16 %v6679
    %v7191 = vunpack.c.h.b16 %v6679
    %v7192 = vunpack.c.l.b16 %v6680
    %v7193 = vunpack.c.h.b16 %v6680
    %v7194 = vunpack.c.l.b16 %v6681
    %v7195 = vunpack.c.h.b16 %v6681
    %v7196 = vunpack.c.l.b16 %v6682
    %v7197 = vunpack.c.h.b16 %v6682
    %v7198 = vunpack.c.l.b16 %v6683
    %v7199 = vunpack.c.h.b16 %v6683
    %v7200 = vunpack.c.l.b16 %v6684
    %v7201 = vunpack.c.h.b16 %v6684
    %v7202 = vunpack.c.l.b16 %v6685
    %v7203 = vunpack.c.h.b16 %v6685
    %v7204 = vunpack.c.l.b16 %v6686
    %v7205 = vunpack.c.h.b16 %v6686
    %v7206 = vunpack.c.l.b16 %v6687
    %v7207 = vunpack.c.h.b16 %v6687
    %v7208 = vunpack.c.l.b16 %v6688
    %v7209 = vunpack.c.h.b16 %v6688
    %v7210 = vunpack.c.l.b16 %v6689
    %v7211 = vunpack.c.h.b16 %v6689
    %v7212 = vunpack.c.l.b16 %v6690
    %v7213 = vunpack.c.h.b16 %v6690
    %v7214 = vunpack.c.l.b16 %v6691
    %v7215 = vunpack.c.h.b16 %v6691
    %v7216 = vunpack.c.l.b16 %v6692
    %v7217 = vunpack.c.h.b16 %v6692
    %v7218 = vunpack.c.l.b16 %v6693
    %v7219 = vunpack.c.h.b16 %v6693
    %v7220 = vunpack.c.l.b16 %v6694
    %v7221 = vunpack.c.h.b16 %v6694
    %v7222 = vunpack.c.l.b16 %v6695
    %v7223 = vunpack.c.h.b16 %v6695
    %v7224 = vunpack.c.l.b16 %v6696
    %v7225 = vunpack.c.h.b16 %v6696
    %v7226 = vunpack.c.l.b16 %v6697
    %v7227 = vunpack.c.h.b16 %v6697
    %v7228 = vunpack.c.l.b16 %v6698
    %v7229 = vunpack.c.h.b16 %v6698
    %v7230 = vunpack.c.l.b16 %v6699
    %v7231 = vunpack.c.h.b16 %v6699
    %v7232 = vunpack.c.l.b16 %v6700
    %v7233 = vunpack.c.h.b16 %v6700
    %v7234 = vunpack.c.l.b16 %v6701
    %v7235 = vunpack.c.h.b16 %v6701
    %v7236 = vunpack.c.l.b16 %v6702
    %v7237 = vunpack.c.h.b16 %v6702
    %v7238 = vunpack.c.l.b16 %v6703
    %v7239 = vunpack.c.h.b16 %v6703
    %v7240 = vunpack.c.l.b16 %v6704
    %v7241 = vunpack.c.h.b16 %v6704
    %v7242 = vunpack.c.l.b16 %v6705
    %v7243 = vunpack.c.h.b16 %v6705
    %v7244 = vunpack.c.l.b16 %v6706
    %v7245 = vunpack.c.h.b16 %v6706
    %v7246 = vunpack.c.l.b16 %v6707
    %v7247 = vunpack.c.h.b16 %v6707
    %v7248 = vunpack.c.l.b16 %v6708
    %v7249 = vunpack.c.h.b16 %v6708
    %v7250 = vunpack.c.l.b16 %v6709
    %v7251 = vunpack.c.h.b16 %v6709
    %v7252 = vunpack.c.l.b16 %v6710
    %v7253 = vunpack.c.h.b16 %v6710
    %v7254 = vunpack.c.l.b16 %v6711
    %v7255 = vunpack.c.h.b16 %v6711
    %v7256 = vunpack.c.l.b16 %v6712
    %v7257 = vunpack.c.h.b16 %v6712
    %v7258 = vunpack.c.l.b16 %v6713
    %v7259 = vunpack.c.h.b16 %v6713
    %v7260 = vunpack.c.l.b16 %v6714
    %v7261 = vunpack.c.h.b16 %v6714
    %v7262 = vunpack.c.l.b16 %v6715
    %v7263 = vunpack.c.h.b16 %v6715
    %v7264 = vunpack.c.l.b16 %v6716
    %v7265 = vunpack.c.h.b16 %v6716
    %v7266 = vunpack.c.l.b16 %v6717
    %v7267 = vunpack.c.h.b16 %v6717
    %v7268 = vunpack.c.l.b16 %v6718
    %v7269 = vunpack.c.h.b16 %v6718
    %v7270 = vunpack.c.l.b16 %v6719
    %v7271 = vunpack.c.h.b16 %v6719
    %v7272 = vunpack.c.l.b16 %v6720
    %v7273 = vunpack.c.h.b16 %v6720
    %v7274 = vunpack.c.l.b16 %v6721
    %v7275 = vunpack.c.h.b16 %v6721
    %v7276 = vunpack.c.l.b16 %v6722
    %v7277 = vunpack.c.h.b16 %v6722
    %v7278 = vunpack.c.l.b16 %v6723
    %v7279 = vunpack.c.h.b16 %v6723
    %v7280 = vunpack.c.l.b16 %v6724
    %v7281 = vunpack.c.h.b16 %v6724
    %v7282 = vunpack.c.l.b16 %v6725
    %v7283 = vunpack.c.h.b16 %v6725
    %v7284 = vunpack.c.l.b16 %v6726
    %v7285 = vunpack.c.h.b16 %v6726
    %v7286 = vunpack.c.l.b16 %v6727
    %v7287 = vunpack.c.h.b16 %v6727
    %v7288 = vunpack.c.l.b16 %v6728
    %v7289 = vunpack.c.h.b16 %v6728
    %v7290 = vunpack.c.l.b16 %v6729
    %v7291 = vunpack.c.h.b16 %v6729
    %v7292 = vunpack.c.l.b16 %v6730
    %v7293 = vunpack.c.h.b16 %v6730
    %v7294 = vunpack.c.l.b16 %v6731
    %v7295 = vunpack.c.h.b16 %v6731
    %v7296 = vunpack.c.l.b16 %v6732
    %v7297 = vunpack.c.h.b16 %v6732
    %v7298 = vunpack.c.l.b16 %v6733
    %v7299 = vunpack.c.h.b16 %v6733
    %v7300 = vunpack.c.l.b16 %v6734
    %v7301 = vunpack.c.h.b16 %v6734
    %v7302 = vunpack.c.l.b16 %v6735
    %v7303 = vunpack.c.h.b16 %v6735
    %v7304 = vunpack.c.l.b16 %v6736
    %v7305 = vunpack.c.h.b16 %v6736
    %v7306 = vunpack.c.l.b16 %v6737
    %v7307 = vunpack.c.h.b16 %v6737
    %v7308 = vunpack.c.l.b16 %v6738
    %v7309 = vunpack.c.h.b16 %v6738
    %v7310 = vunpack.c.l.b16 %v6739
    %v7311 = vunpack.c.h.b16 %v6739
    %v7312 = vunpack.c.l.b16 %v6740
    %v7313 = vunpack.c.h.b16 %v6740
    %v7314 = vunpack.c.l.b16 %v6741
    %v7315 = vunpack.c.h.b16 %v6741
    %v7316 = vunpack.c.l.b16 %v6742
    %v7317 = vunpack.c.h.b16 %v6742
    %v7318 = vunpack.c.l.b16 %v6743
    %v7319 = vunpack.c.h.b16 %v6743
    %v7320 = vunpack.c.l.b16 %v6744
    %v7321 = vunpack.c.h.b16 %v6744
    %v7322 = vunpack.c.l.b16 %v6745
    %v7323 = vunpack.c.h.b16 %v6745
    %v7324 = vunpack.c.l.b16 %v6746
    %v7325 = vunpack.c.h.b16 %v6746
    %v7326 = vunpack.c.l.b16 %v6747
    %v7327 = vunpack.c.h.b16 %v6747
    %v7328 = vunpack.c.l.b16 %v6748
    %v7329 = vunpack.c.h.b16 %v6748
    %v7330 = vunpack.c.l.b16 %v6749
    %v7331 = vunpack.c.h.b16 %v6749
    %v7332 = vpack.c.b16 %v6950, %v6948
    %v7333 = vpack.c.b16 %v6951, %v6949
    %v7334 = vpack.c.b16 %v6954, %v6952
    %v7335 = vpack.c.b16 %v6955, %v6953
    %v7336 = vpack.c.b16 %v6958, %v6956
    %v7337 = vpack.c.b16 %v6959, %v6957
    %v7338 = vpack.c.b16 %v6962, %v6960
    %v7339 = vpack.c.b16 %v6963, %v6961
    %v7340 = vpack.c.b16 %v6966, %v6964
    %v7341 = vpack.c.b16 %v6967, %v6965
    %v7342 = vpack.c.b16 %v6970, %v6968
    %v7343 = vpack.c.b16 %v6971, %v6969
    %v7344 = vpack.c.b16 %v6974, %v6972
    %v7345 = vpack.c.b16 %v6975, %v6973
    %v7346 = vpack.c.b16 %v6978, %v6976
    %v7347 = vpack.c.b16 %v6979, %v6977
    %v7348 = vpack.c.b16 %v6982, %v6980
    %v7349 = vpack.c.b16 %v6983, %v6981
    %v7350 = vpack.c.b16 %v6986, %v6984
    %v7351 = vpack.c.b16 %v6987, %v6985
    %v7352 = vpack.c.b16 %v6990, %v6988
    %v7353 = vpack.c.b16 %v6991, %v6989
    %v7354 = vpack.c.b16 %v6994, %v6992
    %v7355 = vpack.c.b16 %v6995, %v6993
    %v7356 = vpack.c.b16 %v6998, %v6996
    %v7357 = vpack.c.b16 %v6999, %v6997
    %v7358 = vpack.c.b16 %v7002, %v7000
    %v7359 = vpack.c.b16 %v7003, %v7001
    %v7360 = vpack.c.b16 %v7006, %v7004
    %v7361 = vpack.c.b16 %v7007, %v7005
    %v7362 = vpack.c.b16 %v7010, %v7008
    %v7363 = vpack.c.b16 %v7011, %v7009
    %v7364 = vpack.c.b16 %v7014, %v7012
    %v7365 = vpack.c.b16 %v7015, %v7013
    %v7366 = vpack.c.b16 %v7018, %v7016
    %v7367 = vpack.c.b16 %v7019, %v7017
    %v7368 = vpack.c.b16 %v7022, %v7020
    %v7369 = vpack.c.b16 %v7023, %v7021
    %v7370 = vpack.c.b16 %v7026, %v7024
    %v7371 = vpack.c.b16 %v7027, %v7025
    %v7372 = vpack.c.b16 %v7030, %v7028
    %v7373 = vpack.c.b16 %v7031, %v7029
    %v7374 = vpack.c.b16 %v7034, %v7032
    %v7375 = vpack.c.b16 %v7035, %v7033
    %v7376 = vpack.c.b16 %v7038, %v7036
    %v7377 = vpack.c.b16 %v7039, %v7037
    %v7378 = vpack.c.b16 %v7042, %v7040
    %v7379 = vpack.c.b16 %v7043, %v7041
    %v7380 = vpack.c.b16 %v7046, %v7044
    %v7381 = vpack.c.b16 %v7047, %v7045
    %v7382 = vpack.c.b16 %v7050, %v7048
    %v7383 = vpack.c.b16 %v7051, %v7049
    %v7384 = vpack.c.b16 %v7054, %v7052
    %v7385 = vpack.c.b16 %v7055, %v7053
    %v7386 = vpack.c.b16 %v7058, %v7056
    %v7387 = vpack.c.b16 %v7059, %v7057
    %v7388 = vpack.c.b16 %v7062, %v7060
    %v7389 = vpack.c.b16 %v7063, %v7061
    %v7390 = vpack.c.b16 %v7066, %v7064
    %v7391 = vpack.c.b16 %v7067, %v7065
    %v7392 = vpack.c.b16 %v7070, %v7068
    %v7393 = vpack.c.b16 %v7071, %v7069
    %v7394 = vpack.c.b16 %v7074, %v7072
    %v7395 = vpack.c.b16 %v7075, %v7073
    %v7396 = vpack.c.b16 %v7078, %v7076
    %v7397 = vpack.c.b16 %v7079, %v7077
    %v7398 = vpack.c.b16 %v7082, %v7080
    %v7399 = vpack.c.b16 %v7083, %v7081
    %v7400 = vpack.c.b16 %v7086, %v7084
    %v7401 = vpack.c.b16 %v7087, %v7085
    %v7402 = vpack.c.b16 %v7090, %v7088
    %v7403 = vpack.c.b16 %v7091, %v7089
    %v7404 = vpack.c.b16 %v7094, %v7092
    %v7405 = vpack.c.b16 %v7095, %v7093
    %v7406 = vpack.c.b16 %v7098, %v7096
    %v7407 = vpack.c.b16 %v7099, %v7097
    %v7408 = vpack.c.b16 %v7102, %v7100
    %v7409 = vpack.c.b16 %v7103, %v7101
    %v7410 = vpack.c.b16 %v7106, %v7104
    %v7411 = vpack.c.b16 %v7107, %v7105
    %v7412 = vpack.c.b16 %v7110, %v7108
    %v7413 = vpack.c.b16 %v7111, %v7109
    %v7414 = vpack.c.b16 %v7114, %v7112
    %v7415 = vpack.c.b16 %v7115, %v7113
    %v7416 = vpack.c.b16 %v7118, %v7116
    %v7417 = vpack.c.b16 %v7119, %v7117
    %v7418 = vpack.c.b16 %v7122, %v7120
    %v7419 = vpack.c.b16 %v7123, %v7121
    %v7420 = vpack.c.b16 %v7126, %v7124
    %v7421 = vpack.c.b16 %v7127, %v7125
    %v7422 = vpack.c.b16 %v7130, %v7128
    %v7423 = vpack.c.b16 %v7131, %v7129
    %v7424 = vpack.c.b16 %v7134, %v7132
    %v7425 = vpack.c.b16 %v7135, %v7133
    %v7426 = vpack.c.b16 %v7138, %v7136
    %v7427 = vpack.c.b16 %v7139, %v7137
    %v7428 = vpack.c.b16 %v7142, %v7140
    %v7429 = vpack.c.b16 %v7143, %v7141
    %v7430 = vpack.c.b16 %v7146, %v7144
    %v7431 = vpack.c.b16 %v7147, %v7145
    %v7432 = vpack.c.b16 %v7150, %v7148
    %v7433 = vpack.c.b16 %v7151, %v7149
    %v7434 = vpack.c.b16 %v7154, %v7152
    %v7435 = vpack.c.b16 %v7155, %v7153
    %v7436 = vpack.c.b16 %v7158, %v7156
    %v7437 = vpack.c.b16 %v7159, %v7157
    %v7438 = vpack.c.b16 %v7162, %v7160
    %v7439 = vpack.c.b16 %v7163, %v7161
    %v7440 = vpack.c.b16 %v7166, %v7164
    %v7441 = vpack.c.b16 %v7167, %v7165
    %v7442 = vpack.c.b16 %v7170, %v7168
    %v7443 = vpack.c.b16 %v7171, %v7169
    %v7444 = vpack.c.b16 %v7174, %v7172
    %v7445 = vpack.c.b16 %v7175, %v7173
    %v7446 = vpack.c.b16 %v7178, %v7176
    %v7447 = vpack.c.b16 %v7179, %v7177
    %v7448 = vpack.c.b16 %v7182, %v7180
    %v7449 = vpack.c.b16 %v7183, %v7181
    %v7450 = vpack.c.b16 %v7186, %v7184
    %v7451 = vpack.c.b16 %v7187, %v7185
    %v7452 = vpack.c.b16 %v7190, %v7188
    %v7453 = vpack.c.b16 %v7191, %v7189
    %v7454 = vpack.c.b16 %v7194, %v7192
    %v7455 = vpack.c.b16 %v7195, %v7193
    %v7456 = vpack.c.b16 %v7198, %v7196
    %v7457 = vpack.c.b16 %v7199, %v7197
    %v7458 = vpack.c.b16 %v7202, %v7200
    %v7459 = vpack.c.b16 %v7203, %v7201
    %v7460 = vpack.c.b16 %v7206, %v7204
    %v7461 = vpack.c.b16 %v7207, %v7205
    %v7462 = vpack.c.b16 %v7210, %v7208
    %v7463 = vpack.c.b16 %v7211, %v7209
    %v7464 = vpack.c.b16 %v7214, %v7212
    %v7465 = vpack.c.b16 %v7215, %v7213
    %v7466 = vpack.c.b16 %v7218, %v7216
    %v7467 = vpack.c.b16 %v7219, %v7217
    %v7468 = vpack.c.b16 %v7222, %v7220
    %v7469 = vpack.c.b16 %v7223, %v7221
    %v7470 = vpack.c.b16 %v7226, %v7224
    %v7471 = vpack.c.b16 %v7227, %v7225
    %v7472 = vpack.c.b16 %v7230, %v7228
    %v7473 = vpack.c.b16 %v7231, %v7229
    %v7474 = vpack.c.b16 %v7234, %v7232
    %v7475 = vpack.c.b16 %v7235, %v7233
    %v7476 = vpack.c.b16 %v7238, %v7236
    %v7477 = vpack.c.b16 %v7239, %v7237
    %v7478 = vpack.c.b16 %v7242, %v7240
    %v7479 = vpack.c.b16 %v7243, %v7241
    %v7480 = vpack.c.b16 %v7246, %v7244
    %v7481 = vpack.c.b16 %v7247, %v7245
    %v7482 = vpack.c.b16 %v7250, %v7248
    %v7483 = vpack.c.b16 %v7251, %v7249
    %v7484 = vpack.c.b16 %v7254, %v7252
    %v7485 = vpack.c.b16 %v7255, %v7253
    %v7486 = vpack.c.b16 %v7258, %v7256
    %v7487 = vpack.c.b16 %v7259, %v7257
    %v7488 = vpack.c.b16 %v7262, %v7260
    %v7489 = vpack.c.b16 %v7263, %v7261
    %v7490 = vpack.c.b16 %v7266, %v7264
    %v7491 = vpack.c.b16 %v7267, %v7265
    %v7492 = vpack.c.b16 %v7270, %v7268
    %v7493 = vpack.c.b16 %v7271, %v7269
    %v7494 = vpack.c.b16 %v7274, %v7272
    %v7495 = vpack.c.b16 %v7275, %v7273
    %v7496 = vpack.c.b16 %v7278, %v7276
    %v7497 = vpack.c.b16 %v7279, %v7277
    %v7498 = vpack.c.b16 %v7282, %v7280
    %v7499 = vpack.c.b16 %v7283, %v7281
    %v7500 = vpack.c.b16 %v7286, %v7284
    %v7501 = vpack.c.b16 %v7287, %v7285
    %v7502 = vpack.c.b16 %v7290, %v7288
    %v7503 = vpack.c.b16 %v7291, %v7289
    %v7504 = vpack.c.b16 %v7294, %v7292
    %v7505 = vpack.c.b16 %v7295, %v7293
    %v7506 = vpack.c.b16 %v7298, %v7296
    %v7507 = vpack.c.b16 %v7299, %v7297
    %v7508 = vpack.c.b16 %v7302, %v7300
    %v7509 = vpack.c.b16 %v7303, %v7301
    %v7510 = vpack.c.b16 %v7306, %v7304
    %v7511 = vpack.c.b16 %v7307, %v7305
    %v7512 = vpack.c.b16 %v7310, %v7308
    %v7513 = vpack.c.b16 %v7311, %v7309
    %v7514 = vpack.c.b16 %v7314, %v7312
    %v7515 = vpack.c.b16 %v7315, %v7313
    %v7516 = vpack.c.b16 %v7318, %v7316
    %v7517 = vpack.c.b16 %v7319, %v7317
    %v7518 = vpack.c.b16 %v7322, %v7320
    %v7519 = vpack.c.b16 %v7323, %v7321
    %v7520 = vpack.c.b16 %v7326, %v7324
    %v7521 = vpack.c.b16 %v7327, %v7325
    %v7522 = vpack.c.b16 %v7330, %v7328
    %v7523 = vpack.c.b16 %v7331, %v7329
    %7716 = vmatpush.bf16.msra.mxu0 %v7346
    %7717 = vmatpush.bf16.msra.mxu0 %v7344
    %7718 = vmatpush.bf16.msra.mxu0 %v7342
    %7719 = vmatpush.bf16.msra.mxu0 %v7340
    %7720 = vmatpush.bf16.msra.mxu0 %v7338
    %7721 = vmatpush.bf16.msra.mxu0 %v7336
    %7722 = vmatpush.bf16.msra.mxu0 %v7334
    %7723 = vmatpush.bf16.msra.mxu0 %v7332
    %7724 = vmatmul.bf16.gmra.mxu0 %v6542
    %v7725 = vpop.f32.mrf.mxu0
    %v7726 = vadd.f32 %v6752, %v7725
    %v7727 = vpop.f32.mrf.mxu0
    %7728 = vdwg.mxu0
    %7729 = vmatpush.bf16.msra.mxu0 %v7362
    %7730 = vmatpush.bf16.msra.mxu0 %v7360
    %7731 = vmatpush.bf16.msra.mxu0 %v7358
    %7732 = vmatpush.bf16.msra.mxu0 %v7356
    %7733 = vmatpush.bf16.msra.mxu0 %v7354
    %7734 = vmatpush.bf16.msra.mxu0 %v7352
    %7735 = vmatpush.bf16.msra.mxu0 %v7350
    %7736 = vmatpush.bf16.msra.mxu0 %v7348
    %7737 = vmatmul.bf16.gmra.mxu0 %v6543
    %v7738 = vpop.f32.mrf.mxu0
    %v7739 = vadd.f32 %v7726, %v7738
    %v7740 = vpop.f32.mrf.mxu0
    %7741 = vdwg.mxu0
    %7742 = vmatpush.bf16.msra.mxu0 %v7378
    %7743 = vmatpush.bf16.msra.mxu0 %v7376
    %7744 = vmatpush.bf16.msra.mxu0 %v7374
    %7745 = vmatpush.bf16.msra.mxu0 %v7372
    %7746 = vmatpush.bf16.msra.mxu0 %v7370
    %7747 = vmatpush.bf16.msra.mxu0 %v7368
    %7748 = vmatpush.bf16.msra.mxu0 %v7366
    %7749 = vmatpush.bf16.msra.mxu0 %v7364
    %7750 = vmatmul.bf16.gmra.mxu0 %v6544
    %v7751 = vpop.f32.mrf.mxu0
    %v7752 = vadd.f32 %v7739, %v7751
    %v7753 = vpop.f32.mrf.mxu0
    %7754 = vdwg.mxu0
    %7755 = vmatpush.bf16.msra.mxu0 %v7394
    %7756 = vmatpush.bf16.msra.mxu0 %v7392
    %7757 = vmatpush.bf16.msra.mxu0 %v7390
    %7758 = vmatpush.bf16.msra.mxu0 %v7388
    %7759 = vmatpush.bf16.msra.mxu0 %v7386
    %7760 = vmatpush.bf16.msra.mxu0 %v7384
    %7761 = vmatpush.bf16.msra.mxu0 %v7382
    %7762 = vmatpush.bf16.msra.mxu0 %v7380
    %7763 = vmatmul.bf16.gmra.mxu0 %v6545
    %v7764 = vpop.f32.mrf.mxu0
    %v7765 = vadd.f32 %v7752, %v7764
    %v7766 = vpop.f32.mrf.mxu0
    %7767 = vdwg.mxu0
    %7768 = vmatpush.bf16.msra.mxu0 %v7410
    %7769 = vmatpush.bf16.msra.mxu0 %v7408
    %7770 = vmatpush.bf16.msra.mxu0 %v7406
    %7771 = vmatpush.bf16.msra.mxu0 %v7404
    %7772 = vmatpush.bf16.msra.mxu0 %v7402
    %7773 = vmatpush.bf16.msra.mxu0 %v7400
    %7774 = vmatpush.bf16.msra.mxu0 %v7398
    %7775 = vmatpush.bf16.msra.mxu0 %v7396
    %7776 = vmatmul.bf16.gmra.mxu0 %v6546
    %v7777 = vpop.f32.mrf.mxu0
    %v7778 = vadd.f32 %v7765, %v7777
    %v7779 = vpop.f32.mrf.mxu0
    %7780 = vdwg.mxu0
    %7781 = vmatpush.bf16.msra.mxu0 %v7426
    %7782 = vmatpush.bf16.msra.mxu0 %v7424
    %7783 = vmatpush.bf16.msra.mxu0 %v7422
    %7784 = vmatpush.bf16.msra.mxu0 %v7420
    %7785 = vmatpush.bf16.msra.mxu0 %v7418
    %7786 = vmatpush.bf16.msra.mxu0 %v7416
    %7787 = vmatpush.bf16.msra.mxu0 %v7414
    %7788 = vmatpush.bf16.msra.mxu0 %v7412
    %7789 = vmatmul.bf16.gmra.mxu0 %v6547
    %v7790 = vpop.f32.mrf.mxu0
    %v7791 = vadd.f32 %v7778, %v7790
    %v7792 = vpop.f32.mrf.mxu0
    %7793 = vdwg.mxu0
    %7794 = vmatpush.bf16.msra.mxu0 %v7442
    %7795 = vmatpush.bf16.msra.mxu0 %v7440
    %7796 = vmatpush.bf16.msra.mxu0 %v7438
    %7797 = vmatpush.bf16.msra.mxu0 %v7436
    %7798 = vmatpush.bf16.msra.mxu0 %v7434
    %7799 = vmatpush.bf16.msra.mxu0 %v7432
    %7800 = vmatpush.bf16.msra.mxu0 %v7430
    %7801 = vmatpush.bf16.msra.mxu0 %v7428
    %7802 = vmatmul.bf16.gmra.mxu0 %v6548
    %v7803 = vpop.f32.mrf.mxu0
    %v7804 = vadd.f32 %v7791, %v7803
    %v7805 = vpop.f32.mrf.mxu0
    %7806 = vdwg.mxu0
    %7807 = vmatpush.bf16.msra.mxu0 %v7458
    %7808 = vmatpush.bf16.msra.mxu0 %v7456
    %7809 = vmatpush.bf16.msra.mxu0 %v7454
    %7810 = vmatpush.bf16.msra.mxu0 %v7452
    %7811 = vmatpush.bf16.msra.mxu0 %v7450
    %7812 = vmatpush.bf16.msra.mxu0 %v7448
    %7813 = vmatpush.bf16.msra.mxu0 %v7446
    %7814 = vmatpush.bf16.msra.mxu0 %v7444
    %7815 = vmatmul.bf16.gmra.mxu0 %v6549
    %v7816 = vpop.f32.mrf.mxu0
    %v7817 = vadd.f32 %v7804, %v7816
    %v7818 = vpop.f32.mrf.mxu0
    %7819 = vdwg.mxu0
    %7820 = vmatpush.bf16.msra.mxu0 %v7474
    %7821 = vmatpush.bf16.msra.mxu0 %v7472
    %7822 = vmatpush.bf16.msra.mxu0 %v7470
    %7823 = vmatpush.bf16.msra.mxu0 %v7468
    %7824 = vmatpush.bf16.msra.mxu0 %v7466
    %7825 = vmatpush.bf16.msra.mxu0 %v7464
    %7826 = vmatpush.bf16.msra.mxu0 %v7462
    %7827 = vmatpush.bf16.msra.mxu0 %v7460
    %7828 = vmatmul.bf16.gmra.mxu0 %v6550
    %v7829 = vpop.f32.mrf.mxu0
    %v7830 = vadd.f32 %v7817, %v7829
    %v7831 = vpop.f32.mrf.mxu0
    %7832 = vdwg.mxu0
    %7833 = vmatpush.bf16.msra.mxu0 %v7490
    %7834 = vmatpush.bf16.msra.mxu0 %v7488
    %7835 = vmatpush.bf16.msra.mxu0 %v7486
    %7836 = vmatpush.bf16.msra.mxu0 %v7484
    %7837 = vmatpush.bf16.msra.mxu0 %v7482
    %7838 = vmatpush.bf16.msra.mxu0 %v7480
    %7839 = vmatpush.bf16.msra.mxu0 %v7478
    %7840 = vmatpush.bf16.msra.mxu0 %v7476
    %7841 = vmatmul.bf16.gmra.mxu0 %v6551
    %v7842 = vpop.f32.mrf.mxu0
    %v7843 = vadd.f32 %v7830, %v7842
    %v7844 = vpop.f32.mrf.mxu0
    %7845 = vdwg.mxu0
    %7846 = vmatpush.bf16.msra.mxu0 %v7506
    %7847 = vmatpush.bf16.msra.mxu0 %v7504
    %7848 = vmatpush.bf16.msra.mxu0 %v7502
    %7849 = vmatpush.bf16.msra.mxu0 %v7500
    %7850 = vmatpush.bf16.msra.mxu0 %v7498
    %7851 = vmatpush.bf16.msra.mxu0 %v7496
    %7852 = vmatpush.bf16.msra.mxu0 %v7494
    %7853 = vmatpush.bf16.msra.mxu0 %v7492
    %7854 = vmatmul.bf16.gmra.mxu0 %v6552
    %v7855 = vpop.f32.mrf.mxu0
    %v7856 = vadd.f32 %v7843, %v7855
    %v7857 = vpop.f32.mrf.mxu0
    %7858 = vdwg.mxu0
    %7859 = vmatpush.bf16.msra.mxu0 %v7522
    %7860 = vmatpush.bf16.msra.mxu0 %v7520
    %7861 = vmatpush.bf16.msra.mxu0 %v7518
    %7862 = vmatpush.bf16.msra.mxu0 %v7516
    %7863 = vmatpush.bf16.msra.mxu0 %v7514
    %7864 = vmatpush.bf16.msra.mxu0 %v7512
    %7865 = vmatpush.bf16.msra.mxu0 %v7510
    %7866 = vmatpush.bf16.msra.mxu0 %v7508
    %7867 = vmatmul.bf16.gmra.mxu0 %v6553
    %v7868 = vpop.f32.mrf.mxu0
    %v7869 = vadd.f32 %v7856, %v7868
    %v7870 = vpop.f32.mrf.mxu0
    %7871 = vdwg.mxu0
    %7872 = vmatpush.bf16.msra.mxu0 %v7347
    %7873 = vmatpush.bf16.msra.mxu0 %v7345
    %7874 = vmatpush.bf16.msra.mxu0 %v7343
    %7875 = vmatpush.bf16.msra.mxu0 %v7341
    %7876 = vmatpush.bf16.msra.mxu0 %v7339
    %7877 = vmatpush.bf16.msra.mxu0 %v7337
    %7878 = vmatpush.bf16.msra.mxu0 %v7335
    %7879 = vmatpush.bf16.msra.mxu0 %v7333
    %7880 = vmatmul.bf16.gmra.mxu0 %v6542
    %v7881 = vpop.f32.mrf.mxu0
    %v7882 = vadd.f32 %v6753, %v7881
    %v7883 = vpop.f32.mrf.mxu0
    %7884 = vdwg.mxu0
    %7885 = vmatpush.bf16.msra.mxu0 %v7363
    %7886 = vmatpush.bf16.msra.mxu0 %v7361
    %7887 = vmatpush.bf16.msra.mxu0 %v7359
    %7888 = vmatpush.bf16.msra.mxu0 %v7357
    %7889 = vmatpush.bf16.msra.mxu0 %v7355
    %7890 = vmatpush.bf16.msra.mxu0 %v7353
    %7891 = vmatpush.bf16.msra.mxu0 %v7351
    %7892 = vmatpush.bf16.msra.mxu0 %v7349
    %7893 = vmatmul.bf16.gmra.mxu0 %v6543
    %v7894 = vpop.f32.mrf.mxu0
    %v7895 = vadd.f32 %v7882, %v7894
    %v7896 = vpop.f32.mrf.mxu0
    %7897 = vdwg.mxu0
    %7898 = vmatpush.bf16.msra.mxu0 %v7379
    %7899 = vmatpush.bf16.msra.mxu0 %v7377
    %7900 = vmatpush.bf16.msra.mxu0 %v7375
    %7901 = vmatpush.bf16.msra.mxu0 %v7373
    %7902 = vmatpush.bf16.msra.mxu0 %v7371
    %7903 = vmatpush.bf16.msra.mxu0 %v7369
    %7904 = vmatpush.bf16.msra.mxu0 %v7367
    %7905 = vmatpush.bf16.msra.mxu0 %v7365
    %7906 = vmatmul.bf16.gmra.mxu0 %v6544
    %v7907 = vpop.f32.mrf.mxu0
    %v7908 = vadd.f32 %v7895, %v7907
    %v7909 = vpop.f32.mrf.mxu0
    %7910 = vdwg.mxu0
    %7911 = vmatpush.bf16.msra.mxu0 %v7395
    %7912 = vmatpush.bf16.msra.mxu0 %v7393
    %7913 = vmatpush.bf16.msra.mxu0 %v7391
    %7914 = vmatpush.bf16.msra.mxu0 %v7389
    %7915 = vmatpush.bf16.msra.mxu0 %v7387
    %7916 = vmatpush.bf16.msra.mxu0 %v7385
    %7917 = vmatpush.bf16.msra.mxu0 %v7383
    %7918 = vmatpush.bf16.msra.mxu0 %v7381
    %7919 = vmatmul.bf16.gmra.mxu0 %v6545
    %v7920 = vpop.f32.mrf.mxu0
    %v7921 = vadd.f32 %v7908, %v7920
    %v7922 = vpop.f32.mrf.mxu0
    %7923 = vdwg.mxu0
    %7924 = vmatpush.bf16.msra.mxu0 %v7411
    %7925 = vmatpush.bf16.msra.mxu0 %v7409
    %7926 = vmatpush.bf16.msra.mxu0 %v7407
    %7927 = vmatpush.bf16.msra.mxu0 %v7405
    %7928 = vmatpush.bf16.msra.mxu0 %v7403
    %7929 = vmatpush.bf16.msra.mxu0 %v7401
    %7930 = vmatpush.bf16.msra.mxu0 %v7399
    %7931 = vmatpush.bf16.msra.mxu0 %v7397
    %7932 = vmatmul.bf16.gmra.mxu0 %v6546
    %v7933 = vpop.f32.mrf.mxu0
    %v7934 = vadd.f32 %v7921, %v7933
    %v7935 = vpop.f32.mrf.mxu0
    %7936 = vdwg.mxu0
    %7937 = vmatpush.bf16.msra.mxu0 %v7427
    %7938 = vmatpush.bf16.msra.mxu0 %v7425
    %7939 = vmatpush.bf16.msra.mxu0 %v7423
    %7940 = vmatpush.bf16.msra.mxu0 %v7421
    %7941 = vmatpush.bf16.msra.mxu0 %v7419
    %7942 = vmatpush.bf16.msra.mxu0 %v7417
    %7943 = vmatpush.bf16.msra.mxu0 %v7415
    %7944 = vmatpush.bf16.msra.mxu0 %v7413
    %7945 = vmatmul.bf16.gmra.mxu0 %v6547
    %v7946 = vpop.f32.mrf.mxu0
    %v7947 = vadd.f32 %v7934, %v7946
    %v7948 = vpop.f32.mrf.mxu0
    %7949 = vdwg.mxu0
    %7950 = vmatpush.bf16.msra.mxu0 %v7443
    %7951 = vmatpush.bf16.msra.mxu0 %v7441
    %7952 = vmatpush.bf16.msra.mxu0 %v7439
    %7953 = vmatpush.bf16.msra.mxu0 %v7437
    %7954 = vmatpush.bf16.msra.mxu0 %v7435
    %7955 = vmatpush.bf16.msra.mxu0 %v7433
    %7956 = vmatpush.bf16.msra.mxu0 %v7431
    %7957 = vmatpush.bf16.msra.mxu0 %v7429
    %7958 = vmatmul.bf16.gmra.mxu0 %v6548
    %v7959 = vpop.f32.mrf.mxu0
    %v7960 = vadd.f32 %v7947, %v7959
    %v7961 = vpop.f32.mrf.mxu0
    %7962 = vdwg.mxu0
    %7963 = vmatpush.bf16.msra.mxu0 %v7459
    %7964 = vmatpush.bf16.msra.mxu0 %v7457
    %7965 = vmatpush.bf16.msra.mxu0 %v7455
    %7966 = vmatpush.bf16.msra.mxu0 %v7453
    %7967 = vmatpush.bf16.msra.mxu0 %v7451
    %7968 = vmatpush.bf16.msra.mxu0 %v7449
    %7969 = vmatpush.bf16.msra.mxu0 %v7447
    %7970 = vmatpush.bf16.msra.mxu0 %v7445
    %7971 = vmatmul.bf16.gmra.mxu0 %v6549
    %v7972 = vpop.f32.mrf.mxu0
    %v7973 = vadd.f32 %v7960, %v7972
    %v7974 = vpop.f32.mrf.mxu0
    %7975 = vdwg.mxu0
    %7976 = vmatpush.bf16.msra.mxu0 %v7475
    %7977 = vmatpush.bf16.msra.mxu0 %v7473
    %7978 = vmatpush.bf16.msra.mxu0 %v7471
    %7979 = vmatpush.bf16.msra.mxu0 %v7469
    %7980 = vmatpush.bf16.msra.mxu0 %v7467
    %7981 = vmatpush.bf16.msra.mxu0 %v7465
    %7982 = vmatpush.bf16.msra.mxu0 %v7463
    %7983 = vmatpush.bf16.msra.mxu0 %v7461
    %7984 = vmatmul.bf16.gmra.mxu0 %v6550
    %v7985 = vpop.f32.mrf.mxu0
    %v7986 = vadd.f32 %v7973, %v7985
    %v7987 = vpop.f32.mrf.mxu0
    %7988 = vdwg.mxu0
    %7989 = vmatpush.bf16.msra.mxu0 %v7491
    %7990 = vmatpush.bf16.msra.mxu0 %v7489
    %7991 = vmatpush.bf16.msra.mxu0 %v7487
    %7992 = vmatpush.bf16.msra.mxu0 %v7485
    %7993 = vmatpush.bf16.msra.mxu0 %v7483
    %7994 = vmatpush.bf16.msra.mxu0 %v7481
    %7995 = vmatpush.bf16.msra.mxu0 %v7479
    %7996 = vmatpush.bf16.msra.mxu0 %v7477
    %7997 = vmatmul.bf16.gmra.mxu0 %v6551
    %v7998 = vpop.f32.mrf.mxu0
    %v7999 = vadd.f32 %v7986, %v7998
    %v8000 = vpop.f32.mrf.mxu0
    %8001 = vdwg.mxu0
    %8002 = vmatpush.bf16.msra.mxu0 %v7507
    %8003 = vmatpush.bf16.msra.mxu0 %v7505
    %8004 = vmatpush.bf16.msra.mxu0 %v7503
    %8005 = vmatpush.bf16.msra.mxu0 %v7501
    %8006 = vmatpush.bf16.msra.mxu0 %v7499
    %8007 = vmatpush.bf16.msra.mxu0 %v7497
    %8008 = vmatpush.bf16.msra.mxu0 %v7495
    %8009 = vmatpush.bf16.msra.mxu0 %v7493
    %8010 = vmatmul.bf16.gmra.mxu0 %v6552
    %v8011 = vpop.f32.mrf.mxu0
    %v8012 = vadd.f32 %v7999, %v8011
    %v8013 = vpop.f32.mrf.mxu0
    %8014 = vdwg.mxu0
    %8015 = vmatpush.bf16.msra.mxu0 %v7523
    %8016 = vmatpush.bf16.msra.mxu0 %v7521
    %8017 = vmatpush.bf16.msra.mxu0 %v7519
    %8018 = vmatpush.bf16.msra.mxu0 %v7517
    %8019 = vmatpush.bf16.msra.mxu0 %v7515
    %8020 = vmatpush.bf16.msra.mxu0 %v7513
    %8021 = vmatpush.bf16.msra.mxu0 %v7511
    %8022 = vmatpush.bf16.msra.mxu0 %v7509
    %8023 = vmatmul.bf16.gmra.mxu0 %v6553
    %v8024 = vpop.f32.mrf.mxu0
    %v8025 = vadd.f32 %v8012, %v8024
    %v8026 = vpop.f32.mrf.mxu0
    %8027 = vdwg.mxu0
    %v8028 = vmax.f32 %v7869, 0.0
    %v8029 = vmax.f32 %v8025, 0.0
    %v8030 = vpack.c.bf16 %v6444, %v6444
    %v8031 = vpack.c.bf16 %v6445, %v6445
    %v8032 = vpack.c.bf16 %v8028, %v8028
    %v8033 = vpack.c.bf16 %v8029, %v8029
    %s8034 = smul.u32 %s3682, 1
    %s8035 = sshll.u32 %s8034, 4
    %8036 = dma.done %s225, %s8035
    %v8037 = vld [vmem:[#allocation7] sm:$0xf]
    %v8038 = vld [vmem:[#allocation7 + $0x4] sm:$0xf]
    %v8039 = vld [vmem:[#allocation7 + $0x8] sm:$0xf]
    %v8040 = vld [vmem:[#allocation7 + $0xc] sm:$0xf]
    %v8041 = vld [vmem:[#allocation7 + $0x10] sm:$0xf]
    %v8042 = vld [vmem:[#allocation7 + $0x14] sm:$0xf]
    %v8043 = vld [vmem:[#allocation7 + $0x18] sm:$0xf]
    %v8044 = vld [vmem:[#allocation7 + $0x1c] sm:$0xf]
    %v8045 = vld [vmem:[#allocation7 + $0x20] sm:$0xf]
    %v8046 = vld [vmem:[#allocation7 + $0x24] sm:$0xf]
    %v8047 = vld [vmem:[#allocation7 + $0x28] sm:$0xf]
    %v8048 = vld [vmem:[#allocation7 + $0x2c] sm:$0xf]
    %v8049 = vld [vmem:[#allocation7 + $0x30] sm:$0xf]
    %v8050 = vld [vmem:[#allocation7 + $0x34] sm:$0xf]
    %v8051 = vld [vmem:[#allocation7 + $0x38] sm:$0xf]
    %v8052 = vld [vmem:[#allocation7 + $0x3c] sm:$0xf]
    %v8053 = vld [vmem:[#allocation7 + $0x40] sm:$0xf]
    %v8054 = vld [vmem:[#allocation7 + $0x44] sm:$0xf]
    %v8055 = vld [vmem:[#allocation7 + $0x48] sm:$0xf]
    %v8056 = vld [vmem:[#allocation7 + $0x4c] sm:$0xf]
    %v8057 = vld [vmem:[#allocation7 + $0x50] sm:$0xf]
    %v8058 = vld [vmem:[#allocation7 + $0x54] sm:$0xf]
    %v8059 = vld [vmem:[#allocation7 + $0x58] sm:$0xf]
    %v8060 = vld [vmem:[#allocation7 + $0x5c] sm:$0xf]
    %v8061 = vld [vmem:[#allocation7 + $0x60] sm:$0xf]
    %v8062 = vld [vmem:[#allocation7 + $0x64] sm:$0xf]
    %v8063 = vld [vmem:[#allocation7 + $0x68] sm:$0xf]
    %v8064 = vld [vmem:[#allocation7 + $0x6c] sm:$0xf]
    %v8065 = vld [vmem:[#allocation7 + $0x70] sm:$0xf]
    %v8066 = vld [vmem:[#allocation7 + $0x74] sm:$0xf]
    %v8067 = vld [vmem:[#allocation7 + $0x78] sm:$0xf]
    %v8068 = vld [vmem:[#allocation7 + $0x7c] sm:$0xf]
    %v8069 = vld [vmem:[#allocation7 + $0x80] sm:$0xf]
    %v8070 = vld [vmem:[#allocation7 + $0x84] sm:$0xf]
    %v8071 = vld [vmem:[#allocation7 + $0x88] sm:$0xf]
    %v8072 = vld [vmem:[#allocation7 + $0x8c] sm:$0xf]
    %v8073 = vld [vmem:[#allocation7 + $0x90] sm:$0xf]
    %v8074 = vld [vmem:[#allocation7 + $0x94] sm:$0xf]
    %v8075 = vld [vmem:[#allocation7 + $0x98] sm:$0xf]
    %v8076 = vld [vmem:[#allocation7 + $0x9c] sm:$0xf]
    %v8077 = vld [vmem:[#allocation7 + $0xa0] sm:$0xf]
    %v8078 = vld [vmem:[#allocation7 + $0xa4] sm:$0xf]
    %v8079 = vld [vmem:[#allocation7 + $0xa8] sm:$0xf]
    %v8080 = vld [vmem:[#allocation7 + $0xac] sm:$0xf]
    %v8081 = vld [vmem:[#allocation7 + $0xb0] sm:$0xf]
    %v8082 = vld [vmem:[#allocation7 + $0xb4] sm:$0xf]
    %v8083 = vld [vmem:[#allocation7 + $0xb8] sm:$0xf]
    %v8084 = vld [vmem:[#allocation7 + $0xbc] sm:$0xf]
    %v8085 = vld [vmem:[#allocation7 + $0xc0] sm:$0xf]
    %v8086 = vld [vmem:[#allocation7 + $0xc4] sm:$0xf]
    %v8087 = vld [vmem:[#allocation7 + $0xc8] sm:$0xf]
    %v8088 = vld [vmem:[#allocation7 + $0xcc] sm:$0xf]
    %v8089 = vld [vmem:[#allocation7 + $0xd0] sm:$0xf]
    %v8090 = vld [vmem:[#allocation7 + $0xd4] sm:$0xf]
    %v8091 = vld [vmem:[#allocation7 + $0xd8] sm:$0xf]
    %v8092 = vld [vmem:[#allocation7 + $0xdc] sm:$0xf]
    %v8093 = vld [vmem:[#allocation7 + $0xe0] sm:$0xf]
    %v8094 = vld [vmem:[#allocation7 + $0xe4] sm:$0xf]
    %v8095 = vld [vmem:[#allocation7 + $0xe8] sm:$0xf]
    %v8096 = vld [vmem:[#allocation7 + $0xec] sm:$0xf]
    %v8097 = vld [vmem:[#allocation7 + $0xf0] sm:$0xf]
    %v8098 = vld [vmem:[#allocation7 + $0xf4] sm:$0xf]
    %v8099 = vld [vmem:[#allocation7 + $0xf8] sm:$0xf]
    %v8100 = vld [vmem:[#allocation7 + $0xfc] sm:$0xf]
    %v8101 = vld [vmem:[#allocation22] sm:$0x1]
    %v8103 = vperm.slane %v8101, 0
    %v8169 = vunpack.c.l.b16 %v8037
    %v8170 = vunpack.c.l.b16 %v8038
    %v8171 = vunpack.c.l.b16 %v8039
    %v8172 = vunpack.c.l.b16 %v8040
    %v8173 = vunpack.c.l.b16 %v8041
    %v8174 = vunpack.c.l.b16 %v8042
    %v8175 = vunpack.c.l.b16 %v8043
    %v8176 = vunpack.c.l.b16 %v8044
    %v8177 = vunpack.c.l.b16 %v8045
    %v8178 = vunpack.c.l.b16 %v8046
    %v8179 = vunpack.c.l.b16 %v8047
    %v8180 = vunpack.c.l.b16 %v8048
    %v8181 = vunpack.c.l.b16 %v8049
    %v8182 = vunpack.c.l.b16 %v8050
    %v8183 = vunpack.c.l.b16 %v8051
    %v8184 = vunpack.c.l.b16 %v8052
    %v8185 = vunpack.c.l.b16 %v8053
    %v8186 = vunpack.c.l.b16 %v8054
    %v8187 = vunpack.c.l.b16 %v8055
    %v8188 = vunpack.c.l.b16 %v8056
    %v8189 = vunpack.c.l.b16 %v8057
    %v8190 = vunpack.c.l.b16 %v8058
    %v8191 = vunpack.c.l.b16 %v8059
    %v8192 = vunpack.c.l.b16 %v8060
    %v8193 = vunpack.c.l.b16 %v8061
    %v8194 = vunpack.c.l.b16 %v8062
    %v8195 = vunpack.c.l.b16 %v8063
    %v8196 = vunpack.c.l.b16 %v8064
    %v8197 = vunpack.c.l.b16 %v8065
    %v8198 = vunpack.c.l.b16 %v8066
    %v8199 = vunpack.c.l.b16 %v8067
    %v8200 = vunpack.c.l.b16 %v8068
    %v8201 = vunpack.c.l.b16 %v8069
    %v8202 = vunpack.c.l.b16 %v8070
    %v8203 = vunpack.c.l.b16 %v8071
    %v8204 = vunpack.c.l.b16 %v8072
    %v8205 = vunpack.c.l.b16 %v8073
    %v8206 = vunpack.c.l.b16 %v8074
    %v8207 = vunpack.c.l.b16 %v8075
    %v8208 = vunpack.c.l.b16 %v8076
    %v8209 = vunpack.c.l.b16 %v8077
    %v8210 = vunpack.c.l.b16 %v8078
    %v8211 = vunpack.c.l.b16 %v8079
    %v8212 = vunpack.c.l.b16 %v8080
    %v8213 = vunpack.c.l.b16 %v8081
    %v8214 = vunpack.c.l.b16 %v8082
    %v8215 = vunpack.c.l.b16 %v8083
    %v8216 = vunpack.c.l.b16 %v8084
    %v8217 = vunpack.c.l.b16 %v8085
    %v8218 = vunpack.c.l.b16 %v8086
    %v8219 = vunpack.c.l.b16 %v8087
    %v8220 = vunpack.c.l.b16 %v8088
    %v8221 = vunpack.c.l.b16 %v8089
    %v8222 = vunpack.c.l.b16 %v8090
    %v8223 = vunpack.c.l.b16 %v8091
    %v8224 = vunpack.c.l.b16 %v8092
    %v8225 = vunpack.c.l.b16 %v8093
    %v8226 = vunpack.c.l.b16 %v8094
    %v8227 = vunpack.c.l.b16 %v8095
    %v8228 = vunpack.c.l.b16 %v8096
    %v8229 = vunpack.c.l.b16 %v8097
    %v8230 = vunpack.c.l.b16 %v8098
    %v8231 = vunpack.c.l.b16 %v8099
    %v8232 = vunpack.c.l.b16 %v8100
    %v8233 = vpack.c.b16 %v8170, %v8169
    %v8234 = vpack.c.b16 %v8172, %v8171
    %v8235 = vpack.c.b16 %v8174, %v8173
    %v8236 = vpack.c.b16 %v8176, %v8175
    %v8237 = vpack.c.b16 %v8178, %v8177
    %v8238 = vpack.c.b16 %v8180, %v8179
    %v8239 = vpack.c.b16 %v8182, %v8181
    %v8240 = vpack.c.b16 %v8184, %v8183
    %v8241 = vpack.c.b16 %v8186, %v8185
    %v8242 = vpack.c.b16 %v8188, %v8187
    %v8243 = vpack.c.b16 %v8190, %v8189
    %v8244 = vpack.c.b16 %v8192, %v8191
    %v8245 = vpack.c.b16 %v8194, %v8193
    %v8246 = vpack.c.b16 %v8196, %v8195
    %v8247 = vpack.c.b16 %v8198, %v8197
    %v8248 = vpack.c.b16 %v8200, %v8199
    %v8249 = vpack.c.b16 %v8202, %v8201
    %v8250 = vpack.c.b16 %v8204, %v8203
    %v8251 = vpack.c.b16 %v8206, %v8205
    %v8252 = vpack.c.b16 %v8208, %v8207
    %v8253 = vpack.c.b16 %v8210, %v8209
    %v8254 = vpack.c.b16 %v8212, %v8211
    %v8255 = vpack.c.b16 %v8214, %v8213
    %v8256 = vpack.c.b16 %v8216, %v8215
    %v8257 = vpack.c.b16 %v8218, %v8217
    %v8258 = vpack.c.b16 %v8220, %v8219
    %v8259 = vpack.c.b16 %v8222, %v8221
    %v8260 = vpack.c.b16 %v8224, %v8223
    %v8261 = vpack.c.b16 %v8226, %v8225
    %v8262 = vpack.c.b16 %v8228, %v8227
    %v8263 = vpack.c.b16 %v8230, %v8229
    %v8264 = vpack.c.b16 %v8232, %v8231
    %8297 = vmatpush.bf16.msra.mxu0 %v8240
    %8298 = vmatpush.bf16.msra.mxu0 %v8239
    %8299 = vmatpush.bf16.msra.mxu0 %v8238
    %8300 = vmatpush.bf16.msra.mxu0 %v8237
    %8301 = vmatpush.bf16.msra.mxu0 %v8236
    %8302 = vmatpush.bf16.msra.mxu0 %v8235
    %8303 = vmatpush.bf16.msra.mxu0 %v8234
    %8304 = vmatpush.bf16.msra.mxu0 %v8233
    %8305 = vmatmul.bf16.gmra.mxu0 %v8030
    %v8306 = vpop.f32.mrf.mxu0
    %v8307 = vadd.f32 %v8103, %v8306
    %v8308 = vpop.f32.mrf.mxu0
    %8309 = vdwg.mxu0
    %8310 = vmatpush.bf16.msra.mxu0 %v8248
    %8311 = vmatpush.bf16.msra.mxu0 %v8247
    %8312 = vmatpush.bf16.msra.mxu0 %v8246
    %8313 = vmatpush.bf16.msra.mxu0 %v8245
    %8314 = vmatpush.bf16.msra.mxu0 %v8244
    %8315 = vmatpush.bf16.msra.mxu0 %v8243
    %8316 = vmatpush.bf16.msra.mxu0 %v8242
    %8317 = vmatpush.bf16.msra.mxu0 %v8241
    %8318 = vmatmul.bf16.gmra.mxu0 %v8031
    %v8319 = vpop.f32.mrf.mxu0
    %v8320 = vadd.f32 %v8307, %v8319
    %v8321 = vpop.f32.mrf.mxu0
    %8322 = vdwg.mxu0
    %8323 = vmatpush.bf16.msra.mxu0 %v8256
    %8324 = vmatpush.bf16.msra.mxu0 %v8255
    %8325 = vmatpush.bf16.msra.mxu0 %v8254
    %8326 = vmatpush.bf16.msra.mxu0 %v8253
    %8327 = vmatpush.bf16.msra.mxu0 %v8252
    %8328 = vmatpush.bf16.msra.mxu0 %v8251
    %8329 = vmatpush.bf16.msra.mxu0 %v8250
    %8330 = vmatpush.bf16.msra.mxu0 %v8249
    %8331 = vmatmul.bf16.gmra.mxu0 %v8032
    %v8332 = vpop.f32.mrf.mxu0
    %v8333 = vadd.f32 %v8320, %v8332
    %v8334 = vpop.f32.mrf.mxu0
    %8335 = vdwg.mxu0
    %8336 = vmatpush.bf16.msra.mxu0 %v8264
    %8337 = vmatpush.bf16.msra.mxu0 %v8263
    %8338 = vmatpush.bf16.msra.mxu0 %v8262
    %8339 = vmatpush.bf16.msra.mxu0 %v8261
    %8340 = vmatpush.bf16.msra.mxu0 %v8260
    %8341 = vmatpush.bf16.msra.mxu0 %v8259
    %8342 = vmatpush.bf16.msra.mxu0 %v8258
    %8343 = vmatpush.bf16.msra.mxu0 %v8257
    %8344 = vmatmul.bf16.gmra.mxu0 %v8033
    %v8345 = vpop.f32.mrf.mxu0
    %v8346 = vadd.f32 %v8333, %v8345
    %v8347 = vpop.f32.mrf.mxu0
    %8348 = vdwg.mxu0
    %v8349 = vmax.f32 %v8346, 0.0
    %8350 = vst [vmem:[#allocation23] sm:$0xff] %v8349
    // Predicated region
    $region102: #{sdgcn_forward.1} parent=1 // pred_check
      _
    $region103: #{sdgcn_forward.1} parent=1 // pred_check_branch
      %8352 = sbr.rel (0) target = $region105
    $region104: #{sdgcn_forward.1} parent=1 // pred_region
      %8354 = vsyncadd [#allocation11], 0
      %s8356 = sshll.u32 [#allocation23], 4
      %s8357 = int_to_ptr.vmem [resolvable:$true] %s8356
      %s8358 = sshll.u32 %s17, 4
      %s8359 = int_to_ptr.hbm [resolvable:$true] %s8358
      %8361 = dma.vmem_to_hbm [thread:$0]  %s8357, 128, %s8359, [#allocation11]
    $region105: #{sdgcn_forward.1} parent=1 // pred_fallthru
      _
    // Predicated region
    $region106: #{sdgcn_forward.1} parent=1 // pred_check
      _
    $region107: #{sdgcn_forward.1} parent=1 // pred_check_branch
      %8363 = sbr.rel (0) target = $region109
    $region108: #{sdgcn_forward.1} parent=1 // pred_region
      %8365 = dma.done [#allocation11], 128
    $region109: #{sdgcn_forward.1} parent=1 // pred_fallthru
      _
    %8366 = vsyncpa [#allocation10], 1
    %8367 = vsyncpa [#allocation15], 1
    %8368 = vsyncpa [#allocation18], 1
    %8369 = vsyncpa [#allocation21], 1
    %8370 = vsyncpa [#allocation11], 1
    %8371 = vsyncpa [#allocation12], 1
  %8372 = vsyncmov [#allocation8]
  %s8373 = vpop.sfrf %8372
  %p8374 = scmp.eq.s32.totalorder %s8373, 0
  %p8375 = pneg %p8374
  %8377 = shalt.err (%p8375)
  %s8378 = scalar_lea.sflag [#allocation8], 1
  %8379 = vsyncmov %s8378
  %s8380 = vpop.sfrf %8379
  %p8381 = scmp.eq.s32.totalorder %s8380, 0
  %p8382 = pneg %p8381
  %8384 = shalt.err (%p8382)
  %s8385 = scalar_lea.sflag [#allocation8], 2
  %8386 = vsyncmov %s8385
  %s8387 = vpop.sfrf %8386
  %p8388 = scmp.eq.s32.totalorder %s8387, 0
  %p8389 = pneg %p8388
  %8391 = shalt.err (%p8389)
  %s8392 = scalar_lea.sflag [#allocation8], 3
  %8393 = vsyncmov %s8392
  %s8394 = vpop.sfrf %8393
  %p8395 = scmp.eq.s32.totalorder %s8394, 0
  %p8396 = pneg %p8395
  %8398 = shalt.err (%p8396)
  %s8399 = scalar_lea.sflag [#allocation8], 4
  %8400 = vsyncmov %s8399
  %s8401 = vpop.sfrf %8400
  %p8402 = scmp.eq.s32.totalorder %s8401, 0
  %p8403 = pneg %p8402
  %8405 = shalt.err (%p8403)
  %s8406 = scalar_lea.sflag [#allocation8], 5
  %8407 = vsyncmov %s8406
  %s8408 = vpop.sfrf %8407
  %p8409 = scmp.eq.s32.totalorder %s8408, 0
  %p8410 = pneg %p8409
  %8412 = shalt.err (%p8410)

</llo_original>
